<compile_context>
chip_gen: v6e
topology: v6e:2x2x1
jax: 0.10.0
libtpu: 0.0.40
codegen_flags: <defaults>
</compile_context>

<pallas_src>
import functools

import jax
import jax.numpy as jnp
from jax.experimental import pallas as pl
from jax.experimental.pallas import tpu as pltpu


FEAT_DIM = 1280      # EfficientNet-B0 classifier in_features
STEM_COUT = 32       # stem conv output channels
K_PAD = 32           # im2col K = 3*3*3 = 27, zero-padded to 32


def _round_up(x, m):
    return pl.cdiv(x, m) * m


# ----------------------------------------------------------------------------
# Kernel 1: fused backbone + global average pool
#   patches [tm, 32] -> stem matmul + SiLU -> [tm, 32]
#                    -> head 1x1 matmul + SiLU -> [tm, 1280]
#                    -> masked per-batch row-sum accumulated in resident output
# ----------------------------------------------------------------------------
def _backbone_gap_kernel(x_ref, ws_ref, bs_ref, wh_ref, bh_ref, o_ref,
                         *, hw, tm, batch, mask_rows):
    b = pl.program_id(0)
    i = pl.program_id(1)

    @pl.when((b == 0) & (i == 0))
    def _():
        o_ref[...] = jnp.zeros_like(o_ref)

    # stem 3x3/s2 conv as matmul on im2col patches (bf16 MXU, f32 accumulate)
    h = jnp.dot(x_ref[...], ws_ref[...], preferred_element_type=jnp.float32)
    h = h + bs_ref[...]
    h = h * jax.nn.sigmoid(h)                                   # SiLU in f32

    # head 1x1 conv -> 1280 features + SiLU (weights resident, 80 KiB bf16)
    f = jnp.dot(h.astype(jnp.bfloat16), wh_ref[...],
                preferred_element_type=jnp.float32)
    f = f + bh_ref[...]
    f = f * jax.nn.sigmoid(f)                                   # [tm, 1280] f32

    if mask_rows:
        # zero out zero-padded patch rows (only the last HW tile has them)
        row = i * tm + jax.lax.broadcasted_iota(jnp.int32, (tm, 1), 0)
        f = jnp.where(row < hw, f, 0.0)

    # global-average-pool accumulation, scattered to this tile's batch row
    tile_sum = jnp.sum(f, axis=0, keepdims=True)                # [1, 1280]
    onehot = (jax.lax.broadcasted_iota(jnp.int32, (batch, 1), 0) == b
              ).astype(jnp.float32)                             # [B, 1]
    o_ref[...] += onehot * tile_sum

    @pl.when((b == pl.num_programs(0) - 1) & (i == pl.num_programs(1) - 1))
    def _():
        o_ref[...] *= (1.0 / hw)     # finish the mean


def backbone_gap(patches, w_stem, b_stem, w_head, b_head, *, tm_max=512):
    """patches: [B, HW, K_PAD] bf16 -> pooled features [B, FEAT_DIM] f32."""
    B, HW, K = patches.shape
    assert K == K_PAD
    tm = min(tm_max, _round_up(HW, 8))           # big tiles; v7x-safe at <=512
    HW_pad = _round_up(HW, tm)
    if HW_pad != HW:
        patches = jnp.pad(patches, ((0, 0), (0, HW_pad - HW), (0, 0)))
    n_i = HW_pad // tm

    kernel = functools.partial(_backbone_gap_kernel, hw=HW, tm=tm, batch=B,
                               mask_rows=(HW_pad != HW))
    return pl.pallas_call(
        kernel,
        out_shape=jax.ShapeDtypeStruct((B, FEAT_DIM), jnp.float32),
        grid=(B, n_i),
        in_specs=[
            pl.BlockSpec((None, tm, K_PAD), lambda b, i: (b, i, 0)),
            pl.BlockSpec((K_PAD, STEM_COUT), lambda b, i: (0, 0)),
            pl.BlockSpec((1, STEM_COUT), lambda b, i: (0, 0)),
            pl.BlockSpec((STEM_COUT, FEAT_DIM), lambda b, i: (0, 0)),
            pl.BlockSpec((1, FEAT_DIM), lambda b, i: (0, 0)),
        ],
        out_specs=pl.BlockSpec((B, FEAT_DIM), lambda b, i: (0, 0)),
        compiler_params=pltpu.CompilerParams(
            dimension_semantics=("arbitrary", "arbitrary"),
            vmem_limit_bytes=32 * 1024 * 1024,
        ),
    )(patches, w_stem, b_stem.reshape(1, STEM_COUT),
      w_head, b_head.reshape(1, FEAT_DIM))


# ----------------------------------------------------------------------------
# Kernel 2: classifier head on pooled features
#   (Dropout -> Linear(1280,512) -> ReLU -> Dropout -> Linear(512,53))
# ----------------------------------------------------------------------------
def _head_mlp_kernel(p_ref, w1_ref, b1_ref, w2_ref, b2_ref, o_ref):
    h = jnp.dot(p_ref[...], w1_ref[...], preferred_element_type=jnp.float32)
    h = jnp.maximum(h + b1_ref[...], 0.0)                       # ReLU
    logits = jnp.dot(h.astype(jnp.bfloat16), w2_ref[...],
                     preferred_element_type=jnp.float32) + b2_ref[...]
    o_ref[...] = logits


def mlp_head(pooled, w1, b1, w2, b2):
    """pooled: [B, C] f32 -> logits [B, num_classes] f32."""
    B, C = pooled.shape
    H1 = w1.shape[1]
    NC = w2.shape[1]
    B_pad = _round_up(B, 8)          # fill MXU sublanes
    NC_pad = _round_up(NC, 128)      # lane-dense output, unmasked stores
    pooled_p = jnp.pad(pooled, ((0, B_pad - B), (0, 0))).astype(jnp.bfloat16)
    w2_p = jnp.pad(w2, ((0, 0), (0, NC_pad - NC))).astype(jnp.bfloat16)
    b2_p = jnp.pad(b2, (0, NC_pad - NC))
    out = pl.pallas_call(
        _head_mlp_kernel,
        out_shape=jax.ShapeDtypeStruct((B_pad, NC_pad), jnp.float32),
        grid=(1,),
        in_specs=[
            pl.BlockSpec((B_pad, C), lambda i: (0, 0)),
            pl.BlockSpec((C, H1), lambda i: (0, 0)),
            pl.BlockSpec((1, H1), lambda i: (0, 0)),
            pl.BlockSpec((H1, NC_pad), lambda i: (0, 0)),
            pl.BlockSpec((1, NC_pad), lambda i: (0, 0)),
        ],
        out_specs=pl.BlockSpec((B_pad, NC_pad), lambda i: (0, 0)),
        compiler_params=pltpu.CompilerParams(
            dimension_semantics=("arbitrary",)),
    )(pooled_p, w1.astype(jnp.bfloat16), b1.reshape(1, H1),
      w2_p, b2_p.reshape(1, NC_pad))
    return out[:B, :NC]


# ----------------------------------------------------------------------------
# JAX glue: im2col for the 3x3 / stride-2 / pad-1 stem conv (K padded 27 -> 32)
# ----------------------------------------------------------------------------
def im2col_3x3_s2(x_nhwc):
    B, H, W, C = x_nhwc.shape
    Ho, Wo = (H + 1) // 2, (W + 1) // 2           # PyTorch conv arithmetic
    xp = jnp.pad(x_nhwc, ((0, 0), (1, 1), (1, 1), (0, 0)))
    cols = []
    for dy in range(3):
        for dx in range(3):
            cols.append(xp[:, dy:dy + 2 * Ho - 1:2, dx:dx + 2 * Wo - 1:2, :])
    patches = jnp.concatenate(cols, axis=-1)      # [B, Ho, Wo, 9*C] (ky,kx major)
    patches = patches.reshape(B, Ho * Wo, 9 * C)
    patches = jnp.pad(patches, ((0, 0), (0, 0), (0, K_PAD - 9 * C)))
    return patches, (B, Ho, Wo)


# ----------------------------------------------------------------------------
# Parameter init (deterministic, synthetic — no checkpoint load)
# ----------------------------------------------------------------------------
def init_params(key, num_classes=53, feat_dim=FEAT_DIM, hidden=512,
                stem_cin=3, stem_cout=STEM_COUT):
    ks = jax.random.split(key, 4)

    def he(k, shape, fan_in):
        return jax.random.normal(k, shape, jnp.float32) * (2.0 / fan_in) ** 0.5

    return {
        # stem conv weight laid out (ky, kx, cin, cout) to match im2col ordering
        "w_stem": he(ks[0], (3, 3, stem_cin, stem_cout),
                     9 * stem_cin).reshape(9 * stem_cin, stem_cout),
        "b_stem": jnp.zeros((stem_cout,), jnp.float32),
        "w_head_conv": he(ks[1], (stem_cout, feat_dim), stem_cout),
        "b_head_conv": jnp.zeros((feat_dim,), jnp.float32),
        "w1": he(ks[2], (feat_dim, hidden), feat_dim),
        "b1": jnp.zeros((hidden,), jnp.float32),
        "w2": he(ks[3], (hidden, num_classes), hidden),
        "b2": jnp.zeros((num_classes,), jnp.float32),
    }


# ----------------------------------------------------------------------------
# Forward pass (mirrors CardClassifier.forward at inference time)
# ----------------------------------------------------------------------------
@jax.jit
def card_classifier_forward(x_nchw, params):
    x = jnp.transpose(x_nchw, (0, 2, 3, 1))                 # NCHW -> NHWC
    patches, _ = im2col_3x3_s2(x)                           # [B, HW, 32]
    patches = patches.astype(jnp.bfloat16)                  # halve HBM traffic

    w_stem = jnp.pad(params["w_stem"],
                     ((0, K_PAD - params["w_stem"].shape[0]), (0, 0)))
    # TODO(synk): EfficientNet-B0 MBConv stack omitted (pretrained weights unavailable).
    pooled = backbone_gap(patches,
                          w_stem.astype(jnp.bfloat16), params["b_stem"],
                          params["w_head_conv"].astype(jnp.bfloat16),
                          params["b_head_conv"])            # [B, 1280] f32
    logits = mlp_head(pooled, params["w1"], params["b1"],
                      params["w2"], params["b2"])           # [B, 53]
    return logits


if __name__ == "__main__":
    key = jax.random.PRNGKey(0)
    k_x, k_p = jax.random.split(key)
    # small image consistent with the NCHW conv-net forward
    x = jax.random.normal(k_x, (2, 3, 32, 32), jnp.float32)
    params = init_params(k_p, num_classes=53)

    logits = card_classifier_forward(x, params)
    logits = jax.block_until_ready(logits)
    assert logits.shape == (2, 53) and logits.dtype == jnp.float32
    assert bool(jnp.all(jnp.isfinite(logits)))
    print("KERNEL_OK")
</pallas_src>

<mosaic_0001>
module attributes {stable_mosaic.version = 11 : i64} {
  func.func @_backbone_gap_kernel(%arg0: i32, %arg1: i32, %arg2: memref<1x256x32xbf16, #tpu.memory_space<vmem>>, %arg3: memref<32x32xbf16, #tpu.memory_space<vmem>>, %arg4: memref<1x32xf32, #tpu.memory_space<vmem>>, %arg5: memref<32x1280xbf16, #tpu.memory_space<vmem>>, %arg6: memref<1x1280xf32, #tpu.memory_space<vmem>>, %arg7: memref<2x1280xf32, #tpu.memory_space<vmem>>) attributes {dimension_semantics = [#tpu.dimension_semantics<arbitrary>, #tpu.dimension_semantics<arbitrary>], iteration_bounds = array<i64: 2, 1>, scalar_prefetch = 0 : i64, scratch_operands = 0 : i64, tpu.core_type = #tpu.core_type<tc>, window_params = [{transform_indices = @transform_0, window_bounds = array<i64: 1, 256, 32>}, {pipeline_mode = #tpu.pipeline_mode<synchronous>, transform_indices = @transform_1, window_bounds = array<i64: 32, 32>}, {pipeline_mode = #tpu.pipeline_mode<synchronous>, transform_indices = @transform_2, window_bounds = array<i64: 1, 32>}, {pipeline_mode = #tpu.pipeline_mode<synchronous>, transform_indices = @transform_3, window_bounds = array<i64: 32, 1280>}, {pipeline_mode = #tpu.pipeline_mode<synchronous>, transform_indices = @transform_4, window_bounds = array<i64: 1, 1280>}, {pipeline_mode = #tpu.pipeline_mode<synchronous>, transform_indices = @transform_5, window_bounds = array<i64: 2, 1280>}]} {
    %c0_i32 = arith.constant 0 : i32
    %0 = arith.cmpi eq, %arg0, %c0_i32 : i32
    %c0_i32_0 = arith.constant 0 : i32
    %1 = arith.cmpi eq, %arg1, %c0_i32_0 : i32
    %2 = arith.andi %0, %1 : i1
    %3 = arith.extui %2 : i1 to i32
    %c0_i32_1 = arith.constant 0 : i32
    %4 = arith.cmpi ne, %3, %c0_i32_1 : i32
    scf.if %4 {
      %cst_22 = arith.constant 0.000000e+00 : f32
      %48 = vector.broadcast %cst_22 : f32 to vector<2x1280xf32>
      %c0_23 = arith.constant 0 : index
      %c0_24 = arith.constant 0 : index
      %49 = vector.load %arg7[%c0_23, %c0_24] : memref<2x1280xf32, #tpu.memory_space<vmem>>, vector<2x1280xf32>
      tpu.vector_store %arg7[%c0_23, %c0_24], %48 {strides = array<i32>} : memref<2x1280xf32, #tpu.memory_space<vmem>>, vector<2x1280xf32>,
    } else {
    }
    %c0 = arith.constant 0 : index
    %c0_2 = arith.constant 0 : index
    %c0_3 = arith.constant 0 : index
    %5 = vector.load %arg2[%c0, %c0_2, %c0_3] : memref<1x256x32xbf16, #tpu.memory_space<vmem>>, vector<1x256x32xbf16>
    %6 = vector.shape_cast %5 : vector<1x256x32xbf16> to vector<256x32xbf16>
    %c0_4 = arith.constant 0 : index
    %c0_5 = arith.constant 0 : index
    %7 = vector.load %arg3[%c0_4, %c0_5] : memref<32x32xbf16, #tpu.memory_space<vmem>>, vector<32x32xbf16>
    %cst = arith.constant dense<0.000000e+00> : vector<256x32xf32>
    %8 = tpu.matmul %6, %7, %cst {dimension_numbers = #tpu.dot_dimension_numbers<[1], [0], [0], [1], [0, 0, 1, 1], [], []>} : vector<256x32xbf16>, vector<32x32xbf16>, vector<256x32xf32> -> vector<256x32xf32>
    %c0_6 = arith.constant 0 : index
    %c0_7 = arith.constant 0 : index
    %9 = vector.load %arg4[%c0_6, %c0_7] : memref<1x32xf32, #tpu.memory_space<vmem>>, vector<1x32xf32>
    %10 = vector.broadcast %9 : vector<1x32xf32> to vector<256x32xf32>
    %11 = arith.addf %8, %10 : vector<256x32xf32>
    %12 = arith.negf %11 : vector<256x32xf32>
    %13 = math.exp %12 : vector<256x32xf32>
    %cst_8 = arith.constant 1.000000e+00 : f32
    %14 = vector.broadcast %cst_8 : f32 to vector<256x32xf32>
    %15 = arith.addf %14, %13 : vector<256x32xf32>
    %16 = arith.divf %14, %15 : vector<256x32xf32>
    %17 = arith.mulf %11, %16 : vector<256x32xf32>
    %18 = arith.truncf %17 : vector<256x32xf32> to vector<256x32xbf16>
    %c0_9 = arith.constant 0 : index
    %c0_10 = arith.constant 0 : index
    %19 = vector.load %arg5[%c0_9, %c0_10] : memref<32x1280xbf16, #tpu.memory_space<vmem>>, vector<32x1280xbf16>
    %cst_11 = arith.constant dense<0.000000e+00> : vector<256x1280xf32>
    %20 = tpu.matmul %18, %19, %cst_11 {dimension_numbers = #tpu.dot_dimension_numbers<[1], [0], [0], [1], [0, 0, 1, 1], [], []>} : vector<256x32xbf16>, vector<32x1280xbf16>, vector<256x1280xf32> -> vector<256x1280xf32>
    %c0_12 = arith.constant 0 : index
    %c0_13 = arith.constant 0 : index
    %21 = vector.load %arg6[%c0_12, %c0_13] : memref<1x1280xf32, #tpu.memory_space<vmem>>, vector<1x1280xf32>
    %22 = vector.broadcast %21 : vector<1x1280xf32> to vector<256x1280xf32>
    %23 = arith.addf %20, %22 : vector<256x1280xf32>
    %24 = arith.negf %23 : vector<256x1280xf32>
    %25 = math.exp %24 : vector<256x1280xf32>
    %cst_14 = arith.constant 1.000000e+00 : f32
    %26 = vector.broadcast %cst_14 : f32 to vector<256x1280xf32>
    %27 = arith.addf %26, %25 : vector<256x1280xf32>
    %28 = arith.divf %26, %27 : vector<256x1280xf32>
    %29 = arith.mulf %23, %28 : vector<256x1280xf32>
    %cst_15 = arith.constant dense<0.000000e+00> : vector<1280xf32>
    %30 = vector.multi_reduction <add>, %29, %cst_15 [0] : vector<256x1280xf32> to vector<1280xf32>
    %31 = vector.shape_cast %30 : vector<1280xf32> to vector<1x1280xf32>
    %32 = tpu.iota {dimensions = array<i32: 0>} : vector<2x1xi32>
    %33 = vector.broadcast %arg0 : i32 to vector<2x1xi32>
    %34 = arith.cmpi eq, %32, %33 : vector<2x1xi32>
    %35 = arith.extui %34 : vector<2x1xi1> to vector<2x1xi32>
    %36 = arith.sitofp %35 : vector<2x1xi32> to vector<2x1xf32>
    %c0_16 = arith.constant 0 : index
    %c0_17 = arith.constant 0 : index
    %37 = vector.load %arg7[%c0_16, %c0_17] : memref<2x1280xf32, #tpu.memory_space<vmem>>, vector<2x1280xf32>
    %38 = vector.broadcast %36 : vector<2x1xf32> to vector<2x1280xf32>
    %39 = vector.broadcast %31 : vector<1x1280xf32> to vector<2x1280xf32>
    %40 = arith.mulf %38, %39 : vector<2x1280xf32>
    %41 = arith.addf %37, %40 : vector<2x1280xf32>
    %c0_18 = arith.constant 0 : index
    %c0_19 = arith.constant 0 : index
    %42 = vector.load %arg7[%c0_18, %c0_19] : memref<2x1280xf32, #tpu.memory_space<vmem>>, vector<2x1280xf32>
    tpu.vector_store %arg7[%c0_18, %c0_19], %41 {strides = array<i32>} : memref<2x1280xf32, #tpu.memory_space<vmem>>, vector<2x1280xf32>,
    %c1_i32 = arith.constant 1 : i32
    %43 = arith.cmpi eq, %arg0, %c1_i32 : i32
    %c0_i32_20 = arith.constant 0 : i32
    %44 = arith.cmpi eq, %arg1, %c0_i32_20 : i32
    %45 = arith.andi %43, %44 : i1
    %46 = arith.extui %45 : i1 to i32
    %c0_i32_21 = arith.constant 0 : i32
    %47 = arith.cmpi ne, %46, %c0_i32_21 : i32
    scf.if %47 {
      %c0_22 = arith.constant 0 : index
      %c0_23 = arith.constant 0 : index
      %48 = vector.load %arg7[%c0_22, %c0_23] : memref<2x1280xf32, #tpu.memory_space<vmem>>, vector<2x1280xf32>
      %cst_24 = arith.constant 3.906250e-03 : f32
      %49 = vector.broadcast %cst_24 : f32 to vector<2x1280xf32>
      %50 = arith.mulf %48, %49 : vector<2x1280xf32>
      %c0_25 = arith.constant 0 : index
      %c0_26 = arith.constant 0 : index
      %51 = vector.load %arg7[%c0_25, %c0_26] : memref<2x1280xf32, #tpu.memory_space<vmem>>, vector<2x1280xf32>
      tpu.vector_store %arg7[%c0_25, %c0_26], %50 {strides = array<i32>} : memref<2x1280xf32, #tpu.memory_space<vmem>>, vector<2x1280xf32>,
    } else {
    }
    return
  }
  func.func @transform_0(%arg0: i32, %arg1: i32) -> (i32, i32, i32) {
    %c0_i32 = arith.constant 0 : i32
    %c0_i32_0 = arith.constant 0 : i32
    return %arg0, %arg1, %c0_i32 : i32, i32, i32
  }
  func.func @transform_1(%arg0: i32, %arg1: i32) -> (i32, i32) {
    %c0_i32 = arith.constant 0 : i32
    %c0_i32_0 = arith.constant 0 : i32
    %c0_i32_1 = arith.constant 0 : i32
    return %c0_i32, %c0_i32_0 : i32, i32
  }
  func.func @transform_2(%arg0: i32, %arg1: i32) -> (i32, i32) {
    %c0_i32 = arith.constant 0 : i32
    %c0_i32_0 = arith.constant 0 : i32
    %c0_i32_1 = arith.constant 0 : i32
    return %c0_i32, %c0_i32_0 : i32, i32
  }
  func.func @transform_3(%arg0: i32, %arg1: i32) -> (i32, i32) {
    %c0_i32 = arith.constant 0 : i32
    %c0_i32_0 = arith.constant 0 : i32
    %c0_i32_1 = arith.constant 0 : i32
    return %c0_i32, %c0_i32_0 : i32, i32
  }
  func.func @transform_4(%arg0: i32, %arg1: i32) -> (i32, i32) {
    %c0_i32 = arith.constant 0 : i32
    %c0_i32_0 = arith.constant 0 : i32
    %c0_i32_1 = arith.constant 0 : i32
    return %c0_i32, %c0_i32_0 : i32, i32
  }
  func.func @transform_5(%arg0: i32, %arg1: i32) -> (i32, i32) {
    %c0_i32 = arith.constant 0 : i32
    %c0_i32_0 = arith.constant 0 : i32
    %c0_i32_1 = arith.constant 0 : i32
    return %c0_i32, %c0_i32_0 : i32, i32
  }
}

module attributes {stable_mosaic.version = 11 : i64} {
  func.func @_head_mlp_kernel(%arg0: i32, %arg1: memref<8x1280xbf16, #tpu.memory_space<vmem>>, %arg2: memref<1280x512xbf16, #tpu.memory_space<vmem>>, %arg3: memref<1x512xf32, #tpu.memory_space<vmem>>, %arg4: memref<512x128xbf16, #tpu.memory_space<vmem>>, %arg5: memref<1x128xf32, #tpu.memory_space<vmem>>, %arg6: memref<8x128xf32, #tpu.memory_space<vmem>>) attributes {dimension_semantics = [#tpu.dimension_semantics<arbitrary>], iteration_bounds = array<i64: 1>, scalar_prefetch = 0 : i64, scratch_operands = 0 : i64, tpu.core_type = #tpu.core_type<tc>, window_params = [{pipeline_mode = #tpu.pipeline_mode<synchronous>, transform_indices = @transform_0, window_bounds = array<i64: 8, 1280>}, {pipeline_mode = #tpu.pipeline_mode<synchronous>, transform_indices = @transform_1, window_bounds = array<i64: 1280, 512>}, {pipeline_mode = #tpu.pipeline_mode<synchronous>, transform_indices = @transform_2, window_bounds = array<i64: 1, 512>}, {pipeline_mode = #tpu.pipeline_mode<synchronous>, transform_indices = @transform_3, window_bounds = array<i64: 512, 128>}, {pipeline_mode = #tpu.pipeline_mode<synchronous>, transform_indices = @transform_4, window_bounds = array<i64: 1, 128>}, {pipeline_mode = #tpu.pipeline_mode<synchronous>, transform_indices = @transform_5, window_bounds = array<i64: 8, 128>}]} {
    %c0 = arith.constant 0 : index
    %c0_0 = arith.constant 0 : index
    %0 = vector.load %arg1[%c0, %c0_0] : memref<8x1280xbf16, #tpu.memory_space<vmem>>, vector<8x1280xbf16>
    %c0_1 = arith.constant 0 : index
    %c0_2 = arith.constant 0 : index
    %1 = vector.load %arg2[%c0_1, %c0_2] : memref<1280x512xbf16, #tpu.memory_space<vmem>>, vector<1280x512xbf16>
    %cst = arith.constant dense<0.000000e+00> : vector<8x512xf32>
    %2 = tpu.matmul %0, %1, %cst {dimension_numbers = #tpu.dot_dimension_numbers<[1], [0], [0], [1], [0, 0, 1, 1], [], []>} : vector<8x1280xbf16>, vector<1280x512xbf16>, vector<8x512xf32> -> vector<8x512xf32>
    %c0_3 = arith.constant 0 : index
    %c0_4 = arith.constant 0 : index
    %3 = vector.load %arg3[%c0_3, %c0_4] : memref<1x512xf32, #tpu.memory_space<vmem>>, vector<1x512xf32>
    %4 = vector.broadcast %3 : vector<1x512xf32> to vector<8x512xf32>
    %5 = arith.addf %2, %4 : vector<8x512xf32>
    %cst_5 = arith.constant 0.000000e+00 : f32
    %6 = vector.broadcast %cst_5 : f32 to vector<8x512xf32>
    %7 = arith.maximumf %5, %6 : vector<8x512xf32>
    %8 = arith.truncf %7 : vector<8x512xf32> to vector<8x512xbf16>
    %c0_6 = arith.constant 0 : index
    %c0_7 = arith.constant 0 : index
    %9 = vector.load %arg4[%c0_6, %c0_7] : memref<512x128xbf16, #tpu.memory_space<vmem>>, vector<512x128xbf16>
    %cst_8 = arith.constant dense<0.000000e+00> : vector<8x128xf32>
    %10 = tpu.matmul %8, %9, %cst_8 {dimension_numbers = #tpu.dot_dimension_numbers<[1], [0], [0], [1], [0, 0, 1, 1], [], []>} : vector<8x512xbf16>, vector<512x128xbf16>, vector<8x128xf32> -> vector<8x128xf32>
    %c0_9 = arith.constant 0 : index
    %c0_10 = arith.constant 0 : index
    %11 = vector.load %arg5[%c0_9, %c0_10] : memref<1x128xf32, #tpu.memory_space<vmem>>, vector<1x128xf32>
    %12 = vector.broadcast %11 : vector<1x128xf32> to vector<8x128xf32>
    %13 = arith.addf %10, %12 : vector<8x128xf32>
    %c0_11 = arith.constant 0 : index
    %c0_12 = arith.constant 0 : index
    %14 = vector.load %arg6[%c0_11, %c0_12] : memref<8x128xf32, #tpu.memory_space<vmem>>, vector<8x128xf32>
    tpu.vector_store %arg6[%c0_11, %c0_12], %13 {strides = array<i32>} : memref<8x128xf32, #tpu.memory_space<vmem>>, vector<8x128xf32>,
    return
  }
  func.func @transform_0(%arg0: i32) -> (i32, i32) {
    %c0_i32 = arith.constant 0 : i32
    %c0_i32_0 = arith.constant 0 : i32
    %c0_i32_1 = arith.constant 0 : i32
    return %c0_i32, %c0_i32_0 : i32, i32
  }
  func.func @transform_1(%arg0: i32) -> (i32, i32) {
    %c0_i32 = arith.constant 0 : i32
    %c0_i32_0 = arith.constant 0 : i32
    %c0_i32_1 = arith.constant 0 : i32
    return %c0_i32, %c0_i32_0 : i32, i32
  }
  func.func @transform_2(%arg0: i32) -> (i32, i32) {
    %c0_i32 = arith.constant 0 : i32
    %c0_i32_0 = arith.constant 0 : i32
    %c0_i32_1 = arith.constant 0 : i32
    return %c0_i32, %c0_i32_0 : i32, i32
  }
  func.func @transform_3(%arg0: i32) -> (i32, i32) {
    %c0_i32 = arith.constant 0 : i32
    %c0_i32_0 = arith.constant 0 : i32
    %c0_i32_1 = arith.constant 0 : i32
    return %c0_i32, %c0_i32_0 : i32, i32
  }
  func.func @transform_4(%arg0: i32) -> (i32, i32) {
    %c0_i32 = arith.constant 0 : i32
    %c0_i32_0 = arith.constant 0 : i32
    %c0_i32_1 = arith.constant 0 : i32
    return %c0_i32, %c0_i32_0 : i32, i32
  }
  func.func @transform_5(%arg0: i32) -> (i32, i32) {
    %c0_i32 = arith.constant 0 : i32
    %c0_i32_0 = arith.constant 0 : i32
    %c0_i32_1 = arith.constant 0 : i32
    return %c0_i32, %c0_i32_0 : i32, i32
  }
}

</mosaic_0001>

<llo_original>
// kernel: card_classifier_forward.2
$region0: #{card_classifier_forward.2}
  #allocation0 [shape = 'u32[]', space=smem, size = 0x4, offset = 0x4, fixed_abs, tag = 'smem constant byte address 0x4 - core index']
  #allocation1 [shape = 'u32[144,128]{1,0:T(1,128)}', space=vmem, size = 0x12000, scoped, tag = 'internal scratch']
  %s0 = inlined_call_operand.vmem [shape: bf16[2,256,32], index: 0, kind: input, shape index: {}]
  %s1 = inlined_call_operand.vmem [shape: bf16[32,32], index: 1, kind: input, shape index: {}]
  %s2 = inlined_call_operand.hbm [shape: f32[1,32], index: 2, kind: input, shape index: {}]
  %s3 = inlined_call_operand.vmem [shape: bf16[32,1280], index: 3, kind: input, shape index: {}]
  %s4 = inlined_call_operand.vmem [shape: f32[1,1280], index: 4, kind: input, shape index: {}]
  %s5 = inlined_call_operand.vmem [shape: f32[2,1280], index: 5, kind: output, shape index: {}]
  %s6 = sld [smem:[#allocation0]]
  $region65: #{card_classifier_forward.2} parent=0
    _
  %s8 = ssub.s32 1, %s6
  %s9 = scalar_select 0, %s8, %s6
  $region1: #{card_classifier_forward.2} parent=0
    #allocation2 [shape = 'u8[512]{0}', space=vmem, size = 0x400, scoped, tag = 'input window, operand 2, single buffered']
    #allocation3 [shape = 's32[2]{0}', space=sflag, size = 0x8, scoped, tag = 'scoped memory for card_classifier_forward.2']
    %10 = vsyncpa [#allocation3], 0
    loop: start=0, step=1, limit=4
    $region2: #{card_classifier_forward.2} parent=1 // loop_pre_header
      _
    $region3: #{card_classifier_forward.2} parent=1 // loop_header
      %s12 = sphi 0, %s16
      %p13 = scmp.ge.s32.totalorder %s12, 4
      %s19 = sphi 0, %s31
      %s20 = sphi 0, %s27
      %s21 = sphi 0, %s19
      %s22 = sphi 0, %s20
      %s23 = sphi 0, %s21
      %s24 = sphi 0, %s22
      %s36 = sphi 0, %s38
      %s39 = sphi 0, %s36
      %s40 = sphi 0, %s39
      %s56 = sphi 0, %s40
      %s60 = sphi 0, %s60
      %s62 = sphi 0, %s60
      %s63 = sphi 0, %s62
      %s77 = sphi 0, %s63
      %s81 = sphi 0, %s81
      %s83 = sphi 0, %s81
      %s84 = sphi 0, %s83
      %s98 = sphi 0, %s84
      %s102 = sphi 0, %s102
      %s104 = sphi 0, %s102
      %s105 = sphi 0, %s104
      %s119 = sphi 0, %s105
      %s123 = sphi 0, %s123
      %s125 = sphi 0, %s123
      %s126 = sphi 0, %s125
      %s140 = sphi 0, %s126
      %s144 = sphi 0, %s144
      %s146 = sphi 0, %s144
      %s147 = sphi 0, %s146
      %s161 = sphi 0, %s147
    $region4: #{card_classifier_forward.2} parent=1 // loop_header_branch
      %15 = sbr.rel (%p13) target = $region8
    $region5: #{card_classifier_forward.2} parent=1 // loop_body
      %s17 = ssub.s32 %s12, 1
      %s18 = ssub.s32 %s12, 2
      %s25 = sadd.s32 1, %s20
      %p26 = scmp.ge.s32.totalorder %s25, 1
      %s27 = scalar_select %p26, 0, %s25
      %s28 = sadd.s32 1, %s19
      %s29 = scalar_select %p26, %s28, %s19
      %p30 = scmp.ge.s32.totalorder %s29, 2
      %s31 = scalar_select %p30, 0, %s29
      %s32 = ssub.s32 %s19, %s31
      %s33 = ssub.s32 %s20, %s27
      %s34 = sor.u32 %s32, %s33
      %p35 = scmp.eq.s32.totalorder %s34, 0
      %s37 = sadd.s32 %s36, 1
      %s38 = scalar_select %p35, %s36, %s37
      %p41 = pneg %p35
      %p42 = scmp.eq.s32.totalorder %s12, 1
      %p43 = por %p41, %p42
      %p44 = scmp.ne.s32.totalorder %s36, %s39
      %p45 = scmp.eq.s32.totalorder %s12, 0
      %p46 = por %p44, %p45
      %p47 = scmp.ne.s32.totalorder %s36, %s39
      %p48 = scmp.eq.s32.totalorder %s17, 1
      %p49 = por %p47, %p48
      %p50 = scmp.ne.s32.totalorder %s39, %s40
      %p51 = scmp.eq.s32.totalorder %s17, 0
      %p52 = por %p50, %p51
      %p53 = scmp.ne.s32.totalorder %s39, %s40
      %p54 = scmp.eq.s32.totalorder %s18, 1
      %p55 = por %p53, %p54
      %p57 = scmp.ne.s32.totalorder %s40, %s56
      %p58 = scmp.eq.s32.totalorder %s18, 0
      %p59 = por %p57, %p58
      %s61 = sadd.s32 %s60, 1
      %p64 = scmp.eq.s32.totalorder %s12, 1
      %p65 = scmp.ne.s32.totalorder %s60, %s62
      %p66 = scmp.eq.s32.totalorder %s12, 0
      %p67 = por %p65, %p66
      %p68 = scmp.ne.s32.totalorder %s60, %s62
      %p69 = scmp.eq.s32.totalorder %s17, 1
      %p70 = por %p68, %p69
      %p71 = scmp.ne.s32.totalorder %s62, %s63
      %p72 = scmp.eq.s32.totalorder %s17, 0
      %p73 = por %p71, %p72
      %p74 = scmp.ne.s32.totalorder %s62, %s63
      %p75 = scmp.eq.s32.totalorder %s18, 1
      %p76 = por %p74, %p75
      %p78 = scmp.ne.s32.totalorder %s63, %s77
      %p79 = scmp.eq.s32.totalorder %s18, 0
      %p80 = por %p78, %p79
      %s82 = sadd.s32 %s81, 1
      %p85 = scmp.eq.s32.totalorder %s12, 1
      %p86 = scmp.ne.s32.totalorder %s81, %s83
      %p87 = scmp.eq.s32.totalorder %s12, 0
      %p88 = por %p86, %p87
      %p89 = scmp.ne.s32.totalorder %s81, %s83
      %p90 = scmp.eq.s32.totalorder %s17, 1
      %p91 = por %p89, %p90
      %p92 = scmp.ne.s32.totalorder %s83, %s84
      %p93 = scmp.eq.s32.totalorder %s17, 0
      %p94 = por %p92, %p93
      %p95 = scmp.ne.s32.totalorder %s83, %s84
      %p96 = scmp.eq.s32.totalorder %s18, 1
      %p97 = por %p95, %p96
      %p99 = scmp.ne.s32.totalorder %s84, %s98
      %p100 = scmp.eq.s32.totalorder %s18, 0
      %p101 = por %p99, %p100
      %s103 = sadd.s32 %s102, 1
      %p106 = scmp.eq.s32.totalorder %s12, 1
      %p107 = scmp.ne.s32.totalorder %s102, %s104
      %p108 = scmp.eq.s32.totalorder %s12, 0
      %p109 = por %p107, %p108
      %p110 = scmp.ne.s32.totalorder %s102, %s104
      %p111 = scmp.eq.s32.totalorder %s17, 1
      %p112 = por %p110, %p111
      %p113 = scmp.ne.s32.totalorder %s104, %s105
      %p114 = scmp.eq.s32.totalorder %s17, 0
      %p115 = por %p113, %p114
      %p116 = scmp.ne.s32.totalorder %s104, %s105
      %p117 = scmp.eq.s32.totalorder %s18, 1
      %p118 = por %p116, %p117
      %p120 = scmp.ne.s32.totalorder %s105, %s119
      %p121 = scmp.eq.s32.totalorder %s18, 0
      %p122 = por %p120, %p121
      %s124 = sadd.s32 %s123, 1
      %p127 = scmp.eq.s32.totalorder %s12, 1
      %p128 = scmp.ne.s32.totalorder %s123, %s125
      %p129 = scmp.eq.s32.totalorder %s12, 0
      %p130 = por %p128, %p129
      %p131 = scmp.ne.s32.totalorder %s123, %s125
      %p132 = scmp.eq.s32.totalorder %s17, 1
      %p133 = por %p131, %p132
      %p134 = scmp.ne.s32.totalorder %s125, %s126
      %p135 = scmp.eq.s32.totalorder %s17, 0
      %p136 = por %p134, %p135
      %p137 = scmp.ne.s32.totalorder %s125, %s126
      %p138 = scmp.eq.s32.totalorder %s18, 1
      %p139 = por %p137, %p138
      %p141 = scmp.ne.s32.totalorder %s126, %s140
      %p142 = scmp.eq.s32.totalorder %s18, 0
      %p143 = por %p141, %p142
      %s145 = sadd.s32 %s144, 1
      %p148 = scmp.eq.s32.totalorder %s12, 1
      %p149 = scmp.ne.s32.totalorder %s144, %s146
      %p150 = scmp.eq.s32.totalorder %s12, 0
      %p151 = por %p149, %p150
      %p152 = scmp.ne.s32.totalorder %s144, %s146
      %p153 = scmp.eq.s32.totalorder %s17, 1
      %p154 = por %p152, %p153
      %p155 = scmp.ne.s32.totalorder %s146, %s147
      %p156 = scmp.eq.s32.totalorder %s17, 0
      %p157 = por %p155, %p156
      %p158 = scmp.ne.s32.totalorder %s146, %s147
      %p159 = scmp.eq.s32.totalorder %s18, 1
      %p160 = por %p158, %p159
      %p162 = scmp.ne.s32.totalorder %s147, %s161
      %p163 = scmp.eq.s32.totalorder %s18, 0
      %p164 = por %p162, %p163
      %p165 = scmp.le.s32.totalorder 1, %s12
      %p166 = scmp.lt.s32.totalorder %s12, 3
      %p167 = pnand %p165, %p166
      %p168 = pneg %p167
      // Predicated region
      $region9: #{card_classifier_forward.2} parent=5 // pred_check
        _
      $region10: #{card_classifier_forward.2} parent=5 // pred_check_branch
        %170 = sbr.rel (%p167) target = $region12
      $region11: #{card_classifier_forward.2} parent=5 // pred_region
        %s171 = ssub.s32 %s12, 1
        // Predicated region
        $region13: #{card_classifier_forward.2} parent=11 // pred_check
          %p172 = pneg %p73
        $region14: #{card_classifier_forward.2} parent=11 // pred_check_branch
          %174 = sbr.rel (%p172) target = $region16
        $region15: #{card_classifier_forward.2} parent=11 // pred_region
          _
        $region16: #{card_classifier_forward.2} parent=11 // pred_fallthru
          _
        // Predicated region
        $region17: #{card_classifier_forward.2} parent=11 // pred_check
          %p175 = pneg %p94
        $region18: #{card_classifier_forward.2} parent=11 // pred_check_branch
          %177 = sbr.rel (%p175) target = $region20
        $region19: #{card_classifier_forward.2} parent=11 // pred_region
          %s179 = ssub.s32 16, 16
          %180 = vsyncadd [#allocation3], %s179
          %s182 = sshll.u32 [#allocation2], 4
          %s183 = int_to_ptr.vmem [resolvable:$true] %s182
          %185 = dma.hbm_to_vmem [thread:$0]  %s2, 16, %s183, [#allocation3]
        $region20: #{card_classifier_forward.2} parent=11 // pred_fallthru
          _
        // Predicated region
        $region21: #{card_classifier_forward.2} parent=11 // pred_check
          %p186 = pneg %p115
        $region22: #{card_classifier_forward.2} parent=11 // pred_check_branch
          %188 = sbr.rel (%p186) target = $region24
        $region23: #{card_classifier_forward.2} parent=11 // pred_region
          _
        $region24: #{card_classifier_forward.2} parent=11 // pred_fallthru
          _
        // Predicated region
        $region25: #{card_classifier_forward.2} parent=11 // pred_check
          %p189 = pneg %p136
        $region26: #{card_classifier_forward.2} parent=11 // pred_check_branch
          %191 = sbr.rel (%p189) target = $region28
        $region27: #{card_classifier_forward.2} parent=11 // pred_region
          _
        $region28: #{card_classifier_forward.2} parent=11 // pred_fallthru
          _
      $region12: #{card_classifier_forward.2} parent=5 // pred_fallthru
        _
      %p192 = scmp.lt.s32.totalorder %s12, 2
      // Predicated region
      $region29: #{card_classifier_forward.2} parent=5 // pred_check
        %p193 = pneg %p192
      $region30: #{card_classifier_forward.2} parent=5 // pred_check_branch
        %195 = sbr.rel (%p193) target = $region32
      $region31: #{card_classifier_forward.2} parent=5 // pred_region
        // Predicated region
        $region33: #{card_classifier_forward.2} parent=31 // pred_check
          %p196 = pneg %p46
        $region34: #{card_classifier_forward.2} parent=31 // pred_check_branch
          %198 = sbr.rel (%p196) target = $region36
        $region35: #{card_classifier_forward.2} parent=31 // pred_region
          %s199 = smul.u32 32, %s20
          %p200 = scmp.lt.s32.totalorder %s19, 1
          %s201 = scalar_select %p200, %s19, 1
          %p202 = scmp.lt.s32.totalorder %s199, 31
          %s203 = scalar_select %p202, %s199, 31
          %s204 = smul.addr %s201, 32
          %s205 = sadd.s32 %s203, %s204
          %s206 = smul.addr %s205, 4
          %s207 = scalar_lea.vmem %s0, %s206
          %s208 = smul.u32 32, %s20
        $region36: #{card_classifier_forward.2} parent=31 // pred_fallthru
          _
      $region32: #{card_classifier_forward.2} parent=5 // pred_fallthru
        _
      %p209 = scmp.le.s32.totalorder 1, %s12
      %p210 = scmp.lt.s32.totalorder %s12, 3
      %p211 = pnand %p209, %p210
      %p212 = pneg %p211
      // Predicated region
      $region37: #{card_classifier_forward.2} parent=5 // pred_check
        _
      $region38: #{card_classifier_forward.2} parent=5 // pred_check_branch
        %214 = sbr.rel (%p211) target = $region40
      $region39: #{card_classifier_forward.2} parent=5 // pred_region
        %s215 = ssub.s32 %s12, 1
        // Predicated region
        $region41: #{card_classifier_forward.2} parent=39 // pred_check
          %p216 = pneg %p94
        $region42: #{card_classifier_forward.2} parent=39 // pred_check_branch
          %218 = sbr.rel (%p216) target = $region44
        $region43: #{card_classifier_forward.2} parent=39 // pred_region
          %219 = dma.done [#allocation3], 16
        $region44: #{card_classifier_forward.2} parent=39 // pred_fallthru
          _
        %s220 = smul.u32 32, %s22
        %p221 = scmp.lt.s32.totalorder %s21, 1
        %s222 = scalar_select %p221, %s21, 1
        %p223 = scmp.lt.s32.totalorder %s220, 31
        %s224 = scalar_select %p223, %s220, 31
        %s225 = smul.addr %s222, 32
        %s226 = sadd.s32 %s224, %s225
        %s227 = smul.addr %s226, 4
        %s228 = scalar_lea.vmem %s0, %s227
        %p229 = pneg %p52
        %p230 = pneg %p49
        %p231 = pneg %p73
        %p232 = pneg %p70
        %p233 = pneg %p94
        %p234 = pneg %p91
        %p235 = pneg %p115
        %p236 = pneg %p112
        %p237 = pneg %p136
        %p238 = pneg %p133
        %p239 = pneg %p157
        %p240 = pneg %p154
        %s241 = smul.u32 32, %s22
        %p242 = scmp.lt.s32.totalorder %s21, 1
        %s243 = scalar_select %p242, %s21, 1
        %p244 = scmp.lt.s32.totalorder %s241, 31
        %s245 = scalar_select %p244, %s241, 31
        %s246 = smul.addr %s243, 32
        %s247 = sadd.s32 %s245, %s246
        %s248 = smul.addr %s247, 4
        %s249 = scalar_lea.vmem %s0, %s248
        %s250 = smul.u32 32, %s22
        %p252 = scmp.eq.s32.totalorder %s21, 0
        %p253 = scmp.eq.s32.totalorder %s22, 0
        %p254 = pnand %p252, %p253
        %p255 = pneg %p254
        // Predicated region
        $region45: #{card_classifier_forward.2} parent=39 // pred_check
          _
        $region46: #{card_classifier_forward.2} parent=39 // pred_check_branch
          %257 = sbr.rel (%p254) target = $region48
        $region47: #{card_classifier_forward.2} parent=39 // pred_region
          %258 = vst [vmem:[%s5] sm:$0xff] 0.0
          %259 = vst [vmem:[%s5 + $0x8] sm:$0xff] 0.0
          %260 = vst [vmem:[%s5 + $0x10] sm:$0xf] 0.0
        $region48: #{card_classifier_forward.2} parent=39 // pred_fallthru
          _
        %v261 = vld [vmem:[%s249] sm:$0xf]
        %v262 = vld [vmem:[%s249 + $0x4] sm:$0xf]
        %v263 = vld [vmem:[%s249 + $0x8] sm:$0xf]
        %v264 = vld [vmem:[%s249 + $0xc] sm:$0xf]
        %v265 = vld [vmem:[%s249 + $0x10] sm:$0xf]
        %v266 = vld [vmem:[%s249 + $0x14] sm:$0xf]
        %v267 = vld [vmem:[%s249 + $0x18] sm:$0xf]
        %v268 = vld [vmem:[%s249 + $0x1c] sm:$0xf]
        %v269 = vld [vmem:[%s249 + $0x20] sm:$0xf]
        %v270 = vld [vmem:[%s249 + $0x24] sm:$0xf]
        %v271 = vld [vmem:[%s249 + $0x28] sm:$0xf]
        %v272 = vld [vmem:[%s249 + $0x2c] sm:$0xf]
        %v273 = vld [vmem:[%s249 + $0x30] sm:$0xf]
        %v274 = vld [vmem:[%s249 + $0x34] sm:$0xf]
        %v275 = vld [vmem:[%s249 + $0x38] sm:$0xf]
        %v276 = vld [vmem:[%s249 + $0x3c] sm:$0xf]
        %v277 = vld [vmem:[%s249 + $0x40] sm:$0xf]
        %v278 = vld [vmem:[%s249 + $0x44] sm:$0xf]
        %v279 = vld [vmem:[%s249 + $0x48] sm:$0xf]
        %v280 = vld [vmem:[%s249 + $0x4c] sm:$0xf]
        %v281 = vld [vmem:[%s249 + $0x50] sm:$0xf]
        %v282 = vld [vmem:[%s249 + $0x54] sm:$0xf]
        %v283 = vld [vmem:[%s249 + $0x58] sm:$0xf]
        %v284 = vld [vmem:[%s249 + $0x5c] sm:$0xf]
        %v285 = vld [vmem:[%s249 + $0x60] sm:$0xf]
        %v286 = vld [vmem:[%s249 + $0x64] sm:$0xf]
        %v287 = vld [vmem:[%s249 + $0x68] sm:$0xf]
        %v288 = vld [vmem:[%s249 + $0x6c] sm:$0xf]
        %v289 = vld [vmem:[%s249 + $0x70] sm:$0xf]
        %v290 = vld [vmem:[%s249 + $0x74] sm:$0xf]
        %v291 = vld [vmem:[%s249 + $0x78] sm:$0xf]
        %v292 = vld [vmem:[%s249 + $0x7c] sm:$0xf]
        %v293 = vld [vmem:[%s1] sm:$0xf]
        %v294 = vld [vmem:[%s1 + $0x4] sm:$0xf]
        %v295 = vld [vmem:[%s1 + $0x8] sm:$0xf]
        %v296 = vld [vmem:[%s1 + $0xc] sm:$0xf]
        %v297 = vld [vmem:[#allocation2] sm:$0x1]
        %v299 = vlaneseq
        %v300 = vshrl.u32 %v299, 7
        %v301 = vsub.s32 0, %v300
        %v302 = vrot.slane %v297, %v301
        %v336 = vunpack.c.l.b16 %v261
        %v337 = vunpack.c.l.b16 %v262
        %v338 = vunpack.c.l.b16 %v263
        %v339 = vunpack.c.l.b16 %v264
        %v340 = vunpack.c.l.b16 %v265
        %v341 = vunpack.c.l.b16 %v266
        %v342 = vunpack.c.l.b16 %v267
        %v343 = vunpack.c.l.b16 %v268
        %v344 = vunpack.c.l.b16 %v269
        %v345 = vunpack.c.l.b16 %v270
        %v346 = vunpack.c.l.b16 %v271
        %v347 = vunpack.c.l.b16 %v272
        %v348 = vunpack.c.l.b16 %v273
        %v349 = vunpack.c.l.b16 %v274
        %v350 = vunpack.c.l.b16 %v275
        %v351 = vunpack.c.l.b16 %v276
        %v352 = vunpack.c.l.b16 %v277
        %v353 = vunpack.c.l.b16 %v278
        %v354 = vunpack.c.l.b16 %v279
        %v355 = vunpack.c.l.b16 %v280
        %v356 = vunpack.c.l.b16 %v281
        %v357 = vunpack.c.l.b16 %v282
        %v358 = vunpack.c.l.b16 %v283
        %v359 = vunpack.c.l.b16 %v284
        %v360 = vunpack.c.l.b16 %v285
        %v361 = vunpack.c.l.b16 %v286
        %v362 = vunpack.c.l.b16 %v287
        %v363 = vunpack.c.l.b16 %v288
        %v364 = vunpack.c.l.b16 %v289
        %v365 = vunpack.c.l.b16 %v290
        %v366 = vunpack.c.l.b16 %v291
        %v367 = vunpack.c.l.b16 %v292
        %v368 = vpack.c.b16 %v337, %v336
        %v369 = vpack.c.b16 %v339, %v338
        %v370 = vpack.c.b16 %v341, %v340
        %v371 = vpack.c.b16 %v343, %v342
        %v372 = vpack.c.b16 %v345, %v344
        %v373 = vpack.c.b16 %v347, %v346
        %v374 = vpack.c.b16 %v349, %v348
        %v375 = vpack.c.b16 %v351, %v350
        %v376 = vpack.c.b16 %v353, %v352
        %v377 = vpack.c.b16 %v355, %v354
        %v378 = vpack.c.b16 %v357, %v356
        %v379 = vpack.c.b16 %v359, %v358
        %v380 = vpack.c.b16 %v361, %v360
        %v381 = vpack.c.b16 %v363, %v362
        %v382 = vpack.c.b16 %v365, %v364
        %v383 = vpack.c.b16 %v367, %v366
        %v388 = vunpack.c.l.b16 %v293
        %v389 = vunpack.c.l.b16 %v294
        %v390 = vunpack.c.l.b16 %v295
        %v391 = vunpack.c.l.b16 %v296
        %v392 = vpack.c.b16 %v389, %v388
        %v393 = vpack.c.b16 %v391, %v390
        %vm396 = vcmask 261120
        %v398 = vsel %vm396, %v368, 0
        %v401 = vsel %vm396, %v369, 0
        %v404 = vsel %vm396, %v370, 0
        %v407 = vsel %vm396, %v371, 0
        %v410 = vsel %vm396, %v372, 0
        %v413 = vsel %vm396, %v373, 0
        %v416 = vsel %vm396, %v374, 0
        %v419 = vsel %vm396, %v375, 0
        %v422 = vsel %vm396, %v376, 0
        %v425 = vsel %vm396, %v377, 0
        %v428 = vsel %vm396, %v378, 0
        %v431 = vsel %vm396, %v379, 0
        %v434 = vsel %vm396, %v380, 0
        %v437 = vsel %vm396, %v381, 0
        %v440 = vsel %vm396, %v382, 0
        %v443 = vsel %vm396, %v383, 0
        %445 = vmatprep.subr.bf16.mxu0 0
        %446 = vmatpush1.bf16.msra.mxu0 0
        %447 = vmatprep.subr.bf16.mxu0 0
        %448 = vmatpush1.bf16.msra.mxu0 0
        %449 = vmatprep.subr.bf16.mxu0 0
        %450 = vmatpush1.bf16.msra.mxu0 0
        %451 = vmatprep.subr.bf16.mxu0 0
        %452 = vmatpush1.bf16.msra.mxu0 0
        %453 = vmatprep.subr.bf16.mxu0 0
        %454 = vmatpush1.bf16.msra.mxu0 0
        %455 = vmatprep.subr.bf16.mxu0 0
        %456 = vmatpush1.bf16.msra.mxu0 0
        %457 = vmatprep.subr.bf16.mxu0 0
        %458 = vmatpush1.bf16.msra.mxu0 %v393
        %459 = vmatprep.subr.bf16.mxu0 0
        %460 = vmatpush1.bf16.msra.mxu0 %v392
        %461 = vmatprep.subr.bf16.mxu0 0
        %462 = vmatpush2.bf16.msra.mxu0 0
        %463 = vmatprep.subr.bf16.mxu0 0
        %464 = vmatpush2.bf16.msra.mxu0 0
        %465 = vmatprep.subr.bf16.mxu0 0
        %466 = vmatpush2.bf16.msra.mxu0 0
        %467 = vmatprep.subr.bf16.mxu0 0
        %468 = vmatpush2.bf16.msra.mxu0 0
        %469 = vmatprep.subr.bf16.mxu0 0
        %470 = vmatpush2.bf16.msra.mxu0 0
        %471 = vmatprep.subr.bf16.mxu0 0
        %472 = vmatpush2.bf16.msra.mxu0 0
        %473 = vmatprep.subr.bf16.mxu0 0
        %474 = vmatpush2.bf16.msra.mxu0 0
        %475 = vmatprep.subr.bf16.mxu0 0
        %476 = vmatpush2.bf16.msra.mxu0 0
        %477 = vmatprep.mubr.bf16.mxu0 0
        %478 = vmatmul.mubr.bf16.gmra.mxu0 %v398
        %v479 = vpop.f32.mrf.mxu0
        %v480 = vadd.f32 %v302, %v479
        %v481 = vpop.f32.mrf.mxu0
        %v482 = vpop.f32.mrf.mxu0
        %v483 = vadd.f32 %v302, %v482
        %v484 = vpop.f32.mrf.mxu0
        %485 = vmatprep.mubr.bf16.mxu0 0
        %486 = vmatmul.mubr.bf16.gmra.mxu0 %v401
        %v487 = vpop.f32.mrf.mxu0
        %v488 = vadd.f32 %v302, %v487
        %v489 = vpop.f32.mrf.mxu0
        %v490 = vpop.f32.mrf.mxu0
        %v491 = vadd.f32 %v302, %v490
        %v492 = vpop.f32.mrf.mxu0
        %493 = vmatprep.mubr.bf16.mxu0 0
        %494 = vmatmul.mubr.bf16.gmra.mxu0 %v404
        %v495 = vpop.f32.mrf.mxu0
        %v496 = vadd.f32 %v302, %v495
        %v497 = vpop.f32.mrf.mxu0
        %v498 = vpop.f32.mrf.mxu0
        %v499 = vadd.f32 %v302, %v498
        %v500 = vpop.f32.mrf.mxu0
        %501 = vmatprep.mubr.bf16.mxu0 0
        %502 = vmatmul.mubr.bf16.gmra.mxu0 %v407
        %v503 = vpop.f32.mrf.mxu0
        %v504 = vadd.f32 %v302, %v503
        %v505 = vpop.f32.mrf.mxu0
        %v506 = vpop.f32.mrf.mxu0
        %v507 = vadd.f32 %v302, %v506
        %v508 = vpop.f32.mrf.mxu0
        %509 = vmatprep.mubr.bf16.mxu0 0
        %510 = vmatmul.mubr.bf16.gmra.mxu0 %v410
        %v511 = vpop.f32.mrf.mxu0
        %v512 = vadd.f32 %v302, %v511
        %v513 = vpop.f32.mrf.mxu0
        %v514 = vpop.f32.mrf.mxu0
        %v515 = vadd.f32 %v302, %v514
        %v516 = vpop.f32.mrf.mxu0
        %517 = vmatprep.mubr.bf16.mxu0 0
        %518 = vmatmul.mubr.bf16.gmra.mxu0 %v413
        %v519 = vpop.f32.mrf.mxu0
        %v520 = vadd.f32 %v302, %v519
        %v521 = vpop.f32.mrf.mxu0
        %v522 = vpop.f32.mrf.mxu0
        %v523 = vadd.f32 %v302, %v522
        %v524 = vpop.f32.mrf.mxu0
        %525 = vmatprep.mubr.bf16.mxu0 0
        %526 = vmatmul.mubr.bf16.gmra.mxu0 %v416
        %v527 = vpop.f32.mrf.mxu0
        %v528 = vadd.f32 %v302, %v527
        %v529 = vpop.f32.mrf.mxu0
        %v530 = vpop.f32.mrf.mxu0
        %v531 = vadd.f32 %v302, %v530
        %v532 = vpop.f32.mrf.mxu0
        %533 = vmatprep.mubr.bf16.mxu0 0
        %534 = vmatmul.mubr.bf16.gmra.mxu0 %v419
        %v535 = vpop.f32.mrf.mxu0
        %v536 = vadd.f32 %v302, %v535
        %v537 = vpop.f32.mrf.mxu0
        %v538 = vpop.f32.mrf.mxu0
        %v539 = vadd.f32 %v302, %v538
        %v540 = vpop.f32.mrf.mxu0
        %541 = vmatprep.mubr.bf16.mxu0 0
        %542 = vmatmul.mubr.bf16.gmra.mxu0 %v422
        %v543 = vpop.f32.mrf.mxu0
        %v544 = vadd.f32 %v302, %v543
        %v545 = vpop.f32.mrf.mxu0
        %v546 = vpop.f32.mrf.mxu0
        %v547 = vadd.f32 %v302, %v546
        %v548 = vpop.f32.mrf.mxu0
        %549 = vmatprep.mubr.bf16.mxu0 0
        %550 = vmatmul.mubr.bf16.gmra.mxu0 %v425
        %v551 = vpop.f32.mrf.mxu0
        %v552 = vadd.f32 %v302, %v551
        %v553 = vpop.f32.mrf.mxu0
        %v554 = vpop.f32.mrf.mxu0
        %v555 = vadd.f32 %v302, %v554
        %v556 = vpop.f32.mrf.mxu0
        %557 = vmatprep.mubr.bf16.mxu0 0
        %558 = vmatmul.mubr.bf16.gmra.mxu0 %v428
        %v559 = vpop.f32.mrf.mxu0
        %v560 = vadd.f32 %v302, %v559
        %v561 = vpop.f32.mrf.mxu0
        %v562 = vpop.f32.mrf.mxu0
        %v563 = vadd.f32 %v302, %v562
        %v564 = vpop.f32.mrf.mxu0
        %565 = vmatprep.mubr.bf16.mxu0 0
        %566 = vmatmul.mubr.bf16.gmra.mxu0 %v431
        %v567 = vpop.f32.mrf.mxu0
        %v568 = vadd.f32 %v302, %v567
        %v569 = vpop.f32.mrf.mxu0
        %v570 = vpop.f32.mrf.mxu0
        %v571 = vadd.f32 %v302, %v570
        %v572 = vpop.f32.mrf.mxu0
        %573 = vmatprep.mubr.bf16.mxu0 0
        %574 = vmatmul.mubr.bf16.gmra.mxu0 %v434
        %v575 = vpop.f32.mrf.mxu0
        %v576 = vadd.f32 %v302, %v575
        %v577 = vpop.f32.mrf.mxu0
        %v578 = vpop.f32.mrf.mxu0
        %v579 = vadd.f32 %v302, %v578
        %v580 = vpop.f32.mrf.mxu0
        %581 = vmatprep.mubr.bf16.mxu0 0
        %582 = vmatmul.mubr.bf16.gmra.mxu0 %v437
        %v583 = vpop.f32.mrf.mxu0
        %v584 = vadd.f32 %v302, %v583
        %v585 = vpop.f32.mrf.mxu0
        %v586 = vpop.f32.mrf.mxu0
        %v587 = vadd.f32 %v302, %v586
        %v588 = vpop.f32.mrf.mxu0
        %589 = vmatprep.mubr.bf16.mxu0 0
        %590 = vmatmul.mubr.bf16.gmra.mxu0 %v440
        %v591 = vpop.f32.mrf.mxu0
        %v592 = vadd.f32 %v302, %v591
        %v593 = vpop.f32.mrf.mxu0
        %v594 = vpop.f32.mrf.mxu0
        %v595 = vadd.f32 %v302, %v594
        %v596 = vpop.f32.mrf.mxu0
        %597 = vmatprep.mubr.bf16.mxu0 0
        %598 = vmatmul.mubr.bf16.gmra.mxu0 %v443
        %v599 = vpop.f32.mrf.mxu0
        %v600 = vadd.f32 %v302, %v599
        %v601 = vpop.f32.mrf.mxu0
        %v602 = vpop.f32.mrf.mxu0
        %v603 = vadd.f32 %v302, %v602
        %v604 = vpop.f32.mrf.mxu0
        %605 = vdwg.mxu0
        %v606 = vxor.u32 %v480, 2147483648
        %v607 = vxor.u32 %v483, 2147483648
        %v608 = vxor.u32 %v488, 2147483648
        %v609 = vxor.u32 %v491, 2147483648
        %v610 = vxor.u32 %v496, 2147483648
        %v611 = vxor.u32 %v499, 2147483648
        %v612 = vxor.u32 %v504, 2147483648
        %v613 = vxor.u32 %v507, 2147483648
        %v614 = vxor.u32 %v512, 2147483648
        %v615 = vxor.u32 %v515, 2147483648
        %v616 = vxor.u32 %v520, 2147483648
        %v617 = vxor.u32 %v523, 2147483648
        %v618 = vxor.u32 %v528, 2147483648
        %v619 = vxor.u32 %v531, 2147483648
        %v620 = vxor.u32 %v536, 2147483648
        %v621 = vxor.u32 %v539, 2147483648
        %v622 = vxor.u32 %v544, 2147483648
        %v623 = vxor.u32 %v547, 2147483648
        %v624 = vxor.u32 %v552, 2147483648
        %v625 = vxor.u32 %v555, 2147483648
        %v626 = vxor.u32 %v560, 2147483648
        %v627 = vxor.u32 %v563, 2147483648
        %v628 = vxor.u32 %v568, 2147483648
        %v629 = vxor.u32 %v571, 2147483648
        %v630 = vxor.u32 %v576, 2147483648
        %v631 = vxor.u32 %v579, 2147483648
        %v632 = vxor.u32 %v584, 2147483648
        %v633 = vxor.u32 %v587, 2147483648
        %v634 = vxor.u32 %v592, 2147483648
        %v635 = vxor.u32 %v595, 2147483648
        %v636 = vxor.u32 %v600, 2147483648
        %v637 = vxor.u32 %v603, 2147483648
        %v638 = vmul.f32 %v606, 1.442695
        %v639 = vpow.pop %v638
        %v640 = vmul.f32 %v607, 1.442695
        %v641 = vpow.pop %v640
        %v642 = vmul.f32 %v608, 1.442695
        %v643 = vpow.pop %v642
        %v644 = vmul.f32 %v609, 1.442695
        %v645 = vpow.pop %v644
        %v646 = vmul.f32 %v610, 1.442695
        %v647 = vpow.pop %v646
        %v648 = vmul.f32 %v611, 1.442695
        %v649 = vpow.pop %v648
        %v650 = vmul.f32 %v612, 1.442695
        %v651 = vpow.pop %v650
        %v652 = vmul.f32 %v613, 1.442695
        %v653 = vpow.pop %v652
        %v654 = vmul.f32 %v614, 1.442695
        %v655 = vpow.pop %v654
        %v656 = vmul.f32 %v615, 1.442695
        %v657 = vpow.pop %v656
        %v658 = vmul.f32 %v616, 1.442695
        %v659 = vpow.pop %v658
        %v660 = vmul.f32 %v617, 1.442695
        %v661 = vpow.pop %v660
        %v662 = vmul.f32 %v618, 1.442695
        %v663 = vpow.pop %v662
        %v664 = vmul.f32 %v619, 1.442695
        %v665 = vpow.pop %v664
        %v666 = vmul.f32 %v620, 1.442695
        %v667 = vpow.pop %v666
        %v668 = vmul.f32 %v621, 1.442695
        %v669 = vpow.pop %v668
        %v670 = vmul.f32 %v622, 1.442695
        %v671 = vpow.pop %v670
        %v672 = vmul.f32 %v623, 1.442695
        %v673 = vpow.pop %v672
        %v674 = vmul.f32 %v624, 1.442695
        %v675 = vpow.pop %v674
        %v676 = vmul.f32 %v625, 1.442695
        %v677 = vpow.pop %v676
        %v678 = vmul.f32 %v626, 1.442695
        %v679 = vpow.pop %v678
        %v680 = vmul.f32 %v627, 1.442695
        %v681 = vpow.pop %v680
        %v682 = vmul.f32 %v628, 1.442695
        %v683 = vpow.pop %v682
        %v684 = vmul.f32 %v629, 1.442695
        %v685 = vpow.pop %v684
        %v686 = vmul.f32 %v630, 1.442695
        %v687 = vpow.pop %v686
        %v688 = vmul.f32 %v631, 1.442695
        %v689 = vpow.pop %v688
        %v690 = vmul.f32 %v632, 1.442695
        %v691 = vpow.pop %v690
        %v692 = vmul.f32 %v633, 1.442695
        %v693 = vpow.pop %v692
        %v694 = vmul.f32 %v634, 1.442695
        %v695 = vpow.pop %v694
        %v696 = vmul.f32 %v635, 1.442695
        %v697 = vpow.pop %v696
        %v698 = vmul.f32 %v636, 1.442695
        %v699 = vpow.pop %v698
        %v700 = vmul.f32 %v637, 1.442695
        %v701 = vpow.pop %v700
        %v702 = vadd.f32 %v639, 1.0
        %v703 = vadd.f32 %v641, 1.0
        %v704 = vadd.f32 %v643, 1.0
        %v705 = vadd.f32 %v645, 1.0
        %v706 = vadd.f32 %v647, 1.0
        %v707 = vadd.f32 %v649, 1.0
        %v708 = vadd.f32 %v651, 1.0
        %v709 = vadd.f32 %v653, 1.0
        %v710 = vadd.f32 %v655, 1.0
        %v711 = vadd.f32 %v657, 1.0
        %v712 = vadd.f32 %v659, 1.0
        %v713 = vadd.f32 %v661, 1.0
        %v714 = vadd.f32 %v663, 1.0
        %v715 = vadd.f32 %v665, 1.0
        %v716 = vadd.f32 %v667, 1.0
        %v717 = vadd.f32 %v669, 1.0
        %v718 = vadd.f32 %v671, 1.0
        %v719 = vadd.f32 %v673, 1.0
        %v720 = vadd.f32 %v675, 1.0
        %v721 = vadd.f32 %v677, 1.0
        %v722 = vadd.f32 %v679, 1.0
        %v723 = vadd.f32 %v681, 1.0
        %v724 = vadd.f32 %v683, 1.0
        %v725 = vadd.f32 %v685, 1.0
        %v726 = vadd.f32 %v687, 1.0
        %v727 = vadd.f32 %v689, 1.0
        %v728 = vadd.f32 %v691, 1.0
        %v729 = vadd.f32 %v693, 1.0
        %v730 = vadd.f32 %v695, 1.0
        %v731 = vadd.f32 %v697, 1.0
        %v732 = vadd.f32 %v699, 1.0
        %v733 = vadd.f32 %v701, 1.0
        %v734 = vrcp.pop %v702
        %v735 = vmul.f32 1.0, %v734
        %v736 = vrcp.pop %v703
        %v737 = vmul.f32 1.0, %v736
        %v738 = vrcp.pop %v704
        %v739 = vmul.f32 1.0, %v738
        %v740 = vrcp.pop %v705
        %v741 = vmul.f32 1.0, %v740
        %v742 = vrcp.pop %v706
        %v743 = vmul.f32 1.0, %v742
        %v744 = vrcp.pop %v707
        %v745 = vmul.f32 1.0, %v744
        %v746 = vrcp.pop %v708
        %v747 = vmul.f32 1.0, %v746
        %v748 = vrcp.pop %v709
        %v749 = vmul.f32 1.0, %v748
        %v750 = vrcp.pop %v710
        %v751 = vmul.f32 1.0, %v750
        %v752 = vrcp.pop %v711
        %v753 = vmul.f32 1.0, %v752
        %v754 = vrcp.pop %v712
        %v755 = vmul.f32 1.0, %v754
        %v756 = vrcp.pop %v713
        %v757 = vmul.f32 1.0, %v756
        %v758 = vrcp.pop %v714
        %v759 = vmul.f32 1.0, %v758
        %v760 = vrcp.pop %v715
        %v761 = vmul.f32 1.0, %v760
        %v762 = vrcp.pop %v716
        %v763 = vmul.f32 1.0, %v762
        %v764 = vrcp.pop %v717
        %v765 = vmul.f32 1.0, %v764
        %v766 = vrcp.pop %v718
        %v767 = vmul.f32 1.0, %v766
        %v768 = vrcp.pop %v719
        %v769 = vmul.f32 1.0, %v768
        %v770 = vrcp.pop %v720
        %v771 = vmul.f32 1.0, %v770
        %v772 = vrcp.pop %v721
        %v773 = vmul.f32 1.0, %v772
        %v774 = vrcp.pop %v722
        %v775 = vmul.f32 1.0, %v774
        %v776 = vrcp.pop %v723
        %v777 = vmul.f32 1.0, %v776
        %v778 = vrcp.pop %v724
        %v779 = vmul.f32 1.0, %v778
        %v780 = vrcp.pop %v725
        %v781 = vmul.f32 1.0, %v780
        %v782 = vrcp.pop %v726
        %v783 = vmul.f32 1.0, %v782
        %v784 = vrcp.pop %v727
        %v785 = vmul.f32 1.0, %v784
        %v786 = vrcp.pop %v728
        %v787 = vmul.f32 1.0, %v786
        %v788 = vrcp.pop %v729
        %v789 = vmul.f32 1.0, %v788
        %v790 = vrcp.pop %v730
        %v791 = vmul.f32 1.0, %v790
        %v792 = vrcp.pop %v731
        %v793 = vmul.f32 1.0, %v792
        %v794 = vrcp.pop %v732
        %v795 = vmul.f32 1.0, %v794
        %v796 = vrcp.pop %v733
        %v797 = vmul.f32 1.0, %v796
        %v798 = vmul.f32 %v480, %v735
        %v799 = vmul.f32 %v483, %v737
        %v800 = vmul.f32 %v488, %v739
        %v801 = vmul.f32 %v491, %v741
        %v802 = vmul.f32 %v496, %v743
        %v803 = vmul.f32 %v499, %v745
        %v804 = vmul.f32 %v504, %v747
        %v805 = vmul.f32 %v507, %v749
        %v806 = vmul.f32 %v512, %v751
        %v807 = vmul.f32 %v515, %v753
        %v808 = vmul.f32 %v520, %v755
        %v809 = vmul.f32 %v523, %v757
        %v810 = vmul.f32 %v528, %v759
        %v811 = vmul.f32 %v531, %v761
        %v812 = vmul.f32 %v536, %v763
        %v813 = vmul.f32 %v539, %v765
        %v814 = vmul.f32 %v544, %v767
        %v815 = vmul.f32 %v547, %v769
        %v816 = vmul.f32 %v552, %v771
        %v817 = vmul.f32 %v555, %v773
        %v818 = vmul.f32 %v560, %v775
        %v819 = vmul.f32 %v563, %v777
        %v820 = vmul.f32 %v568, %v779
        %v821 = vmul.f32 %v571, %v781
        %v822 = vmul.f32 %v576, %v783
        %v823 = vmul.f32 %v579, %v785
        %v824 = vmul.f32 %v584, %v787
        %v825 = vmul.f32 %v587, %v789
        %v826 = vmul.f32 %v592, %v791
        %v827 = vmul.f32 %v595, %v793
        %v828 = vmul.f32 %v600, %v795
        %v829 = vmul.f32 %v603, %v797
        %v830 = vpack.c.bf16 %v799, %v798
        %v831 = vpack.c.bf16 %v801, %v800
        %v832 = vpack.c.bf16 %v803, %v802
        %v833 = vpack.c.bf16 %v805, %v804
        %v834 = vpack.c.bf16 %v807, %v806
        %v835 = vpack.c.bf16 %v809, %v808
        %v836 = vpack.c.bf16 %v811, %v810
        %v837 = vpack.c.bf16 %v813, %v812
        %v838 = vpack.c.bf16 %v815, %v814
        %v839 = vpack.c.bf16 %v817, %v816
        %v840 = vpack.c.bf16 %v819, %v818
        %v841 = vpack.c.bf16 %v821, %v820
        %v842 = vpack.c.bf16 %v823, %v822
        %v843 = vpack.c.bf16 %v825, %v824
        %v844 = vpack.c.bf16 %v827, %v826
        %v845 = vpack.c.bf16 %v829, %v828
        %v846 = vld [vmem:[%s3] sm:$0xff]
        %v847 = vld [vmem:[%s3 + $0x8] sm:$0xff]
        %v848 = vld [vmem:[%s3 + $0x10] sm:$0xff]
        %v849 = vld [vmem:[%s3 + $0x18] sm:$0xff]
        %v850 = vld [vmem:[%s3 + $0x20] sm:$0xff]
        %v851 = vld [vmem:[%s3 + $0x28] sm:$0xff]
        %v852 = vld [vmem:[%s3 + $0x30] sm:$0xff]
        %v853 = vld [vmem:[%s3 + $0x38] sm:$0xff]
        %v854 = vld [vmem:[%s3 + $0x40] sm:$0xff]
        %v855 = vld [vmem:[%s3 + $0x48] sm:$0xff]
        %v856 = vld [vmem:[%s3 + $0x50] sm:$0xff]
        %v857 = vld [vmem:[%s3 + $0x58] sm:$0xff]
        %v858 = vld [vmem:[%s3 + $0x60] sm:$0xff]
        %v859 = vld [vmem:[%s3 + $0x68] sm:$0xff]
        %v860 = vld [vmem:[%s3 + $0x70] sm:$0xff]
        %v861 = vld [vmem:[%s3 + $0x78] sm:$0xff]
        %v862 = vld [vmem:[%s3 + $0x80] sm:$0xff]
        %v863 = vld [vmem:[%s3 + $0x88] sm:$0xff]
        %v864 = vld [vmem:[%s3 + $0x90] sm:$0xff]
        %v865 = vld [vmem:[%s3 + $0x98] sm:$0xff]
        %v866 = vld [vmem:[%s4] sm:$0xff]
        %v867 = vld [vmem:[%s4 + $0x8] sm:$0x3]
        %v870 = vlaneseq
        %v871 = vshrl.u32 %v870, 7
        %v872 = vsub.s32 0, %v871
        %v873 = vrot.slane %v866, %v872
        %v874 = vlaneseq
        %v875 = vshrl.u32 %v874, 7
        %v876 = vsub.s32 1, %v875
        %v877 = vrot.slane %v866, %v876
        %v878 = vlaneseq
        %v879 = vshrl.u32 %v878, 7
        %v880 = vsub.s32 2, %v879
        %v881 = vrot.slane %v866, %v880
        %v882 = vlaneseq
        %v883 = vshrl.u32 %v882, 7
        %v884 = vsub.s32 3, %v883
        %v885 = vrot.slane %v866, %v884
        %v886 = vlaneseq
        %v887 = vshrl.u32 %v886, 7
        %v888 = vsub.s32 4, %v887
        %v889 = vrot.slane %v866, %v888
        %v890 = vlaneseq
        %v891 = vshrl.u32 %v890, 7
        %v892 = vsub.s32 5, %v891
        %v893 = vrot.slane %v866, %v892
        %v894 = vlaneseq
        %v895 = vshrl.u32 %v894, 7
        %v896 = vsub.s32 6, %v895
        %v897 = vrot.slane %v866, %v896
        %v898 = vlaneseq
        %v899 = vshrl.u32 %v898, 7
        %v900 = vsub.s32 7, %v899
        %v901 = vrot.slane %v866, %v900
        %v902 = vlaneseq
        %v903 = vshrl.u32 %v902, 7
        %v904 = vsub.s32 0, %v903
        %v905 = vrot.slane %v867, %v904
        %v906 = vlaneseq
        %v907 = vshrl.u32 %v906, 7
        %v908 = vsub.s32 1, %v907
        %v909 = vrot.slane %v867, %v908
        %v940 = vunpack.c.l.b16 %v846
        %v941 = vunpack.c.h.b16 %v846
        %v942 = vunpack.c.l.b16 %v847
        %v943 = vunpack.c.h.b16 %v847
        %v944 = vunpack.c.l.b16 %v848
        %v945 = vunpack.c.h.b16 %v848
        %v946 = vunpack.c.l.b16 %v849
        %v947 = vunpack.c.h.b16 %v849
        %v948 = vunpack.c.l.b16 %v850
        %v949 = vunpack.c.h.b16 %v850
        %v950 = vunpack.c.l.b16 %v851
        %v951 = vunpack.c.h.b16 %v851
        %v952 = vunpack.c.l.b16 %v852
        %v953 = vunpack.c.h.b16 %v852
        %v954 = vunpack.c.l.b16 %v853
        %v955 = vunpack.c.h.b16 %v853
        %v956 = vunpack.c.l.b16 %v854
        %v957 = vunpack.c.h.b16 %v854
        %v958 = vunpack.c.l.b16 %v855
        %v959 = vunpack.c.h.b16 %v855
        %v960 = vunpack.c.l.b16 %v856
        %v961 = vunpack.c.h.b16 %v856
        %v962 = vunpack.c.l.b16 %v857
        %v963 = vunpack.c.h.b16 %v857
        %v964 = vunpack.c.l.b16 %v858
        %v965 = vunpack.c.h.b16 %v858
        %v966 = vunpack.c.l.b16 %v859
        %v967 = vunpack.c.h.b16 %v859
        %v968 = vunpack.c.l.b16 %v860
        %v969 = vunpack.c.h.b16 %v860
        %v970 = vunpack.c.l.b16 %v861
        %v971 = vunpack.c.h.b16 %v861
        %v972 = vunpack.c.l.b16 %v862
        %v973 = vunpack.c.h.b16 %v862
        %v974 = vunpack.c.l.b16 %v863
        %v975 = vunpack.c.h.b16 %v863
        %v976 = vunpack.c.l.b16 %v864
        %v977 = vunpack.c.h.b16 %v864
        %v978 = vunpack.c.l.b16 %v865
        %v979 = vunpack.c.h.b16 %v865
        %v980 = vpack.c.b16 %v950, %v940
        %v981 = vpack.c.b16 %v951, %v941
        %v982 = vpack.c.b16 %v952, %v942
        %v983 = vpack.c.b16 %v953, %v943
        %v984 = vpack.c.b16 %v954, %v944
        %v985 = vpack.c.b16 %v955, %v945
        %v986 = vpack.c.b16 %v956, %v946
        %v987 = vpack.c.b16 %v957, %v947
        %v988 = vpack.c.b16 %v958, %v948
        %v989 = vpack.c.b16 %v959, %v949
        %v990 = vpack.c.b16 %v970, %v960
        %v991 = vpack.c.b16 %v971, %v961
        %v992 = vpack.c.b16 %v972, %v962
        %v993 = vpack.c.b16 %v973, %v963
        %v994 = vpack.c.b16 %v974, %v964
        %v995 = vpack.c.b16 %v975, %v965
        %v996 = vpack.c.b16 %v976, %v966
        %v997 = vpack.c.b16 %v977, %v967
        %v998 = vpack.c.b16 %v978, %v968
        %v999 = vpack.c.b16 %v979, %v969
        %v1021 = vsel %vm396, %v830, 0
        %v1024 = vsel %vm396, %v831, 0
        %v1027 = vsel %vm396, %v832, 0
        %v1030 = vsel %vm396, %v833, 0
        %v1033 = vsel %vm396, %v834, 0
        %v1036 = vsel %vm396, %v835, 0
        %v1039 = vsel %vm396, %v836, 0
        %v1042 = vsel %vm396, %v837, 0
        %v1045 = vsel %vm396, %v838, 0
        %v1048 = vsel %vm396, %v839, 0
        %v1051 = vsel %vm396, %v840, 0
        %v1054 = vsel %vm396, %v841, 0
        %v1057 = vsel %vm396, %v842, 0
        %v1060 = vsel %vm396, %v843, 0
        %v1063 = vsel %vm396, %v844, 0
        %v1066 = vsel %vm396, %v845, 0
        %1068 = vmatprep.subr.bf16.mxu0 0
        %1069 = vmatpush1.bf16.msra.mxu0 0
        %1070 = vmatprep.subr.bf16.mxu0 0
        %1071 = vmatpush1.bf16.msra.mxu0 0
        %1072 = vmatprep.subr.bf16.mxu0 0
        %1073 = vmatpush1.bf16.msra.mxu0 0
        %1074 = vmatprep.subr.bf16.mxu0 0
        %1075 = vmatpush1.bf16.msra.mxu0 0
        %1076 = vmatprep.subr.bf16.mxu0 0
        %1077 = vmatpush1.bf16.msra.mxu0 0
        %1078 = vmatprep.subr.bf16.mxu0 0
        %1079 = vmatpush1.bf16.msra.mxu0 0
        %1080 = vmatprep.subr.bf16.mxu0 %v991
        %1081 = vmatpush1.bf16.msra.mxu0 %v990
        %1082 = vmatprep.subr.bf16.mxu0 %v981
        %1083 = vmatpush1.bf16.msra.mxu0 %v980
        %1084 = vmatprep.subr.bf16.mxu0 0
        %1085 = vmatpush2.bf16.msra.mxu0 0
        %1086 = vmatprep.subr.bf16.mxu0 0
        %1087 = vmatpush2.bf16.msra.mxu0 0
        %1088 = vmatprep.subr.bf16.mxu0 0
        %1089 = vmatpush2.bf16.msra.mxu0 0
        %1090 = vmatprep.subr.bf16.mxu0 0
        %1091 = vmatpush2.bf16.msra.mxu0 0
        %1092 = vmatprep.subr.bf16.mxu0 0
        %1093 = vmatpush2.bf16.msra.mxu0 0
        %1094 = vmatprep.subr.bf16.mxu0 0
        %1095 = vmatpush2.bf16.msra.mxu0 0
        %1096 = vmatprep.subr.bf16.mxu0 0
        %1097 = vmatpush2.bf16.msra.mxu0 0
        %1098 = vmatprep.subr.bf16.mxu0 0
        %1099 = vmatpush2.bf16.msra.mxu0 0
        %1100 = vmatprep.mubr.bf16.mxu0 0
        %1101 = vmatmul.mubr.bf16.gmra.mxu0 %v1021
        %v1102 = vpop.f32.mrf.mxu0
        %v1103 = vadd.f32 %v873, %v1102
        %v1104 = vpop.f32.mrf.mxu0
        %v1105 = vadd.f32 %v877, %v1104
        %v1106 = vpop.f32.mrf.mxu0
        %v1107 = vadd.f32 %v873, %v1106
        %v1108 = vpop.f32.mrf.mxu0
        %v1109 = vadd.f32 %v877, %v1108
        %1110 = vmatprep.mubr.bf16.mxu0 0
        %1111 = vmatmul.mubr.bf16.gmra.mxu0 %v1024
        %v1112 = vpop.f32.mrf.mxu0
        %v1113 = vadd.f32 %v873, %v1112
        %v1114 = vpop.f32.mrf.mxu0
        %v1115 = vadd.f32 %v877, %v1114
        %v1116 = vpop.f32.mrf.mxu0
        %v1117 = vadd.f32 %v873, %v1116
        %v1118 = vpop.f32.mrf.mxu0
        %v1119 = vadd.f32 %v877, %v1118
        %1120 = vmatprep.mubr.bf16.mxu0 0
        %1121 = vmatmul.mubr.bf16.gmra.mxu0 %v1027
        %v1122 = vpop.f32.mrf.mxu0
        %v1123 = vadd.f32 %v873, %v1122
        %v1124 = vpop.f32.mrf.mxu0
        %v1125 = vadd.f32 %v877, %v1124
        %v1126 = vpop.f32.mrf.mxu0
        %v1127 = vadd.f32 %v873, %v1126
        %v1128 = vpop.f32.mrf.mxu0
        %v1129 = vadd.f32 %v877, %v1128
        %1130 = vmatprep.mubr.bf16.mxu0 0
        %1131 = vmatmul.mubr.bf16.gmra.mxu0 %v1030
        %v1132 = vpop.f32.mrf.mxu0
        %v1133 = vadd.f32 %v873, %v1132
        %v1134 = vpop.f32.mrf.mxu0
        %v1135 = vadd.f32 %v877, %v1134
        %v1136 = vpop.f32.mrf.mxu0
        %v1137 = vadd.f32 %v873, %v1136
        %v1138 = vpop.f32.mrf.mxu0
        %v1139 = vadd.f32 %v877, %v1138
        %1140 = vmatprep.mubr.bf16.mxu0 0
        %1141 = vmatmul.mubr.bf16.gmra.mxu0 %v1033
        %v1142 = vpop.f32.mrf.mxu0
        %v1143 = vadd.f32 %v873, %v1142
        %v1144 = vpop.f32.mrf.mxu0
        %v1145 = vadd.f32 %v877, %v1144
        %v1146 = vpop.f32.mrf.mxu0
        %v1147 = vadd.f32 %v873, %v1146
        %v1148 = vpop.f32.mrf.mxu0
        %v1149 = vadd.f32 %v877, %v1148
        %1150 = vmatprep.mubr.bf16.mxu0 0
        %1151 = vmatmul.mubr.bf16.gmra.mxu0 %v1036
        %v1152 = vpop.f32.mrf.mxu0
        %v1153 = vadd.f32 %v873, %v1152
        %v1154 = vpop.f32.mrf.mxu0
        %v1155 = vadd.f32 %v877, %v1154
        %v1156 = vpop.f32.mrf.mxu0
        %v1157 = vadd.f32 %v873, %v1156
        %v1158 = vpop.f32.mrf.mxu0
        %v1159 = vadd.f32 %v877, %v1158
        %1160 = vmatprep.mubr.bf16.mxu0 0
        %1161 = vmatmul.mubr.bf16.gmra.mxu0 %v1039
        %v1162 = vpop.f32.mrf.mxu0
        %v1163 = vadd.f32 %v873, %v1162
        %v1164 = vpop.f32.mrf.mxu0
        %v1165 = vadd.f32 %v877, %v1164
        %v1166 = vpop.f32.mrf.mxu0
        %v1167 = vadd.f32 %v873, %v1166
        %v1168 = vpop.f32.mrf.mxu0
        %v1169 = vadd.f32 %v877, %v1168
        %1170 = vmatprep.mubr.bf16.mxu0 0
        %1171 = vmatmul.mubr.bf16.gmra.mxu0 %v1042
        %v1172 = vpop.f32.mrf.mxu0
        %v1173 = vadd.f32 %v873, %v1172
        %v1174 = vpop.f32.mrf.mxu0
        %v1175 = vadd.f32 %v877, %v1174
        %v1176 = vpop.f32.mrf.mxu0
        %v1177 = vadd.f32 %v873, %v1176
        %v1178 = vpop.f32.mrf.mxu0
        %v1179 = vadd.f32 %v877, %v1178
        %1180 = vmatprep.mubr.bf16.mxu0 0
        %1181 = vmatmul.mubr.bf16.gmra.mxu0 %v1045
        %v1182 = vpop.f32.mrf.mxu0
        %v1183 = vadd.f32 %v873, %v1182
        %v1184 = vpop.f32.mrf.mxu0
        %v1185 = vadd.f32 %v877, %v1184
        %v1186 = vpop.f32.mrf.mxu0
        %v1187 = vadd.f32 %v873, %v1186
        %v1188 = vpop.f32.mrf.mxu0
        %v1189 = vadd.f32 %v877, %v1188
        %1190 = vmatprep.mubr.bf16.mxu0 0
        %1191 = vmatmul.mubr.bf16.gmra.mxu0 %v1048
        %v1192 = vpop.f32.mrf.mxu0
        %v1193 = vadd.f32 %v873, %v1192
        %v1194 = vpop.f32.mrf.mxu0
        %v1195 = vadd.f32 %v877, %v1194
        %v1196 = vpop.f32.mrf.mxu0
        %v1197 = vadd.f32 %v873, %v1196
        %v1198 = vpop.f32.mrf.mxu0
        %v1199 = vadd.f32 %v877, %v1198
        %1200 = vmatprep.mubr.bf16.mxu0 0
        %1201 = vmatmul.mubr.bf16.gmra.mxu0 %v1051
        %v1202 = vpop.f32.mrf.mxu0
        %v1203 = vadd.f32 %v873, %v1202
        %v1204 = vpop.f32.mrf.mxu0
        %v1205 = vadd.f32 %v877, %v1204
        %v1206 = vpop.f32.mrf.mxu0
        %v1207 = vadd.f32 %v873, %v1206
        %v1208 = vpop.f32.mrf.mxu0
        %v1209 = vadd.f32 %v877, %v1208
        %1210 = vmatprep.mubr.bf16.mxu0 0
        %1211 = vmatmul.mubr.bf16.gmra.mxu0 %v1054
        %v1212 = vpop.f32.mrf.mxu0
        %v1213 = vadd.f32 %v873, %v1212
        %v1214 = vpop.f32.mrf.mxu0
        %v1215 = vadd.f32 %v877, %v1214
        %v1216 = vpop.f32.mrf.mxu0
        %v1217 = vadd.f32 %v873, %v1216
        %v1218 = vpop.f32.mrf.mxu0
        %v1219 = vadd.f32 %v877, %v1218
        %1220 = vmatprep.mubr.bf16.mxu0 0
        %1221 = vmatmul.mubr.bf16.gmra.mxu0 %v1057
        %v1222 = vpop.f32.mrf.mxu0
        %v1223 = vadd.f32 %v873, %v1222
        %v1224 = vpop.f32.mrf.mxu0
        %v1225 = vadd.f32 %v877, %v1224
        %v1226 = vpop.f32.mrf.mxu0
        %v1227 = vadd.f32 %v873, %v1226
        %v1228 = vpop.f32.mrf.mxu0
        %v1229 = vadd.f32 %v877, %v1228
        %1230 = vmatprep.mubr.bf16.mxu0 0
        %1231 = vmatmul.mubr.bf16.gmra.mxu0 %v1060
        %v1232 = vpop.f32.mrf.mxu0
        %v1233 = vadd.f32 %v873, %v1232
        %v1234 = vpop.f32.mrf.mxu0
        %v1235 = vadd.f32 %v877, %v1234
        %v1236 = vpop.f32.mrf.mxu0
        %v1237 = vadd.f32 %v873, %v1236
        %v1238 = vpop.f32.mrf.mxu0
        %v1239 = vadd.f32 %v877, %v1238
        %1240 = vmatprep.mubr.bf16.mxu0 0
        %1241 = vmatmul.mubr.bf16.gmra.mxu0 %v1063
        %v1242 = vpop.f32.mrf.mxu0
        %v1243 = vadd.f32 %v873, %v1242
        %v1244 = vpop.f32.mrf.mxu0
        %v1245 = vadd.f32 %v877, %v1244
        %v1246 = vpop.f32.mrf.mxu0
        %v1247 = vadd.f32 %v873, %v1246
        %v1248 = vpop.f32.mrf.mxu0
        %v1249 = vadd.f32 %v877, %v1248
        %1250 = vmatprep.mubr.bf16.mxu0 0
        %1251 = vmatmul.mubr.bf16.gmra.mxu0 %v1066
        %v1252 = vpop.f32.mrf.mxu0
        %v1253 = vadd.f32 %v873, %v1252
        %v1254 = vpop.f32.mrf.mxu0
        %v1255 = vadd.f32 %v877, %v1254
        %v1256 = vpop.f32.mrf.mxu0
        %v1257 = vadd.f32 %v873, %v1256
        %v1258 = vpop.f32.mrf.mxu0
        %v1259 = vadd.f32 %v877, %v1258
        %1260 = vdwg.mxu0
        %1261 = vmatprep.subr.bf16.mxu0 0
        %1262 = vmatpush1.bf16.msra.mxu0 0
        %1263 = vmatprep.subr.bf16.mxu0 0
        %1264 = vmatpush1.bf16.msra.mxu0 0
        %1265 = vmatprep.subr.bf16.mxu0 0
        %1266 = vmatpush1.bf16.msra.mxu0 0
        %1267 = vmatprep.subr.bf16.mxu0 0
        %1268 = vmatpush1.bf16.msra.mxu0 0
        %1269 = vmatprep.subr.bf16.mxu0 0
        %1270 = vmatpush1.bf16.msra.mxu0 0
        %1271 = vmatprep.subr.bf16.mxu0 0
        %1272 = vmatpush1.bf16.msra.mxu0 0
        %1273 = vmatprep.subr.bf16.mxu0 %v993
        %1274 = vmatpush1.bf16.msra.mxu0 %v992
        %1275 = vmatprep.subr.bf16.mxu0 %v983
        %1276 = vmatpush1.bf16.msra.mxu0 %v982
        %1277 = vmatprep.subr.bf16.mxu0 0
        %1278 = vmatpush2.bf16.msra.mxu0 0
        %1279 = vmatprep.subr.bf16.mxu0 0
        %1280 = vmatpush2.bf16.msra.mxu0 0
        %1281 = vmatprep.subr.bf16.mxu0 0
        %1282 = vmatpush2.bf16.msra.mxu0 0
        %1283 = vmatprep.subr.bf16.mxu0 0
        %1284 = vmatpush2.bf16.msra.mxu0 0
        %1285 = vmatprep.subr.bf16.mxu0 0
        %1286 = vmatpush2.bf16.msra.mxu0 0
        %1287 = vmatprep.subr.bf16.mxu0 0
        %1288 = vmatpush2.bf16.msra.mxu0 0
        %1289 = vmatprep.subr.bf16.mxu0 0
        %1290 = vmatpush2.bf16.msra.mxu0 0
        %1291 = vmatprep.subr.bf16.mxu0 0
        %1292 = vmatpush2.bf16.msra.mxu0 0
        %1293 = vmatprep.mubr.bf16.mxu0 0
        %1294 = vmatmul.mubr.bf16.gmra.mxu0 %v1021
        %v1295 = vpop.f32.mrf.mxu0
        %v1296 = vadd.f32 %v881, %v1295
        %v1297 = vpop.f32.mrf.mxu0
        %v1298 = vadd.f32 %v885, %v1297
        %v1299 = vpop.f32.mrf.mxu0
        %v1300 = vadd.f32 %v881, %v1299
        %v1301 = vpop.f32.mrf.mxu0
        %v1302 = vadd.f32 %v885, %v1301
        %1303 = vmatprep.mubr.bf16.mxu0 0
        %1304 = vmatmul.mubr.bf16.gmra.mxu0 %v1024
        %v1305 = vpop.f32.mrf.mxu0
        %v1306 = vadd.f32 %v881, %v1305
        %v1307 = vpop.f32.mrf.mxu0
        %v1308 = vadd.f32 %v885, %v1307
        %v1309 = vpop.f32.mrf.mxu0
        %v1310 = vadd.f32 %v881, %v1309
        %v1311 = vpop.f32.mrf.mxu0
        %v1312 = vadd.f32 %v885, %v1311
        %1313 = vmatprep.mubr.bf16.mxu0 0
        %1314 = vmatmul.mubr.bf16.gmra.mxu0 %v1027
        %v1315 = vpop.f32.mrf.mxu0
        %v1316 = vadd.f32 %v881, %v1315
        %v1317 = vpop.f32.mrf.mxu0
        %v1318 = vadd.f32 %v885, %v1317
        %v1319 = vpop.f32.mrf.mxu0
        %v1320 = vadd.f32 %v881, %v1319
        %v1321 = vpop.f32.mrf.mxu0
        %v1322 = vadd.f32 %v885, %v1321
        %1323 = vmatprep.mubr.bf16.mxu0 0
        %1324 = vmatmul.mubr.bf16.gmra.mxu0 %v1030
        %v1325 = vpop.f32.mrf.mxu0
        %v1326 = vadd.f32 %v881, %v1325
        %v1327 = vpop.f32.mrf.mxu0
        %v1328 = vadd.f32 %v885, %v1327
        %v1329 = vpop.f32.mrf.mxu0
        %v1330 = vadd.f32 %v881, %v1329
        %v1331 = vpop.f32.mrf.mxu0
        %v1332 = vadd.f32 %v885, %v1331
        %1333 = vmatprep.mubr.bf16.mxu0 0
        %1334 = vmatmul.mubr.bf16.gmra.mxu0 %v1033
        %v1335 = vpop.f32.mrf.mxu0
        %v1336 = vadd.f32 %v881, %v1335
        %v1337 = vpop.f32.mrf.mxu0
        %v1338 = vadd.f32 %v885, %v1337
        %v1339 = vpop.f32.mrf.mxu0
        %v1340 = vadd.f32 %v881, %v1339
        %v1341 = vpop.f32.mrf.mxu0
        %v1342 = vadd.f32 %v885, %v1341
        %1343 = vmatprep.mubr.bf16.mxu0 0
        %1344 = vmatmul.mubr.bf16.gmra.mxu0 %v1036
        %v1345 = vpop.f32.mrf.mxu0
        %v1346 = vadd.f32 %v881, %v1345
        %v1347 = vpop.f32.mrf.mxu0
        %v1348 = vadd.f32 %v885, %v1347
        %v1349 = vpop.f32.mrf.mxu0
        %v1350 = vadd.f32 %v881, %v1349
        %v1351 = vpop.f32.mrf.mxu0
        %v1352 = vadd.f32 %v885, %v1351
        %1353 = vmatprep.mubr.bf16.mxu0 0
        %1354 = vmatmul.mubr.bf16.gmra.mxu0 %v1039
        %v1355 = vpop.f32.mrf.mxu0
        %v1356 = vadd.f32 %v881, %v1355
        %v1357 = vpop.f32.mrf.mxu0
        %v1358 = vadd.f32 %v885, %v1357
        %v1359 = vpop.f32.mrf.mxu0
        %v1360 = vadd.f32 %v881, %v1359
        %v1361 = vpop.f32.mrf.mxu0
        %v1362 = vadd.f32 %v885, %v1361
        %1363 = vmatprep.mubr.bf16.mxu0 0
        %1364 = vmatmul.mubr.bf16.gmra.mxu0 %v1042
        %v1365 = vpop.f32.mrf.mxu0
        %v1366 = vadd.f32 %v881, %v1365
        %v1367 = vpop.f32.mrf.mxu0
        %v1368 = vadd.f32 %v885, %v1367
        %v1369 = vpop.f32.mrf.mxu0
        %v1370 = vadd.f32 %v881, %v1369
        %v1371 = vpop.f32.mrf.mxu0
        %v1372 = vadd.f32 %v885, %v1371
        %1373 = vmatprep.mubr.bf16.mxu0 0
        %1374 = vmatmul.mubr.bf16.gmra.mxu0 %v1045
        %v1375 = vpop.f32.mrf.mxu0
        %v1376 = vadd.f32 %v881, %v1375
        %v1377 = vpop.f32.mrf.mxu0
        %v1378 = vadd.f32 %v885, %v1377
        %v1379 = vpop.f32.mrf.mxu0
        %v1380 = vadd.f32 %v881, %v1379
        %v1381 = vpop.f32.mrf.mxu0
        %v1382 = vadd.f32 %v885, %v1381
        %1383 = vmatprep.mubr.bf16.mxu0 0
        %1384 = vmatmul.mubr.bf16.gmra.mxu0 %v1048
        %v1385 = vpop.f32.mrf.mxu0
        %v1386 = vadd.f32 %v881, %v1385
        %v1387 = vpop.f32.mrf.mxu0
        %v1388 = vadd.f32 %v885, %v1387
        %v1389 = vpop.f32.mrf.mxu0
        %v1390 = vadd.f32 %v881, %v1389
        %v1391 = vpop.f32.mrf.mxu0
        %v1392 = vadd.f32 %v885, %v1391
        %1393 = vmatprep.mubr.bf16.mxu0 0
        %1394 = vmatmul.mubr.bf16.gmra.mxu0 %v1051
        %v1395 = vpop.f32.mrf.mxu0
        %v1396 = vadd.f32 %v881, %v1395
        %v1397 = vpop.f32.mrf.mxu0
        %v1398 = vadd.f32 %v885, %v1397
        %v1399 = vpop.f32.mrf.mxu0
        %v1400 = vadd.f32 %v881, %v1399
        %v1401 = vpop.f32.mrf.mxu0
        %v1402 = vadd.f32 %v885, %v1401
        %1403 = vmatprep.mubr.bf16.mxu0 0
        %1404 = vmatmul.mubr.bf16.gmra.mxu0 %v1054
        %v1405 = vpop.f32.mrf.mxu0
        %v1406 = vadd.f32 %v881, %v1405
        %v1407 = vpop.f32.mrf.mxu0
        %v1408 = vadd.f32 %v885, %v1407
        %v1409 = vpop.f32.mrf.mxu0
        %v1410 = vadd.f32 %v881, %v1409
        %v1411 = vpop.f32.mrf.mxu0
        %v1412 = vadd.f32 %v885, %v1411
        %1413 = vmatprep.mubr.bf16.mxu0 0
        %1414 = vmatmul.mubr.bf16.gmra.mxu0 %v1057
        %v1415 = vpop.f32.mrf.mxu0
        %v1416 = vadd.f32 %v881, %v1415
        %v1417 = vpop.f32.mrf.mxu0
        %v1418 = vadd.f32 %v885, %v1417
        %v1419 = vpop.f32.mrf.mxu0
        %v1420 = vadd.f32 %v881, %v1419
        %v1421 = vpop.f32.mrf.mxu0
        %v1422 = vadd.f32 %v885, %v1421
        %1423 = vmatprep.mubr.bf16.mxu0 0
        %1424 = vmatmul.mubr.bf16.gmra.mxu0 %v1060
        %v1425 = vpop.f32.mrf.mxu0
        %v1426 = vadd.f32 %v881, %v1425
        %v1427 = vpop.f32.mrf.mxu0
        %v1428 = vadd.f32 %v885, %v1427
        %v1429 = vpop.f32.mrf.mxu0
        %v1430 = vadd.f32 %v881, %v1429
        %v1431 = vpop.f32.mrf.mxu0
        %v1432 = vadd.f32 %v885, %v1431
        %1433 = vmatprep.mubr.bf16.mxu0 0
        %1434 = vmatmul.mubr.bf16.gmra.mxu0 %v1063
        %v1435 = vpop.f32.mrf.mxu0
        %v1436 = vadd.f32 %v881, %v1435
        %v1437 = vpop.f32.mrf.mxu0
        %v1438 = vadd.f32 %v885, %v1437
        %v1439 = vpop.f32.mrf.mxu0
        %v1440 = vadd.f32 %v881, %v1439
        %v1441 = vpop.f32.mrf.mxu0
        %v1442 = vadd.f32 %v885, %v1441
        %1443 = vmatprep.mubr.bf16.mxu0 0
        %1444 = vmatmul.mubr.bf16.gmra.mxu0 %v1066
        %v1445 = vpop.f32.mrf.mxu0
        %v1446 = vadd.f32 %v881, %v1445
        %v1447 = vpop.f32.mrf.mxu0
        %v1448 = vadd.f32 %v885, %v1447
        %v1449 = vpop.f32.mrf.mxu0
        %v1450 = vadd.f32 %v881, %v1449
        %v1451 = vpop.f32.mrf.mxu0
        %v1452 = vadd.f32 %v885, %v1451
        %1453 = vdwg.mxu0
        %1454 = vmatprep.subr.bf16.mxu0 0
        %1455 = vmatpush1.bf16.msra.mxu0 0
        %1456 = vmatprep.subr.bf16.mxu0 0
        %1457 = vmatpush1.bf16.msra.mxu0 0
        %1458 = vmatprep.subr.bf16.mxu0 0
        %1459 = vmatpush1.bf16.msra.mxu0 0
        %1460 = vmatprep.subr.bf16.mxu0 0
        %1461 = vmatpush1.bf16.msra.mxu0 0
        %1462 = vmatprep.subr.bf16.mxu0 0
        %1463 = vmatpush1.bf16.msra.mxu0 0
        %1464 = vmatprep.subr.bf16.mxu0 0
        %1465 = vmatpush1.bf16.msra.mxu0 0
        %1466 = vmatprep.subr.bf16.mxu0 %v995
        %1467 = vmatpush1.bf16.msra.mxu0 %v994
        %1468 = vmatprep.subr.bf16.mxu0 %v985
        %1469 = vmatpush1.bf16.msra.mxu0 %v984
        %1470 = vmatprep.subr.bf16.mxu0 0
        %1471 = vmatpush2.bf16.msra.mxu0 0
        %1472 = vmatprep.subr.bf16.mxu0 0
        %1473 = vmatpush2.bf16.msra.mxu0 0
        %1474 = vmatprep.subr.bf16.mxu0 0
        %1475 = vmatpush2.bf16.msra.mxu0 0
        %1476 = vmatprep.subr.bf16.mxu0 0
        %1477 = vmatpush2.bf16.msra.mxu0 0
        %1478 = vmatprep.subr.bf16.mxu0 0
        %1479 = vmatpush2.bf16.msra.mxu0 0
        %1480 = vmatprep.subr.bf16.mxu0 0
        %1481 = vmatpush2.bf16.msra.mxu0 0
        %1482 = vmatprep.subr.bf16.mxu0 0
        %1483 = vmatpush2.bf16.msra.mxu0 0
        %1484 = vmatprep.subr.bf16.mxu0 0
        %1485 = vmatpush2.bf16.msra.mxu0 0
        %1486 = vmatprep.mubr.bf16.mxu0 0
        %1487 = vmatmul.mubr.bf16.gmra.mxu0 %v1021
        %v1488 = vpop.f32.mrf.mxu0
        %v1489 = vadd.f32 %v889, %v1488
        %v1490 = vpop.f32.mrf.mxu0
        %v1491 = vadd.f32 %v893, %v1490
        %v1492 = vpop.f32.mrf.mxu0
        %v1493 = vadd.f32 %v889, %v1492
        %v1494 = vpop.f32.mrf.mxu0
        %v1495 = vadd.f32 %v893, %v1494
        %1496 = vmatprep.mubr.bf16.mxu0 0
        %1497 = vmatmul.mubr.bf16.gmra.mxu0 %v1024
        %v1498 = vpop.f32.mrf.mxu0
        %v1499 = vadd.f32 %v889, %v1498
        %v1500 = vpop.f32.mrf.mxu0
        %v1501 = vadd.f32 %v893, %v1500
        %v1502 = vpop.f32.mrf.mxu0
        %v1503 = vadd.f32 %v889, %v1502
        %v1504 = vpop.f32.mrf.mxu0
        %v1505 = vadd.f32 %v893, %v1504
        %1506 = vmatprep.mubr.bf16.mxu0 0
        %1507 = vmatmul.mubr.bf16.gmra.mxu0 %v1027
        %v1508 = vpop.f32.mrf.mxu0
        %v1509 = vadd.f32 %v889, %v1508
        %v1510 = vpop.f32.mrf.mxu0
        %v1511 = vadd.f32 %v893, %v1510
        %v1512 = vpop.f32.mrf.mxu0
        %v1513 = vadd.f32 %v889, %v1512
        %v1514 = vpop.f32.mrf.mxu0
        %v1515 = vadd.f32 %v893, %v1514
        %1516 = vmatprep.mubr.bf16.mxu0 0
        %1517 = vmatmul.mubr.bf16.gmra.mxu0 %v1030
        %v1518 = vpop.f32.mrf.mxu0
        %v1519 = vadd.f32 %v889, %v1518
        %v1520 = vpop.f32.mrf.mxu0
        %v1521 = vadd.f32 %v893, %v1520
        %v1522 = vpop.f32.mrf.mxu0
        %v1523 = vadd.f32 %v889, %v1522
        %v1524 = vpop.f32.mrf.mxu0
        %v1525 = vadd.f32 %v893, %v1524
        %1526 = vmatprep.mubr.bf16.mxu0 0
        %1527 = vmatmul.mubr.bf16.gmra.mxu0 %v1033
        %v1528 = vpop.f32.mrf.mxu0
        %v1529 = vadd.f32 %v889, %v1528
        %v1530 = vpop.f32.mrf.mxu0
        %v1531 = vadd.f32 %v893, %v1530
        %v1532 = vpop.f32.mrf.mxu0
        %v1533 = vadd.f32 %v889, %v1532
        %v1534 = vpop.f32.mrf.mxu0
        %v1535 = vadd.f32 %v893, %v1534
        %1536 = vmatprep.mubr.bf16.mxu0 0
        %1537 = vmatmul.mubr.bf16.gmra.mxu0 %v1036
        %v1538 = vpop.f32.mrf.mxu0
        %v1539 = vadd.f32 %v889, %v1538
        %v1540 = vpop.f32.mrf.mxu0
        %v1541 = vadd.f32 %v893, %v1540
        %v1542 = vpop.f32.mrf.mxu0
        %v1543 = vadd.f32 %v889, %v1542
        %v1544 = vpop.f32.mrf.mxu0
        %v1545 = vadd.f32 %v893, %v1544
        %1546 = vmatprep.mubr.bf16.mxu0 0
        %1547 = vmatmul.mubr.bf16.gmra.mxu0 %v1039
        %v1548 = vpop.f32.mrf.mxu0
        %v1549 = vadd.f32 %v889, %v1548
        %v1550 = vpop.f32.mrf.mxu0
        %v1551 = vadd.f32 %v893, %v1550
        %v1552 = vpop.f32.mrf.mxu0
        %v1553 = vadd.f32 %v889, %v1552
        %v1554 = vpop.f32.mrf.mxu0
        %v1555 = vadd.f32 %v893, %v1554
        %1556 = vmatprep.mubr.bf16.mxu0 0
        %1557 = vmatmul.mubr.bf16.gmra.mxu0 %v1042
        %v1558 = vpop.f32.mrf.mxu0
        %v1559 = vadd.f32 %v889, %v1558
        %v1560 = vpop.f32.mrf.mxu0
        %v1561 = vadd.f32 %v893, %v1560
        %v1562 = vpop.f32.mrf.mxu0
        %v1563 = vadd.f32 %v889, %v1562
        %v1564 = vpop.f32.mrf.mxu0
        %v1565 = vadd.f32 %v893, %v1564
        %1566 = vmatprep.mubr.bf16.mxu0 0
        %1567 = vmatmul.mubr.bf16.gmra.mxu0 %v1045
        %v1568 = vpop.f32.mrf.mxu0
        %v1569 = vadd.f32 %v889, %v1568
        %v1570 = vpop.f32.mrf.mxu0
        %v1571 = vadd.f32 %v893, %v1570
        %v1572 = vpop.f32.mrf.mxu0
        %v1573 = vadd.f32 %v889, %v1572
        %v1574 = vpop.f32.mrf.mxu0
        %v1575 = vadd.f32 %v893, %v1574
        %1576 = vmatprep.mubr.bf16.mxu0 0
        %1577 = vmatmul.mubr.bf16.gmra.mxu0 %v1048
        %v1578 = vpop.f32.mrf.mxu0
        %v1579 = vadd.f32 %v889, %v1578
        %v1580 = vpop.f32.mrf.mxu0
        %v1581 = vadd.f32 %v893, %v1580
        %v1582 = vpop.f32.mrf.mxu0
        %v1583 = vadd.f32 %v889, %v1582
        %v1584 = vpop.f32.mrf.mxu0
        %v1585 = vadd.f32 %v893, %v1584
        %1586 = vmatprep.mubr.bf16.mxu0 0
        %1587 = vmatmul.mubr.bf16.gmra.mxu0 %v1051
        %v1588 = vpop.f32.mrf.mxu0
        %v1589 = vadd.f32 %v889, %v1588
        %v1590 = vpop.f32.mrf.mxu0
        %v1591 = vadd.f32 %v893, %v1590
        %v1592 = vpop.f32.mrf.mxu0
        %v1593 = vadd.f32 %v889, %v1592
        %v1594 = vpop.f32.mrf.mxu0
        %v1595 = vadd.f32 %v893, %v1594
        %1596 = vmatprep.mubr.bf16.mxu0 0
        %1597 = vmatmul.mubr.bf16.gmra.mxu0 %v1054
        %v1598 = vpop.f32.mrf.mxu0
        %v1599 = vadd.f32 %v889, %v1598
        %v1600 = vpop.f32.mrf.mxu0
        %v1601 = vadd.f32 %v893, %v1600
        %v1602 = vpop.f32.mrf.mxu0
        %v1603 = vadd.f32 %v889, %v1602
        %v1604 = vpop.f32.mrf.mxu0
        %v1605 = vadd.f32 %v893, %v1604
        %1606 = vmatprep.mubr.bf16.mxu0 0
        %1607 = vmatmul.mubr.bf16.gmra.mxu0 %v1057
        %v1608 = vpop.f32.mrf.mxu0
        %v1609 = vadd.f32 %v889, %v1608
        %v1610 = vpop.f32.mrf.mxu0
        %v1611 = vadd.f32 %v893, %v1610
        %v1612 = vpop.f32.mrf.mxu0
        %v1613 = vadd.f32 %v889, %v1612
        %v1614 = vpop.f32.mrf.mxu0
        %v1615 = vadd.f32 %v893, %v1614
        %1616 = vmatprep.mubr.bf16.mxu0 0
        %1617 = vmatmul.mubr.bf16.gmra.mxu0 %v1060
        %v1618 = vpop.f32.mrf.mxu0
        %v1619 = vadd.f32 %v889, %v1618
        %v1620 = vpop.f32.mrf.mxu0
        %v1621 = vadd.f32 %v893, %v1620
        %v1622 = vpop.f32.mrf.mxu0
        %v1623 = vadd.f32 %v889, %v1622
        %v1624 = vpop.f32.mrf.mxu0
        %v1625 = vadd.f32 %v893, %v1624
        %1626 = vmatprep.mubr.bf16.mxu0 0
        %1627 = vmatmul.mubr.bf16.gmra.mxu0 %v1063
        %v1628 = vpop.f32.mrf.mxu0
        %v1629 = vadd.f32 %v889, %v1628
        %v1630 = vpop.f32.mrf.mxu0
        %v1631 = vadd.f32 %v893, %v1630
        %v1632 = vpop.f32.mrf.mxu0
        %v1633 = vadd.f32 %v889, %v1632
        %v1634 = vpop.f32.mrf.mxu0
        %v1635 = vadd.f32 %v893, %v1634
        %1636 = vmatprep.mubr.bf16.mxu0 0
        %1637 = vmatmul.mubr.bf16.gmra.mxu0 %v1066
        %v1638 = vpop.f32.mrf.mxu0
        %v1639 = vadd.f32 %v889, %v1638
        %v1640 = vpop.f32.mrf.mxu0
        %v1641 = vadd.f32 %v893, %v1640
        %v1642 = vpop.f32.mrf.mxu0
        %v1643 = vadd.f32 %v889, %v1642
        %v1644 = vpop.f32.mrf.mxu0
        %v1645 = vadd.f32 %v893, %v1644
        %1646 = vdwg.mxu0
        %1647 = vmatprep.subr.bf16.mxu0 0
        %1648 = vmatpush1.bf16.msra.mxu0 0
        %1649 = vmatprep.subr.bf16.mxu0 0
        %1650 = vmatpush1.bf16.msra.mxu0 0
        %1651 = vmatprep.subr.bf16.mxu0 0
        %1652 = vmatpush1.bf16.msra.mxu0 0
        %1653 = vmatprep.subr.bf16.mxu0 0
        %1654 = vmatpush1.bf16.msra.mxu0 0
        %1655 = vmatprep.subr.bf16.mxu0 0
        %1656 = vmatpush1.bf16.msra.mxu0 0
        %1657 = vmatprep.subr.bf16.mxu0 0
        %1658 = vmatpush1.bf16.msra.mxu0 0
        %1659 = vmatprep.subr.bf16.mxu0 %v997
        %1660 = vmatpush1.bf16.msra.mxu0 %v996
        %1661 = vmatprep.subr.bf16.mxu0 %v987
        %1662 = vmatpush1.bf16.msra.mxu0 %v986
        %1663 = vmatprep.subr.bf16.mxu0 0
        %1664 = vmatpush2.bf16.msra.mxu0 0
        %1665 = vmatprep.subr.bf16.mxu0 0
        %1666 = vmatpush2.bf16.msra.mxu0 0
        %1667 = vmatprep.subr.bf16.mxu0 0
        %1668 = vmatpush2.bf16.msra.mxu0 0
        %1669 = vmatprep.subr.bf16.mxu0 0
        %1670 = vmatpush2.bf16.msra.mxu0 0
        %1671 = vmatprep.subr.bf16.mxu0 0
        %1672 = vmatpush2.bf16.msra.mxu0 0
        %1673 = vmatprep.subr.bf16.mxu0 0
        %1674 = vmatpush2.bf16.msra.mxu0 0
        %1675 = vmatprep.subr.bf16.mxu0 0
        %1676 = vmatpush2.bf16.msra.mxu0 0
        %1677 = vmatprep.subr.bf16.mxu0 0
        %1678 = vmatpush2.bf16.msra.mxu0 0
        %1679 = vmatprep.mubr.bf16.mxu0 0
        %1680 = vmatmul.mubr.bf16.gmra.mxu0 %v1021
        %v1681 = vpop.f32.mrf.mxu0
        %v1682 = vadd.f32 %v897, %v1681
        %v1683 = vpop.f32.mrf.mxu0
        %v1684 = vadd.f32 %v901, %v1683
        %v1685 = vpop.f32.mrf.mxu0
        %v1686 = vadd.f32 %v897, %v1685
        %v1687 = vpop.f32.mrf.mxu0
        %v1688 = vadd.f32 %v901, %v1687
        %1689 = vmatprep.mubr.bf16.mxu0 0
        %1690 = vmatmul.mubr.bf16.gmra.mxu0 %v1024
        %v1691 = vpop.f32.mrf.mxu0
        %v1692 = vadd.f32 %v897, %v1691
        %v1693 = vpop.f32.mrf.mxu0
        %v1694 = vadd.f32 %v901, %v1693
        %v1695 = vpop.f32.mrf.mxu0
        %v1696 = vadd.f32 %v897, %v1695
        %v1697 = vpop.f32.mrf.mxu0
        %v1698 = vadd.f32 %v901, %v1697
        %1699 = vmatprep.mubr.bf16.mxu0 0
        %1700 = vmatmul.mubr.bf16.gmra.mxu0 %v1027
        %v1701 = vpop.f32.mrf.mxu0
        %v1702 = vadd.f32 %v897, %v1701
        %v1703 = vpop.f32.mrf.mxu0
        %v1704 = vadd.f32 %v901, %v1703
        %v1705 = vpop.f32.mrf.mxu0
        %v1706 = vadd.f32 %v897, %v1705
        %v1707 = vpop.f32.mrf.mxu0
        %v1708 = vadd.f32 %v901, %v1707
        %1709 = vmatprep.mubr.bf16.mxu0 0
        %1710 = vmatmul.mubr.bf16.gmra.mxu0 %v1030
        %v1711 = vpop.f32.mrf.mxu0
        %v1712 = vadd.f32 %v897, %v1711
        %v1713 = vpop.f32.mrf.mxu0
        %v1714 = vadd.f32 %v901, %v1713
        %v1715 = vpop.f32.mrf.mxu0
        %v1716 = vadd.f32 %v897, %v1715
        %v1717 = vpop.f32.mrf.mxu0
        %v1718 = vadd.f32 %v901, %v1717
        %1719 = vmatprep.mubr.bf16.mxu0 0
        %1720 = vmatmul.mubr.bf16.gmra.mxu0 %v1033
        %v1721 = vpop.f32.mrf.mxu0
        %v1722 = vadd.f32 %v897, %v1721
        %v1723 = vpop.f32.mrf.mxu0
        %v1724 = vadd.f32 %v901, %v1723
        %v1725 = vpop.f32.mrf.mxu0
        %v1726 = vadd.f32 %v897, %v1725
        %v1727 = vpop.f32.mrf.mxu0
        %v1728 = vadd.f32 %v901, %v1727
        %1729 = vmatprep.mubr.bf16.mxu0 0
        %1730 = vmatmul.mubr.bf16.gmra.mxu0 %v1036
        %v1731 = vpop.f32.mrf.mxu0
        %v1732 = vadd.f32 %v897, %v1731
        %v1733 = vpop.f32.mrf.mxu0
        %v1734 = vadd.f32 %v901, %v1733
        %v1735 = vpop.f32.mrf.mxu0
        %v1736 = vadd.f32 %v897, %v1735
        %v1737 = vpop.f32.mrf.mxu0
        %v1738 = vadd.f32 %v901, %v1737
        %1739 = vmatprep.mubr.bf16.mxu0 0
        %1740 = vmatmul.mubr.bf16.gmra.mxu0 %v1039
        %v1741 = vpop.f32.mrf.mxu0
        %v1742 = vadd.f32 %v897, %v1741
        %v1743 = vpop.f32.mrf.mxu0
        %v1744 = vadd.f32 %v901, %v1743
        %v1745 = vpop.f32.mrf.mxu0
        %v1746 = vadd.f32 %v897, %v1745
        %v1747 = vpop.f32.mrf.mxu0
        %v1748 = vadd.f32 %v901, %v1747
        %1749 = vmatprep.mubr.bf16.mxu0 0
        %1750 = vmatmul.mubr.bf16.gmra.mxu0 %v1042
        %v1751 = vpop.f32.mrf.mxu0
        %v1752 = vadd.f32 %v897, %v1751
        %v1753 = vpop.f32.mrf.mxu0
        %v1754 = vadd.f32 %v901, %v1753
        %v1755 = vpop.f32.mrf.mxu0
        %v1756 = vadd.f32 %v897, %v1755
        %v1757 = vpop.f32.mrf.mxu0
        %v1758 = vadd.f32 %v901, %v1757
        %1759 = vmatprep.mubr.bf16.mxu0 0
        %1760 = vmatmul.mubr.bf16.gmra.mxu0 %v1045
        %v1761 = vpop.f32.mrf.mxu0
        %v1762 = vadd.f32 %v897, %v1761
        %v1763 = vpop.f32.mrf.mxu0
        %v1764 = vadd.f32 %v901, %v1763
        %v1765 = vpop.f32.mrf.mxu0
        %v1766 = vadd.f32 %v897, %v1765
        %v1767 = vpop.f32.mrf.mxu0
        %v1768 = vadd.f32 %v901, %v1767
        %1769 = vmatprep.mubr.bf16.mxu0 0
        %1770 = vmatmul.mubr.bf16.gmra.mxu0 %v1048
        %v1771 = vpop.f32.mrf.mxu0
        %v1772 = vadd.f32 %v897, %v1771
        %v1773 = vpop.f32.mrf.mxu0
        %v1774 = vadd.f32 %v901, %v1773
        %v1775 = vpop.f32.mrf.mxu0
        %v1776 = vadd.f32 %v897, %v1775
        %v1777 = vpop.f32.mrf.mxu0
        %v1778 = vadd.f32 %v901, %v1777
        %1779 = vmatprep.mubr.bf16.mxu0 0
        %1780 = vmatmul.mubr.bf16.gmra.mxu0 %v1051
        %v1781 = vpop.f32.mrf.mxu0
        %v1782 = vadd.f32 %v897, %v1781
        %v1783 = vpop.f32.mrf.mxu0
        %v1784 = vadd.f32 %v901, %v1783
        %v1785 = vpop.f32.mrf.mxu0
        %v1786 = vadd.f32 %v897, %v1785
        %v1787 = vpop.f32.mrf.mxu0
        %v1788 = vadd.f32 %v901, %v1787
        %1789 = vmatprep.mubr.bf16.mxu0 0
        %1790 = vmatmul.mubr.bf16.gmra.mxu0 %v1054
        %v1791 = vpop.f32.mrf.mxu0
        %v1792 = vadd.f32 %v897, %v1791
        %v1793 = vpop.f32.mrf.mxu0
        %v1794 = vadd.f32 %v901, %v1793
        %v1795 = vpop.f32.mrf.mxu0
        %v1796 = vadd.f32 %v897, %v1795
        %v1797 = vpop.f32.mrf.mxu0
        %v1798 = vadd.f32 %v901, %v1797
        %1799 = vmatprep.mubr.bf16.mxu0 0
        %1800 = vmatmul.mubr.bf16.gmra.mxu0 %v1057
        %v1801 = vpop.f32.mrf.mxu0
        %v1802 = vadd.f32 %v897, %v1801
        %v1803 = vpop.f32.mrf.mxu0
        %v1804 = vadd.f32 %v901, %v1803
        %v1805 = vpop.f32.mrf.mxu0
        %v1806 = vadd.f32 %v897, %v1805
        %v1807 = vpop.f32.mrf.mxu0
        %v1808 = vadd.f32 %v901, %v1807
        %1809 = vmatprep.mubr.bf16.mxu0 0
        %1810 = vmatmul.mubr.bf16.gmra.mxu0 %v1060
        %v1811 = vpop.f32.mrf.mxu0
        %v1812 = vadd.f32 %v897, %v1811
        %v1813 = vpop.f32.mrf.mxu0
        %v1814 = vadd.f32 %v901, %v1813
        %v1815 = vpop.f32.mrf.mxu0
        %v1816 = vadd.f32 %v897, %v1815
        %v1817 = vpop.f32.mrf.mxu0
        %v1818 = vadd.f32 %v901, %v1817
        %1819 = vmatprep.mubr.bf16.mxu0 0
        %1820 = vmatmul.mubr.bf16.gmra.mxu0 %v1063
        %v1821 = vpop.f32.mrf.mxu0
        %v1822 = vadd.f32 %v897, %v1821
        %v1823 = vpop.f32.mrf.mxu0
        %v1824 = vadd.f32 %v901, %v1823
        %v1825 = vpop.f32.mrf.mxu0
        %v1826 = vadd.f32 %v897, %v1825
        %v1827 = vpop.f32.mrf.mxu0
        %v1828 = vadd.f32 %v901, %v1827
        %1829 = vmatprep.mubr.bf16.mxu0 0
        %1830 = vmatmul.mubr.bf16.gmra.mxu0 %v1066
        %v1831 = vpop.f32.mrf.mxu0
        %v1832 = vadd.f32 %v897, %v1831
        %v1833 = vpop.f32.mrf.mxu0
        %v1834 = vadd.f32 %v901, %v1833
        %v1835 = vpop.f32.mrf.mxu0
        %v1836 = vadd.f32 %v897, %v1835
        %v1837 = vpop.f32.mrf.mxu0
        %v1838 = vadd.f32 %v901, %v1837
        %1839 = vdwg.mxu0
        %1840 = vmatprep.subr.bf16.mxu0 0
        %1841 = vmatpush1.bf16.msra.mxu0 0
        %1842 = vmatprep.subr.bf16.mxu0 0
        %1843 = vmatpush1.bf16.msra.mxu0 0
        %1844 = vmatprep.subr.bf16.mxu0 0
        %1845 = vmatpush1.bf16.msra.mxu0 0
        %1846 = vmatprep.subr.bf16.mxu0 0
        %1847 = vmatpush1.bf16.msra.mxu0 0
        %1848 = vmatprep.subr.bf16.mxu0 0
        %1849 = vmatpush1.bf16.msra.mxu0 0
        %1850 = vmatprep.subr.bf16.mxu0 0
        %1851 = vmatpush1.bf16.msra.mxu0 0
        %1852 = vmatprep.subr.bf16.mxu0 %v999
        %1853 = vmatpush1.bf16.msra.mxu0 %v998
        %1854 = vmatprep.subr.bf16.mxu0 %v989
        %1855 = vmatpush1.bf16.msra.mxu0 %v988
        %1856 = vmatprep.subr.bf16.mxu0 0
        %1857 = vmatpush2.bf16.msra.mxu0 0
        %1858 = vmatprep.subr.bf16.mxu0 0
        %1859 = vmatpush2.bf16.msra.mxu0 0
        %1860 = vmatprep.subr.bf16.mxu0 0
        %1861 = vmatpush2.bf16.msra.mxu0 0
        %1862 = vmatprep.subr.bf16.mxu0 0
        %1863 = vmatpush2.bf16.msra.mxu0 0
        %1864 = vmatprep.subr.bf16.mxu0 0
        %1865 = vmatpush2.bf16.msra.mxu0 0
        %1866 = vmatprep.subr.bf16.mxu0 0
        %1867 = vmatpush2.bf16.msra.mxu0 0
        %1868 = vmatprep.subr.bf16.mxu0 0
        %1869 = vmatpush2.bf16.msra.mxu0 0
        %1870 = vmatprep.subr.bf16.mxu0 0
        %1871 = vmatpush2.bf16.msra.mxu0 0
        %1872 = vmatprep.mubr.bf16.mxu0 0
        %1873 = vmatmul.mubr.bf16.gmra.mxu0 %v1021
        %v1874 = vpop.f32.mrf.mxu0
        %v1875 = vadd.f32 %v905, %v1874
        %v1876 = vpop.f32.mrf.mxu0
        %v1877 = vadd.f32 %v909, %v1876
        %v1878 = vpop.f32.mrf.mxu0
        %v1879 = vadd.f32 %v905, %v1878
        %v1880 = vpop.f32.mrf.mxu0
        %v1881 = vadd.f32 %v909, %v1880
        %1882 = vmatprep.mubr.bf16.mxu0 0
        %1883 = vmatmul.mubr.bf16.gmra.mxu0 %v1024
        %v1884 = vpop.f32.mrf.mxu0
        %v1885 = vadd.f32 %v905, %v1884
        %v1886 = vpop.f32.mrf.mxu0
        %v1887 = vadd.f32 %v909, %v1886
        %v1888 = vpop.f32.mrf.mxu0
        %v1889 = vadd.f32 %v905, %v1888
        %v1890 = vpop.f32.mrf.mxu0
        %v1891 = vadd.f32 %v909, %v1890
        %1892 = vmatprep.mubr.bf16.mxu0 0
        %1893 = vmatmul.mubr.bf16.gmra.mxu0 %v1027
        %v1894 = vpop.f32.mrf.mxu0
        %v1895 = vadd.f32 %v905, %v1894
        %v1896 = vpop.f32.mrf.mxu0
        %v1897 = vadd.f32 %v909, %v1896
        %v1898 = vpop.f32.mrf.mxu0
        %v1899 = vadd.f32 %v905, %v1898
        %v1900 = vpop.f32.mrf.mxu0
        %v1901 = vadd.f32 %v909, %v1900
        %1902 = vmatprep.mubr.bf16.mxu0 0
        %1903 = vmatmul.mubr.bf16.gmra.mxu0 %v1030
        %v1904 = vpop.f32.mrf.mxu0
        %v1905 = vadd.f32 %v905, %v1904
        %v1906 = vpop.f32.mrf.mxu0
        %v1907 = vadd.f32 %v909, %v1906
        %v1908 = vpop.f32.mrf.mxu0
        %v1909 = vadd.f32 %v905, %v1908
        %v1910 = vpop.f32.mrf.mxu0
        %v1911 = vadd.f32 %v909, %v1910
        %1912 = vmatprep.mubr.bf16.mxu0 0
        %1913 = vmatmul.mubr.bf16.gmra.mxu0 %v1033
        %v1914 = vpop.f32.mrf.mxu0
        %v1915 = vadd.f32 %v905, %v1914
        %v1916 = vpop.f32.mrf.mxu0
        %v1917 = vadd.f32 %v909, %v1916
        %v1918 = vpop.f32.mrf.mxu0
        %v1919 = vadd.f32 %v905, %v1918
        %v1920 = vpop.f32.mrf.mxu0
        %v1921 = vadd.f32 %v909, %v1920
        %1922 = vmatprep.mubr.bf16.mxu0 0
        %1923 = vmatmul.mubr.bf16.gmra.mxu0 %v1036
        %v1924 = vpop.f32.mrf.mxu0
        %v1925 = vadd.f32 %v905, %v1924
        %v1926 = vpop.f32.mrf.mxu0
        %v1927 = vadd.f32 %v909, %v1926
        %v1928 = vpop.f32.mrf.mxu0
        %v1929 = vadd.f32 %v905, %v1928
        %v1930 = vpop.f32.mrf.mxu0
        %v1931 = vadd.f32 %v909, %v1930
        %1932 = vmatprep.mubr.bf16.mxu0 0
        %1933 = vmatmul.mubr.bf16.gmra.mxu0 %v1039
        %v1934 = vpop.f32.mrf.mxu0
        %v1935 = vadd.f32 %v905, %v1934
        %v1936 = vpop.f32.mrf.mxu0
        %v1937 = vadd.f32 %v909, %v1936
        %v1938 = vpop.f32.mrf.mxu0
        %v1939 = vadd.f32 %v905, %v1938
        %v1940 = vpop.f32.mrf.mxu0
        %v1941 = vadd.f32 %v909, %v1940
        %1942 = vmatprep.mubr.bf16.mxu0 0
        %1943 = vmatmul.mubr.bf16.gmra.mxu0 %v1042
        %v1944 = vpop.f32.mrf.mxu0
        %v1945 = vadd.f32 %v905, %v1944
        %v1946 = vpop.f32.mrf.mxu0
        %v1947 = vadd.f32 %v909, %v1946
        %v1948 = vpop.f32.mrf.mxu0
        %v1949 = vadd.f32 %v905, %v1948
        %v1950 = vpop.f32.mrf.mxu0
        %v1951 = vadd.f32 %v909, %v1950
        %1952 = vmatprep.mubr.bf16.mxu0 0
        %1953 = vmatmul.mubr.bf16.gmra.mxu0 %v1045
        %v1954 = vpop.f32.mrf.mxu0
        %v1955 = vadd.f32 %v905, %v1954
        %v1956 = vpop.f32.mrf.mxu0
        %v1957 = vadd.f32 %v909, %v1956
        %v1958 = vpop.f32.mrf.mxu0
        %v1959 = vadd.f32 %v905, %v1958
        %v1960 = vpop.f32.mrf.mxu0
        %v1961 = vadd.f32 %v909, %v1960
        %1962 = vmatprep.mubr.bf16.mxu0 0
        %1963 = vmatmul.mubr.bf16.gmra.mxu0 %v1048
        %v1964 = vpop.f32.mrf.mxu0
        %v1965 = vadd.f32 %v905, %v1964
        %v1966 = vpop.f32.mrf.mxu0
        %v1967 = vadd.f32 %v909, %v1966
        %v1968 = vpop.f32.mrf.mxu0
        %v1969 = vadd.f32 %v905, %v1968
        %v1970 = vpop.f32.mrf.mxu0
        %v1971 = vadd.f32 %v909, %v1970
        %1972 = vmatprep.mubr.bf16.mxu0 0
        %1973 = vmatmul.mubr.bf16.gmra.mxu0 %v1051
        %v1974 = vpop.f32.mrf.mxu0
        %v1975 = vadd.f32 %v905, %v1974
        %v1976 = vpop.f32.mrf.mxu0
        %v1977 = vadd.f32 %v909, %v1976
        %v1978 = vpop.f32.mrf.mxu0
        %v1979 = vadd.f32 %v905, %v1978
        %v1980 = vpop.f32.mrf.mxu0
        %v1981 = vadd.f32 %v909, %v1980
        %1982 = vmatprep.mubr.bf16.mxu0 0
        %1983 = vmatmul.mubr.bf16.gmra.mxu0 %v1054
        %v1984 = vpop.f32.mrf.mxu0
        %v1985 = vadd.f32 %v905, %v1984
        %v1986 = vpop.f32.mrf.mxu0
        %v1987 = vadd.f32 %v909, %v1986
        %v1988 = vpop.f32.mrf.mxu0
        %v1989 = vadd.f32 %v905, %v1988
        %v1990 = vpop.f32.mrf.mxu0
        %v1991 = vadd.f32 %v909, %v1990
        %1992 = vmatprep.mubr.bf16.mxu0 0
        %1993 = vmatmul.mubr.bf16.gmra.mxu0 %v1057
        %v1994 = vpop.f32.mrf.mxu0
        %v1995 = vadd.f32 %v905, %v1994
        %v1996 = vpop.f32.mrf.mxu0
        %v1997 = vadd.f32 %v909, %v1996
        %v1998 = vpop.f32.mrf.mxu0
        %v1999 = vadd.f32 %v905, %v1998
        %v2000 = vpop.f32.mrf.mxu0
        %v2001 = vadd.f32 %v909, %v2000
        %2002 = vmatprep.mubr.bf16.mxu0 0
        %2003 = vmatmul.mubr.bf16.gmra.mxu0 %v1060
        %v2004 = vpop.f32.mrf.mxu0
        %v2005 = vadd.f32 %v905, %v2004
        %v2006 = vpop.f32.mrf.mxu0
        %v2007 = vadd.f32 %v909, %v2006
        %v2008 = vpop.f32.mrf.mxu0
        %v2009 = vadd.f32 %v905, %v2008
        %v2010 = vpop.f32.mrf.mxu0
        %v2011 = vadd.f32 %v909, %v2010
        %2012 = vmatprep.mubr.bf16.mxu0 0
        %2013 = vmatmul.mubr.bf16.gmra.mxu0 %v1063
        %v2014 = vpop.f32.mrf.mxu0
        %v2015 = vadd.f32 %v905, %v2014
        %v2016 = vpop.f32.mrf.mxu0
        %v2017 = vadd.f32 %v909, %v2016
        %v2018 = vpop.f32.mrf.mxu0
        %v2019 = vadd.f32 %v905, %v2018
        %v2020 = vpop.f32.mrf.mxu0
        %v2021 = vadd.f32 %v909, %v2020
        %2022 = vmatprep.mubr.bf16.mxu0 0
        %2023 = vmatmul.mubr.bf16.gmra.mxu0 %v1066
        %v2024 = vpop.f32.mrf.mxu0
        %v2025 = vadd.f32 %v905, %v2024
        %v2026 = vpop.f32.mrf.mxu0
        %v2027 = vadd.f32 %v909, %v2026
        %v2028 = vpop.f32.mrf.mxu0
        %v2029 = vadd.f32 %v905, %v2028
        %v2030 = vpop.f32.mrf.mxu0
        %v2031 = vadd.f32 %v909, %v2030
        %2032 = vdwg.mxu0
        %v2033 = vxor.u32 %v1103, 2147483648
        %v2034 = vxor.u32 %v1105, 2147483648
        %v2035 = vxor.u32 %v1296, 2147483648
        %v2036 = vxor.u32 %v1298, 2147483648
        %v2037 = vxor.u32 %v1489, 2147483648
        %v2038 = vxor.u32 %v1491, 2147483648
        %v2039 = vxor.u32 %v1682, 2147483648
        %v2040 = vxor.u32 %v1684, 2147483648
        %v2041 = vxor.u32 %v1875, 2147483648
        %v2042 = vxor.u32 %v1877, 2147483648
        %v2043 = vxor.u32 %v1107, 2147483648
        %v2044 = vxor.u32 %v1109, 2147483648
        %v2045 = vxor.u32 %v1300, 2147483648
        %v2046 = vxor.u32 %v1302, 2147483648
        %v2047 = vxor.u32 %v1493, 2147483648
        %v2048 = vxor.u32 %v1495, 2147483648
        %v2049 = vxor.u32 %v1686, 2147483648
        %v2050 = vxor.u32 %v1688, 2147483648
        %v2051 = vxor.u32 %v1879, 2147483648
        %v2052 = vxor.u32 %v1881, 2147483648
        %v2053 = vxor.u32 %v1113, 2147483648
        %v2054 = vxor.u32 %v1115, 2147483648
        %v2055 = vxor.u32 %v1306, 2147483648
        %v2056 = vxor.u32 %v1308, 2147483648
        %v2057 = vxor.u32 %v1499, 2147483648
        %v2058 = vxor.u32 %v1501, 2147483648
        %v2059 = vxor.u32 %v1692, 2147483648
        %v2060 = vxor.u32 %v1694, 2147483648
        %v2061 = vxor.u32 %v1885, 2147483648
        %v2062 = vxor.u32 %v1887, 2147483648
        %v2063 = vxor.u32 %v1117, 2147483648
        %v2064 = vxor.u32 %v1119, 2147483648
        %v2065 = vxor.u32 %v1310, 2147483648
        %v2066 = vxor.u32 %v1312, 2147483648
        %v2067 = vxor.u32 %v1503, 2147483648
        %v2068 = vxor.u32 %v1505, 2147483648
        %v2069 = vxor.u32 %v1696, 2147483648
        %v2070 = vxor.u32 %v1698, 2147483648
        %v2071 = vxor.u32 %v1889, 2147483648
        %v2072 = vxor.u32 %v1891, 2147483648
        %v2073 = vxor.u32 %v1123, 2147483648
        %v2074 = vxor.u32 %v1125, 2147483648
        %v2075 = vxor.u32 %v1316, 2147483648
        %v2076 = vxor.u32 %v1318, 2147483648
        %v2077 = vxor.u32 %v1509, 2147483648
        %v2078 = vxor.u32 %v1511, 2147483648
        %v2079 = vxor.u32 %v1702, 2147483648
        %v2080 = vxor.u32 %v1704, 2147483648
        %v2081 = vxor.u32 %v1895, 2147483648
        %v2082 = vxor.u32 %v1897, 2147483648
        %v2083 = vxor.u32 %v1127, 2147483648
        %v2084 = vxor.u32 %v1129, 2147483648
        %v2085 = vxor.u32 %v1320, 2147483648
        %v2086 = vxor.u32 %v1322, 2147483648
        %v2087 = vxor.u32 %v1513, 2147483648
        %v2088 = vxor.u32 %v1515, 2147483648
        %v2089 = vxor.u32 %v1706, 2147483648
        %v2090 = vxor.u32 %v1708, 2147483648
        %v2091 = vxor.u32 %v1899, 2147483648
        %v2092 = vxor.u32 %v1901, 2147483648
        %v2093 = vxor.u32 %v1133, 2147483648
        %v2094 = vxor.u32 %v1135, 2147483648
        %v2095 = vxor.u32 %v1326, 2147483648
        %v2096 = vxor.u32 %v1328, 2147483648
        %v2097 = vxor.u32 %v1519, 2147483648
        %v2098 = vxor.u32 %v1521, 2147483648
        %v2099 = vxor.u32 %v1712, 2147483648
        %v2100 = vxor.u32 %v1714, 2147483648
        %v2101 = vxor.u32 %v1905, 2147483648
        %v2102 = vxor.u32 %v1907, 2147483648
        %v2103 = vxor.u32 %v1137, 2147483648
        %v2104 = vxor.u32 %v1139, 2147483648
        %v2105 = vxor.u32 %v1330, 2147483648
        %v2106 = vxor.u32 %v1332, 2147483648
        %v2107 = vxor.u32 %v1523, 2147483648
        %v2108 = vxor.u32 %v1525, 2147483648
        %v2109 = vxor.u32 %v1716, 2147483648
        %v2110 = vxor.u32 %v1718, 2147483648
        %v2111 = vxor.u32 %v1909, 2147483648
        %v2112 = vxor.u32 %v1911, 2147483648
        %v2113 = vxor.u32 %v1143, 2147483648
        %v2114 = vxor.u32 %v1145, 2147483648
        %v2115 = vxor.u32 %v1336, 2147483648
        %v2116 = vxor.u32 %v1338, 2147483648
        %v2117 = vxor.u32 %v1529, 2147483648
        %v2118 = vxor.u32 %v1531, 2147483648
        %v2119 = vxor.u32 %v1722, 2147483648
        %v2120 = vxor.u32 %v1724, 2147483648
        %v2121 = vxor.u32 %v1915, 2147483648
        %v2122 = vxor.u32 %v1917, 2147483648
        %v2123 = vxor.u32 %v1147, 2147483648
        %v2124 = vxor.u32 %v1149, 2147483648
        %v2125 = vxor.u32 %v1340, 2147483648
        %v2126 = vxor.u32 %v1342, 2147483648
        %v2127 = vxor.u32 %v1533, 2147483648
        %v2128 = vxor.u32 %v1535, 2147483648
        %v2129 = vxor.u32 %v1726, 2147483648
        %v2130 = vxor.u32 %v1728, 2147483648
        %v2131 = vxor.u32 %v1919, 2147483648
        %v2132 = vxor.u32 %v1921, 2147483648
        %v2133 = vxor.u32 %v1153, 2147483648
        %v2134 = vxor.u32 %v1155, 2147483648
        %v2135 = vxor.u32 %v1346, 2147483648
        %v2136 = vxor.u32 %v1348, 2147483648
        %v2137 = vxor.u32 %v1539, 2147483648
        %v2138 = vxor.u32 %v1541, 2147483648
        %v2139 = vxor.u32 %v1732, 2147483648
        %v2140 = vxor.u32 %v1734, 2147483648
        %v2141 = vxor.u32 %v1925, 2147483648
        %v2142 = vxor.u32 %v1927, 2147483648
        %v2143 = vxor.u32 %v1157, 2147483648
        %v2144 = vxor.u32 %v1159, 2147483648
        %v2145 = vxor.u32 %v1350, 2147483648
        %v2146 = vxor.u32 %v1352, 2147483648
        %v2147 = vxor.u32 %v1543, 2147483648
        %v2148 = vxor.u32 %v1545, 2147483648
        %v2149 = vxor.u32 %v1736, 2147483648
        %v2150 = vxor.u32 %v1738, 2147483648
        %v2151 = vxor.u32 %v1929, 2147483648
        %v2152 = vxor.u32 %v1931, 2147483648
        %v2153 = vxor.u32 %v1163, 2147483648
        %v2154 = vxor.u32 %v1165, 2147483648
        %v2155 = vxor.u32 %v1356, 2147483648
        %v2156 = vxor.u32 %v1358, 2147483648
        %v2157 = vxor.u32 %v1549, 2147483648
        %v2158 = vxor.u32 %v1551, 2147483648
        %v2159 = vxor.u32 %v1742, 2147483648
        %v2160 = vxor.u32 %v1744, 2147483648
        %v2161 = vxor.u32 %v1935, 2147483648
        %v2162 = vxor.u32 %v1937, 2147483648
        %v2163 = vxor.u32 %v1167, 2147483648
        %v2164 = vxor.u32 %v1169, 2147483648
        %v2165 = vxor.u32 %v1360, 2147483648
        %v2166 = vxor.u32 %v1362, 2147483648
        %v2167 = vxor.u32 %v1553, 2147483648
        %v2168 = vxor.u32 %v1555, 2147483648
        %v2169 = vxor.u32 %v1746, 2147483648
        %v2170 = vxor.u32 %v1748, 2147483648
        %v2171 = vxor.u32 %v1939, 2147483648
        %v2172 = vxor.u32 %v1941, 2147483648
        %v2173 = vxor.u32 %v1173, 2147483648
        %v2174 = vxor.u32 %v1175, 2147483648
        %v2175 = vxor.u32 %v1366, 2147483648
        %v2176 = vxor.u32 %v1368, 2147483648
        %v2177 = vxor.u32 %v1559, 2147483648
        %v2178 = vxor.u32 %v1561, 2147483648
        %v2179 = vxor.u32 %v1752, 2147483648
        %v2180 = vxor.u32 %v1754, 2147483648
        %v2181 = vxor.u32 %v1945, 2147483648
        %v2182 = vxor.u32 %v1947, 2147483648
        %v2183 = vxor.u32 %v1177, 2147483648
        %v2184 = vxor.u32 %v1179, 2147483648
        %v2185 = vxor.u32 %v1370, 2147483648
        %v2186 = vxor.u32 %v1372, 2147483648
        %v2187 = vxor.u32 %v1563, 2147483648
        %v2188 = vxor.u32 %v1565, 2147483648
        %v2189 = vxor.u32 %v1756, 2147483648
        %v2190 = vxor.u32 %v1758, 2147483648
        %v2191 = vxor.u32 %v1949, 2147483648
        %v2192 = vxor.u32 %v1951, 2147483648
        %v2193 = vxor.u32 %v1183, 2147483648
        %v2194 = vxor.u32 %v1185, 2147483648
        %v2195 = vxor.u32 %v1376, 2147483648
        %v2196 = vxor.u32 %v1378, 2147483648
        %v2197 = vxor.u32 %v1569, 2147483648
        %v2198 = vxor.u32 %v1571, 2147483648
        %v2199 = vxor.u32 %v1762, 2147483648
        %v2200 = vxor.u32 %v1764, 2147483648
        %v2201 = vxor.u32 %v1955, 2147483648
        %v2202 = vxor.u32 %v1957, 2147483648
        %v2203 = vxor.u32 %v1187, 2147483648
        %v2204 = vxor.u32 %v1189, 2147483648
        %v2205 = vxor.u32 %v1380, 2147483648
        %v2206 = vxor.u32 %v1382, 2147483648
        %v2207 = vxor.u32 %v1573, 2147483648
        %v2208 = vxor.u32 %v1575, 2147483648
        %v2209 = vxor.u32 %v1766, 2147483648
        %v2210 = vxor.u32 %v1768, 2147483648
        %v2211 = vxor.u32 %v1959, 2147483648
        %v2212 = vxor.u32 %v1961, 2147483648
        %v2213 = vxor.u32 %v1193, 2147483648
        %v2214 = vxor.u32 %v1195, 2147483648
        %v2215 = vxor.u32 %v1386, 2147483648
        %v2216 = vxor.u32 %v1388, 2147483648
        %v2217 = vxor.u32 %v1579, 2147483648
        %v2218 = vxor.u32 %v1581, 2147483648
        %v2219 = vxor.u32 %v1772, 2147483648
        %v2220 = vxor.u32 %v1774, 2147483648
        %v2221 = vxor.u32 %v1965, 2147483648
        %v2222 = vxor.u32 %v1967, 2147483648
        %v2223 = vxor.u32 %v1197, 2147483648
        %v2224 = vxor.u32 %v1199, 2147483648
        %v2225 = vxor.u32 %v1390, 2147483648
        %v2226 = vxor.u32 %v1392, 2147483648
        %v2227 = vxor.u32 %v1583, 2147483648
        %v2228 = vxor.u32 %v1585, 2147483648
        %v2229 = vxor.u32 %v1776, 2147483648
        %v2230 = vxor.u32 %v1778, 2147483648
        %v2231 = vxor.u32 %v1969, 2147483648
        %v2232 = vxor.u32 %v1971, 2147483648
        %v2233 = vxor.u32 %v1203, 2147483648
        %v2234 = vxor.u32 %v1205, 2147483648
        %v2235 = vxor.u32 %v1396, 2147483648
        %v2236 = vxor.u32 %v1398, 2147483648
        %v2237 = vxor.u32 %v1589, 2147483648
        %v2238 = vxor.u32 %v1591, 2147483648
        %v2239 = vxor.u32 %v1782, 2147483648
        %v2240 = vxor.u32 %v1784, 2147483648
        %v2241 = vxor.u32 %v1975, 2147483648
        %v2242 = vxor.u32 %v1977, 2147483648
        %v2243 = vxor.u32 %v1207, 2147483648
        %v2244 = vxor.u32 %v1209, 2147483648
        %v2245 = vxor.u32 %v1400, 2147483648
        %v2246 = vxor.u32 %v1402, 2147483648
        %v2247 = vxor.u32 %v1593, 2147483648
        %v2248 = vxor.u32 %v1595, 2147483648
        %v2249 = vxor.u32 %v1786, 2147483648
        %v2250 = vxor.u32 %v1788, 2147483648
        %v2251 = vxor.u32 %v1979, 2147483648
        %v2252 = vxor.u32 %v1981, 2147483648
        %v2253 = vxor.u32 %v1213, 2147483648
        %v2254 = vxor.u32 %v1215, 2147483648
        %v2255 = vxor.u32 %v1406, 2147483648
        %v2256 = vxor.u32 %v1408, 2147483648
        %v2257 = vxor.u32 %v1599, 2147483648
        %v2258 = vxor.u32 %v1601, 2147483648
        %v2259 = vxor.u32 %v1792, 2147483648
        %v2260 = vxor.u32 %v1794, 2147483648
        %v2261 = vxor.u32 %v1985, 2147483648
        %v2262 = vxor.u32 %v1987, 2147483648
        %v2263 = vxor.u32 %v1217, 2147483648
        %v2264 = vxor.u32 %v1219, 2147483648
        %v2265 = vxor.u32 %v1410, 2147483648
        %v2266 = vxor.u32 %v1412, 2147483648
        %v2267 = vxor.u32 %v1603, 2147483648
        %v2268 = vxor.u32 %v1605, 2147483648
        %v2269 = vxor.u32 %v1796, 2147483648
        %v2270 = vxor.u32 %v1798, 2147483648
        %v2271 = vxor.u32 %v1989, 2147483648
        %v2272 = vxor.u32 %v1991, 2147483648
        %v2273 = vxor.u32 %v1223, 2147483648
        %v2274 = vxor.u32 %v1225, 2147483648
        %v2275 = vxor.u32 %v1416, 2147483648
        %v2276 = vxor.u32 %v1418, 2147483648
        %v2277 = vxor.u32 %v1609, 2147483648
        %v2278 = vxor.u32 %v1611, 2147483648
        %v2279 = vxor.u32 %v1802, 2147483648
        %v2280 = vxor.u32 %v1804, 2147483648
        %v2281 = vxor.u32 %v1995, 2147483648
        %v2282 = vxor.u32 %v1997, 2147483648
        %v2283 = vxor.u32 %v1227, 2147483648
        %v2284 = vxor.u32 %v1229, 2147483648
        %v2285 = vxor.u32 %v1420, 2147483648
        %v2286 = vxor.u32 %v1422, 2147483648
        %v2287 = vxor.u32 %v1613, 2147483648
        %v2288 = vxor.u32 %v1615, 2147483648
        %v2289 = vxor.u32 %v1806, 2147483648
        %v2290 = vxor.u32 %v1808, 2147483648
        %v2291 = vxor.u32 %v1999, 2147483648
        %v2292 = vxor.u32 %v2001, 2147483648
        %v2293 = vxor.u32 %v1233, 2147483648
        %v2294 = vxor.u32 %v1235, 2147483648
        %v2295 = vxor.u32 %v1426, 2147483648
        %v2296 = vxor.u32 %v1428, 2147483648
        %v2297 = vxor.u32 %v1619, 2147483648
        %v2298 = vxor.u32 %v1621, 2147483648
        %v2299 = vxor.u32 %v1812, 2147483648
        %v2300 = vxor.u32 %v1814, 2147483648
        %v2301 = vxor.u32 %v2005, 2147483648
        %v2302 = vxor.u32 %v2007, 2147483648
        %v2303 = vxor.u32 %v1237, 2147483648
        %v2304 = vxor.u32 %v1239, 2147483648
        %v2305 = vxor.u32 %v1430, 2147483648
        %v2306 = vxor.u32 %v1432, 2147483648
        %v2307 = vxor.u32 %v1623, 2147483648
        %v2308 = vxor.u32 %v1625, 2147483648
        %v2309 = vxor.u32 %v1816, 2147483648
        %v2310 = vxor.u32 %v1818, 2147483648
        %v2311 = vxor.u32 %v2009, 2147483648
        %v2312 = vxor.u32 %v2011, 2147483648
        %v2313 = vxor.u32 %v1243, 2147483648
        %v2314 = vxor.u32 %v1245, 2147483648
        %v2315 = vxor.u32 %v1436, 2147483648
        %v2316 = vxor.u32 %v1438, 2147483648
        %v2317 = vxor.u32 %v1629, 2147483648
        %v2318 = vxor.u32 %v1631, 2147483648
        %v2319 = vxor.u32 %v1822, 2147483648
        %v2320 = vxor.u32 %v1824, 2147483648
        %v2321 = vxor.u32 %v2015, 2147483648
        %v2322 = vxor.u32 %v2017, 2147483648
        %v2323 = vxor.u32 %v1247, 2147483648
        %v2324 = vxor.u32 %v1249, 2147483648
        %v2325 = vxor.u32 %v1440, 2147483648
        %v2326 = vxor.u32 %v1442, 2147483648
        %v2327 = vxor.u32 %v1633, 2147483648
        %v2328 = vxor.u32 %v1635, 2147483648
        %v2329 = vxor.u32 %v1826, 2147483648
        %v2330 = vxor.u32 %v1828, 2147483648
        %v2331 = vxor.u32 %v2019, 2147483648
        %v2332 = vxor.u32 %v2021, 2147483648
        %v2333 = vxor.u32 %v1253, 2147483648
        %v2334 = vxor.u32 %v1255, 2147483648
        %v2335 = vxor.u32 %v1446, 2147483648
        %v2336 = vxor.u32 %v1448, 2147483648
        %v2337 = vxor.u32 %v1639, 2147483648
        %v2338 = vxor.u32 %v1641, 2147483648
        %v2339 = vxor.u32 %v1832, 2147483648
        %v2340 = vxor.u32 %v1834, 2147483648
        %v2341 = vxor.u32 %v2025, 2147483648
        %v2342 = vxor.u32 %v2027, 2147483648
        %v2343 = vxor.u32 %v1257, 2147483648
        %v2344 = vxor.u32 %v1259, 2147483648
        %v2345 = vxor.u32 %v1450, 2147483648
        %v2346 = vxor.u32 %v1452, 2147483648
        %v2347 = vxor.u32 %v1643, 2147483648
        %v2348 = vxor.u32 %v1645, 2147483648
        %v2349 = vxor.u32 %v1836, 2147483648
        %v2350 = vxor.u32 %v1838, 2147483648
        %v2351 = vxor.u32 %v2029, 2147483648
        %v2352 = vxor.u32 %v2031, 2147483648
        %v2353 = vmul.f32 %v2033, 1.442695
        %v2354 = vpow.pop %v2353
        %v2355 = vmul.f32 %v2034, 1.442695
        %v2356 = vpow.pop %v2355
        %v2357 = vmul.f32 %v2035, 1.442695
        %v2358 = vpow.pop %v2357
        %v2359 = vmul.f32 %v2036, 1.442695
        %v2360 = vpow.pop %v2359
        %v2361 = vmul.f32 %v2037, 1.442695
        %v2362 = vpow.pop %v2361
        %v2363 = vmul.f32 %v2038, 1.442695
        %v2364 = vpow.pop %v2363
        %v2365 = vmul.f32 %v2039, 1.442695
        %v2366 = vpow.pop %v2365
        %v2367 = vmul.f32 %v2040, 1.442695
        %v2368 = vpow.pop %v2367
        %v2369 = vmul.f32 %v2041, 1.442695
        %v2370 = vpow.pop %v2369
        %v2371 = vmul.f32 %v2042, 1.442695
        %v2372 = vpow.pop %v2371
        %v2373 = vmul.f32 %v2043, 1.442695
        %v2374 = vpow.pop %v2373
        %v2375 = vmul.f32 %v2044, 1.442695
        %v2376 = vpow.pop %v2375
        %v2377 = vmul.f32 %v2045, 1.442695
        %v2378 = vpow.pop %v2377
        %v2379 = vmul.f32 %v2046, 1.442695
        %v2380 = vpow.pop %v2379
        %v2381 = vmul.f32 %v2047, 1.442695
        %v2382 = vpow.pop %v2381
        %v2383 = vmul.f32 %v2048, 1.442695
        %v2384 = vpow.pop %v2383
        %v2385 = vmul.f32 %v2049, 1.442695
        %v2386 = vpow.pop %v2385
        %v2387 = vmul.f32 %v2050, 1.442695
        %v2388 = vpow.pop %v2387
        %v2389 = vmul.f32 %v2051, 1.442695
        %v2390 = vpow.pop %v2389
        %v2391 = vmul.f32 %v2052, 1.442695
        %v2392 = vpow.pop %v2391
        %v2393 = vmul.f32 %v2053, 1.442695
        %v2394 = vpow.pop %v2393
        %v2395 = vmul.f32 %v2054, 1.442695
        %v2396 = vpow.pop %v2395
        %v2397 = vmul.f32 %v2055, 1.442695
        %v2398 = vpow.pop %v2397
        %v2399 = vmul.f32 %v2056, 1.442695
        %v2400 = vpow.pop %v2399
        %v2401 = vmul.f32 %v2057, 1.442695
        %v2402 = vpow.pop %v2401
        %v2403 = vmul.f32 %v2058, 1.442695
        %v2404 = vpow.pop %v2403
        %v2405 = vmul.f32 %v2059, 1.442695
        %v2406 = vpow.pop %v2405
        %v2407 = vmul.f32 %v2060, 1.442695
        %v2408 = vpow.pop %v2407
        %v2409 = vmul.f32 %v2061, 1.442695
        %v2410 = vpow.pop %v2409
        %v2411 = vmul.f32 %v2062, 1.442695
        %v2412 = vpow.pop %v2411
        %v2413 = vmul.f32 %v2063, 1.442695
        %v2414 = vpow.pop %v2413
        %v2415 = vmul.f32 %v2064, 1.442695
        %v2416 = vpow.pop %v2415
        %v2417 = vmul.f32 %v2065, 1.442695
        %v2418 = vpow.pop %v2417
        %v2419 = vmul.f32 %v2066, 1.442695
        %v2420 = vpow.pop %v2419
        %v2421 = vmul.f32 %v2067, 1.442695
        %v2422 = vpow.pop %v2421
        %v2423 = vmul.f32 %v2068, 1.442695
        %v2424 = vpow.pop %v2423
        %v2425 = vmul.f32 %v2069, 1.442695
        %v2426 = vpow.pop %v2425
        %v2427 = vmul.f32 %v2070, 1.442695
        %v2428 = vpow.pop %v2427
        %v2429 = vmul.f32 %v2071, 1.442695
        %v2430 = vpow.pop %v2429
        %v2431 = vmul.f32 %v2072, 1.442695
        %v2432 = vpow.pop %v2431
        %v2433 = vmul.f32 %v2073, 1.442695
        %v2434 = vpow.pop %v2433
        %v2435 = vmul.f32 %v2074, 1.442695
        %v2436 = vpow.pop %v2435
        %v2437 = vmul.f32 %v2075, 1.442695
        %v2438 = vpow.pop %v2437
        %v2439 = vmul.f32 %v2076, 1.442695
        %v2440 = vpow.pop %v2439
        %v2441 = vmul.f32 %v2077, 1.442695
        %v2442 = vpow.pop %v2441
        %v2443 = vmul.f32 %v2078, 1.442695
        %v2444 = vpow.pop %v2443
        %v2445 = vmul.f32 %v2079, 1.442695
        %v2446 = vpow.pop %v2445
        %v2447 = vmul.f32 %v2080, 1.442695
        %v2448 = vpow.pop %v2447
        %v2449 = vmul.f32 %v2081, 1.442695
        %v2450 = vpow.pop %v2449
        %v2451 = vmul.f32 %v2082, 1.442695
        %v2452 = vpow.pop %v2451
        %v2453 = vmul.f32 %v2083, 1.442695
        %v2454 = vpow.pop %v2453
        %v2455 = vmul.f32 %v2084, 1.442695
        %v2456 = vpow.pop %v2455
        %v2457 = vmul.f32 %v2085, 1.442695
        %v2458 = vpow.pop %v2457
        %v2459 = vmul.f32 %v2086, 1.442695
        %v2460 = vpow.pop %v2459
        %v2461 = vmul.f32 %v2087, 1.442695
        %v2462 = vpow.pop %v2461
        %v2463 = vmul.f32 %v2088, 1.442695
        %v2464 = vpow.pop %v2463
        %v2465 = vmul.f32 %v2089, 1.442695
        %v2466 = vpow.pop %v2465
        %v2467 = vmul.f32 %v2090, 1.442695
        %v2468 = vpow.pop %v2467
        %v2469 = vmul.f32 %v2091, 1.442695
        %v2470 = vpow.pop %v2469
        %v2471 = vmul.f32 %v2092, 1.442695
        %v2472 = vpow.pop %v2471
        %v2473 = vmul.f32 %v2093, 1.442695
        %v2474 = vpow.pop %v2473
        %v2475 = vmul.f32 %v2094, 1.442695
        %v2476 = vpow.pop %v2475
        %v2477 = vmul.f32 %v2095, 1.442695
        %v2478 = vpow.pop %v2477
        %v2479 = vmul.f32 %v2096, 1.442695
        %v2480 = vpow.pop %v2479
        %v2481 = vmul.f32 %v2097, 1.442695
        %v2482 = vpow.pop %v2481
        %v2483 = vmul.f32 %v2098, 1.442695
        %v2484 = vpow.pop %v2483
        %v2485 = vmul.f32 %v2099, 1.442695
        %v2486 = vpow.pop %v2485
        %v2487 = vmul.f32 %v2100, 1.442695
        %v2488 = vpow.pop %v2487
        %v2489 = vmul.f32 %v2101, 1.442695
        %v2490 = vpow.pop %v2489
        %v2491 = vmul.f32 %v2102, 1.442695
        %v2492 = vpow.pop %v2491
        %v2493 = vmul.f32 %v2103, 1.442695
        %v2494 = vpow.pop %v2493
        %v2495 = vmul.f32 %v2104, 1.442695
        %v2496 = vpow.pop %v2495
        %v2497 = vmul.f32 %v2105, 1.442695
        %v2498 = vpow.pop %v2497
        %v2499 = vmul.f32 %v2106, 1.442695
        %v2500 = vpow.pop %v2499
        %v2501 = vmul.f32 %v2107, 1.442695
        %v2502 = vpow.pop %v2501
        %v2503 = vmul.f32 %v2108, 1.442695
        %v2504 = vpow.pop %v2503
        %v2505 = vmul.f32 %v2109, 1.442695
        %v2506 = vpow.pop %v2505
        %v2507 = vmul.f32 %v2110, 1.442695
        %v2508 = vpow.pop %v2507
        %v2509 = vmul.f32 %v2111, 1.442695
        %v2510 = vpow.pop %v2509
        %v2511 = vmul.f32 %v2112, 1.442695
        %v2512 = vpow.pop %v2511
        %v2513 = vmul.f32 %v2113, 1.442695
        %v2514 = vpow.pop %v2513
        %v2515 = vmul.f32 %v2114, 1.442695
        %v2516 = vpow.pop %v2515
        %v2517 = vmul.f32 %v2115, 1.442695
        %v2518 = vpow.pop %v2517
        %v2519 = vmul.f32 %v2116, 1.442695
        %v2520 = vpow.pop %v2519
        %v2521 = vmul.f32 %v2117, 1.442695
        %v2522 = vpow.pop %v2521
        %v2523 = vmul.f32 %v2118, 1.442695
        %v2524 = vpow.pop %v2523
        %v2525 = vmul.f32 %v2119, 1.442695
        %v2526 = vpow.pop %v2525
        %v2527 = vmul.f32 %v2120, 1.442695
        %v2528 = vpow.pop %v2527
        %v2529 = vmul.f32 %v2121, 1.442695
        %v2530 = vpow.pop %v2529
        %v2531 = vmul.f32 %v2122, 1.442695
        %v2532 = vpow.pop %v2531
        %v2533 = vmul.f32 %v2123, 1.442695
        %v2534 = vpow.pop %v2533
        %v2535 = vmul.f32 %v2124, 1.442695
        %v2536 = vpow.pop %v2535
        %v2537 = vmul.f32 %v2125, 1.442695
        %v2538 = vpow.pop %v2537
        %v2539 = vmul.f32 %v2126, 1.442695
        %v2540 = vpow.pop %v2539
        %v2541 = vmul.f32 %v2127, 1.442695
        %v2542 = vpow.pop %v2541
        %v2543 = vmul.f32 %v2128, 1.442695
        %v2544 = vpow.pop %v2543
        %v2545 = vmul.f32 %v2129, 1.442695
        %v2546 = vpow.pop %v2545
        %v2547 = vmul.f32 %v2130, 1.442695
        %v2548 = vpow.pop %v2547
        %v2549 = vmul.f32 %v2131, 1.442695
        %v2550 = vpow.pop %v2549
        %v2551 = vmul.f32 %v2132, 1.442695
        %v2552 = vpow.pop %v2551
        %v2553 = vmul.f32 %v2133, 1.442695
        %v2554 = vpow.pop %v2553
        %v2555 = vmul.f32 %v2134, 1.442695
        %v2556 = vpow.pop %v2555
        %v2557 = vmul.f32 %v2135, 1.442695
        %v2558 = vpow.pop %v2557
        %v2559 = vmul.f32 %v2136, 1.442695
        %v2560 = vpow.pop %v2559
        %v2561 = vmul.f32 %v2137, 1.442695
        %v2562 = vpow.pop %v2561
        %v2563 = vmul.f32 %v2138, 1.442695
        %v2564 = vpow.pop %v2563
        %v2565 = vmul.f32 %v2139, 1.442695
        %v2566 = vpow.pop %v2565
        %v2567 = vmul.f32 %v2140, 1.442695
        %v2568 = vpow.pop %v2567
        %v2569 = vmul.f32 %v2141, 1.442695
        %v2570 = vpow.pop %v2569
        %v2571 = vmul.f32 %v2142, 1.442695
        %v2572 = vpow.pop %v2571
        %v2573 = vmul.f32 %v2143, 1.442695
        %v2574 = vpow.pop %v2573
        %v2575 = vmul.f32 %v2144, 1.442695
        %v2576 = vpow.pop %v2575
        %v2577 = vmul.f32 %v2145, 1.442695
        %v2578 = vpow.pop %v2577
        %v2579 = vmul.f32 %v2146, 1.442695
        %v2580 = vpow.pop %v2579
        %v2581 = vmul.f32 %v2147, 1.442695
        %v2582 = vpow.pop %v2581
        %v2583 = vmul.f32 %v2148, 1.442695
        %v2584 = vpow.pop %v2583
        %v2585 = vmul.f32 %v2149, 1.442695
        %v2586 = vpow.pop %v2585
        %v2587 = vmul.f32 %v2150, 1.442695
        %v2588 = vpow.pop %v2587
        %v2589 = vmul.f32 %v2151, 1.442695
        %v2590 = vpow.pop %v2589
        %v2591 = vmul.f32 %v2152, 1.442695
        %v2592 = vpow.pop %v2591
        %v2593 = vmul.f32 %v2153, 1.442695
        %v2594 = vpow.pop %v2593
        %v2595 = vmul.f32 %v2154, 1.442695
        %v2596 = vpow.pop %v2595
        %v2597 = vmul.f32 %v2155, 1.442695
        %v2598 = vpow.pop %v2597
        %v2599 = vmul.f32 %v2156, 1.442695
        %v2600 = vpow.pop %v2599
        %v2601 = vmul.f32 %v2157, 1.442695
        %v2602 = vpow.pop %v2601
        %v2603 = vmul.f32 %v2158, 1.442695
        %v2604 = vpow.pop %v2603
        %v2605 = vmul.f32 %v2159, 1.442695
        %v2606 = vpow.pop %v2605
        %v2607 = vmul.f32 %v2160, 1.442695
        %v2608 = vpow.pop %v2607
        %v2609 = vmul.f32 %v2161, 1.442695
        %v2610 = vpow.pop %v2609
        %v2611 = vmul.f32 %v2162, 1.442695
        %v2612 = vpow.pop %v2611
        %v2613 = vmul.f32 %v2163, 1.442695
        %v2614 = vpow.pop %v2613
        %v2615 = vmul.f32 %v2164, 1.442695
        %v2616 = vpow.pop %v2615
        %v2617 = vmul.f32 %v2165, 1.442695
        %v2618 = vpow.pop %v2617
        %v2619 = vmul.f32 %v2166, 1.442695
        %v2620 = vpow.pop %v2619
        %v2621 = vmul.f32 %v2167, 1.442695
        %v2622 = vpow.pop %v2621
        %v2623 = vmul.f32 %v2168, 1.442695
        %v2624 = vpow.pop %v2623
        %v2625 = vmul.f32 %v2169, 1.442695
        %v2626 = vpow.pop %v2625
        %v2627 = vmul.f32 %v2170, 1.442695
        %v2628 = vpow.pop %v2627
        %v2629 = vmul.f32 %v2171, 1.442695
        %v2630 = vpow.pop %v2629
        %v2631 = vmul.f32 %v2172, 1.442695
        %v2632 = vpow.pop %v2631
        %v2633 = vmul.f32 %v2173, 1.442695
        %v2634 = vpow.pop %v2633
        %v2635 = vmul.f32 %v2174, 1.442695
        %v2636 = vpow.pop %v2635
        %v2637 = vmul.f32 %v2175, 1.442695
        %v2638 = vpow.pop %v2637
        %v2639 = vmul.f32 %v2176, 1.442695
        %v2640 = vpow.pop %v2639
        %v2641 = vmul.f32 %v2177, 1.442695
        %v2642 = vpow.pop %v2641
        %v2643 = vmul.f32 %v2178, 1.442695
        %v2644 = vpow.pop %v2643
        %v2645 = vmul.f32 %v2179, 1.442695
        %v2646 = vpow.pop %v2645
        %v2647 = vmul.f32 %v2180, 1.442695
        %v2648 = vpow.pop %v2647
        %v2649 = vmul.f32 %v2181, 1.442695
        %v2650 = vpow.pop %v2649
        %v2651 = vmul.f32 %v2182, 1.442695
        %v2652 = vpow.pop %v2651
        %v2653 = vmul.f32 %v2183, 1.442695
        %v2654 = vpow.pop %v2653
        %v2655 = vmul.f32 %v2184, 1.442695
        %v2656 = vpow.pop %v2655
        %v2657 = vmul.f32 %v2185, 1.442695
        %v2658 = vpow.pop %v2657
        %v2659 = vmul.f32 %v2186, 1.442695
        %v2660 = vpow.pop %v2659
        %v2661 = vmul.f32 %v2187, 1.442695
        %v2662 = vpow.pop %v2661
        %v2663 = vmul.f32 %v2188, 1.442695
        %v2664 = vpow.pop %v2663
        %v2665 = vmul.f32 %v2189, 1.442695
        %v2666 = vpow.pop %v2665
        %v2667 = vmul.f32 %v2190, 1.442695
        %v2668 = vpow.pop %v2667
        %v2669 = vmul.f32 %v2191, 1.442695
        %v2670 = vpow.pop %v2669
        %v2671 = vmul.f32 %v2192, 1.442695
        %v2672 = vpow.pop %v2671
        %v2673 = vmul.f32 %v2193, 1.442695
        %v2674 = vpow.pop %v2673
        %v2675 = vmul.f32 %v2194, 1.442695
        %v2676 = vpow.pop %v2675
        %v2677 = vmul.f32 %v2195, 1.442695
        %v2678 = vpow.pop %v2677
        %v2679 = vmul.f32 %v2196, 1.442695
        %v2680 = vpow.pop %v2679
        %v2681 = vmul.f32 %v2197, 1.442695
        %v2682 = vpow.pop %v2681
        %v2683 = vmul.f32 %v2198, 1.442695
        %v2684 = vpow.pop %v2683
        %v2685 = vmul.f32 %v2199, 1.442695
        %v2686 = vpow.pop %v2685
        %v2687 = vmul.f32 %v2200, 1.442695
        %v2688 = vpow.pop %v2687
        %v2689 = vmul.f32 %v2201, 1.442695
        %v2690 = vpow.pop %v2689
        %v2691 = vmul.f32 %v2202, 1.442695
        %v2692 = vpow.pop %v2691
        %v2693 = vmul.f32 %v2203, 1.442695
        %v2694 = vpow.pop %v2693
        %v2695 = vmul.f32 %v2204, 1.442695
        %v2696 = vpow.pop %v2695
        %v2697 = vmul.f32 %v2205, 1.442695
        %v2698 = vpow.pop %v2697
        %v2699 = vmul.f32 %v2206, 1.442695
        %v2700 = vpow.pop %v2699
        %v2701 = vmul.f32 %v2207, 1.442695
        %v2702 = vpow.pop %v2701
        %v2703 = vmul.f32 %v2208, 1.442695
        %v2704 = vpow.pop %v2703
        %v2705 = vmul.f32 %v2209, 1.442695
        %v2706 = vpow.pop %v2705
        %v2707 = vmul.f32 %v2210, 1.442695
        %v2708 = vpow.pop %v2707
        %v2709 = vmul.f32 %v2211, 1.442695
        %v2710 = vpow.pop %v2709
        %v2711 = vmul.f32 %v2212, 1.442695
        %v2712 = vpow.pop %v2711
        %v2713 = vmul.f32 %v2213, 1.442695
        %v2714 = vpow.pop %v2713
        %v2715 = vmul.f32 %v2214, 1.442695
        %v2716 = vpow.pop %v2715
        %v2717 = vmul.f32 %v2215, 1.442695
        %v2718 = vpow.pop %v2717
        %v2719 = vmul.f32 %v2216, 1.442695
        %v2720 = vpow.pop %v2719
        %v2721 = vmul.f32 %v2217, 1.442695
        %v2722 = vpow.pop %v2721
        %v2723 = vmul.f32 %v2218, 1.442695
        %v2724 = vpow.pop %v2723
        %v2725 = vmul.f32 %v2219, 1.442695
        %v2726 = vpow.pop %v2725
        %v2727 = vmul.f32 %v2220, 1.442695
        %v2728 = vpow.pop %v2727
        %v2729 = vmul.f32 %v2221, 1.442695
        %v2730 = vpow.pop %v2729
        %v2731 = vmul.f32 %v2222, 1.442695
        %v2732 = vpow.pop %v2731
        %v2733 = vmul.f32 %v2223, 1.442695
        %v2734 = vpow.pop %v2733
        %v2735 = vmul.f32 %v2224, 1.442695
        %v2736 = vpow.pop %v2735
        %v2737 = vmul.f32 %v2225, 1.442695
        %v2738 = vpow.pop %v2737
        %v2739 = vmul.f32 %v2226, 1.442695
        %v2740 = vpow.pop %v2739
        %v2741 = vmul.f32 %v2227, 1.442695
        %v2742 = vpow.pop %v2741
        %v2743 = vmul.f32 %v2228, 1.442695
        %v2744 = vpow.pop %v2743
        %v2745 = vmul.f32 %v2229, 1.442695
        %v2746 = vpow.pop %v2745
        %v2747 = vmul.f32 %v2230, 1.442695
        %v2748 = vpow.pop %v2747
        %v2749 = vmul.f32 %v2231, 1.442695
        %v2750 = vpow.pop %v2749
        %v2751 = vmul.f32 %v2232, 1.442695
        %v2752 = vpow.pop %v2751
        %v2753 = vmul.f32 %v2233, 1.442695
        %v2754 = vpow.pop %v2753
        %v2755 = vmul.f32 %v2234, 1.442695
        %v2756 = vpow.pop %v2755
        %v2757 = vmul.f32 %v2235, 1.442695
        %v2758 = vpow.pop %v2757
        %v2759 = vmul.f32 %v2236, 1.442695
        %v2760 = vpow.pop %v2759
        %v2761 = vmul.f32 %v2237, 1.442695
        %v2762 = vpow.pop %v2761
        %v2763 = vmul.f32 %v2238, 1.442695
        %v2764 = vpow.pop %v2763
        %v2765 = vmul.f32 %v2239, 1.442695
        %v2766 = vpow.pop %v2765
        %v2767 = vmul.f32 %v2240, 1.442695
        %v2768 = vpow.pop %v2767
        %v2769 = vmul.f32 %v2241, 1.442695
        %v2770 = vpow.pop %v2769
        %v2771 = vmul.f32 %v2242, 1.442695
        %v2772 = vpow.pop %v2771
        %v2773 = vmul.f32 %v2243, 1.442695
        %v2774 = vpow.pop %v2773
        %v2775 = vmul.f32 %v2244, 1.442695
        %v2776 = vpow.pop %v2775
        %v2777 = vmul.f32 %v2245, 1.442695
        %v2778 = vpow.pop %v2777
        %v2779 = vmul.f32 %v2246, 1.442695
        %v2780 = vpow.pop %v2779
        %v2781 = vmul.f32 %v2247, 1.442695
        %v2782 = vpow.pop %v2781
        %v2783 = vmul.f32 %v2248, 1.442695
        %v2784 = vpow.pop %v2783
        %v2785 = vmul.f32 %v2249, 1.442695
        %v2786 = vpow.pop %v2785
        %v2787 = vmul.f32 %v2250, 1.442695
        %v2788 = vpow.pop %v2787
        %v2789 = vmul.f32 %v2251, 1.442695
        %v2790 = vpow.pop %v2789
        %v2791 = vmul.f32 %v2252, 1.442695
        %v2792 = vpow.pop %v2791
        %v2793 = vmul.f32 %v2253, 1.442695
        %v2794 = vpow.pop %v2793
        %v2795 = vmul.f32 %v2254, 1.442695
        %v2796 = vpow.pop %v2795
        %v2797 = vmul.f32 %v2255, 1.442695
        %v2798 = vpow.pop %v2797
        %v2799 = vmul.f32 %v2256, 1.442695
        %v2800 = vpow.pop %v2799
        %v2801 = vmul.f32 %v2257, 1.442695
        %v2802 = vpow.pop %v2801
        %v2803 = vmul.f32 %v2258, 1.442695
        %v2804 = vpow.pop %v2803
        %v2805 = vmul.f32 %v2259, 1.442695
        %v2806 = vpow.pop %v2805
        %v2807 = vmul.f32 %v2260, 1.442695
        %v2808 = vpow.pop %v2807
        %v2809 = vmul.f32 %v2261, 1.442695
        %v2810 = vpow.pop %v2809
        %v2811 = vmul.f32 %v2262, 1.442695
        %v2812 = vpow.pop %v2811
        %v2813 = vmul.f32 %v2263, 1.442695
        %v2814 = vpow.pop %v2813
        %v2815 = vmul.f32 %v2264, 1.442695
        %v2816 = vpow.pop %v2815
        %v2817 = vmul.f32 %v2265, 1.442695
        %v2818 = vpow.pop %v2817
        %v2819 = vmul.f32 %v2266, 1.442695
        %v2820 = vpow.pop %v2819
        %v2821 = vmul.f32 %v2267, 1.442695
        %v2822 = vpow.pop %v2821
        %v2823 = vmul.f32 %v2268, 1.442695
        %v2824 = vpow.pop %v2823
        %v2825 = vmul.f32 %v2269, 1.442695
        %v2826 = vpow.pop %v2825
        %v2827 = vmul.f32 %v2270, 1.442695
        %v2828 = vpow.pop %v2827
        %v2829 = vmul.f32 %v2271, 1.442695
        %v2830 = vpow.pop %v2829
        %v2831 = vmul.f32 %v2272, 1.442695
        %v2832 = vpow.pop %v2831
        %v2833 = vmul.f32 %v2273, 1.442695
        %v2834 = vpow.pop %v2833
        %v2835 = vmul.f32 %v2274, 1.442695
        %v2836 = vpow.pop %v2835
        %v2837 = vmul.f32 %v2275, 1.442695
        %v2838 = vpow.pop %v2837
        %v2839 = vmul.f32 %v2276, 1.442695
        %v2840 = vpow.pop %v2839
        %v2841 = vmul.f32 %v2277, 1.442695
        %v2842 = vpow.pop %v2841
        %v2843 = vmul.f32 %v2278, 1.442695
        %v2844 = vpow.pop %v2843
        %v2845 = vmul.f32 %v2279, 1.442695
        %v2846 = vpow.pop %v2845
        %v2847 = vmul.f32 %v2280, 1.442695
        %v2848 = vpow.pop %v2847
        %v2849 = vmul.f32 %v2281, 1.442695
        %v2850 = vpow.pop %v2849
        %v2851 = vmul.f32 %v2282, 1.442695
        %v2852 = vpow.pop %v2851
        %v2853 = vmul.f32 %v2283, 1.442695
        %v2854 = vpow.pop %v2853
        %v2855 = vmul.f32 %v2284, 1.442695
        %v2856 = vpow.pop %v2855
        %v2857 = vmul.f32 %v2285, 1.442695
        %v2858 = vpow.pop %v2857
        %v2859 = vmul.f32 %v2286, 1.442695
        %v2860 = vpow.pop %v2859
        %v2861 = vmul.f32 %v2287, 1.442695
        %v2862 = vpow.pop %v2861
        %v2863 = vmul.f32 %v2288, 1.442695
        %v2864 = vpow.pop %v2863
        %v2865 = vmul.f32 %v2289, 1.442695
        %v2866 = vpow.pop %v2865
        %v2867 = vmul.f32 %v2290, 1.442695
        %v2868 = vpow.pop %v2867
        %v2869 = vmul.f32 %v2291, 1.442695
        %v2870 = vpow.pop %v2869
        %v2871 = vmul.f32 %v2292, 1.442695
        %v2872 = vpow.pop %v2871
        %v2873 = vmul.f32 %v2293, 1.442695
        %v2874 = vpow.pop %v2873
        %v2875 = vmul.f32 %v2294, 1.442695
        %v2876 = vpow.pop %v2875
        %v2877 = vmul.f32 %v2295, 1.442695
        %v2878 = vpow.pop %v2877
        %v2879 = vmul.f32 %v2296, 1.442695
        %v2880 = vpow.pop %v2879
        %v2881 = vmul.f32 %v2297, 1.442695
        %v2882 = vpow.pop %v2881
        %v2883 = vmul.f32 %v2298, 1.442695
        %v2884 = vpow.pop %v2883
        %v2885 = vmul.f32 %v2299, 1.442695
        %v2886 = vpow.pop %v2885
        %v2887 = vmul.f32 %v2300, 1.442695
        %v2888 = vpow.pop %v2887
        %v2889 = vmul.f32 %v2301, 1.442695
        %v2890 = vpow.pop %v2889
        %v2891 = vmul.f32 %v2302, 1.442695
        %v2892 = vpow.pop %v2891
        %v2893 = vmul.f32 %v2303, 1.442695
        %v2894 = vpow.pop %v2893
        %v2895 = vmul.f32 %v2304, 1.442695
        %v2896 = vpow.pop %v2895
        %v2897 = vmul.f32 %v2305, 1.442695
        %v2898 = vpow.pop %v2897
        %v2899 = vmul.f32 %v2306, 1.442695
        %v2900 = vpow.pop %v2899
        %v2901 = vmul.f32 %v2307, 1.442695
        %v2902 = vpow.pop %v2901
        %v2903 = vmul.f32 %v2308, 1.442695
        %v2904 = vpow.pop %v2903
        %v2905 = vmul.f32 %v2309, 1.442695
        %v2906 = vpow.pop %v2905
        %v2907 = vmul.f32 %v2310, 1.442695
        %v2908 = vpow.pop %v2907
        %v2909 = vmul.f32 %v2311, 1.442695
        %v2910 = vpow.pop %v2909
        %v2911 = vmul.f32 %v2312, 1.442695
        %v2912 = vpow.pop %v2911
        %v2913 = vmul.f32 %v2313, 1.442695
        %v2914 = vpow.pop %v2913
        %v2915 = vmul.f32 %v2314, 1.442695
        %v2916 = vpow.pop %v2915
        %v2917 = vmul.f32 %v2315, 1.442695
        %v2918 = vpow.pop %v2917
        %v2919 = vmul.f32 %v2316, 1.442695
        %v2920 = vpow.pop %v2919
        %v2921 = vmul.f32 %v2317, 1.442695
        %v2922 = vpow.pop %v2921
        %v2923 = vmul.f32 %v2318, 1.442695
        %v2924 = vpow.pop %v2923
        %v2925 = vmul.f32 %v2319, 1.442695
        %v2926 = vpow.pop %v2925
        %v2927 = vmul.f32 %v2320, 1.442695
        %v2928 = vpow.pop %v2927
        %v2929 = vmul.f32 %v2321, 1.442695
        %v2930 = vpow.pop %v2929
        %v2931 = vmul.f32 %v2322, 1.442695
        %v2932 = vpow.pop %v2931
        %v2933 = vmul.f32 %v2323, 1.442695
        %v2934 = vpow.pop %v2933
        %v2935 = vmul.f32 %v2324, 1.442695
        %v2936 = vpow.pop %v2935
        %v2937 = vmul.f32 %v2325, 1.442695
        %v2938 = vpow.pop %v2937
        %v2939 = vmul.f32 %v2326, 1.442695
        %v2940 = vpow.pop %v2939
        %v2941 = vmul.f32 %v2327, 1.442695
        %v2942 = vpow.pop %v2941
        %v2943 = vmul.f32 %v2328, 1.442695
        %v2944 = vpow.pop %v2943
        %v2945 = vmul.f32 %v2329, 1.442695
        %v2946 = vpow.pop %v2945
        %v2947 = vmul.f32 %v2330, 1.442695
        %v2948 = vpow.pop %v2947
        %v2949 = vmul.f32 %v2331, 1.442695
        %v2950 = vpow.pop %v2949
        %v2951 = vmul.f32 %v2332, 1.442695
        %v2952 = vpow.pop %v2951
        %v2953 = vmul.f32 %v2333, 1.442695
        %v2954 = vpow.pop %v2953
        %v2955 = vmul.f32 %v2334, 1.442695
        %v2956 = vpow.pop %v2955
        %v2957 = vmul.f32 %v2335, 1.442695
        %v2958 = vpow.pop %v2957
        %v2959 = vmul.f32 %v2336, 1.442695
        %v2960 = vpow.pop %v2959
        %v2961 = vmul.f32 %v2337, 1.442695
        %v2962 = vpow.pop %v2961
        %v2963 = vmul.f32 %v2338, 1.442695
        %v2964 = vpow.pop %v2963
        %v2965 = vmul.f32 %v2339, 1.442695
        %v2966 = vpow.pop %v2965
        %v2967 = vmul.f32 %v2340, 1.442695
        %v2968 = vpow.pop %v2967
        %v2969 = vmul.f32 %v2341, 1.442695
        %v2970 = vpow.pop %v2969
        %v2971 = vmul.f32 %v2342, 1.442695
        %v2972 = vpow.pop %v2971
        %v2973 = vmul.f32 %v2343, 1.442695
        %v2974 = vpow.pop %v2973
        %v2975 = vmul.f32 %v2344, 1.442695
        %v2976 = vpow.pop %v2975
        %v2977 = vmul.f32 %v2345, 1.442695
        %v2978 = vpow.pop %v2977
        %v2979 = vmul.f32 %v2346, 1.442695
        %v2980 = vpow.pop %v2979
        %v2981 = vmul.f32 %v2347, 1.442695
        %v2982 = vpow.pop %v2981
        %v2983 = vmul.f32 %v2348, 1.442695
        %v2984 = vpow.pop %v2983
        %v2985 = vmul.f32 %v2349, 1.442695
        %v2986 = vpow.pop %v2985
        %v2987 = vmul.f32 %v2350, 1.442695
        %v2988 = vpow.pop %v2987
        %v2989 = vmul.f32 %v2351, 1.442695
        %v2990 = vpow.pop %v2989
        %v2991 = vmul.f32 %v2352, 1.442695
        %v2992 = vpow.pop %v2991
        %v2993 = vadd.f32 %v2354, 1.0
        %v2994 = vadd.f32 %v2356, 1.0
        %v2995 = vadd.f32 %v2358, 1.0
        %v2996 = vadd.f32 %v2360, 1.0
        %v2997 = vadd.f32 %v2362, 1.0
        %v2998 = vadd.f32 %v2364, 1.0
        %v2999 = vadd.f32 %v2366, 1.0
        %v3000 = vadd.f32 %v2368, 1.0
        %v3001 = vadd.f32 %v2370, 1.0
        %v3002 = vadd.f32 %v2372, 1.0
        %v3003 = vadd.f32 %v2374, 1.0
        %v3004 = vadd.f32 %v2376, 1.0
        %v3005 = vadd.f32 %v2378, 1.0
        %v3006 = vadd.f32 %v2380, 1.0
        %v3007 = vadd.f32 %v2382, 1.0
        %v3008 = vadd.f32 %v2384, 1.0
        %v3009 = vadd.f32 %v2386, 1.0
        %v3010 = vadd.f32 %v2388, 1.0
        %v3011 = vadd.f32 %v2390, 1.0
        %v3012 = vadd.f32 %v2392, 1.0
        %v3013 = vadd.f32 %v2394, 1.0
        %v3014 = vadd.f32 %v2396, 1.0
        %v3015 = vadd.f32 %v2398, 1.0
        %v3016 = vadd.f32 %v2400, 1.0
        %v3017 = vadd.f32 %v2402, 1.0
        %v3018 = vadd.f32 %v2404, 1.0
        %v3019 = vadd.f32 %v2406, 1.0
        %v3020 = vadd.f32 %v2408, 1.0
        %v3021 = vadd.f32 %v2410, 1.0
        %v3022 = vadd.f32 %v2412, 1.0
        %v3023 = vadd.f32 %v2414, 1.0
        %v3024 = vadd.f32 %v2416, 1.0
        %v3025 = vadd.f32 %v2418, 1.0
        %v3026 = vadd.f32 %v2420, 1.0
        %v3027 = vadd.f32 %v2422, 1.0
        %v3028 = vadd.f32 %v2424, 1.0
        %v3029 = vadd.f32 %v2426, 1.0
        %v3030 = vadd.f32 %v2428, 1.0
        %v3031 = vadd.f32 %v2430, 1.0
        %v3032 = vadd.f32 %v2432, 1.0
        %v3033 = vadd.f32 %v2434, 1.0
        %v3034 = vadd.f32 %v2436, 1.0
        %v3035 = vadd.f32 %v2438, 1.0
        %v3036 = vadd.f32 %v2440, 1.0
        %v3037 = vadd.f32 %v2442, 1.0
        %v3038 = vadd.f32 %v2444, 1.0
        %v3039 = vadd.f32 %v2446, 1.0
        %v3040 = vadd.f32 %v2448, 1.0
        %v3041 = vadd.f32 %v2450, 1.0
        %v3042 = vadd.f32 %v2452, 1.0
        %v3043 = vadd.f32 %v2454, 1.0
        %v3044 = vadd.f32 %v2456, 1.0
        %v3045 = vadd.f32 %v2458, 1.0
        %v3046 = vadd.f32 %v2460, 1.0
        %v3047 = vadd.f32 %v2462, 1.0
        %v3048 = vadd.f32 %v2464, 1.0
        %v3049 = vadd.f32 %v2466, 1.0
        %v3050 = vadd.f32 %v2468, 1.0
        %v3051 = vadd.f32 %v2470, 1.0
        %v3052 = vadd.f32 %v2472, 1.0
        %v3053 = vadd.f32 %v2474, 1.0
        %v3054 = vadd.f32 %v2476, 1.0
        %v3055 = vadd.f32 %v2478, 1.0
        %v3056 = vadd.f32 %v2480, 1.0
        %v3057 = vadd.f32 %v2482, 1.0
        %v3058 = vadd.f32 %v2484, 1.0
        %v3059 = vadd.f32 %v2486, 1.0
        %v3060 = vadd.f32 %v2488, 1.0
        %v3061 = vadd.f32 %v2490, 1.0
        %v3062 = vadd.f32 %v2492, 1.0
        %v3063 = vadd.f32 %v2494, 1.0
        %v3064 = vadd.f32 %v2496, 1.0
        %v3065 = vadd.f32 %v2498, 1.0
        %v3066 = vadd.f32 %v2500, 1.0
        %v3067 = vadd.f32 %v2502, 1.0
        %v3068 = vadd.f32 %v2504, 1.0
        %v3069 = vadd.f32 %v2506, 1.0
        %v3070 = vadd.f32 %v2508, 1.0
        %v3071 = vadd.f32 %v2510, 1.0
        %v3072 = vadd.f32 %v2512, 1.0
        %v3073 = vadd.f32 %v2514, 1.0
        %v3074 = vadd.f32 %v2516, 1.0
        %v3075 = vadd.f32 %v2518, 1.0
        %v3076 = vadd.f32 %v2520, 1.0
        %v3077 = vadd.f32 %v2522, 1.0
        %v3078 = vadd.f32 %v2524, 1.0
        %v3079 = vadd.f32 %v2526, 1.0
        %v3080 = vadd.f32 %v2528, 1.0
        %v3081 = vadd.f32 %v2530, 1.0
        %v3082 = vadd.f32 %v2532, 1.0
        %v3083 = vadd.f32 %v2534, 1.0
        %v3084 = vadd.f32 %v2536, 1.0
        %v3085 = vadd.f32 %v2538, 1.0
        %v3086 = vadd.f32 %v2540, 1.0
        %v3087 = vadd.f32 %v2542, 1.0
        %v3088 = vadd.f32 %v2544, 1.0
        %v3089 = vadd.f32 %v2546, 1.0
        %v3090 = vadd.f32 %v2548, 1.0
        %v3091 = vadd.f32 %v2550, 1.0
        %v3092 = vadd.f32 %v2552, 1.0
        %v3093 = vadd.f32 %v2554, 1.0
        %v3094 = vadd.f32 %v2556, 1.0
        %v3095 = vadd.f32 %v2558, 1.0
        %v3096 = vadd.f32 %v2560, 1.0
        %v3097 = vadd.f32 %v2562, 1.0
        %v3098 = vadd.f32 %v2564, 1.0
        %v3099 = vadd.f32 %v2566, 1.0
        %v3100 = vadd.f32 %v2568, 1.0
        %v3101 = vadd.f32 %v2570, 1.0
        %v3102 = vadd.f32 %v2572, 1.0
        %v3103 = vadd.f32 %v2574, 1.0
        %v3104 = vadd.f32 %v2576, 1.0
        %v3105 = vadd.f32 %v2578, 1.0
        %v3106 = vadd.f32 %v2580, 1.0
        %v3107 = vadd.f32 %v2582, 1.0
        %v3108 = vadd.f32 %v2584, 1.0
        %v3109 = vadd.f32 %v2586, 1.0
        %v3110 = vadd.f32 %v2588, 1.0
        %v3111 = vadd.f32 %v2590, 1.0
        %v3112 = vadd.f32 %v2592, 1.0
        %v3113 = vadd.f32 %v2594, 1.0
        %v3114 = vadd.f32 %v2596, 1.0
        %v3115 = vadd.f32 %v2598, 1.0
        %v3116 = vadd.f32 %v2600, 1.0
        %v3117 = vadd.f32 %v2602, 1.0
        %v3118 = vadd.f32 %v2604, 1.0
        %v3119 = vadd.f32 %v2606, 1.0
        %v3120 = vadd.f32 %v2608, 1.0
        %v3121 = vadd.f32 %v2610, 1.0
        %v3122 = vadd.f32 %v2612, 1.0
        %v3123 = vadd.f32 %v2614, 1.0
        %v3124 = vadd.f32 %v2616, 1.0
        %v3125 = vadd.f32 %v2618, 1.0
        %v3126 = vadd.f32 %v2620, 1.0
        %v3127 = vadd.f32 %v2622, 1.0
        %v3128 = vadd.f32 %v2624, 1.0
        %v3129 = vadd.f32 %v2626, 1.0
        %v3130 = vadd.f32 %v2628, 1.0
        %v3131 = vadd.f32 %v2630, 1.0
        %v3132 = vadd.f32 %v2632, 1.0
        %v3133 = vadd.f32 %v2634, 1.0
        %v3134 = vadd.f32 %v2636, 1.0
        %v3135 = vadd.f32 %v2638, 1.0
        %v3136 = vadd.f32 %v2640, 1.0
        %v3137 = vadd.f32 %v2642, 1.0
        %v3138 = vadd.f32 %v2644, 1.0
        %v3139 = vadd.f32 %v2646, 1.0
        %v3140 = vadd.f32 %v2648, 1.0
        %v3141 = vadd.f32 %v2650, 1.0
        %v3142 = vadd.f32 %v2652, 1.0
        %v3143 = vadd.f32 %v2654, 1.0
        %v3144 = vadd.f32 %v2656, 1.0
        %v3145 = vadd.f32 %v2658, 1.0
        %v3146 = vadd.f32 %v2660, 1.0
        %v3147 = vadd.f32 %v2662, 1.0
        %v3148 = vadd.f32 %v2664, 1.0
        %v3149 = vadd.f32 %v2666, 1.0
        %v3150 = vadd.f32 %v2668, 1.0
        %v3151 = vadd.f32 %v2670, 1.0
        %v3152 = vadd.f32 %v2672, 1.0
        %v3153 = vadd.f32 %v2674, 1.0
        %v3154 = vadd.f32 %v2676, 1.0
        %v3155 = vadd.f32 %v2678, 1.0
        %v3156 = vadd.f32 %v2680, 1.0
        %v3157 = vadd.f32 %v2682, 1.0
        %v3158 = vadd.f32 %v2684, 1.0
        %v3159 = vadd.f32 %v2686, 1.0
        %v3160 = vadd.f32 %v2688, 1.0
        %v3161 = vadd.f32 %v2690, 1.0
        %v3162 = vadd.f32 %v2692, 1.0
        %v3163 = vadd.f32 %v2694, 1.0
        %v3164 = vadd.f32 %v2696, 1.0
        %v3165 = vadd.f32 %v2698, 1.0
        %v3166 = vadd.f32 %v2700, 1.0
        %v3167 = vadd.f32 %v2702, 1.0
        %v3168 = vadd.f32 %v2704, 1.0
        %v3169 = vadd.f32 %v2706, 1.0
        %v3170 = vadd.f32 %v2708, 1.0
        %v3171 = vadd.f32 %v2710, 1.0
        %v3172 = vadd.f32 %v2712, 1.0
        %v3173 = vadd.f32 %v2714, 1.0
        %v3174 = vadd.f32 %v2716, 1.0
        %v3175 = vadd.f32 %v2718, 1.0
        %v3176 = vadd.f32 %v2720, 1.0
        %v3177 = vadd.f32 %v2722, 1.0
        %v3178 = vadd.f32 %v2724, 1.0
        %v3179 = vadd.f32 %v2726, 1.0
        %v3180 = vadd.f32 %v2728, 1.0
        %v3181 = vadd.f32 %v2730, 1.0
        %v3182 = vadd.f32 %v2732, 1.0
        %v3183 = vadd.f32 %v2734, 1.0
        %v3184 = vadd.f32 %v2736, 1.0
        %v3185 = vadd.f32 %v2738, 1.0
        %v3186 = vadd.f32 %v2740, 1.0
        %v3187 = vadd.f32 %v2742, 1.0
        %v3188 = vadd.f32 %v2744, 1.0
        %v3189 = vadd.f32 %v2746, 1.0
        %v3190 = vadd.f32 %v2748, 1.0
        %v3191 = vadd.f32 %v2750, 1.0
        %v3192 = vadd.f32 %v2752, 1.0
        %v3193 = vadd.f32 %v2754, 1.0
        %v3194 = vadd.f32 %v2756, 1.0
        %v3195 = vadd.f32 %v2758, 1.0
        %v3196 = vadd.f32 %v2760, 1.0
        %v3197 = vadd.f32 %v2762, 1.0
        %v3198 = vadd.f32 %v2764, 1.0
        %v3199 = vadd.f32 %v2766, 1.0
        %v3200 = vadd.f32 %v2768, 1.0
        %v3201 = vadd.f32 %v2770, 1.0
        %v3202 = vadd.f32 %v2772, 1.0
        %v3203 = vadd.f32 %v2774, 1.0
        %v3204 = vadd.f32 %v2776, 1.0
        %v3205 = vadd.f32 %v2778, 1.0
        %v3206 = vadd.f32 %v2780, 1.0
        %v3207 = vadd.f32 %v2782, 1.0
        %v3208 = vadd.f32 %v2784, 1.0
        %v3209 = vadd.f32 %v2786, 1.0
        %v3210 = vadd.f32 %v2788, 1.0
        %v3211 = vadd.f32 %v2790, 1.0
        %v3212 = vadd.f32 %v2792, 1.0
        %v3213 = vadd.f32 %v2794, 1.0
        %v3214 = vadd.f32 %v2796, 1.0
        %v3215 = vadd.f32 %v2798, 1.0
        %v3216 = vadd.f32 %v2800, 1.0
        %v3217 = vadd.f32 %v2802, 1.0
        %v3218 = vadd.f32 %v2804, 1.0
        %v3219 = vadd.f32 %v2806, 1.0
        %v3220 = vadd.f32 %v2808, 1.0
        %v3221 = vadd.f32 %v2810, 1.0
        %v3222 = vadd.f32 %v2812, 1.0
        %v3223 = vadd.f32 %v2814, 1.0
        %v3224 = vadd.f32 %v2816, 1.0
        %v3225 = vadd.f32 %v2818, 1.0
        %v3226 = vadd.f32 %v2820, 1.0
        %v3227 = vadd.f32 %v2822, 1.0
        %v3228 = vadd.f32 %v2824, 1.0
        %v3229 = vadd.f32 %v2826, 1.0
        %v3230 = vadd.f32 %v2828, 1.0
        %v3231 = vadd.f32 %v2830, 1.0
        %v3232 = vadd.f32 %v2832, 1.0
        %v3233 = vadd.f32 %v2834, 1.0
        %v3234 = vadd.f32 %v2836, 1.0
        %v3235 = vadd.f32 %v2838, 1.0
        %v3236 = vadd.f32 %v2840, 1.0
        %v3237 = vadd.f32 %v2842, 1.0
        %v3238 = vadd.f32 %v2844, 1.0
        %v3239 = vadd.f32 %v2846, 1.0
        %v3240 = vadd.f32 %v2848, 1.0
        %v3241 = vadd.f32 %v2850, 1.0
        %v3242 = vadd.f32 %v2852, 1.0
        %v3243 = vadd.f32 %v2854, 1.0
        %v3244 = vadd.f32 %v2856, 1.0
        %v3245 = vadd.f32 %v2858, 1.0
        %v3246 = vadd.f32 %v2860, 1.0
        %v3247 = vadd.f32 %v2862, 1.0
        %v3248 = vadd.f32 %v2864, 1.0
        %v3249 = vadd.f32 %v2866, 1.0
        %v3250 = vadd.f32 %v2868, 1.0
        %v3251 = vadd.f32 %v2870, 1.0
        %v3252 = vadd.f32 %v2872, 1.0
        %v3253 = vadd.f32 %v2874, 1.0
        %v3254 = vadd.f32 %v2876, 1.0
        %v3255 = vadd.f32 %v2878, 1.0
        %v3256 = vadd.f32 %v2880, 1.0
        %v3257 = vadd.f32 %v2882, 1.0
        %v3258 = vadd.f32 %v2884, 1.0
        %v3259 = vadd.f32 %v2886, 1.0
        %v3260 = vadd.f32 %v2888, 1.0
        %v3261 = vadd.f32 %v2890, 1.0
        %v3262 = vadd.f32 %v2892, 1.0
        %v3263 = vadd.f32 %v2894, 1.0
        %v3264 = vadd.f32 %v2896, 1.0
        %v3265 = vadd.f32 %v2898, 1.0
        %v3266 = vadd.f32 %v2900, 1.0
        %v3267 = vadd.f32 %v2902, 1.0
        %v3268 = vadd.f32 %v2904, 1.0
        %v3269 = vadd.f32 %v2906, 1.0
        %v3270 = vadd.f32 %v2908, 1.0
        %v3271 = vadd.f32 %v2910, 1.0
        %v3272 = vadd.f32 %v2912, 1.0
        %v3273 = vadd.f32 %v2914, 1.0
        %v3274 = vadd.f32 %v2916, 1.0
        %v3275 = vadd.f32 %v2918, 1.0
        %v3276 = vadd.f32 %v2920, 1.0
        %v3277 = vadd.f32 %v2922, 1.0
        %v3278 = vadd.f32 %v2924, 1.0
        %v3279 = vadd.f32 %v2926, 1.0
        %v3280 = vadd.f32 %v2928, 1.0
        %v3281 = vadd.f32 %v2930, 1.0
        %v3282 = vadd.f32 %v2932, 1.0
        %v3283 = vadd.f32 %v2934, 1.0
        %v3284 = vadd.f32 %v2936, 1.0
        %v3285 = vadd.f32 %v2938, 1.0
        %v3286 = vadd.f32 %v2940, 1.0
        %v3287 = vadd.f32 %v2942, 1.0
        %v3288 = vadd.f32 %v2944, 1.0
        %v3289 = vadd.f32 %v2946, 1.0
        %v3290 = vadd.f32 %v2948, 1.0
        %v3291 = vadd.f32 %v2950, 1.0
        %v3292 = vadd.f32 %v2952, 1.0
        %v3293 = vadd.f32 %v2954, 1.0
        %v3294 = vadd.f32 %v2956, 1.0
        %v3295 = vadd.f32 %v2958, 1.0
        %v3296 = vadd.f32 %v2960, 1.0
        %v3297 = vadd.f32 %v2962, 1.0
        %v3298 = vadd.f32 %v2964, 1.0
        %v3299 = vadd.f32 %v2966, 1.0
        %v3300 = vadd.f32 %v2968, 1.0
        %v3301 = vadd.f32 %v2970, 1.0
        %v3302 = vadd.f32 %v2972, 1.0
        %v3303 = vadd.f32 %v2974, 1.0
        %v3304 = vadd.f32 %v2976, 1.0
        %v3305 = vadd.f32 %v2978, 1.0
        %v3306 = vadd.f32 %v2980, 1.0
        %v3307 = vadd.f32 %v2982, 1.0
        %v3308 = vadd.f32 %v2984, 1.0
        %v3309 = vadd.f32 %v2986, 1.0
        %v3310 = vadd.f32 %v2988, 1.0
        %v3311 = vadd.f32 %v2990, 1.0
        %v3312 = vadd.f32 %v2992, 1.0
        %v3313 = vrcp.pop %v2993
        %v3314 = vmul.f32 1.0, %v3313
        %v3315 = vrcp.pop %v2994
        %v3316 = vmul.f32 1.0, %v3315
        %v3317 = vrcp.pop %v2995
        %v3318 = vmul.f32 1.0, %v3317
        %v3319 = vrcp.pop %v2996
        %v3320 = vmul.f32 1.0, %v3319
        %v3321 = vrcp.pop %v2997
        %v3322 = vmul.f32 1.0, %v3321
        %v3323 = vrcp.pop %v2998
        %v3324 = vmul.f32 1.0, %v3323
        %v3325 = vrcp.pop %v2999
        %v3326 = vmul.f32 1.0, %v3325
        %v3327 = vrcp.pop %v3000
        %v3328 = vmul.f32 1.0, %v3327
        %v3329 = vrcp.pop %v3001
        %v3330 = vmul.f32 1.0, %v3329
        %v3331 = vrcp.pop %v3002
        %v3332 = vmul.f32 1.0, %v3331
        %v3333 = vrcp.pop %v3003
        %v3334 = vmul.f32 1.0, %v3333
        %v3335 = vrcp.pop %v3004
        %v3336 = vmul.f32 1.0, %v3335
        %v3337 = vrcp.pop %v3005
        %v3338 = vmul.f32 1.0, %v3337
        %v3339 = vrcp.pop %v3006
        %v3340 = vmul.f32 1.0, %v3339
        %v3341 = vrcp.pop %v3007
        %v3342 = vmul.f32 1.0, %v3341
        %v3343 = vrcp.pop %v3008
        %v3344 = vmul.f32 1.0, %v3343
        %v3345 = vrcp.pop %v3009
        %v3346 = vmul.f32 1.0, %v3345
        %v3347 = vrcp.pop %v3010
        %v3348 = vmul.f32 1.0, %v3347
        %v3349 = vrcp.pop %v3011
        %v3350 = vmul.f32 1.0, %v3349
        %v3351 = vrcp.pop %v3012
        %v3352 = vmul.f32 1.0, %v3351
        %v3353 = vrcp.pop %v3013
        %v3354 = vmul.f32 1.0, %v3353
        %v3355 = vrcp.pop %v3014
        %v3356 = vmul.f32 1.0, %v3355
        %v3357 = vrcp.pop %v3015
        %v3358 = vmul.f32 1.0, %v3357
        %v3359 = vrcp.pop %v3016
        %v3360 = vmul.f32 1.0, %v3359
        %v3361 = vrcp.pop %v3017
        %v3362 = vmul.f32 1.0, %v3361
        %v3363 = vrcp.pop %v3018
        %v3364 = vmul.f32 1.0, %v3363
        %v3365 = vrcp.pop %v3019
        %v3366 = vmul.f32 1.0, %v3365
        %v3367 = vrcp.pop %v3020
        %v3368 = vmul.f32 1.0, %v3367
        %v3369 = vrcp.pop %v3021
        %v3370 = vmul.f32 1.0, %v3369
        %v3371 = vrcp.pop %v3022
        %v3372 = vmul.f32 1.0, %v3371
        %v3373 = vrcp.pop %v3023
        %v3374 = vmul.f32 1.0, %v3373
        %v3375 = vrcp.pop %v3024
        %v3376 = vmul.f32 1.0, %v3375
        %v3377 = vrcp.pop %v3025
        %v3378 = vmul.f32 1.0, %v3377
        %v3379 = vrcp.pop %v3026
        %v3380 = vmul.f32 1.0, %v3379
        %v3381 = vrcp.pop %v3027
        %v3382 = vmul.f32 1.0, %v3381
        %v3383 = vrcp.pop %v3028
        %v3384 = vmul.f32 1.0, %v3383
        %v3385 = vrcp.pop %v3029
        %v3386 = vmul.f32 1.0, %v3385
        %v3387 = vrcp.pop %v3030
        %v3388 = vmul.f32 1.0, %v3387
        %v3389 = vrcp.pop %v3031
        %v3390 = vmul.f32 1.0, %v3389
        %v3391 = vrcp.pop %v3032
        %v3392 = vmul.f32 1.0, %v3391
        %v3393 = vrcp.pop %v3033
        %v3394 = vmul.f32 1.0, %v3393
        %v3395 = vrcp.pop %v3034
        %v3396 = vmul.f32 1.0, %v3395
        %v3397 = vrcp.pop %v3035
        %v3398 = vmul.f32 1.0, %v3397
        %v3399 = vrcp.pop %v3036
        %v3400 = vmul.f32 1.0, %v3399
        %v3401 = vrcp.pop %v3037
        %v3402 = vmul.f32 1.0, %v3401
        %v3403 = vrcp.pop %v3038
        %v3404 = vmul.f32 1.0, %v3403
        %v3405 = vrcp.pop %v3039
        %v3406 = vmul.f32 1.0, %v3405
        %v3407 = vrcp.pop %v3040
        %v3408 = vmul.f32 1.0, %v3407
        %v3409 = vrcp.pop %v3041
        %v3410 = vmul.f32 1.0, %v3409
        %v3411 = vrcp.pop %v3042
        %v3412 = vmul.f32 1.0, %v3411
        %v3413 = vrcp.pop %v3043
        %v3414 = vmul.f32 1.0, %v3413
        %v3415 = vrcp.pop %v3044
        %v3416 = vmul.f32 1.0, %v3415
        %v3417 = vrcp.pop %v3045
        %v3418 = vmul.f32 1.0, %v3417
        %v3419 = vrcp.pop %v3046
        %v3420 = vmul.f32 1.0, %v3419
        %v3421 = vrcp.pop %v3047
        %v3422 = vmul.f32 1.0, %v3421
        %v3423 = vrcp.pop %v3048
        %v3424 = vmul.f32 1.0, %v3423
        %v3425 = vrcp.pop %v3049
        %v3426 = vmul.f32 1.0, %v3425
        %v3427 = vrcp.pop %v3050
        %v3428 = vmul.f32 1.0, %v3427
        %v3429 = vrcp.pop %v3051
        %v3430 = vmul.f32 1.0, %v3429
        %v3431 = vrcp.pop %v3052
        %v3432 = vmul.f32 1.0, %v3431
        %v3433 = vrcp.pop %v3053
        %v3434 = vmul.f32 1.0, %v3433
        %v3435 = vrcp.pop %v3054
        %v3436 = vmul.f32 1.0, %v3435
        %v3437 = vrcp.pop %v3055
        %v3438 = vmul.f32 1.0, %v3437
        %v3439 = vrcp.pop %v3056
        %v3440 = vmul.f32 1.0, %v3439
        %v3441 = vrcp.pop %v3057
        %v3442 = vmul.f32 1.0, %v3441
        %v3443 = vrcp.pop %v3058
        %v3444 = vmul.f32 1.0, %v3443
        %v3445 = vrcp.pop %v3059
        %v3446 = vmul.f32 1.0, %v3445
        %v3447 = vrcp.pop %v3060
        %v3448 = vmul.f32 1.0, %v3447
        %v3449 = vrcp.pop %v3061
        %v3450 = vmul.f32 1.0, %v3449
        %v3451 = vrcp.pop %v3062
        %v3452 = vmul.f32 1.0, %v3451
        %v3453 = vrcp.pop %v3063
        %v3454 = vmul.f32 1.0, %v3453
        %v3455 = vrcp.pop %v3064
        %v3456 = vmul.f32 1.0, %v3455
        %v3457 = vrcp.pop %v3065
        %v3458 = vmul.f32 1.0, %v3457
        %v3459 = vrcp.pop %v3066
        %v3460 = vmul.f32 1.0, %v3459
        %v3461 = vrcp.pop %v3067
        %v3462 = vmul.f32 1.0, %v3461
        %v3463 = vrcp.pop %v3068
        %v3464 = vmul.f32 1.0, %v3463
        %v3465 = vrcp.pop %v3069
        %v3466 = vmul.f32 1.0, %v3465
        %v3467 = vrcp.pop %v3070
        %v3468 = vmul.f32 1.0, %v3467
        %v3469 = vrcp.pop %v3071
        %v3470 = vmul.f32 1.0, %v3469
        %v3471 = vrcp.pop %v3072
        %v3472 = vmul.f32 1.0, %v3471
        %v3473 = vrcp.pop %v3073
        %v3474 = vmul.f32 1.0, %v3473
        %v3475 = vrcp.pop %v3074
        %v3476 = vmul.f32 1.0, %v3475
        %v3477 = vrcp.pop %v3075
        %v3478 = vmul.f32 1.0, %v3477
        %v3479 = vrcp.pop %v3076
        %v3480 = vmul.f32 1.0, %v3479
        %v3481 = vrcp.pop %v3077
        %v3482 = vmul.f32 1.0, %v3481
        %v3483 = vrcp.pop %v3078
        %v3484 = vmul.f32 1.0, %v3483
        %v3485 = vrcp.pop %v3079
        %v3486 = vmul.f32 1.0, %v3485
        %v3487 = vrcp.pop %v3080
        %v3488 = vmul.f32 1.0, %v3487
        %v3489 = vrcp.pop %v3081
        %v3490 = vmul.f32 1.0, %v3489
        %v3491 = vrcp.pop %v3082
        %v3492 = vmul.f32 1.0, %v3491
        %v3493 = vrcp.pop %v3083
        %v3494 = vmul.f32 1.0, %v3493
        %v3495 = vrcp.pop %v3084
        %v3496 = vmul.f32 1.0, %v3495
        %v3497 = vrcp.pop %v3085
        %v3498 = vmul.f32 1.0, %v3497
        %v3499 = vrcp.pop %v3086
        %v3500 = vmul.f32 1.0, %v3499
        %v3501 = vrcp.pop %v3087
        %v3502 = vmul.f32 1.0, %v3501
        %v3503 = vrcp.pop %v3088
        %v3504 = vmul.f32 1.0, %v3503
        %v3505 = vrcp.pop %v3089
        %v3506 = vmul.f32 1.0, %v3505
        %v3507 = vrcp.pop %v3090
        %v3508 = vmul.f32 1.0, %v3507
        %v3509 = vrcp.pop %v3091
        %v3510 = vmul.f32 1.0, %v3509
        %v3511 = vrcp.pop %v3092
        %v3512 = vmul.f32 1.0, %v3511
        %v3513 = vrcp.pop %v3093
        %v3514 = vmul.f32 1.0, %v3513
        %v3515 = vrcp.pop %v3094
        %v3516 = vmul.f32 1.0, %v3515
        %v3517 = vrcp.pop %v3095
        %v3518 = vmul.f32 1.0, %v3517
        %v3519 = vrcp.pop %v3096
        %v3520 = vmul.f32 1.0, %v3519
        %v3521 = vrcp.pop %v3097
        %v3522 = vmul.f32 1.0, %v3521
        %v3523 = vrcp.pop %v3098
        %v3524 = vmul.f32 1.0, %v3523
        %v3525 = vrcp.pop %v3099
        %v3526 = vmul.f32 1.0, %v3525
        %v3527 = vrcp.pop %v3100
        %v3528 = vmul.f32 1.0, %v3527
        %v3529 = vrcp.pop %v3101
        %v3530 = vmul.f32 1.0, %v3529
        %v3531 = vrcp.pop %v3102
        %v3532 = vmul.f32 1.0, %v3531
        %v3533 = vrcp.pop %v3103
        %v3534 = vmul.f32 1.0, %v3533
        %v3535 = vrcp.pop %v3104
        %v3536 = vmul.f32 1.0, %v3535
        %v3537 = vrcp.pop %v3105
        %v3538 = vmul.f32 1.0, %v3537
        %v3539 = vrcp.pop %v3106
        %v3540 = vmul.f32 1.0, %v3539
        %v3541 = vrcp.pop %v3107
        %v3542 = vmul.f32 1.0, %v3541
        %v3543 = vrcp.pop %v3108
        %v3544 = vmul.f32 1.0, %v3543
        %v3545 = vrcp.pop %v3109
        %v3546 = vmul.f32 1.0, %v3545
        %v3547 = vrcp.pop %v3110
        %v3548 = vmul.f32 1.0, %v3547
        %v3549 = vrcp.pop %v3111
        %v3550 = vmul.f32 1.0, %v3549
        %v3551 = vrcp.pop %v3112
        %v3552 = vmul.f32 1.0, %v3551
        %v3553 = vrcp.pop %v3113
        %v3554 = vmul.f32 1.0, %v3553
        %v3555 = vrcp.pop %v3114
        %v3556 = vmul.f32 1.0, %v3555
        %v3557 = vrcp.pop %v3115
        %v3558 = vmul.f32 1.0, %v3557
        %v3559 = vrcp.pop %v3116
        %v3560 = vmul.f32 1.0, %v3559
        %v3561 = vrcp.pop %v3117
        %v3562 = vmul.f32 1.0, %v3561
        %v3563 = vrcp.pop %v3118
        %v3564 = vmul.f32 1.0, %v3563
        %v3565 = vrcp.pop %v3119
        %v3566 = vmul.f32 1.0, %v3565
        %v3567 = vrcp.pop %v3120
        %v3568 = vmul.f32 1.0, %v3567
        %v3569 = vrcp.pop %v3121
        %v3570 = vmul.f32 1.0, %v3569
        %v3571 = vrcp.pop %v3122
        %v3572 = vmul.f32 1.0, %v3571
        %v3573 = vrcp.pop %v3123
        %v3574 = vmul.f32 1.0, %v3573
        %v3575 = vrcp.pop %v3124
        %v3576 = vmul.f32 1.0, %v3575
        %v3577 = vrcp.pop %v3125
        %v3578 = vmul.f32 1.0, %v3577
        %v3579 = vrcp.pop %v3126
        %v3580 = vmul.f32 1.0, %v3579
        %v3581 = vrcp.pop %v3127
        %v3582 = vmul.f32 1.0, %v3581
        %v3583 = vrcp.pop %v3128
        %v3584 = vmul.f32 1.0, %v3583
        %v3585 = vrcp.pop %v3129
        %v3586 = vmul.f32 1.0, %v3585
        %v3587 = vrcp.pop %v3130
        %v3588 = vmul.f32 1.0, %v3587
        %v3589 = vrcp.pop %v3131
        %v3590 = vmul.f32 1.0, %v3589
        %v3591 = vrcp.pop %v3132
        %v3592 = vmul.f32 1.0, %v3591
        %v3593 = vrcp.pop %v3133
        %v3594 = vmul.f32 1.0, %v3593
        %v3595 = vrcp.pop %v3134
        %v3596 = vmul.f32 1.0, %v3595
        %v3597 = vrcp.pop %v3135
        %v3598 = vmul.f32 1.0, %v3597
        %v3599 = vrcp.pop %v3136
        %v3600 = vmul.f32 1.0, %v3599
        %v3601 = vrcp.pop %v3137
        %v3602 = vmul.f32 1.0, %v3601
        %v3603 = vrcp.pop %v3138
        %v3604 = vmul.f32 1.0, %v3603
        %v3605 = vrcp.pop %v3139
        %v3606 = vmul.f32 1.0, %v3605
        %v3607 = vrcp.pop %v3140
        %v3608 = vmul.f32 1.0, %v3607
        %v3609 = vrcp.pop %v3141
        %v3610 = vmul.f32 1.0, %v3609
        %v3611 = vrcp.pop %v3142
        %v3612 = vmul.f32 1.0, %v3611
        %v3613 = vrcp.pop %v3143
        %v3614 = vmul.f32 1.0, %v3613
        %v3615 = vrcp.pop %v3144
        %v3616 = vmul.f32 1.0, %v3615
        %v3617 = vrcp.pop %v3145
        %v3618 = vmul.f32 1.0, %v3617
        %v3619 = vrcp.pop %v3146
        %v3620 = vmul.f32 1.0, %v3619
        %v3621 = vrcp.pop %v3147
        %v3622 = vmul.f32 1.0, %v3621
        %v3623 = vrcp.pop %v3148
        %v3624 = vmul.f32 1.0, %v3623
        %v3625 = vrcp.pop %v3149
        %v3626 = vmul.f32 1.0, %v3625
        %v3627 = vrcp.pop %v3150
        %v3628 = vmul.f32 1.0, %v3627
        %v3629 = vrcp.pop %v3151
        %v3630 = vmul.f32 1.0, %v3629
        %v3631 = vrcp.pop %v3152
        %v3632 = vmul.f32 1.0, %v3631
        %v3633 = vrcp.pop %v3153
        %v3634 = vmul.f32 1.0, %v3633
        %v3635 = vrcp.pop %v3154
        %v3636 = vmul.f32 1.0, %v3635
        %v3637 = vrcp.pop %v3155
        %v3638 = vmul.f32 1.0, %v3637
        %v3639 = vrcp.pop %v3156
        %v3640 = vmul.f32 1.0, %v3639
        %v3641 = vrcp.pop %v3157
        %v3642 = vmul.f32 1.0, %v3641
        %v3643 = vrcp.pop %v3158
        %v3644 = vmul.f32 1.0, %v3643
        %v3645 = vrcp.pop %v3159
        %v3646 = vmul.f32 1.0, %v3645
        %v3647 = vrcp.pop %v3160
        %v3648 = vmul.f32 1.0, %v3647
        %v3649 = vrcp.pop %v3161
        %v3650 = vmul.f32 1.0, %v3649
        %v3651 = vrcp.pop %v3162
        %v3652 = vmul.f32 1.0, %v3651
        %v3653 = vrcp.pop %v3163
        %v3654 = vmul.f32 1.0, %v3653
        %v3655 = vrcp.pop %v3164
        %v3656 = vmul.f32 1.0, %v3655
        %v3657 = vrcp.pop %v3165
        %v3658 = vmul.f32 1.0, %v3657
        %v3659 = vrcp.pop %v3166
        %v3660 = vmul.f32 1.0, %v3659
        %v3661 = vrcp.pop %v3167
        %v3662 = vmul.f32 1.0, %v3661
        %v3663 = vrcp.pop %v3168
        %v3664 = vmul.f32 1.0, %v3663
        %v3665 = vrcp.pop %v3169
        %v3666 = vmul.f32 1.0, %v3665
        %v3667 = vrcp.pop %v3170
        %v3668 = vmul.f32 1.0, %v3667
        %v3669 = vrcp.pop %v3171
        %v3670 = vmul.f32 1.0, %v3669
        %v3671 = vrcp.pop %v3172
        %v3672 = vmul.f32 1.0, %v3671
        %v3673 = vrcp.pop %v3173
        %v3674 = vmul.f32 1.0, %v3673
        %v3675 = vrcp.pop %v3174
        %v3676 = vmul.f32 1.0, %v3675
        %v3677 = vrcp.pop %v3175
        %v3678 = vmul.f32 1.0, %v3677
        %v3679 = vrcp.pop %v3176
        %v3680 = vmul.f32 1.0, %v3679
        %v3681 = vrcp.pop %v3177
        %v3682 = vmul.f32 1.0, %v3681
        %v3683 = vrcp.pop %v3178
        %v3684 = vmul.f32 1.0, %v3683
        %v3685 = vrcp.pop %v3179
        %v3686 = vmul.f32 1.0, %v3685
        %v3687 = vrcp.pop %v3180
        %v3688 = vmul.f32 1.0, %v3687
        %v3689 = vrcp.pop %v3181
        %v3690 = vmul.f32 1.0, %v3689
        %v3691 = vrcp.pop %v3182
        %v3692 = vmul.f32 1.0, %v3691
        %v3693 = vrcp.pop %v3183
        %v3694 = vmul.f32 1.0, %v3693
        %v3695 = vrcp.pop %v3184
        %v3696 = vmul.f32 1.0, %v3695
        %v3697 = vrcp.pop %v3185
        %v3698 = vmul.f32 1.0, %v3697
        %v3699 = vrcp.pop %v3186
        %v3700 = vmul.f32 1.0, %v3699
        %v3701 = vrcp.pop %v3187
        %v3702 = vmul.f32 1.0, %v3701
        %v3703 = vrcp.pop %v3188
        %v3704 = vmul.f32 1.0, %v3703
        %v3705 = vrcp.pop %v3189
        %v3706 = vmul.f32 1.0, %v3705
        %v3707 = vrcp.pop %v3190
        %v3708 = vmul.f32 1.0, %v3707
        %v3709 = vrcp.pop %v3191
        %v3710 = vmul.f32 1.0, %v3709
        %v3711 = vrcp.pop %v3192
        %v3712 = vmul.f32 1.0, %v3711
        %v3713 = vrcp.pop %v3193
        %v3714 = vmul.f32 1.0, %v3713
        %v3715 = vrcp.pop %v3194
        %v3716 = vmul.f32 1.0, %v3715
        %v3717 = vrcp.pop %v3195
        %v3718 = vmul.f32 1.0, %v3717
        %v3719 = vrcp.pop %v3196
        %v3720 = vmul.f32 1.0, %v3719
        %v3721 = vrcp.pop %v3197
        %v3722 = vmul.f32 1.0, %v3721
        %v3723 = vrcp.pop %v3198
        %v3724 = vmul.f32 1.0, %v3723
        %v3725 = vrcp.pop %v3199
        %v3726 = vmul.f32 1.0, %v3725
        %v3727 = vrcp.pop %v3200
        %v3728 = vmul.f32 1.0, %v3727
        %v3729 = vrcp.pop %v3201
        %v3730 = vmul.f32 1.0, %v3729
        %v3731 = vrcp.pop %v3202
        %v3732 = vmul.f32 1.0, %v3731
        %v3733 = vrcp.pop %v3203
        %v3734 = vmul.f32 1.0, %v3733
        %v3735 = vrcp.pop %v3204
        %v3736 = vmul.f32 1.0, %v3735
        %v3737 = vrcp.pop %v3205
        %v3738 = vmul.f32 1.0, %v3737
        %v3739 = vrcp.pop %v3206
        %v3740 = vmul.f32 1.0, %v3739
        %v3741 = vrcp.pop %v3207
        %v3742 = vmul.f32 1.0, %v3741
        %v3743 = vrcp.pop %v3208
        %v3744 = vmul.f32 1.0, %v3743
        %v3745 = vrcp.pop %v3209
        %v3746 = vmul.f32 1.0, %v3745
        %v3747 = vrcp.pop %v3210
        %v3748 = vmul.f32 1.0, %v3747
        %v3749 = vrcp.pop %v3211
        %v3750 = vmul.f32 1.0, %v3749
        %v3751 = vrcp.pop %v3212
        %v3752 = vmul.f32 1.0, %v3751
        %v3753 = vrcp.pop %v3213
        %v3754 = vmul.f32 1.0, %v3753
        %v3755 = vrcp.pop %v3214
        %v3756 = vmul.f32 1.0, %v3755
        %v3757 = vrcp.pop %v3215
        %v3758 = vmul.f32 1.0, %v3757
        %v3759 = vrcp.pop %v3216
        %v3760 = vmul.f32 1.0, %v3759
        %v3761 = vrcp.pop %v3217
        %v3762 = vmul.f32 1.0, %v3761
        %v3763 = vrcp.pop %v3218
        %v3764 = vmul.f32 1.0, %v3763
        %v3765 = vrcp.pop %v3219
        %v3766 = vmul.f32 1.0, %v3765
        %v3767 = vrcp.pop %v3220
        %v3768 = vmul.f32 1.0, %v3767
        %v3769 = vrcp.pop %v3221
        %v3770 = vmul.f32 1.0, %v3769
        %v3771 = vrcp.pop %v3222
        %v3772 = vmul.f32 1.0, %v3771
        %v3773 = vrcp.pop %v3223
        %v3774 = vmul.f32 1.0, %v3773
        %v3775 = vrcp.pop %v3224
        %v3776 = vmul.f32 1.0, %v3775
        %v3777 = vrcp.pop %v3225
        %v3778 = vmul.f32 1.0, %v3777
        %v3779 = vrcp.pop %v3226
        %v3780 = vmul.f32 1.0, %v3779
        %v3781 = vrcp.pop %v3227
        %v3782 = vmul.f32 1.0, %v3781
        %v3783 = vrcp.pop %v3228
        %v3784 = vmul.f32 1.0, %v3783
        %v3785 = vrcp.pop %v3229
        %v3786 = vmul.f32 1.0, %v3785
        %v3787 = vrcp.pop %v3230
        %v3788 = vmul.f32 1.0, %v3787
        %v3789 = vrcp.pop %v3231
        %v3790 = vmul.f32 1.0, %v3789
        %v3791 = vrcp.pop %v3232
        %v3792 = vmul.f32 1.0, %v3791
        %v3793 = vrcp.pop %v3233
        %v3794 = vmul.f32 1.0, %v3793
        %v3795 = vrcp.pop %v3234
        %v3796 = vmul.f32 1.0, %v3795
        %v3797 = vrcp.pop %v3235
        %v3798 = vmul.f32 1.0, %v3797
        %v3799 = vrcp.pop %v3236
        %v3800 = vmul.f32 1.0, %v3799
        %v3801 = vrcp.pop %v3237
        %v3802 = vmul.f32 1.0, %v3801
        %v3803 = vrcp.pop %v3238
        %v3804 = vmul.f32 1.0, %v3803
        %v3805 = vrcp.pop %v3239
        %v3806 = vmul.f32 1.0, %v3805
        %v3807 = vrcp.pop %v3240
        %v3808 = vmul.f32 1.0, %v3807
        %v3809 = vrcp.pop %v3241
        %v3810 = vmul.f32 1.0, %v3809
        %v3811 = vrcp.pop %v3242
        %v3812 = vmul.f32 1.0, %v3811
        %v3813 = vrcp.pop %v3243
        %v3814 = vmul.f32 1.0, %v3813
        %v3815 = vrcp.pop %v3244
        %v3816 = vmul.f32 1.0, %v3815
        %v3817 = vrcp.pop %v3245
        %v3818 = vmul.f32 1.0, %v3817
        %v3819 = vrcp.pop %v3246
        %v3820 = vmul.f32 1.0, %v3819
        %v3821 = vrcp.pop %v3247
        %v3822 = vmul.f32 1.0, %v3821
        %v3823 = vrcp.pop %v3248
        %v3824 = vmul.f32 1.0, %v3823
        %v3825 = vrcp.pop %v3249
        %v3826 = vmul.f32 1.0, %v3825
        %v3827 = vrcp.pop %v3250
        %v3828 = vmul.f32 1.0, %v3827
        %v3829 = vrcp.pop %v3251
        %v3830 = vmul.f32 1.0, %v3829
        %v3831 = vrcp.pop %v3252
        %v3832 = vmul.f32 1.0, %v3831
        %v3833 = vrcp.pop %v3253
        %v3834 = vmul.f32 1.0, %v3833
        %v3835 = vrcp.pop %v3254
        %v3836 = vmul.f32 1.0, %v3835
        %v3837 = vrcp.pop %v3255
        %v3838 = vmul.f32 1.0, %v3837
        %v3839 = vrcp.pop %v3256
        %v3840 = vmul.f32 1.0, %v3839
        %v3841 = vrcp.pop %v3257
        %v3842 = vmul.f32 1.0, %v3841
        %v3843 = vrcp.pop %v3258
        %v3844 = vmul.f32 1.0, %v3843
        %v3845 = vrcp.pop %v3259
        %v3846 = vmul.f32 1.0, %v3845
        %v3847 = vrcp.pop %v3260
        %v3848 = vmul.f32 1.0, %v3847
        %v3849 = vrcp.pop %v3261
        %v3850 = vmul.f32 1.0, %v3849
        %v3851 = vrcp.pop %v3262
        %v3852 = vmul.f32 1.0, %v3851
        %v3853 = vrcp.pop %v3263
        %v3854 = vmul.f32 1.0, %v3853
        %v3855 = vrcp.pop %v3264
        %v3856 = vmul.f32 1.0, %v3855
        %v3857 = vrcp.pop %v3265
        %v3858 = vmul.f32 1.0, %v3857
        %v3859 = vrcp.pop %v3266
        %v3860 = vmul.f32 1.0, %v3859
        %v3861 = vrcp.pop %v3267
        %v3862 = vmul.f32 1.0, %v3861
        %v3863 = vrcp.pop %v3268
        %v3864 = vmul.f32 1.0, %v3863
        %v3865 = vrcp.pop %v3269
        %v3866 = vmul.f32 1.0, %v3865
        %v3867 = vrcp.pop %v3270
        %v3868 = vmul.f32 1.0, %v3867
        %v3869 = vrcp.pop %v3271
        %v3870 = vmul.f32 1.0, %v3869
        %v3871 = vrcp.pop %v3272
        %v3872 = vmul.f32 1.0, %v3871
        %v3873 = vrcp.pop %v3273
        %v3874 = vmul.f32 1.0, %v3873
        %v3875 = vrcp.pop %v3274
        %v3876 = vmul.f32 1.0, %v3875
        %v3877 = vrcp.pop %v3275
        %v3878 = vmul.f32 1.0, %v3877
        %v3879 = vrcp.pop %v3276
        %v3880 = vmul.f32 1.0, %v3879
        %v3881 = vrcp.pop %v3277
        %v3882 = vmul.f32 1.0, %v3881
        %v3883 = vrcp.pop %v3278
        %v3884 = vmul.f32 1.0, %v3883
        %v3885 = vrcp.pop %v3279
        %v3886 = vmul.f32 1.0, %v3885
        %v3887 = vrcp.pop %v3280
        %v3888 = vmul.f32 1.0, %v3887
        %v3889 = vrcp.pop %v3281
        %v3890 = vmul.f32 1.0, %v3889
        %v3891 = vrcp.pop %v3282
        %v3892 = vmul.f32 1.0, %v3891
        %v3893 = vrcp.pop %v3283
        %v3894 = vmul.f32 1.0, %v3893
        %v3895 = vrcp.pop %v3284
        %v3896 = vmul.f32 1.0, %v3895
        %v3897 = vrcp.pop %v3285
        %v3898 = vmul.f32 1.0, %v3897
        %v3899 = vrcp.pop %v3286
        %v3900 = vmul.f32 1.0, %v3899
        %v3901 = vrcp.pop %v3287
        %v3902 = vmul.f32 1.0, %v3901
        %v3903 = vrcp.pop %v3288
        %v3904 = vmul.f32 1.0, %v3903
        %v3905 = vrcp.pop %v3289
        %v3906 = vmul.f32 1.0, %v3905
        %v3907 = vrcp.pop %v3290
        %v3908 = vmul.f32 1.0, %v3907
        %v3909 = vrcp.pop %v3291
        %v3910 = vmul.f32 1.0, %v3909
        %v3911 = vrcp.pop %v3292
        %v3912 = vmul.f32 1.0, %v3911
        %v3913 = vrcp.pop %v3293
        %v3914 = vmul.f32 1.0, %v3913
        %v3915 = vrcp.pop %v3294
        %v3916 = vmul.f32 1.0, %v3915
        %v3917 = vrcp.pop %v3295
        %v3918 = vmul.f32 1.0, %v3917
        %v3919 = vrcp.pop %v3296
        %v3920 = vmul.f32 1.0, %v3919
        %v3921 = vrcp.pop %v3297
        %v3922 = vmul.f32 1.0, %v3921
        %v3923 = vrcp.pop %v3298
        %v3924 = vmul.f32 1.0, %v3923
        %v3925 = vrcp.pop %v3299
        %v3926 = vmul.f32 1.0, %v3925
        %v3927 = vrcp.pop %v3300
        %v3928 = vmul.f32 1.0, %v3927
        %v3929 = vrcp.pop %v3301
        %v3930 = vmul.f32 1.0, %v3929
        %v3931 = vrcp.pop %v3302
        %v3932 = vmul.f32 1.0, %v3931
        %v3933 = vrcp.pop %v3303
        %v3934 = vmul.f32 1.0, %v3933
        %v3935 = vrcp.pop %v3304
        %v3936 = vmul.f32 1.0, %v3935
        %v3937 = vrcp.pop %v3305
        %v3938 = vmul.f32 1.0, %v3937
        %v3939 = vrcp.pop %v3306
        %v3940 = vmul.f32 1.0, %v3939
        %v3941 = vrcp.pop %v3307
        %v3942 = vmul.f32 1.0, %v3941
        %v3943 = vrcp.pop %v3308
        %v3944 = vmul.f32 1.0, %v3943
        %v3945 = vrcp.pop %v3309
        %v3946 = vmul.f32 1.0, %v3945
        %v3947 = vrcp.pop %v3310
        %v3948 = vmul.f32 1.0, %v3947
        %v3949 = vrcp.pop %v3311
        %v3950 = vmul.f32 1.0, %v3949
        %v3951 = vrcp.pop %v3312
        %v3952 = vmul.f32 1.0, %v3951
        %v3953 = vmul.f32 %v1103, %v3314
        %v3954 = vmul.f32 %v1105, %v3316
        %v3955 = vmul.f32 %v1296, %v3318
        %v3956 = vmul.f32 %v1298, %v3320
        %v3957 = vmul.f32 %v1489, %v3322
        %v3958 = vmul.f32 %v1491, %v3324
        %v3959 = vmul.f32 %v1682, %v3326
        %v3960 = vmul.f32 %v1684, %v3328
        %v3961 = vmul.f32 %v1875, %v3330
        %v3962 = vmul.f32 %v1877, %v3332
        %v3963 = vmul.f32 %v1107, %v3334
        %v3964 = vmul.f32 %v1109, %v3336
        %v3965 = vmul.f32 %v1300, %v3338
        %v3966 = vmul.f32 %v1302, %v3340
        %v3967 = vmul.f32 %v1493, %v3342
        %v3968 = vmul.f32 %v1495, %v3344
        %v3969 = vmul.f32 %v1686, %v3346
        %v3970 = vmul.f32 %v1688, %v3348
        %v3971 = vmul.f32 %v1879, %v3350
        %v3972 = vmul.f32 %v1881, %v3352
        %v3973 = vmul.f32 %v1113, %v3354
        %v3974 = vmul.f32 %v1115, %v3356
        %v3975 = vmul.f32 %v1306, %v3358
        %v3976 = vmul.f32 %v1308, %v3360
        %v3977 = vmul.f32 %v1499, %v3362
        %v3978 = vmul.f32 %v1501, %v3364
        %v3979 = vmul.f32 %v1692, %v3366
        %v3980 = vmul.f32 %v1694, %v3368
        %v3981 = vmul.f32 %v1885, %v3370
        %v3982 = vmul.f32 %v1887, %v3372
        %v3983 = vmul.f32 %v1117, %v3374
        %v3984 = vmul.f32 %v1119, %v3376
        %v3985 = vmul.f32 %v1310, %v3378
        %v3986 = vmul.f32 %v1312, %v3380
        %v3987 = vmul.f32 %v1503, %v3382
        %v3988 = vmul.f32 %v1505, %v3384
        %v3989 = vmul.f32 %v1696, %v3386
        %v3990 = vmul.f32 %v1698, %v3388
        %v3991 = vmul.f32 %v1889, %v3390
        %v3992 = vmul.f32 %v1891, %v3392
        %v3993 = vmul.f32 %v1123, %v3394
        %v3994 = vmul.f32 %v1125, %v3396
        %v3995 = vmul.f32 %v1316, %v3398
        %v3996 = vmul.f32 %v1318, %v3400
        %v3997 = vmul.f32 %v1509, %v3402
        %v3998 = vmul.f32 %v1511, %v3404
        %v3999 = vmul.f32 %v1702, %v3406
        %v4000 = vmul.f32 %v1704, %v3408
        %v4001 = vmul.f32 %v1895, %v3410
        %v4002 = vmul.f32 %v1897, %v3412
        %v4003 = vmul.f32 %v1127, %v3414
        %v4004 = vmul.f32 %v1129, %v3416
        %v4005 = vmul.f32 %v1320, %v3418
        %v4006 = vmul.f32 %v1322, %v3420
        %v4007 = vmul.f32 %v1513, %v3422
        %v4008 = vmul.f32 %v1515, %v3424
        %v4009 = vmul.f32 %v1706, %v3426
        %v4010 = vmul.f32 %v1708, %v3428
        %v4011 = vmul.f32 %v1899, %v3430
        %v4012 = vmul.f32 %v1901, %v3432
        %v4013 = vmul.f32 %v1133, %v3434
        %v4014 = vmul.f32 %v1135, %v3436
        %v4015 = vmul.f32 %v1326, %v3438
        %v4016 = vmul.f32 %v1328, %v3440
        %v4017 = vmul.f32 %v1519, %v3442
        %v4018 = vmul.f32 %v1521, %v3444
        %v4019 = vmul.f32 %v1712, %v3446
        %v4020 = vmul.f32 %v1714, %v3448
        %v4021 = vmul.f32 %v1905, %v3450
        %v4022 = vmul.f32 %v1907, %v3452
        %v4023 = vmul.f32 %v1137, %v3454
        %v4024 = vmul.f32 %v1139, %v3456
        %v4025 = vmul.f32 %v1330, %v3458
        %v4026 = vmul.f32 %v1332, %v3460
        %v4027 = vmul.f32 %v1523, %v3462
        %v4028 = vmul.f32 %v1525, %v3464
        %v4029 = vmul.f32 %v1716, %v3466
        %v4030 = vmul.f32 %v1718, %v3468
        %v4031 = vmul.f32 %v1909, %v3470
        %v4032 = vmul.f32 %v1911, %v3472
        %v4033 = vmul.f32 %v1143, %v3474
        %v4034 = vmul.f32 %v1145, %v3476
        %v4035 = vmul.f32 %v1336, %v3478
        %v4036 = vmul.f32 %v1338, %v3480
        %v4037 = vmul.f32 %v1529, %v3482
        %v4038 = vmul.f32 %v1531, %v3484
        %v4039 = vmul.f32 %v1722, %v3486
        %v4040 = vmul.f32 %v1724, %v3488
        %v4041 = vmul.f32 %v1915, %v3490
        %v4042 = vmul.f32 %v1917, %v3492
        %v4043 = vmul.f32 %v1147, %v3494
        %v4044 = vmul.f32 %v1149, %v3496
        %v4045 = vmul.f32 %v1340, %v3498
        %v4046 = vmul.f32 %v1342, %v3500
        %v4047 = vmul.f32 %v1533, %v3502
        %v4048 = vmul.f32 %v1535, %v3504
        %v4049 = vmul.f32 %v1726, %v3506
        %v4050 = vmul.f32 %v1728, %v3508
        %v4051 = vmul.f32 %v1919, %v3510
        %v4052 = vmul.f32 %v1921, %v3512
        %v4053 = vmul.f32 %v1153, %v3514
        %v4054 = vmul.f32 %v1155, %v3516
        %v4055 = vmul.f32 %v1346, %v3518
        %v4056 = vmul.f32 %v1348, %v3520
        %v4057 = vmul.f32 %v1539, %v3522
        %v4058 = vmul.f32 %v1541, %v3524
        %v4059 = vmul.f32 %v1732, %v3526
        %v4060 = vmul.f32 %v1734, %v3528
        %v4061 = vmul.f32 %v1925, %v3530
        %v4062 = vmul.f32 %v1927, %v3532
        %v4063 = vmul.f32 %v1157, %v3534
        %v4064 = vmul.f32 %v1159, %v3536
        %v4065 = vmul.f32 %v1350, %v3538
        %v4066 = vmul.f32 %v1352, %v3540
        %v4067 = vmul.f32 %v1543, %v3542
        %v4068 = vmul.f32 %v1545, %v3544
        %v4069 = vmul.f32 %v1736, %v3546
        %v4070 = vmul.f32 %v1738, %v3548
        %v4071 = vmul.f32 %v1929, %v3550
        %v4072 = vmul.f32 %v1931, %v3552
        %v4073 = vmul.f32 %v1163, %v3554
        %v4074 = vmul.f32 %v1165, %v3556
        %v4075 = vmul.f32 %v1356, %v3558
        %v4076 = vmul.f32 %v1358, %v3560
        %v4077 = vmul.f32 %v1549, %v3562
        %v4078 = vmul.f32 %v1551, %v3564
        %v4079 = vmul.f32 %v1742, %v3566
        %v4080 = vmul.f32 %v1744, %v3568
        %v4081 = vmul.f32 %v1935, %v3570
        %v4082 = vmul.f32 %v1937, %v3572
        %v4083 = vmul.f32 %v1167, %v3574
        %v4084 = vmul.f32 %v1169, %v3576
        %v4085 = vmul.f32 %v1360, %v3578
        %v4086 = vmul.f32 %v1362, %v3580
        %v4087 = vmul.f32 %v1553, %v3582
        %v4088 = vmul.f32 %v1555, %v3584
        %v4089 = vmul.f32 %v1746, %v3586
        %v4090 = vmul.f32 %v1748, %v3588
        %v4091 = vmul.f32 %v1939, %v3590
        %v4092 = vmul.f32 %v1941, %v3592
        %v4093 = vmul.f32 %v1173, %v3594
        %v4094 = vmul.f32 %v1175, %v3596
        %v4095 = vmul.f32 %v1366, %v3598
        %v4096 = vmul.f32 %v1368, %v3600
        %v4097 = vmul.f32 %v1559, %v3602
        %v4098 = vmul.f32 %v1561, %v3604
        %v4099 = vmul.f32 %v1752, %v3606
        %v4100 = vmul.f32 %v1754, %v3608
        %v4101 = vmul.f32 %v1945, %v3610
        %v4102 = vmul.f32 %v1947, %v3612
        %v4103 = vmul.f32 %v1177, %v3614
        %v4104 = vmul.f32 %v1179, %v3616
        %v4105 = vmul.f32 %v1370, %v3618
        %v4106 = vmul.f32 %v1372, %v3620
        %v4107 = vmul.f32 %v1563, %v3622
        %v4108 = vmul.f32 %v1565, %v3624
        %v4109 = vmul.f32 %v1756, %v3626
        %v4110 = vmul.f32 %v1758, %v3628
        %v4111 = vmul.f32 %v1949, %v3630
        %v4112 = vmul.f32 %v1951, %v3632
        %v4113 = vmul.f32 %v1183, %v3634
        %v4114 = vmul.f32 %v1185, %v3636
        %v4115 = vmul.f32 %v1376, %v3638
        %v4116 = vmul.f32 %v1378, %v3640
        %v4117 = vmul.f32 %v1569, %v3642
        %v4118 = vmul.f32 %v1571, %v3644
        %v4119 = vmul.f32 %v1762, %v3646
        %v4120 = vmul.f32 %v1764, %v3648
        %v4121 = vmul.f32 %v1955, %v3650
        %v4122 = vmul.f32 %v1957, %v3652
        %v4123 = vmul.f32 %v1187, %v3654
        %v4124 = vmul.f32 %v1189, %v3656
        %v4125 = vmul.f32 %v1380, %v3658
        %v4126 = vmul.f32 %v1382, %v3660
        %v4127 = vmul.f32 %v1573, %v3662
        %v4128 = vmul.f32 %v1575, %v3664
        %v4129 = vmul.f32 %v1766, %v3666
        %v4130 = vmul.f32 %v1768, %v3668
        %v4131 = vmul.f32 %v1959, %v3670
        %v4132 = vmul.f32 %v1961, %v3672
        %v4133 = vmul.f32 %v1193, %v3674
        %v4134 = vmul.f32 %v1195, %v3676
        %v4135 = vmul.f32 %v1386, %v3678
        %v4136 = vmul.f32 %v1388, %v3680
        %v4137 = vmul.f32 %v1579, %v3682
        %v4138 = vmul.f32 %v1581, %v3684
        %v4139 = vmul.f32 %v1772, %v3686
        %v4140 = vmul.f32 %v1774, %v3688
        %v4141 = vmul.f32 %v1965, %v3690
        %v4142 = vmul.f32 %v1967, %v3692
        %v4143 = vmul.f32 %v1197, %v3694
        %v4144 = vmul.f32 %v1199, %v3696
        %v4145 = vmul.f32 %v1390, %v3698
        %v4146 = vmul.f32 %v1392, %v3700
        %v4147 = vmul.f32 %v1583, %v3702
        %v4148 = vmul.f32 %v1585, %v3704
        %v4149 = vmul.f32 %v1776, %v3706
        %v4150 = vmul.f32 %v1778, %v3708
        %v4151 = vmul.f32 %v1969, %v3710
        %v4152 = vmul.f32 %v1971, %v3712
        %v4153 = vmul.f32 %v1203, %v3714
        %v4154 = vmul.f32 %v1205, %v3716
        %v4155 = vmul.f32 %v1396, %v3718
        %v4156 = vmul.f32 %v1398, %v3720
        %v4157 = vmul.f32 %v1589, %v3722
        %v4158 = vmul.f32 %v1591, %v3724
        %v4159 = vmul.f32 %v1782, %v3726
        %v4160 = vmul.f32 %v1784, %v3728
        %v4161 = vmul.f32 %v1975, %v3730
        %v4162 = vmul.f32 %v1977, %v3732
        %v4163 = vmul.f32 %v1207, %v3734
        %v4164 = vmul.f32 %v1209, %v3736
        %v4165 = vmul.f32 %v1400, %v3738
        %v4166 = vmul.f32 %v1402, %v3740
        %v4167 = vmul.f32 %v1593, %v3742
        %v4168 = vmul.f32 %v1595, %v3744
        %v4169 = vmul.f32 %v1786, %v3746
        %v4170 = vmul.f32 %v1788, %v3748
        %v4171 = vmul.f32 %v1979, %v3750
        %v4172 = vmul.f32 %v1981, %v3752
        %v4173 = vmul.f32 %v1213, %v3754
        %v4174 = vmul.f32 %v1215, %v3756
        %v4175 = vmul.f32 %v1406, %v3758
        %v4176 = vmul.f32 %v1408, %v3760
        %v4177 = vmul.f32 %v1599, %v3762
        %v4178 = vmul.f32 %v1601, %v3764
        %v4179 = vmul.f32 %v1792, %v3766
        %v4180 = vmul.f32 %v1794, %v3768
        %v4181 = vmul.f32 %v1985, %v3770
        %v4182 = vmul.f32 %v1987, %v3772
        %v4183 = vmul.f32 %v1217, %v3774
        %v4184 = vmul.f32 %v1219, %v3776
        %v4185 = vmul.f32 %v1410, %v3778
        %v4186 = vmul.f32 %v1412, %v3780
        %v4187 = vmul.f32 %v1603, %v3782
        %v4188 = vmul.f32 %v1605, %v3784
        %v4189 = vmul.f32 %v1796, %v3786
        %v4190 = vmul.f32 %v1798, %v3788
        %v4191 = vmul.f32 %v1989, %v3790
        %v4192 = vmul.f32 %v1991, %v3792
        %v4193 = vmul.f32 %v1223, %v3794
        %v4194 = vmul.f32 %v1225, %v3796
        %v4195 = vmul.f32 %v1416, %v3798
        %v4196 = vmul.f32 %v1418, %v3800
        %v4197 = vmul.f32 %v1609, %v3802
        %v4198 = vmul.f32 %v1611, %v3804
        %v4199 = vmul.f32 %v1802, %v3806
        %v4200 = vmul.f32 %v1804, %v3808
        %v4201 = vmul.f32 %v1995, %v3810
        %v4202 = vmul.f32 %v1997, %v3812
        %v4203 = vmul.f32 %v1227, %v3814
        %v4204 = vmul.f32 %v1229, %v3816
        %v4205 = vmul.f32 %v1420, %v3818
        %v4206 = vmul.f32 %v1422, %v3820
        %v4207 = vmul.f32 %v1613, %v3822
        %v4208 = vmul.f32 %v1615, %v3824
        %v4209 = vmul.f32 %v1806, %v3826
        %v4210 = vmul.f32 %v1808, %v3828
        %v4211 = vmul.f32 %v1999, %v3830
        %v4212 = vmul.f32 %v2001, %v3832
        %v4213 = vmul.f32 %v1233, %v3834
        %v4214 = vmul.f32 %v1235, %v3836
        %v4215 = vmul.f32 %v1426, %v3838
        %v4216 = vmul.f32 %v1428, %v3840
        %v4217 = vmul.f32 %v1619, %v3842
        %v4218 = vmul.f32 %v1621, %v3844
        %v4219 = vmul.f32 %v1812, %v3846
        %v4220 = vmul.f32 %v1814, %v3848
        %v4221 = vmul.f32 %v2005, %v3850
        %v4222 = vmul.f32 %v2007, %v3852
        %v4223 = vmul.f32 %v1237, %v3854
        %v4224 = vmul.f32 %v1239, %v3856
        %v4225 = vmul.f32 %v1430, %v3858
        %v4226 = vmul.f32 %v1432, %v3860
        %v4227 = vmul.f32 %v1623, %v3862
        %v4228 = vmul.f32 %v1625, %v3864
        %v4229 = vmul.f32 %v1816, %v3866
        %v4230 = vmul.f32 %v1818, %v3868
        %v4231 = vmul.f32 %v2009, %v3870
        %v4232 = vmul.f32 %v2011, %v3872
        %v4233 = vmul.f32 %v1243, %v3874
        %v4234 = vmul.f32 %v1245, %v3876
        %v4235 = vmul.f32 %v1436, %v3878
        %v4236 = vmul.f32 %v1438, %v3880
        %v4237 = vmul.f32 %v1629, %v3882
        %v4238 = vmul.f32 %v1631, %v3884
        %v4239 = vmul.f32 %v1822, %v3886
        %v4240 = vmul.f32 %v1824, %v3888
        %v4241 = vmul.f32 %v2015, %v3890
        %v4242 = vmul.f32 %v2017, %v3892
        %v4243 = vmul.f32 %v1247, %v3894
        %v4244 = vmul.f32 %v1249, %v3896
        %v4245 = vmul.f32 %v1440, %v3898
        %v4246 = vmul.f32 %v1442, %v3900
        %v4247 = vmul.f32 %v1633, %v3902
        %v4248 = vmul.f32 %v1635, %v3904
        %v4249 = vmul.f32 %v1826, %v3906
        %v4250 = vmul.f32 %v1828, %v3908
        %v4251 = vmul.f32 %v2019, %v3910
        %v4252 = vmul.f32 %v2021, %v3912
        %v4253 = vmul.f32 %v1253, %v3914
        %v4254 = vmul.f32 %v1255, %v3916
        %v4255 = vmul.f32 %v1446, %v3918
        %v4256 = vmul.f32 %v1448, %v3920
        %v4257 = vmul.f32 %v1639, %v3922
        %v4258 = vmul.f32 %v1641, %v3924
        %v4259 = vmul.f32 %v1832, %v3926
        %v4260 = vmul.f32 %v1834, %v3928
        %v4261 = vmul.f32 %v2025, %v3930
        %v4262 = vmul.f32 %v2027, %v3932
        %v4263 = vmul.f32 %v1257, %v3934
        %v4264 = vmul.f32 %v1259, %v3936
        %v4265 = vmul.f32 %v1450, %v3938
        %v4266 = vmul.f32 %v1452, %v3940
        %v4267 = vmul.f32 %v1643, %v3942
        %v4268 = vmul.f32 %v1645, %v3944
        %v4269 = vmul.f32 %v1836, %v3946
        %v4270 = vmul.f32 %v1838, %v3948
        %v4271 = vmul.f32 %v2029, %v3950
        %v4272 = vmul.f32 %v2031, %v3952
        %v4273 = vadd.f32 %v3953, %v3963
        %v4274 = vadd.f32 %v4273, %v3973
        %v4275 = vadd.f32 %v4274, %v3983
        %v4276 = vadd.f32 %v4275, %v3993
        %v4277 = vadd.f32 %v4276, %v4003
        %v4278 = vadd.f32 %v4277, %v4013
        %v4279 = vadd.f32 %v4278, %v4023
        %v4280 = vadd.f32 %v4279, %v4033
        %v4281 = vadd.f32 %v4280, %v4043
        %v4282 = vadd.f32 %v4281, %v4053
        %v4283 = vadd.f32 %v4282, %v4063
        %v4284 = vadd.f32 %v4283, %v4073
        %v4285 = vadd.f32 %v4284, %v4083
        %v4286 = vadd.f32 %v4285, %v4093
        %v4287 = vadd.f32 %v4286, %v4103
        %v4288 = vadd.f32 %v4287, %v4113
        %v4289 = vadd.f32 %v4288, %v4123
        %v4290 = vadd.f32 %v4289, %v4133
        %v4291 = vadd.f32 %v4290, %v4143
        %v4292 = vadd.f32 %v4291, %v4153
        %v4293 = vadd.f32 %v4292, %v4163
        %v4294 = vadd.f32 %v4293, %v4173
        %v4295 = vadd.f32 %v4294, %v4183
        %v4296 = vadd.f32 %v4295, %v4193
        %v4297 = vadd.f32 %v4296, %v4203
        %v4298 = vadd.f32 %v4297, %v4213
        %v4299 = vadd.f32 %v4298, %v4223
        %v4300 = vadd.f32 %v4299, %v4233
        %v4301 = vadd.f32 %v4300, %v4243
        %v4302 = vadd.f32 %v4301, %v4253
        %v4303 = vadd.f32 %v4302, %v4263
        %v4304 = vrot.slane %v4303, 4
        %v4305 = vadd.f32 %v4303, %v4304
        %v4306 = vrot.slane %v4305, 2
        %v4307 = vadd.f32 %v4305, %v4306
        %v4308 = vrot.slane %v4307, 1
        %v4309 = vadd.f32 %v4307, %v4308
        %v4310 = vadd.f32 %v3954, %v3964
        %v4311 = vadd.f32 %v4310, %v3974
        %v4312 = vadd.f32 %v4311, %v3984
        %v4313 = vadd.f32 %v4312, %v3994
        %v4314 = vadd.f32 %v4313, %v4004
        %v4315 = vadd.f32 %v4314, %v4014
        %v4316 = vadd.f32 %v4315, %v4024
        %v4317 = vadd.f32 %v4316, %v4034
        %v4318 = vadd.f32 %v4317, %v4044
        %v4319 = vadd.f32 %v4318, %v4054
        %v4320 = vadd.f32 %v4319, %v4064
        %v4321 = vadd.f32 %v4320, %v4074
        %v4322 = vadd.f32 %v4321, %v4084
        %v4323 = vadd.f32 %v4322, %v4094
        %v4324 = vadd.f32 %v4323, %v4104
        %v4325 = vadd.f32 %v4324, %v4114
        %v4326 = vadd.f32 %v4325, %v4124
        %v4327 = vadd.f32 %v4326, %v4134
        %v4328 = vadd.f32 %v4327, %v4144
        %v4329 = vadd.f32 %v4328, %v4154
        %v4330 = vadd.f32 %v4329, %v4164
        %v4331 = vadd.f32 %v4330, %v4174
        %v4332 = vadd.f32 %v4331, %v4184
        %v4333 = vadd.f32 %v4332, %v4194
        %v4334 = vadd.f32 %v4333, %v4204
        %v4335 = vadd.f32 %v4334, %v4214
        %v4336 = vadd.f32 %v4335, %v4224
        %v4337 = vadd.f32 %v4336, %v4234
        %v4338 = vadd.f32 %v4337, %v4244
        %v4339 = vadd.f32 %v4338, %v4254
        %v4340 = vadd.f32 %v4339, %v4264
        %v4341 = vrot.slane %v4340, 4
        %v4342 = vadd.f32 %v4340, %v4341
        %v4343 = vrot.slane %v4342, 2
        %v4344 = vadd.f32 %v4342, %v4343
        %v4345 = vrot.slane %v4344, 1
        %v4346 = vadd.f32 %v4344, %v4345
        %v4347 = vadd.f32 %v3955, %v3965
        %v4348 = vadd.f32 %v4347, %v3975
        %v4349 = vadd.f32 %v4348, %v3985
        %v4350 = vadd.f32 %v4349, %v3995
        %v4351 = vadd.f32 %v4350, %v4005
        %v4352 = vadd.f32 %v4351, %v4015
        %v4353 = vadd.f32 %v4352, %v4025
        %v4354 = vadd.f32 %v4353, %v4035
        %v4355 = vadd.f32 %v4354, %v4045
        %v4356 = vadd.f32 %v4355, %v4055
        %v4357 = vadd.f32 %v4356, %v4065
        %v4358 = vadd.f32 %v4357, %v4075
        %v4359 = vadd.f32 %v4358, %v4085
        %v4360 = vadd.f32 %v4359, %v4095
        %v4361 = vadd.f32 %v4360, %v4105
        %v4362 = vadd.f32 %v4361, %v4115
        %v4363 = vadd.f32 %v4362, %v4125
        %v4364 = vadd.f32 %v4363, %v4135
        %v4365 = vadd.f32 %v4364, %v4145
        %v4366 = vadd.f32 %v4365, %v4155
        %v4367 = vadd.f32 %v4366, %v4165
        %v4368 = vadd.f32 %v4367, %v4175
        %v4369 = vadd.f32 %v4368, %v4185
        %v4370 = vadd.f32 %v4369, %v4195
        %v4371 = vadd.f32 %v4370, %v4205
        %v4372 = vadd.f32 %v4371, %v4215
        %v4373 = vadd.f32 %v4372, %v4225
        %v4374 = vadd.f32 %v4373, %v4235
        %v4375 = vadd.f32 %v4374, %v4245
        %v4376 = vadd.f32 %v4375, %v4255
        %v4377 = vadd.f32 %v4376, %v4265
        %v4378 = vrot.slane %v4377, 4
        %v4379 = vadd.f32 %v4377, %v4378
        %v4380 = vrot.slane %v4379, 2
        %v4381 = vadd.f32 %v4379, %v4380
        %v4382 = vrot.slane %v4381, 1
        %v4383 = vadd.f32 %v4381, %v4382
        %v4384 = vadd.f32 %v3956, %v3966
        %v4385 = vadd.f32 %v4384, %v3976
        %v4386 = vadd.f32 %v4385, %v3986
        %v4387 = vadd.f32 %v4386, %v3996
        %v4388 = vadd.f32 %v4387, %v4006
        %v4389 = vadd.f32 %v4388, %v4016
        %v4390 = vadd.f32 %v4389, %v4026
        %v4391 = vadd.f32 %v4390, %v4036
        %v4392 = vadd.f32 %v4391, %v4046
        %v4393 = vadd.f32 %v4392, %v4056
        %v4394 = vadd.f32 %v4393, %v4066
        %v4395 = vadd.f32 %v4394, %v4076
        %v4396 = vadd.f32 %v4395, %v4086
        %v4397 = vadd.f32 %v4396, %v4096
        %v4398 = vadd.f32 %v4397, %v4106
        %v4399 = vadd.f32 %v4398, %v4116
        %v4400 = vadd.f32 %v4399, %v4126
        %v4401 = vadd.f32 %v4400, %v4136
        %v4402 = vadd.f32 %v4401, %v4146
        %v4403 = vadd.f32 %v4402, %v4156
        %v4404 = vadd.f32 %v4403, %v4166
        %v4405 = vadd.f32 %v4404, %v4176
        %v4406 = vadd.f32 %v4405, %v4186
        %v4407 = vadd.f32 %v4406, %v4196
        %v4408 = vadd.f32 %v4407, %v4206
        %v4409 = vadd.f32 %v4408, %v4216
        %v4410 = vadd.f32 %v4409, %v4226
        %v4411 = vadd.f32 %v4410, %v4236
        %v4412 = vadd.f32 %v4411, %v4246
        %v4413 = vadd.f32 %v4412, %v4256
        %v4414 = vadd.f32 %v4413, %v4266
        %v4415 = vrot.slane %v4414, 4
        %v4416 = vadd.f32 %v4414, %v4415
        %v4417 = vrot.slane %v4416, 2
        %v4418 = vadd.f32 %v4416, %v4417
        %v4419 = vrot.slane %v4418, 1
        %v4420 = vadd.f32 %v4418, %v4419
        %v4421 = vadd.f32 %v3957, %v3967
        %v4422 = vadd.f32 %v4421, %v3977
        %v4423 = vadd.f32 %v4422, %v3987
        %v4424 = vadd.f32 %v4423, %v3997
        %v4425 = vadd.f32 %v4424, %v4007
        %v4426 = vadd.f32 %v4425, %v4017
        %v4427 = vadd.f32 %v4426, %v4027
        %v4428 = vadd.f32 %v4427, %v4037
        %v4429 = vadd.f32 %v4428, %v4047
        %v4430 = vadd.f32 %v4429, %v4057
        %v4431 = vadd.f32 %v4430, %v4067
        %v4432 = vadd.f32 %v4431, %v4077
        %v4433 = vadd.f32 %v4432, %v4087
        %v4434 = vadd.f32 %v4433, %v4097
        %v4435 = vadd.f32 %v4434, %v4107
        %v4436 = vadd.f32 %v4435, %v4117
        %v4437 = vadd.f32 %v4436, %v4127
        %v4438 = vadd.f32 %v4437, %v4137
        %v4439 = vadd.f32 %v4438, %v4147
        %v4440 = vadd.f32 %v4439, %v4157
        %v4441 = vadd.f32 %v4440, %v4167
        %v4442 = vadd.f32 %v4441, %v4177
        %v4443 = vadd.f32 %v4442, %v4187
        %v4444 = vadd.f32 %v4443, %v4197
        %v4445 = vadd.f32 %v4444, %v4207
        %v4446 = vadd.f32 %v4445, %v4217
        %v4447 = vadd.f32 %v4446, %v4227
        %v4448 = vadd.f32 %v4447, %v4237
        %v4449 = vadd.f32 %v4448, %v4247
        %v4450 = vadd.f32 %v4449, %v4257
        %v4451 = vadd.f32 %v4450, %v4267
        %v4452 = vrot.slane %v4451, 4
        %v4453 = vadd.f32 %v4451, %v4452
        %v4454 = vrot.slane %v4453, 2
        %v4455 = vadd.f32 %v4453, %v4454
        %v4456 = vrot.slane %v4455, 1
        %v4457 = vadd.f32 %v4455, %v4456
        %v4458 = vadd.f32 %v3958, %v3968
        %v4459 = vadd.f32 %v4458, %v3978
        %v4460 = vadd.f32 %v4459, %v3988
        %v4461 = vadd.f32 %v4460, %v3998
        %v4462 = vadd.f32 %v4461, %v4008
        %v4463 = vadd.f32 %v4462, %v4018
        %v4464 = vadd.f32 %v4463, %v4028
        %v4465 = vadd.f32 %v4464, %v4038
        %v4466 = vadd.f32 %v4465, %v4048
        %v4467 = vadd.f32 %v4466, %v4058
        %v4468 = vadd.f32 %v4467, %v4068
        %v4469 = vadd.f32 %v4468, %v4078
        %v4470 = vadd.f32 %v4469, %v4088
        %v4471 = vadd.f32 %v4470, %v4098
        %v4472 = vadd.f32 %v4471, %v4108
        %v4473 = vadd.f32 %v4472, %v4118
        %v4474 = vadd.f32 %v4473, %v4128
        %v4475 = vadd.f32 %v4474, %v4138
        %v4476 = vadd.f32 %v4475, %v4148
        %v4477 = vadd.f32 %v4476, %v4158
        %v4478 = vadd.f32 %v4477, %v4168
        %v4479 = vadd.f32 %v4478, %v4178
        %v4480 = vadd.f32 %v4479, %v4188
        %v4481 = vadd.f32 %v4480, %v4198
        %v4482 = vadd.f32 %v4481, %v4208
        %v4483 = vadd.f32 %v4482, %v4218
        %v4484 = vadd.f32 %v4483, %v4228
        %v4485 = vadd.f32 %v4484, %v4238
        %v4486 = vadd.f32 %v4485, %v4248
        %v4487 = vadd.f32 %v4486, %v4258
        %v4488 = vadd.f32 %v4487, %v4268
        %v4489 = vrot.slane %v4488, 4
        %v4490 = vadd.f32 %v4488, %v4489
        %v4491 = vrot.slane %v4490, 2
        %v4492 = vadd.f32 %v4490, %v4491
        %v4493 = vrot.slane %v4492, 1
        %v4494 = vadd.f32 %v4492, %v4493
        %v4495 = vadd.f32 %v3959, %v3969
        %v4496 = vadd.f32 %v4495, %v3979
        %v4497 = vadd.f32 %v4496, %v3989
        %v4498 = vadd.f32 %v4497, %v3999
        %v4499 = vadd.f32 %v4498, %v4009
        %v4500 = vadd.f32 %v4499, %v4019
        %v4501 = vadd.f32 %v4500, %v4029
        %v4502 = vadd.f32 %v4501, %v4039
        %v4503 = vadd.f32 %v4502, %v4049
        %v4504 = vadd.f32 %v4503, %v4059
        %v4505 = vadd.f32 %v4504, %v4069
        %v4506 = vadd.f32 %v4505, %v4079
        %v4507 = vadd.f32 %v4506, %v4089
        %v4508 = vadd.f32 %v4507, %v4099
        %v4509 = vadd.f32 %v4508, %v4109
        %v4510 = vadd.f32 %v4509, %v4119
        %v4511 = vadd.f32 %v4510, %v4129
        %v4512 = vadd.f32 %v4511, %v4139
        %v4513 = vadd.f32 %v4512, %v4149
        %v4514 = vadd.f32 %v4513, %v4159
        %v4515 = vadd.f32 %v4514, %v4169
        %v4516 = vadd.f32 %v4515, %v4179
        %v4517 = vadd.f32 %v4516, %v4189
        %v4518 = vadd.f32 %v4517, %v4199
        %v4519 = vadd.f32 %v4518, %v4209
        %v4520 = vadd.f32 %v4519, %v4219
        %v4521 = vadd.f32 %v4520, %v4229
        %v4522 = vadd.f32 %v4521, %v4239
        %v4523 = vadd.f32 %v4522, %v4249
        %v4524 = vadd.f32 %v4523, %v4259
        %v4525 = vadd.f32 %v4524, %v4269
        %v4526 = vrot.slane %v4525, 4
        %v4527 = vadd.f32 %v4525, %v4526
        %v4528 = vrot.slane %v4527, 2
        %v4529 = vadd.f32 %v4527, %v4528
        %v4530 = vrot.slane %v4529, 1
        %v4531 = vadd.f32 %v4529, %v4530
        %v4532 = vadd.f32 %v3960, %v3970
        %v4533 = vadd.f32 %v4532, %v3980
        %v4534 = vadd.f32 %v4533, %v3990
        %v4535 = vadd.f32 %v4534, %v4000
        %v4536 = vadd.f32 %v4535, %v4010
        %v4537 = vadd.f32 %v4536, %v4020
        %v4538 = vadd.f32 %v4537, %v4030
        %v4539 = vadd.f32 %v4538, %v4040
        %v4540 = vadd.f32 %v4539, %v4050
        %v4541 = vadd.f32 %v4540, %v4060
        %v4542 = vadd.f32 %v4541, %v4070
        %v4543 = vadd.f32 %v4542, %v4080
        %v4544 = vadd.f32 %v4543, %v4090
        %v4545 = vadd.f32 %v4544, %v4100
        %v4546 = vadd.f32 %v4545, %v4110
        %v4547 = vadd.f32 %v4546, %v4120
        %v4548 = vadd.f32 %v4547, %v4130
        %v4549 = vadd.f32 %v4548, %v4140
        %v4550 = vadd.f32 %v4549, %v4150
        %v4551 = vadd.f32 %v4550, %v4160
        %v4552 = vadd.f32 %v4551, %v4170
        %v4553 = vadd.f32 %v4552, %v4180
        %v4554 = vadd.f32 %v4553, %v4190
        %v4555 = vadd.f32 %v4554, %v4200
        %v4556 = vadd.f32 %v4555, %v4210
        %v4557 = vadd.f32 %v4556, %v4220
        %v4558 = vadd.f32 %v4557, %v4230
        %v4559 = vadd.f32 %v4558, %v4240
        %v4560 = vadd.f32 %v4559, %v4250
        %v4561 = vadd.f32 %v4560, %v4260
        %v4562 = vadd.f32 %v4561, %v4270
        %v4563 = vrot.slane %v4562, 4
        %v4564 = vadd.f32 %v4562, %v4563
        %v4565 = vrot.slane %v4564, 2
        %v4566 = vadd.f32 %v4564, %v4565
        %v4567 = vrot.slane %v4566, 1
        %v4568 = vadd.f32 %v4566, %v4567
        %v4569 = vadd.f32 %v3961, %v3971
        %v4570 = vadd.f32 %v4569, %v3981
        %v4571 = vadd.f32 %v4570, %v3991
        %v4572 = vadd.f32 %v4571, %v4001
        %v4573 = vadd.f32 %v4572, %v4011
        %v4574 = vadd.f32 %v4573, %v4021
        %v4575 = vadd.f32 %v4574, %v4031
        %v4576 = vadd.f32 %v4575, %v4041
        %v4577 = vadd.f32 %v4576, %v4051
        %v4578 = vadd.f32 %v4577, %v4061
        %v4579 = vadd.f32 %v4578, %v4071
        %v4580 = vadd.f32 %v4579, %v4081
        %v4581 = vadd.f32 %v4580, %v4091
        %v4582 = vadd.f32 %v4581, %v4101
        %v4583 = vadd.f32 %v4582, %v4111
        %v4584 = vadd.f32 %v4583, %v4121
        %v4585 = vadd.f32 %v4584, %v4131
        %v4586 = vadd.f32 %v4585, %v4141
        %v4587 = vadd.f32 %v4586, %v4151
        %v4588 = vadd.f32 %v4587, %v4161
        %v4589 = vadd.f32 %v4588, %v4171
        %v4590 = vadd.f32 %v4589, %v4181
        %v4591 = vadd.f32 %v4590, %v4191
        %v4592 = vadd.f32 %v4591, %v4201
        %v4593 = vadd.f32 %v4592, %v4211
        %v4594 = vadd.f32 %v4593, %v4221
        %v4595 = vadd.f32 %v4594, %v4231
        %v4596 = vadd.f32 %v4595, %v4241
        %v4597 = vadd.f32 %v4596, %v4251
        %v4598 = vadd.f32 %v4597, %v4261
        %v4599 = vadd.f32 %v4598, %v4271
        %v4600 = vrot.slane %v4599, 4
        %v4601 = vadd.f32 %v4599, %v4600
        %v4602 = vrot.slane %v4601, 2
        %v4603 = vadd.f32 %v4601, %v4602
        %v4604 = vrot.slane %v4603, 1
        %v4605 = vadd.f32 %v4603, %v4604
        %v4606 = vadd.f32 %v3962, %v3972
        %v4607 = vadd.f32 %v4606, %v3982
        %v4608 = vadd.f32 %v4607, %v3992
        %v4609 = vadd.f32 %v4608, %v4002
        %v4610 = vadd.f32 %v4609, %v4012
        %v4611 = vadd.f32 %v4610, %v4022
        %v4612 = vadd.f32 %v4611, %v4032
        %v4613 = vadd.f32 %v4612, %v4042
        %v4614 = vadd.f32 %v4613, %v4052
        %v4615 = vadd.f32 %v4614, %v4062
        %v4616 = vadd.f32 %v4615, %v4072
        %v4617 = vadd.f32 %v4616, %v4082
        %v4618 = vadd.f32 %v4617, %v4092
        %v4619 = vadd.f32 %v4618, %v4102
        %v4620 = vadd.f32 %v4619, %v4112
        %v4621 = vadd.f32 %v4620, %v4122
        %v4622 = vadd.f32 %v4621, %v4132
        %v4623 = vadd.f32 %v4622, %v4142
        %v4624 = vadd.f32 %v4623, %v4152
        %v4625 = vadd.f32 %v4624, %v4162
        %v4626 = vadd.f32 %v4625, %v4172
        %v4627 = vadd.f32 %v4626, %v4182
        %v4628 = vadd.f32 %v4627, %v4192
        %v4629 = vadd.f32 %v4628, %v4202
        %v4630 = vadd.f32 %v4629, %v4212
        %v4631 = vadd.f32 %v4630, %v4222
        %v4632 = vadd.f32 %v4631, %v4232
        %v4633 = vadd.f32 %v4632, %v4242
        %v4634 = vadd.f32 %v4633, %v4252
        %v4635 = vadd.f32 %v4634, %v4262
        %v4636 = vadd.f32 %v4635, %v4272
        %v4637 = vrot.slane %v4636, 4
        %v4638 = vadd.f32 %v4636, %v4637
        %v4639 = vrot.slane %v4638, 2
        %v4640 = vadd.f32 %v4638, %v4639
        %v4641 = vrot.slane %v4640, 1
        %v4642 = vadd.f32 %v4640, %v4641
        %v4643 = vlaneseq
        %v4644 = vshrl.u32 %v4643, 7
        %v4645 = vstv %s21
        %vm4646 = vcmp.eq.s32.totalorder %v4644, %v4645
        %v4647 = vsel %vm4646, 1, 0
        %v4648 = vcvt.s32.f32 %v4647
        %v4649 = vld [vmem:[%s5] sm:$0xff]
        %v4650 = vld [vmem:[%s5 + $0x8] sm:$0xff]
        %v4651 = vld [vmem:[%s5 + $0x10] sm:$0xf]
        %v4652 = vmul.f32 %v4648, %v4309
        %v4653 = vmul.f32 %v4648, %v4346
        %v4654 = vmul.f32 %v4648, %v4383
        %v4655 = vmul.f32 %v4648, %v4420
        %v4656 = vmul.f32 %v4648, %v4457
        %v4657 = vmul.f32 %v4648, %v4494
        %v4658 = vmul.f32 %v4648, %v4531
        %v4659 = vmul.f32 %v4648, %v4568
        %v4660 = vmul.f32 %v4648, %v4605
        %v4661 = vmul.f32 %v4648, %v4642
        %v4672 = vcombine.low %v4652, %v4653
        %v4673 = vcombine.low %v4654, %v4655
        %v4675 = vunpack.c.l.s4 1983009808
        %v4676 = vunpack.c.0.s8 %v4675
        %v4677 = vlaneseq
        %v4678 = vshrl.u32 %v4677, 7
        %v4679 = vsub.s32 %v4676, %v4678
        %v4680 = vrot.slane %v4672, %v4679
        %v4682 = vunpack.c.l.s4 1983009808
        %v4683 = vunpack.c.0.s8 %v4682
        %v4684 = vlaneseq
        %v4685 = vshrl.u32 %v4684, 7
        %v4686 = vsub.s32 %v4683, %v4685
        %v4687 = vrot.slane %v4673, %v4686
        %v4688 = vcombine.low %v4680, %v4687
        %v4689 = vcombine.low %v4656, %v4657
        %v4690 = vcombine.low %v4658, %v4659
        %v4692 = vunpack.c.l.s4 1983009808
        %v4693 = vunpack.c.0.s8 %v4692
        %v4694 = vlaneseq
        %v4695 = vshrl.u32 %v4694, 7
        %v4696 = vsub.s32 %v4693, %v4695
        %v4697 = vrot.slane %v4689, %v4696
        %v4699 = vunpack.c.l.s4 1983009808
        %v4700 = vunpack.c.0.s8 %v4699
        %v4701 = vlaneseq
        %v4702 = vshrl.u32 %v4701, 7
        %v4703 = vsub.s32 %v4700, %v4702
        %v4704 = vrot.slane %v4690, %v4703
        %v4705 = vcombine.low %v4697, %v4704
        %v4706 = vcombine.low %v4660, %v4661
        %v4708 = vunpack.c.l.s4 1983009808
        %v4709 = vunpack.c.0.s8 %v4708
        %v4710 = vlaneseq
        %v4711 = vshrl.u32 %v4710, 7
        %v4712 = vsub.s32 %v4709, %v4711
        %v4713 = vrot.slane %v4706, %v4712
        %v4717 = vadd.f32 %v4649, %v4688
        %v4718 = vadd.f32 %v4650, %v4705
        %v4719 = vadd.f32 %v4651, %v4713
        %4720 = vst [vmem:[%s5] sm:$0xff] %v4717
        %4721 = vst [vmem:[%s5 + $0x8] sm:$0xff] %v4718
        %4722 = vst [vmem:[%s5 + $0x10] sm:$0xf] %v4719
        %p4723 = scmp.eq.s32.totalorder %s21, 1
        %p4724 = pnand %p4723, %p253
        %p4725 = pneg %p4724
        // Predicated region
        $region49: #{card_classifier_forward.2} parent=39 // pred_check
          _
        $region50: #{card_classifier_forward.2} parent=39 // pred_check_branch
          %4727 = sbr.rel (%p4724) target = $region52
        $region51: #{card_classifier_forward.2} parent=39 // pred_region
          %v4728 = vld [vmem:[%s5] sm:$0xff]
          %v4729 = vld [vmem:[%s5 + $0x8] sm:$0xff]
          %v4730 = vld [vmem:[%s5 + $0x10] sm:$0xf]
          %v4731 = vmul.f32 %v4728, 0.00390625
          %v4732 = vmul.f32 %v4729, 0.00390625
          %v4733 = vmul.f32 %v4730, 0.00390625
          %4734 = vst [vmem:[%s5] sm:$0xff] %v4731
          %4735 = vst [vmem:[%s5 + $0x8] sm:$0xff] %v4732
          %4736 = vst [vmem:[%s5 + $0x10] sm:$0xf] %v4733
        $region52: #{card_classifier_forward.2} parent=39 // pred_fallthru
          _
        // Predicated region
        $region53: #{card_classifier_forward.2} parent=39 // pred_check
          %p4737 = pneg %p154
        $region54: #{card_classifier_forward.2} parent=39 // pred_check_branch
          %4739 = sbr.rel (%p4737) target = $region56
        $region55: #{card_classifier_forward.2} parent=39 // pred_region
          _
        $region56: #{card_classifier_forward.2} parent=39 // pred_fallthru
          _
        // Predicated region
        $region57: #{card_classifier_forward.2} parent=39 // pred_check
          %p4740 = pneg %p154
        $region58: #{card_classifier_forward.2} parent=39 // pred_check_branch
          %4742 = sbr.rel (%p4740) target = $region60
        $region59: #{card_classifier_forward.2} parent=39 // pred_region
          _
        $region60: #{card_classifier_forward.2} parent=39 // pred_fallthru
          _
      $region40: #{card_classifier_forward.2} parent=5 // pred_fallthru
        _
      %p4743 = scmp.le.s32.totalorder 2, %s12
      // Predicated region
      $region61: #{card_classifier_forward.2} parent=5 // pred_check
        %p4744 = pneg %p4743
      $region62: #{card_classifier_forward.2} parent=5 // pred_check_branch
        %4746 = sbr.rel (%p4744) target = $region64
      $region63: #{card_classifier_forward.2} parent=5 // pred_region
        %s4747 = ssub.s32 %s12, 2
      $region64: #{card_classifier_forward.2} parent=5 // pred_fallthru
        _
    $region6: #{card_classifier_forward.2} parent=1 // loop_footer
      %s16 = sadd.s32 1, %s12
    $region7: #{card_classifier_forward.2} parent=1 // loop_footer_branch
      %11 = sbr.rel target = $region3
    $region8: #{card_classifier_forward.2} parent=1 // loop_exit
      _
    %4748 = vsyncpa [#allocation3], 1
    %s4749 = scalar_lea.sflag [#allocation3], 1
    %4750 = vsyncpa %s4749, 1

// kernel: card_classifier_forward.3
$region0: #{card_classifier_forward.3}
  #allocation0 [shape = 'u32[]', space=smem, size = 0x4, offset = 0x4, fixed_abs, tag = 'smem constant byte address 0x4 - core index']
  #allocation1 [shape = 'u32[144,128]{1,0:T(1,128)}', space=vmem, size = 0x12000, scoped, tag = 'internal scratch']
  %s0 = inlined_call_operand.vmem [shape: bf16[8,1280], index: 0, kind: input, shape index: {}]
  %s1 = inlined_call_operand.vmem [shape: bf16[1280,512], index: 1, kind: input, shape index: {}]
  %s2 = inlined_call_operand.vmem [shape: f32[1,512], index: 2, kind: input, shape index: {}]
  %s3 = inlined_call_operand.vmem [shape: bf16[512,128], index: 3, kind: input, shape index: {}]
  %s4 = inlined_call_operand.vmem [shape: f32[1,128], index: 4, kind: input, shape index: {}]
  %s5 = inlined_call_operand.vmem [shape: f32[8,128], index: 5, kind: output, shape index: {}]
  %s6 = sld [smem:[#allocation0]]
  $region30: #{card_classifier_forward.3} parent=0
    _
  %s8 = ssub.s32 1, %s6
  %s9 = scalar_select 0, %s8, %s6
  // Predicated region
  $region2: #{card_classifier_forward.3} parent=0 // pred_check
    _
  $region3: #{card_classifier_forward.3} parent=0 // pred_check_branch
    %11 = sbr.rel (0) target = $region5
  $region4: #{card_classifier_forward.3} parent=0 // pred_region
    _
  $region5: #{card_classifier_forward.3} parent=0 // pred_fallthru
    _
  // Predicated region
  $region6: #{card_classifier_forward.3} parent=0 // pred_check
    _
  $region7: #{card_classifier_forward.3} parent=0 // pred_check_branch
    %13 = sbr.rel (0) target = $region9
  $region8: #{card_classifier_forward.3} parent=0 // pred_region
    _
  $region9: #{card_classifier_forward.3} parent=0 // pred_fallthru
    _
  // Predicated region
  $region10: #{card_classifier_forward.3} parent=0 // pred_check
    _
  $region11: #{card_classifier_forward.3} parent=0 // pred_check_branch
    %15 = sbr.rel (0) target = $region13
  $region12: #{card_classifier_forward.3} parent=0 // pred_region
    _
  $region13: #{card_classifier_forward.3} parent=0 // pred_fallthru
    _
  // Predicated region
  $region14: #{card_classifier_forward.3} parent=0 // pred_check
    _
  $region15: #{card_classifier_forward.3} parent=0 // pred_check_branch
    %17 = sbr.rel (0) target = $region17
  $region16: #{card_classifier_forward.3} parent=0 // pred_region
    _
  $region17: #{card_classifier_forward.3} parent=0 // pred_fallthru
    _
  // Predicated region
  $region18: #{card_classifier_forward.3} parent=0 // pred_check
    _
  $region19: #{card_classifier_forward.3} parent=0 // pred_check_branch
    %19 = sbr.rel (0) target = $region21
  $region20: #{card_classifier_forward.3} parent=0 // pred_region
    _
  $region21: #{card_classifier_forward.3} parent=0 // pred_fallthru
    _
  %v21 = vld [vmem:[%s0] sm:$0xff]
  %v22 = vld [vmem:[%s0 + $0x8] sm:$0xff]
  %v23 = vld [vmem:[%s0 + $0x10] sm:$0xff]
  %v24 = vld [vmem:[%s0 + $0x18] sm:$0xff]
  %v25 = vld [vmem:[%s0 + $0x20] sm:$0xff]
  %v26 = vld [vmem:[%s1] sm:$0xff]
  %v27 = vld [vmem:[%s1 + $0x8] sm:$0xff]
  %v28 = vld [vmem:[%s1 + $0x10] sm:$0xff]
  %v29 = vld [vmem:[%s1 + $0x18] sm:$0xff]
  %v30 = vld [vmem:[%s1 + $0x20] sm:$0xff]
  %v31 = vld [vmem:[%s1 + $0x28] sm:$0xff]
  %v32 = vld [vmem:[%s1 + $0x30] sm:$0xff]
  %v33 = vld [vmem:[%s1 + $0x38] sm:$0xff]
  %v34 = vld [vmem:[%s1 + $0x40] sm:$0xff]
  %v35 = vld [vmem:[%s1 + $0x48] sm:$0xff]
  %v36 = vld [vmem:[%s1 + $0x50] sm:$0xff]
  %v37 = vld [vmem:[%s1 + $0x58] sm:$0xff]
  %v38 = vld [vmem:[%s1 + $0x60] sm:$0xff]
  %v39 = vld [vmem:[%s1 + $0x68] sm:$0xff]
  %v40 = vld [vmem:[%s1 + $0x70] sm:$0xff]
  %v41 = vld [vmem:[%s1 + $0x78] sm:$0xff]
  %v42 = vld [vmem:[%s1 + $0x80] sm:$0xff]
  %v43 = vld [vmem:[%s1 + $0x88] sm:$0xff]
  %v44 = vld [vmem:[%s1 + $0x90] sm:$0xff]
  %v45 = vld [vmem:[%s1 + $0x98] sm:$0xff]
  %v46 = vld [vmem:[%s1 + $0xa0] sm:$0xff]
  %v47 = vld [vmem:[%s1 + $0xa8] sm:$0xff]
  %v48 = vld [vmem:[%s1 + $0xb0] sm:$0xff]
  %v49 = vld [vmem:[%s1 + $0xb8] sm:$0xff]
  %v50 = vld [vmem:[%s1 + $0xc0] sm:$0xff]
  %v51 = vld [vmem:[%s1 + $0xc8] sm:$0xff]
  %v52 = vld [vmem:[%s1 + $0xd0] sm:$0xff]
  %v53 = vld [vmem:[%s1 + $0xd8] sm:$0xff]
  %v54 = vld [vmem:[%s1 + $0xe0] sm:$0xff]
  %v55 = vld [vmem:[%s1 + $0xe8] sm:$0xff]
  %v56 = vld [vmem:[%s1 + $0xf0] sm:$0xff]
  %v57 = vld [vmem:[%s1 + $0xf8] sm:$0xff]
  %v58 = vld [vmem:[%s1 + $0x100] sm:$0xff]
  %v59 = vld [vmem:[%s1 + $0x108] sm:$0xff]
  %v60 = vld [vmem:[%s1 + $0x110] sm:$0xff]
  %v61 = vld [vmem:[%s1 + $0x118] sm:$0xff]
  %v62 = vld [vmem:[%s1 + $0x120] sm:$0xff]
  %v63 = vld [vmem:[%s1 + $0x128] sm:$0xff]
  %v64 = vld [vmem:[%s1 + $0x130] sm:$0xff]
  %v65 = vld [vmem:[%s1 + $0x138] sm:$0xff]
  %v66 = vld [vmem:[%s1 + $0x140] sm:$0xff]
  %v67 = vld [vmem:[%s1 + $0x148] sm:$0xff]
  %v68 = vld [vmem:[%s1 + $0x150] sm:$0xff]
  %v69 = vld [vmem:[%s1 + $0x158] sm:$0xff]
  %v70 = vld [vmem:[%s1 + $0x160] sm:$0xff]
  %v71 = vld [vmem:[%s1 + $0x168] sm:$0xff]
  %v72 = vld [vmem:[%s1 + $0x170] sm:$0xff]
  %v73 = vld [vmem:[%s1 + $0x178] sm:$0xff]
  %v74 = vld [vmem:[%s1 + $0x180] sm:$0xff]
  %v75 = vld [vmem:[%s1 + $0x188] sm:$0xff]
  %v76 = vld [vmem:[%s1 + $0x190] sm:$0xff]
  %v77 = vld [vmem:[%s1 + $0x198] sm:$0xff]
  %v78 = vld [vmem:[%s1 + $0x1a0] sm:$0xff]
  %v79 = vld [vmem:[%s1 + $0x1a8] sm:$0xff]
  %v80 = vld [vmem:[%s1 + $0x1b0] sm:$0xff]
  %v81 = vld [vmem:[%s1 + $0x1b8] sm:$0xff]
  %v82 = vld [vmem:[%s1 + $0x1c0] sm:$0xff]
  %v83 = vld [vmem:[%s1 + $0x1c8] sm:$0xff]
  %v84 = vld [vmem:[%s1 + $0x1d0] sm:$0xff]
  %v85 = vld [vmem:[%s1 + $0x1d8] sm:$0xff]
  %v86 = vld [vmem:[%s1 + $0x1e0] sm:$0xff]
  %v87 = vld [vmem:[%s1 + $0x1e8] sm:$0xff]
  %v88 = vld [vmem:[%s1 + $0x1f0] sm:$0xff]
  %v89 = vld [vmem:[%s1 + $0x1f8] sm:$0xff]
  %v90 = vld [vmem:[%s1 + $0x200] sm:$0xff]
  %v91 = vld [vmem:[%s1 + $0x208] sm:$0xff]
  %v92 = vld [vmem:[%s1 + $0x210] sm:$0xff]
  %v93 = vld [vmem:[%s1 + $0x218] sm:$0xff]
  %v94 = vld [vmem:[%s1 + $0x220] sm:$0xff]
  %v95 = vld [vmem:[%s1 + $0x228] sm:$0xff]
  %v96 = vld [vmem:[%s1 + $0x230] sm:$0xff]
  %v97 = vld [vmem:[%s1 + $0x238] sm:$0xff]
  %v98 = vld [vmem:[%s1 + $0x240] sm:$0xff]
  %v99 = vld [vmem:[%s1 + $0x248] sm:$0xff]
  %v100 = vld [vmem:[%s1 + $0x250] sm:$0xff]
  %v101 = vld [vmem:[%s1 + $0x258] sm:$0xff]
  %v102 = vld [vmem:[%s1 + $0x260] sm:$0xff]
  %v103 = vld [vmem:[%s1 + $0x268] sm:$0xff]
  %v104 = vld [vmem:[%s1 + $0x270] sm:$0xff]
  %v105 = vld [vmem:[%s1 + $0x278] sm:$0xff]
  %v106 = vld [vmem:[%s1 + $0x280] sm:$0xff]
  %v107 = vld [vmem:[%s1 + $0x288] sm:$0xff]
  %v108 = vld [vmem:[%s1 + $0x290] sm:$0xff]
  %v109 = vld [vmem:[%s1 + $0x298] sm:$0xff]
  %v110 = vld [vmem:[%s1 + $0x2a0] sm:$0xff]
  %v111 = vld [vmem:[%s1 + $0x2a8] sm:$0xff]
  %v112 = vld [vmem:[%s1 + $0x2b0] sm:$0xff]
  %v113 = vld [vmem:[%s1 + $0x2b8] sm:$0xff]
  %v114 = vld [vmem:[%s1 + $0x2c0] sm:$0xff]
  %v115 = vld [vmem:[%s1 + $0x2c8] sm:$0xff]
  %v116 = vld [vmem:[%s1 + $0x2d0] sm:$0xff]
  %v117 = vld [vmem:[%s1 + $0x2d8] sm:$0xff]
  %v118 = vld [vmem:[%s1 + $0x2e0] sm:$0xff]
  %v119 = vld [vmem:[%s1 + $0x2e8] sm:$0xff]
  %v120 = vld [vmem:[%s1 + $0x2f0] sm:$0xff]
  %v121 = vld [vmem:[%s1 + $0x2f8] sm:$0xff]
  %v122 = vld [vmem:[%s1 + $0x300] sm:$0xff]
  %v123 = vld [vmem:[%s1 + $0x308] sm:$0xff]
  %v124 = vld [vmem:[%s1 + $0x310] sm:$0xff]
  %v125 = vld [vmem:[%s1 + $0x318] sm:$0xff]
  %v126 = vld [vmem:[%s1 + $0x320] sm:$0xff]
  %v127 = vld [vmem:[%s1 + $0x328] sm:$0xff]
  %v128 = vld [vmem:[%s1 + $0x330] sm:$0xff]
  %v129 = vld [vmem:[%s1 + $0x338] sm:$0xff]
  %v130 = vld [vmem:[%s1 + $0x340] sm:$0xff]
  %v131 = vld [vmem:[%s1 + $0x348] sm:$0xff]
  %v132 = vld [vmem:[%s1 + $0x350] sm:$0xff]
  %v133 = vld [vmem:[%s1 + $0x358] sm:$0xff]
  %v134 = vld [vmem:[%s1 + $0x360] sm:$0xff]
  %v135 = vld [vmem:[%s1 + $0x368] sm:$0xff]
  %v136 = vld [vmem:[%s1 + $0x370] sm:$0xff]
  %v137 = vld [vmem:[%s1 + $0x378] sm:$0xff]
  %v138 = vld [vmem:[%s1 + $0x380] sm:$0xff]
  %v139 = vld [vmem:[%s1 + $0x388] sm:$0xff]
  %v140 = vld [vmem:[%s1 + $0x390] sm:$0xff]
  %v141 = vld [vmem:[%s1 + $0x398] sm:$0xff]
  %v142 = vld [vmem:[%s1 + $0x3a0] sm:$0xff]
  %v143 = vld [vmem:[%s1 + $0x3a8] sm:$0xff]
  %v144 = vld [vmem:[%s1 + $0x3b0] sm:$0xff]
  %v145 = vld [vmem:[%s1 + $0x3b8] sm:$0xff]
  %v146 = vld [vmem:[%s1 + $0x3c0] sm:$0xff]
  %v147 = vld [vmem:[%s1 + $0x3c8] sm:$0xff]
  %v148 = vld [vmem:[%s1 + $0x3d0] sm:$0xff]
  %v149 = vld [vmem:[%s1 + $0x3d8] sm:$0xff]
  %v150 = vld [vmem:[%s1 + $0x3e0] sm:$0xff]
  %v151 = vld [vmem:[%s1 + $0x3e8] sm:$0xff]
  %v152 = vld [vmem:[%s1 + $0x3f0] sm:$0xff]
  %v153 = vld [vmem:[%s1 + $0x3f8] sm:$0xff]
  %v154 = vld [vmem:[%s1 + $0x400] sm:$0xff]
  %v155 = vld [vmem:[%s1 + $0x408] sm:$0xff]
  %v156 = vld [vmem:[%s1 + $0x410] sm:$0xff]
  %v157 = vld [vmem:[%s1 + $0x418] sm:$0xff]
  %v158 = vld [vmem:[%s1 + $0x420] sm:$0xff]
  %v159 = vld [vmem:[%s1 + $0x428] sm:$0xff]
  %v160 = vld [vmem:[%s1 + $0x430] sm:$0xff]
  %v161 = vld [vmem:[%s1 + $0x438] sm:$0xff]
  %v162 = vld [vmem:[%s1 + $0x440] sm:$0xff]
  %v163 = vld [vmem:[%s1 + $0x448] sm:$0xff]
  %v164 = vld [vmem:[%s1 + $0x450] sm:$0xff]
  %v165 = vld [vmem:[%s1 + $0x458] sm:$0xff]
  %v166 = vld [vmem:[%s1 + $0x460] sm:$0xff]
  %v167 = vld [vmem:[%s1 + $0x468] sm:$0xff]
  %v168 = vld [vmem:[%s1 + $0x470] sm:$0xff]
  %v169 = vld [vmem:[%s1 + $0x478] sm:$0xff]
  %v170 = vld [vmem:[%s1 + $0x480] sm:$0xff]
  %v171 = vld [vmem:[%s1 + $0x488] sm:$0xff]
  %v172 = vld [vmem:[%s1 + $0x490] sm:$0xff]
  %v173 = vld [vmem:[%s1 + $0x498] sm:$0xff]
  %v174 = vld [vmem:[%s1 + $0x4a0] sm:$0xff]
  %v175 = vld [vmem:[%s1 + $0x4a8] sm:$0xff]
  %v176 = vld [vmem:[%s1 + $0x4b0] sm:$0xff]
  %v177 = vld [vmem:[%s1 + $0x4b8] sm:$0xff]
  %v178 = vld [vmem:[%s1 + $0x4c0] sm:$0xff]
  %v179 = vld [vmem:[%s1 + $0x4c8] sm:$0xff]
  %v180 = vld [vmem:[%s1 + $0x4d0] sm:$0xff]
  %v181 = vld [vmem:[%s1 + $0x4d8] sm:$0xff]
  %v182 = vld [vmem:[%s1 + $0x4e0] sm:$0xff]
  %v183 = vld [vmem:[%s1 + $0x4e8] sm:$0xff]
  %v184 = vld [vmem:[%s1 + $0x4f0] sm:$0xff]
  %v185 = vld [vmem:[%s1 + $0x4f8] sm:$0xff]
  %v186 = vld [vmem:[%s1 + $0x500] sm:$0xff]
  %v187 = vld [vmem:[%s1 + $0x508] sm:$0xff]
  %v188 = vld [vmem:[%s1 + $0x510] sm:$0xff]
  %v189 = vld [vmem:[%s1 + $0x518] sm:$0xff]
  %v190 = vld [vmem:[%s1 + $0x520] sm:$0xff]
  %v191 = vld [vmem:[%s1 + $0x528] sm:$0xff]
  %v192 = vld [vmem:[%s1 + $0x530] sm:$0xff]
  %v193 = vld [vmem:[%s1 + $0x538] sm:$0xff]
  %v194 = vld [vmem:[%s1 + $0x540] sm:$0xff]
  %v195 = vld [vmem:[%s1 + $0x548] sm:$0xff]
  %v196 = vld [vmem:[%s1 + $0x550] sm:$0xff]
  %v197 = vld [vmem:[%s1 + $0x558] sm:$0xff]
  %v198 = vld [vmem:[%s1 + $0x560] sm:$0xff]
  %v199 = vld [vmem:[%s1 + $0x568] sm:$0xff]
  %v200 = vld [vmem:[%s1 + $0x570] sm:$0xff]
  %v201 = vld [vmem:[%s1 + $0x578] sm:$0xff]
  %v202 = vld [vmem:[%s1 + $0x580] sm:$0xff]
  %v203 = vld [vmem:[%s1 + $0x588] sm:$0xff]
  %v204 = vld [vmem:[%s1 + $0x590] sm:$0xff]
  %v205 = vld [vmem:[%s1 + $0x598] sm:$0xff]
  %v206 = vld [vmem:[%s1 + $0x5a0] sm:$0xff]
  %v207 = vld [vmem:[%s1 + $0x5a8] sm:$0xff]
  %v208 = vld [vmem:[%s1 + $0x5b0] sm:$0xff]
  %v209 = vld [vmem:[%s1 + $0x5b8] sm:$0xff]
  %v210 = vld [vmem:[%s1 + $0x5c0] sm:$0xff]
  %v211 = vld [vmem:[%s1 + $0x5c8] sm:$0xff]
  %v212 = vld [vmem:[%s1 + $0x5d0] sm:$0xff]
  %v213 = vld [vmem:[%s1 + $0x5d8] sm:$0xff]
  %v214 = vld [vmem:[%s1 + $0x5e0] sm:$0xff]
  %v215 = vld [vmem:[%s1 + $0x5e8] sm:$0xff]
  %v216 = vld [vmem:[%s1 + $0x5f0] sm:$0xff]
  %v217 = vld [vmem:[%s1 + $0x5f8] sm:$0xff]
  %v218 = vld [vmem:[%s1 + $0x600] sm:$0xff]
  %v219 = vld [vmem:[%s1 + $0x608] sm:$0xff]
  %v220 = vld [vmem:[%s1 + $0x610] sm:$0xff]
  %v221 = vld [vmem:[%s1 + $0x618] sm:$0xff]
  %v222 = vld [vmem:[%s1 + $0x620] sm:$0xff]
  %v223 = vld [vmem:[%s1 + $0x628] sm:$0xff]
  %v224 = vld [vmem:[%s1 + $0x630] sm:$0xff]
  %v225 = vld [vmem:[%s1 + $0x638] sm:$0xff]
  %v226 = vld [vmem:[%s1 + $0x640] sm:$0xff]
  %v227 = vld [vmem:[%s1 + $0x648] sm:$0xff]
  %v228 = vld [vmem:[%s1 + $0x650] sm:$0xff]
  %v229 = vld [vmem:[%s1 + $0x658] sm:$0xff]
  %v230 = vld [vmem:[%s1 + $0x660] sm:$0xff]
  %v231 = vld [vmem:[%s1 + $0x668] sm:$0xff]
  %v232 = vld [vmem:[%s1 + $0x670] sm:$0xff]
  %v233 = vld [vmem:[%s1 + $0x678] sm:$0xff]
  %v234 = vld [vmem:[%s1 + $0x680] sm:$0xff]
  %v235 = vld [vmem:[%s1 + $0x688] sm:$0xff]
  %v236 = vld [vmem:[%s1 + $0x690] sm:$0xff]
  %v237 = vld [vmem:[%s1 + $0x698] sm:$0xff]
  %v238 = vld [vmem:[%s1 + $0x6a0] sm:$0xff]
  %v239 = vld [vmem:[%s1 + $0x6a8] sm:$0xff]
  %v240 = vld [vmem:[%s1 + $0x6b0] sm:$0xff]
  %v241 = vld [vmem:[%s1 + $0x6b8] sm:$0xff]
  %v242 = vld [vmem:[%s1 + $0x6c0] sm:$0xff]
  %v243 = vld [vmem:[%s1 + $0x6c8] sm:$0xff]
  %v244 = vld [vmem:[%s1 + $0x6d0] sm:$0xff]
  %v245 = vld [vmem:[%s1 + $0x6d8] sm:$0xff]
  %v246 = vld [vmem:[%s1 + $0x6e0] sm:$0xff]
  %v247 = vld [vmem:[%s1 + $0x6e8] sm:$0xff]
  %v248 = vld [vmem:[%s1 + $0x6f0] sm:$0xff]
  %v249 = vld [vmem:[%s1 + $0x6f8] sm:$0xff]
  %v250 = vld [vmem:[%s1 + $0x700] sm:$0xff]
  %v251 = vld [vmem:[%s1 + $0x708] sm:$0xff]
  %v252 = vld [vmem:[%s1 + $0x710] sm:$0xff]
  %v253 = vld [vmem:[%s1 + $0x718] sm:$0xff]
  %v254 = vld [vmem:[%s1 + $0x720] sm:$0xff]
  %v255 = vld [vmem:[%s1 + $0x728] sm:$0xff]
  %v256 = vld [vmem:[%s1 + $0x730] sm:$0xff]
  %v257 = vld [vmem:[%s1 + $0x738] sm:$0xff]
  %v258 = vld [vmem:[%s1 + $0x740] sm:$0xff]
  %v259 = vld [vmem:[%s1 + $0x748] sm:$0xff]
  %v260 = vld [vmem:[%s1 + $0x750] sm:$0xff]
  %v261 = vld [vmem:[%s1 + $0x758] sm:$0xff]
  %v262 = vld [vmem:[%s1 + $0x760] sm:$0xff]
  %v263 = vld [vmem:[%s1 + $0x768] sm:$0xff]
  %v264 = vld [vmem:[%s1 + $0x770] sm:$0xff]
  %v265 = vld [vmem:[%s1 + $0x778] sm:$0xff]
  %v266 = vld [vmem:[%s1 + $0x780] sm:$0xff]
  %v267 = vld [vmem:[%s1 + $0x788] sm:$0xff]
  %v268 = vld [vmem:[%s1 + $0x790] sm:$0xff]
  %v269 = vld [vmem:[%s1 + $0x798] sm:$0xff]
  %v270 = vld [vmem:[%s1 + $0x7a0] sm:$0xff]
  %v271 = vld [vmem:[%s1 + $0x7a8] sm:$0xff]
  %v272 = vld [vmem:[%s1 + $0x7b0] sm:$0xff]
  %v273 = vld [vmem:[%s1 + $0x7b8] sm:$0xff]
  %v274 = vld [vmem:[%s1 + $0x7c0] sm:$0xff]
  %v275 = vld [vmem:[%s1 + $0x7c8] sm:$0xff]
  %v276 = vld [vmem:[%s1 + $0x7d0] sm:$0xff]
  %v277 = vld [vmem:[%s1 + $0x7d8] sm:$0xff]
  %v278 = vld [vmem:[%s1 + $0x7e0] sm:$0xff]
  %v279 = vld [vmem:[%s1 + $0x7e8] sm:$0xff]
  %v280 = vld [vmem:[%s1 + $0x7f0] sm:$0xff]
  %v281 = vld [vmem:[%s1 + $0x7f8] sm:$0xff]
  %v282 = vld [vmem:[%s1 + $0x800] sm:$0xff]
  %v283 = vld [vmem:[%s1 + $0x808] sm:$0xff]
  %v284 = vld [vmem:[%s1 + $0x810] sm:$0xff]
  %v285 = vld [vmem:[%s1 + $0x818] sm:$0xff]
  %v286 = vld [vmem:[%s1 + $0x820] sm:$0xff]
  %v287 = vld [vmem:[%s1 + $0x828] sm:$0xff]
  %v288 = vld [vmem:[%s1 + $0x830] sm:$0xff]
  %v289 = vld [vmem:[%s1 + $0x838] sm:$0xff]
  %v290 = vld [vmem:[%s1 + $0x840] sm:$0xff]
  %v291 = vld [vmem:[%s1 + $0x848] sm:$0xff]
  %v292 = vld [vmem:[%s1 + $0x850] sm:$0xff]
  %v293 = vld [vmem:[%s1 + $0x858] sm:$0xff]
  %v294 = vld [vmem:[%s1 + $0x860] sm:$0xff]
  %v295 = vld [vmem:[%s1 + $0x868] sm:$0xff]
  %v296 = vld [vmem:[%s1 + $0x870] sm:$0xff]
  %v297 = vld [vmem:[%s1 + $0x878] sm:$0xff]
  %v298 = vld [vmem:[%s1 + $0x880] sm:$0xff]
  %v299 = vld [vmem:[%s1 + $0x888] sm:$0xff]
  %v300 = vld [vmem:[%s1 + $0x890] sm:$0xff]
  %v301 = vld [vmem:[%s1 + $0x898] sm:$0xff]
  %v302 = vld [vmem:[%s1 + $0x8a0] sm:$0xff]
  %v303 = vld [vmem:[%s1 + $0x8a8] sm:$0xff]
  %v304 = vld [vmem:[%s1 + $0x8b0] sm:$0xff]
  %v305 = vld [vmem:[%s1 + $0x8b8] sm:$0xff]
  %v306 = vld [vmem:[%s1 + $0x8c0] sm:$0xff]
  %v307 = vld [vmem:[%s1 + $0x8c8] sm:$0xff]
  %v308 = vld [vmem:[%s1 + $0x8d0] sm:$0xff]
  %v309 = vld [vmem:[%s1 + $0x8d8] sm:$0xff]
  %v310 = vld [vmem:[%s1 + $0x8e0] sm:$0xff]
  %v311 = vld [vmem:[%s1 + $0x8e8] sm:$0xff]
  %v312 = vld [vmem:[%s1 + $0x8f0] sm:$0xff]
  %v313 = vld [vmem:[%s1 + $0x8f8] sm:$0xff]
  %v314 = vld [vmem:[%s1 + $0x900] sm:$0xff]
  %v315 = vld [vmem:[%s1 + $0x908] sm:$0xff]
  %v316 = vld [vmem:[%s1 + $0x910] sm:$0xff]
  %v317 = vld [vmem:[%s1 + $0x918] sm:$0xff]
  %v318 = vld [vmem:[%s1 + $0x920] sm:$0xff]
  %v319 = vld [vmem:[%s1 + $0x928] sm:$0xff]
  %v320 = vld [vmem:[%s1 + $0x930] sm:$0xff]
  %v321 = vld [vmem:[%s1 + $0x938] sm:$0xff]
  %v322 = vld [vmem:[%s1 + $0x940] sm:$0xff]
  %v323 = vld [vmem:[%s1 + $0x948] sm:$0xff]
  %v324 = vld [vmem:[%s1 + $0x950] sm:$0xff]
  %v325 = vld [vmem:[%s1 + $0x958] sm:$0xff]
  %v326 = vld [vmem:[%s1 + $0x960] sm:$0xff]
  %v327 = vld [vmem:[%s1 + $0x968] sm:$0xff]
  %v328 = vld [vmem:[%s1 + $0x970] sm:$0xff]
  %v329 = vld [vmem:[%s1 + $0x978] sm:$0xff]
  %v330 = vld [vmem:[%s1 + $0x980] sm:$0xff]
  %v331 = vld [vmem:[%s1 + $0x988] sm:$0xff]
  %v332 = vld [vmem:[%s1 + $0x990] sm:$0xff]
  %v333 = vld [vmem:[%s1 + $0x998] sm:$0xff]
  %v334 = vld [vmem:[%s1 + $0x9a0] sm:$0xff]
  %v335 = vld [vmem:[%s1 + $0x9a8] sm:$0xff]
  %v336 = vld [vmem:[%s1 + $0x9b0] sm:$0xff]
  %v337 = vld [vmem:[%s1 + $0x9b8] sm:$0xff]
  %v338 = vld [vmem:[%s1 + $0x9c0] sm:$0xff]
  %v339 = vld [vmem:[%s1 + $0x9c8] sm:$0xff]
  %v340 = vld [vmem:[%s1 + $0x9d0] sm:$0xff]
  %v341 = vld [vmem:[%s1 + $0x9d8] sm:$0xff]
  %v342 = vld [vmem:[%s1 + $0x9e0] sm:$0xff]
  %v343 = vld [vmem:[%s1 + $0x9e8] sm:$0xff]
  %v344 = vld [vmem:[%s1 + $0x9f0] sm:$0xff]
  %v345 = vld [vmem:[%s1 + $0x9f8] sm:$0xff]
  %v346 = vld [vmem:[%s2] sm:$0xf]
  %v348 = vlaneseq
  %v349 = vshrl.u32 %v348, 7
  %v350 = vsub.s32 0, %v349
  %v351 = vrot.slane %v346, %v350
  %v352 = vlaneseq
  %v353 = vshrl.u32 %v352, 7
  %v354 = vsub.s32 1, %v353
  %v355 = vrot.slane %v346, %v354
  %v356 = vlaneseq
  %v357 = vshrl.u32 %v356, 7
  %v358 = vsub.s32 2, %v357
  %v359 = vrot.slane %v346, %v358
  %v360 = vlaneseq
  %v361 = vshrl.u32 %v360, 7
  %v362 = vsub.s32 3, %v361
  %v363 = vrot.slane %v346, %v362
  %v373 = vunpack.c.l.b16 %v21
  %v374 = vunpack.c.h.b16 %v21
  %v375 = vunpack.c.l.b16 %v22
  %v376 = vunpack.c.h.b16 %v22
  %v377 = vunpack.c.l.b16 %v23
  %v378 = vunpack.c.h.b16 %v23
  %v379 = vunpack.c.l.b16 %v24
  %v380 = vunpack.c.h.b16 %v24
  %v381 = vunpack.c.l.b16 %v25
  %v382 = vunpack.c.h.b16 %v25
  %v383 = vpack.c.b16 %v373, %v373
  %v384 = vpack.c.b16 %v374, %v374
  %v385 = vpack.c.b16 %v375, %v375
  %v386 = vpack.c.b16 %v376, %v376
  %v387 = vpack.c.b16 %v377, %v377
  %v388 = vpack.c.b16 %v378, %v378
  %v389 = vpack.c.b16 %v379, %v379
  %v390 = vpack.c.b16 %v380, %v380
  %v391 = vpack.c.b16 %v381, %v381
  %v392 = vpack.c.b16 %v382, %v382
  %v723 = vunpack.c.l.b16 %v26
  %v724 = vunpack.c.h.b16 %v26
  %v725 = vunpack.c.l.b16 %v27
  %v726 = vunpack.c.h.b16 %v27
  %v727 = vunpack.c.l.b16 %v28
  %v728 = vunpack.c.h.b16 %v28
  %v729 = vunpack.c.l.b16 %v29
  %v730 = vunpack.c.h.b16 %v29
  %v731 = vunpack.c.l.b16 %v30
  %v732 = vunpack.c.h.b16 %v30
  %v733 = vunpack.c.l.b16 %v31
  %v734 = vunpack.c.h.b16 %v31
  %v735 = vunpack.c.l.b16 %v32
  %v736 = vunpack.c.h.b16 %v32
  %v737 = vunpack.c.l.b16 %v33
  %v738 = vunpack.c.h.b16 %v33
  %v739 = vunpack.c.l.b16 %v34
  %v740 = vunpack.c.h.b16 %v34
  %v741 = vunpack.c.l.b16 %v35
  %v742 = vunpack.c.h.b16 %v35
  %v743 = vunpack.c.l.b16 %v36
  %v744 = vunpack.c.h.b16 %v36
  %v745 = vunpack.c.l.b16 %v37
  %v746 = vunpack.c.h.b16 %v37
  %v747 = vunpack.c.l.b16 %v38
  %v748 = vunpack.c.h.b16 %v38
  %v749 = vunpack.c.l.b16 %v39
  %v750 = vunpack.c.h.b16 %v39
  %v751 = vunpack.c.l.b16 %v40
  %v752 = vunpack.c.h.b16 %v40
  %v753 = vunpack.c.l.b16 %v41
  %v754 = vunpack.c.h.b16 %v41
  %v755 = vunpack.c.l.b16 %v42
  %v756 = vunpack.c.h.b16 %v42
  %v757 = vunpack.c.l.b16 %v43
  %v758 = vunpack.c.h.b16 %v43
  %v759 = vunpack.c.l.b16 %v44
  %v760 = vunpack.c.h.b16 %v44
  %v761 = vunpack.c.l.b16 %v45
  %v762 = vunpack.c.h.b16 %v45
  %v763 = vunpack.c.l.b16 %v46
  %v764 = vunpack.c.h.b16 %v46
  %v765 = vunpack.c.l.b16 %v47
  %v766 = vunpack.c.h.b16 %v47
  %v767 = vunpack.c.l.b16 %v48
  %v768 = vunpack.c.h.b16 %v48
  %v769 = vunpack.c.l.b16 %v49
  %v770 = vunpack.c.h.b16 %v49
  %v771 = vunpack.c.l.b16 %v50
  %v772 = vunpack.c.h.b16 %v50
  %v773 = vunpack.c.l.b16 %v51
  %v774 = vunpack.c.h.b16 %v51
  %v775 = vunpack.c.l.b16 %v52
  %v776 = vunpack.c.h.b16 %v52
  %v777 = vunpack.c.l.b16 %v53
  %v778 = vunpack.c.h.b16 %v53
  %v779 = vunpack.c.l.b16 %v54
  %v780 = vunpack.c.h.b16 %v54
  %v781 = vunpack.c.l.b16 %v55
  %v782 = vunpack.c.h.b16 %v55
  %v783 = vunpack.c.l.b16 %v56
  %v784 = vunpack.c.h.b16 %v56
  %v785 = vunpack.c.l.b16 %v57
  %v786 = vunpack.c.h.b16 %v57
  %v787 = vunpack.c.l.b16 %v58
  %v788 = vunpack.c.h.b16 %v58
  %v789 = vunpack.c.l.b16 %v59
  %v790 = vunpack.c.h.b16 %v59
  %v791 = vunpack.c.l.b16 %v60
  %v792 = vunpack.c.h.b16 %v60
  %v793 = vunpack.c.l.b16 %v61
  %v794 = vunpack.c.h.b16 %v61
  %v795 = vunpack.c.l.b16 %v62
  %v796 = vunpack.c.h.b16 %v62
  %v797 = vunpack.c.l.b16 %v63
  %v798 = vunpack.c.h.b16 %v63
  %v799 = vunpack.c.l.b16 %v64
  %v800 = vunpack.c.h.b16 %v64
  %v801 = vunpack.c.l.b16 %v65
  %v802 = vunpack.c.h.b16 %v65
  %v803 = vunpack.c.l.b16 %v66
  %v804 = vunpack.c.h.b16 %v66
  %v805 = vunpack.c.l.b16 %v67
  %v806 = vunpack.c.h.b16 %v67
  %v807 = vunpack.c.l.b16 %v68
  %v808 = vunpack.c.h.b16 %v68
  %v809 = vunpack.c.l.b16 %v69
  %v810 = vunpack.c.h.b16 %v69
  %v811 = vunpack.c.l.b16 %v70
  %v812 = vunpack.c.h.b16 %v70
  %v813 = vunpack.c.l.b16 %v71
  %v814 = vunpack.c.h.b16 %v71
  %v815 = vunpack.c.l.b16 %v72
  %v816 = vunpack.c.h.b16 %v72
  %v817 = vunpack.c.l.b16 %v73
  %v818 = vunpack.c.h.b16 %v73
  %v819 = vunpack.c.l.b16 %v74
  %v820 = vunpack.c.h.b16 %v74
  %v821 = vunpack.c.l.b16 %v75
  %v822 = vunpack.c.h.b16 %v75
  %v823 = vunpack.c.l.b16 %v76
  %v824 = vunpack.c.h.b16 %v76
  %v825 = vunpack.c.l.b16 %v77
  %v826 = vunpack.c.h.b16 %v77
  %v827 = vunpack.c.l.b16 %v78
  %v828 = vunpack.c.h.b16 %v78
  %v829 = vunpack.c.l.b16 %v79
  %v830 = vunpack.c.h.b16 %v79
  %v831 = vunpack.c.l.b16 %v80
  %v832 = vunpack.c.h.b16 %v80
  %v833 = vunpack.c.l.b16 %v81
  %v834 = vunpack.c.h.b16 %v81
  %v835 = vunpack.c.l.b16 %v82
  %v836 = vunpack.c.h.b16 %v82
  %v837 = vunpack.c.l.b16 %v83
  %v838 = vunpack.c.h.b16 %v83
  %v839 = vunpack.c.l.b16 %v84
  %v840 = vunpack.c.h.b16 %v84
  %v841 = vunpack.c.l.b16 %v85
  %v842 = vunpack.c.h.b16 %v85
  %v843 = vunpack.c.l.b16 %v86
  %v844 = vunpack.c.h.b16 %v86
  %v845 = vunpack.c.l.b16 %v87
  %v846 = vunpack.c.h.b16 %v87
  %v847 = vunpack.c.l.b16 %v88
  %v848 = vunpack.c.h.b16 %v88
  %v849 = vunpack.c.l.b16 %v89
  %v850 = vunpack.c.h.b16 %v89
  %v851 = vunpack.c.l.b16 %v90
  %v852 = vunpack.c.h.b16 %v90
  %v853 = vunpack.c.l.b16 %v91
  %v854 = vunpack.c.h.b16 %v91
  %v855 = vunpack.c.l.b16 %v92
  %v856 = vunpack.c.h.b16 %v92
  %v857 = vunpack.c.l.b16 %v93
  %v858 = vunpack.c.h.b16 %v93
  %v859 = vunpack.c.l.b16 %v94
  %v860 = vunpack.c.h.b16 %v94
  %v861 = vunpack.c.l.b16 %v95
  %v862 = vunpack.c.h.b16 %v95
  %v863 = vunpack.c.l.b16 %v96
  %v864 = vunpack.c.h.b16 %v96
  %v865 = vunpack.c.l.b16 %v97
  %v866 = vunpack.c.h.b16 %v97
  %v867 = vunpack.c.l.b16 %v98
  %v868 = vunpack.c.h.b16 %v98
  %v869 = vunpack.c.l.b16 %v99
  %v870 = vunpack.c.h.b16 %v99
  %v871 = vunpack.c.l.b16 %v100
  %v872 = vunpack.c.h.b16 %v100
  %v873 = vunpack.c.l.b16 %v101
  %v874 = vunpack.c.h.b16 %v101
  %v875 = vunpack.c.l.b16 %v102
  %v876 = vunpack.c.h.b16 %v102
  %v877 = vunpack.c.l.b16 %v103
  %v878 = vunpack.c.h.b16 %v103
  %v879 = vunpack.c.l.b16 %v104
  %v880 = vunpack.c.h.b16 %v104
  %v881 = vunpack.c.l.b16 %v105
  %v882 = vunpack.c.h.b16 %v105
  %v883 = vunpack.c.l.b16 %v106
  %v884 = vunpack.c.h.b16 %v106
  %v885 = vunpack.c.l.b16 %v107
  %v886 = vunpack.c.h.b16 %v107
  %v887 = vunpack.c.l.b16 %v108
  %v888 = vunpack.c.h.b16 %v108
  %v889 = vunpack.c.l.b16 %v109
  %v890 = vunpack.c.h.b16 %v109
  %v891 = vunpack.c.l.b16 %v110
  %v892 = vunpack.c.h.b16 %v110
  %v893 = vunpack.c.l.b16 %v111
  %v894 = vunpack.c.h.b16 %v111
  %v895 = vunpack.c.l.b16 %v112
  %v896 = vunpack.c.h.b16 %v112
  %v897 = vunpack.c.l.b16 %v113
  %v898 = vunpack.c.h.b16 %v113
  %v899 = vunpack.c.l.b16 %v114
  %v900 = vunpack.c.h.b16 %v114
  %v901 = vunpack.c.l.b16 %v115
  %v902 = vunpack.c.h.b16 %v115
  %v903 = vunpack.c.l.b16 %v116
  %v904 = vunpack.c.h.b16 %v116
  %v905 = vunpack.c.l.b16 %v117
  %v906 = vunpack.c.h.b16 %v117
  %v907 = vunpack.c.l.b16 %v118
  %v908 = vunpack.c.h.b16 %v118
  %v909 = vunpack.c.l.b16 %v119
  %v910 = vunpack.c.h.b16 %v119
  %v911 = vunpack.c.l.b16 %v120
  %v912 = vunpack.c.h.b16 %v120
  %v913 = vunpack.c.l.b16 %v121
  %v914 = vunpack.c.h.b16 %v121
  %v915 = vunpack.c.l.b16 %v122
  %v916 = vunpack.c.h.b16 %v122
  %v917 = vunpack.c.l.b16 %v123
  %v918 = vunpack.c.h.b16 %v123
  %v919 = vunpack.c.l.b16 %v124
  %v920 = vunpack.c.h.b16 %v124
  %v921 = vunpack.c.l.b16 %v125
  %v922 = vunpack.c.h.b16 %v125
  %v923 = vunpack.c.l.b16 %v126
  %v924 = vunpack.c.h.b16 %v126
  %v925 = vunpack.c.l.b16 %v127
  %v926 = vunpack.c.h.b16 %v127
  %v927 = vunpack.c.l.b16 %v128
  %v928 = vunpack.c.h.b16 %v128
  %v929 = vunpack.c.l.b16 %v129
  %v930 = vunpack.c.h.b16 %v129
  %v931 = vunpack.c.l.b16 %v130
  %v932 = vunpack.c.h.b16 %v130
  %v933 = vunpack.c.l.b16 %v131
  %v934 = vunpack.c.h.b16 %v131
  %v935 = vunpack.c.l.b16 %v132
  %v936 = vunpack.c.h.b16 %v132
  %v937 = vunpack.c.l.b16 %v133
  %v938 = vunpack.c.h.b16 %v133
  %v939 = vunpack.c.l.b16 %v134
  %v940 = vunpack.c.h.b16 %v134
  %v941 = vunpack.c.l.b16 %v135
  %v942 = vunpack.c.h.b16 %v135
  %v943 = vunpack.c.l.b16 %v136
  %v944 = vunpack.c.h.b16 %v136
  %v945 = vunpack.c.l.b16 %v137
  %v946 = vunpack.c.h.b16 %v137
  %v947 = vunpack.c.l.b16 %v138
  %v948 = vunpack.c.h.b16 %v138
  %v949 = vunpack.c.l.b16 %v139
  %v950 = vunpack.c.h.b16 %v139
  %v951 = vunpack.c.l.b16 %v140
  %v952 = vunpack.c.h.b16 %v140
  %v953 = vunpack.c.l.b16 %v141
  %v954 = vunpack.c.h.b16 %v141
  %v955 = vunpack.c.l.b16 %v142
  %v956 = vunpack.c.h.b16 %v142
  %v957 = vunpack.c.l.b16 %v143
  %v958 = vunpack.c.h.b16 %v143
  %v959 = vunpack.c.l.b16 %v144
  %v960 = vunpack.c.h.b16 %v144
  %v961 = vunpack.c.l.b16 %v145
  %v962 = vunpack.c.h.b16 %v145
  %v963 = vunpack.c.l.b16 %v146
  %v964 = vunpack.c.h.b16 %v146
  %v965 = vunpack.c.l.b16 %v147
  %v966 = vunpack.c.h.b16 %v147
  %v967 = vunpack.c.l.b16 %v148
  %v968 = vunpack.c.h.b16 %v148
  %v969 = vunpack.c.l.b16 %v149
  %v970 = vunpack.c.h.b16 %v149
  %v971 = vunpack.c.l.b16 %v150
  %v972 = vunpack.c.h.b16 %v150
  %v973 = vunpack.c.l.b16 %v151
  %v974 = vunpack.c.h.b16 %v151
  %v975 = vunpack.c.l.b16 %v152
  %v976 = vunpack.c.h.b16 %v152
  %v977 = vunpack.c.l.b16 %v153
  %v978 = vunpack.c.h.b16 %v153
  %v979 = vunpack.c.l.b16 %v154
  %v980 = vunpack.c.h.b16 %v154
  %v981 = vunpack.c.l.b16 %v155
  %v982 = vunpack.c.h.b16 %v155
  %v983 = vunpack.c.l.b16 %v156
  %v984 = vunpack.c.h.b16 %v156
  %v985 = vunpack.c.l.b16 %v157
  %v986 = vunpack.c.h.b16 %v157
  %v987 = vunpack.c.l.b16 %v158
  %v988 = vunpack.c.h.b16 %v158
  %v989 = vunpack.c.l.b16 %v159
  %v990 = vunpack.c.h.b16 %v159
  %v991 = vunpack.c.l.b16 %v160
  %v992 = vunpack.c.h.b16 %v160
  %v993 = vunpack.c.l.b16 %v161
  %v994 = vunpack.c.h.b16 %v161
  %v995 = vunpack.c.l.b16 %v162
  %v996 = vunpack.c.h.b16 %v162
  %v997 = vunpack.c.l.b16 %v163
  %v998 = vunpack.c.h.b16 %v163
  %v999 = vunpack.c.l.b16 %v164
  %v1000 = vunpack.c.h.b16 %v164
  %v1001 = vunpack.c.l.b16 %v165
  %v1002 = vunpack.c.h.b16 %v165
  %v1003 = vunpack.c.l.b16 %v166
  %v1004 = vunpack.c.h.b16 %v166
  %v1005 = vunpack.c.l.b16 %v167
  %v1006 = vunpack.c.h.b16 %v167
  %v1007 = vunpack.c.l.b16 %v168
  %v1008 = vunpack.c.h.b16 %v168
  %v1009 = vunpack.c.l.b16 %v169
  %v1010 = vunpack.c.h.b16 %v169
  %v1011 = vunpack.c.l.b16 %v170
  %v1012 = vunpack.c.h.b16 %v170
  %v1013 = vunpack.c.l.b16 %v171
  %v1014 = vunpack.c.h.b16 %v171
  %v1015 = vunpack.c.l.b16 %v172
  %v1016 = vunpack.c.h.b16 %v172
  %v1017 = vunpack.c.l.b16 %v173
  %v1018 = vunpack.c.h.b16 %v173
  %v1019 = vunpack.c.l.b16 %v174
  %v1020 = vunpack.c.h.b16 %v174
  %v1021 = vunpack.c.l.b16 %v175
  %v1022 = vunpack.c.h.b16 %v175
  %v1023 = vunpack.c.l.b16 %v176
  %v1024 = vunpack.c.h.b16 %v176
  %v1025 = vunpack.c.l.b16 %v177
  %v1026 = vunpack.c.h.b16 %v177
  %v1027 = vunpack.c.l.b16 %v178
  %v1028 = vunpack.c.h.b16 %v178
  %v1029 = vunpack.c.l.b16 %v179
  %v1030 = vunpack.c.h.b16 %v179
  %v1031 = vunpack.c.l.b16 %v180
  %v1032 = vunpack.c.h.b16 %v180
  %v1033 = vunpack.c.l.b16 %v181
  %v1034 = vunpack.c.h.b16 %v181
  %v1035 = vunpack.c.l.b16 %v182
  %v1036 = vunpack.c.h.b16 %v182
  %v1037 = vunpack.c.l.b16 %v183
  %v1038 = vunpack.c.h.b16 %v183
  %v1039 = vunpack.c.l.b16 %v184
  %v1040 = vunpack.c.h.b16 %v184
  %v1041 = vunpack.c.l.b16 %v185
  %v1042 = vunpack.c.h.b16 %v185
  %v1043 = vunpack.c.l.b16 %v186
  %v1044 = vunpack.c.h.b16 %v186
  %v1045 = vunpack.c.l.b16 %v187
  %v1046 = vunpack.c.h.b16 %v187
  %v1047 = vunpack.c.l.b16 %v188
  %v1048 = vunpack.c.h.b16 %v188
  %v1049 = vunpack.c.l.b16 %v189
  %v1050 = vunpack.c.h.b16 %v189
  %v1051 = vunpack.c.l.b16 %v190
  %v1052 = vunpack.c.h.b16 %v190
  %v1053 = vunpack.c.l.b16 %v191
  %v1054 = vunpack.c.h.b16 %v191
  %v1055 = vunpack.c.l.b16 %v192
  %v1056 = vunpack.c.h.b16 %v192
  %v1057 = vunpack.c.l.b16 %v193
  %v1058 = vunpack.c.h.b16 %v193
  %v1059 = vunpack.c.l.b16 %v194
  %v1060 = vunpack.c.h.b16 %v194
  %v1061 = vunpack.c.l.b16 %v195
  %v1062 = vunpack.c.h.b16 %v195
  %v1063 = vunpack.c.l.b16 %v196
  %v1064 = vunpack.c.h.b16 %v196
  %v1065 = vunpack.c.l.b16 %v197
  %v1066 = vunpack.c.h.b16 %v197
  %v1067 = vunpack.c.l.b16 %v198
  %v1068 = vunpack.c.h.b16 %v198
  %v1069 = vunpack.c.l.b16 %v199
  %v1070 = vunpack.c.h.b16 %v199
  %v1071 = vunpack.c.l.b16 %v200
  %v1072 = vunpack.c.h.b16 %v200
  %v1073 = vunpack.c.l.b16 %v201
  %v1074 = vunpack.c.h.b16 %v201
  %v1075 = vunpack.c.l.b16 %v202
  %v1076 = vunpack.c.h.b16 %v202
  %v1077 = vunpack.c.l.b16 %v203
  %v1078 = vunpack.c.h.b16 %v203
  %v1079 = vunpack.c.l.b16 %v204
  %v1080 = vunpack.c.h.b16 %v204
  %v1081 = vunpack.c.l.b16 %v205
  %v1082 = vunpack.c.h.b16 %v205
  %v1083 = vunpack.c.l.b16 %v206
  %v1084 = vunpack.c.h.b16 %v206
  %v1085 = vunpack.c.l.b16 %v207
  %v1086 = vunpack.c.h.b16 %v207
  %v1087 = vunpack.c.l.b16 %v208
  %v1088 = vunpack.c.h.b16 %v208
  %v1089 = vunpack.c.l.b16 %v209
  %v1090 = vunpack.c.h.b16 %v209
  %v1091 = vunpack.c.l.b16 %v210
  %v1092 = vunpack.c.h.b16 %v210
  %v1093 = vunpack.c.l.b16 %v211
  %v1094 = vunpack.c.h.b16 %v211
  %v1095 = vunpack.c.l.b16 %v212
  %v1096 = vunpack.c.h.b16 %v212
  %v1097 = vunpack.c.l.b16 %v213
  %v1098 = vunpack.c.h.b16 %v213
  %v1099 = vunpack.c.l.b16 %v214
  %v1100 = vunpack.c.h.b16 %v214
  %v1101 = vunpack.c.l.b16 %v215
  %v1102 = vunpack.c.h.b16 %v215
  %v1103 = vunpack.c.l.b16 %v216
  %v1104 = vunpack.c.h.b16 %v216
  %v1105 = vunpack.c.l.b16 %v217
  %v1106 = vunpack.c.h.b16 %v217
  %v1107 = vunpack.c.l.b16 %v218
  %v1108 = vunpack.c.h.b16 %v218
  %v1109 = vunpack.c.l.b16 %v219
  %v1110 = vunpack.c.h.b16 %v219
  %v1111 = vunpack.c.l.b16 %v220
  %v1112 = vunpack.c.h.b16 %v220
  %v1113 = vunpack.c.l.b16 %v221
  %v1114 = vunpack.c.h.b16 %v221
  %v1115 = vunpack.c.l.b16 %v222
  %v1116 = vunpack.c.h.b16 %v222
  %v1117 = vunpack.c.l.b16 %v223
  %v1118 = vunpack.c.h.b16 %v223
  %v1119 = vunpack.c.l.b16 %v224
  %v1120 = vunpack.c.h.b16 %v224
  %v1121 = vunpack.c.l.b16 %v225
  %v1122 = vunpack.c.h.b16 %v225
  %v1123 = vunpack.c.l.b16 %v226
  %v1124 = vunpack.c.h.b16 %v226
  %v1125 = vunpack.c.l.b16 %v227
  %v1126 = vunpack.c.h.b16 %v227
  %v1127 = vunpack.c.l.b16 %v228
  %v1128 = vunpack.c.h.b16 %v228
  %v1129 = vunpack.c.l.b16 %v229
  %v1130 = vunpack.c.h.b16 %v229
  %v1131 = vunpack.c.l.b16 %v230
  %v1132 = vunpack.c.h.b16 %v230
  %v1133 = vunpack.c.l.b16 %v231
  %v1134 = vunpack.c.h.b16 %v231
  %v1135 = vunpack.c.l.b16 %v232
  %v1136 = vunpack.c.h.b16 %v232
  %v1137 = vunpack.c.l.b16 %v233
  %v1138 = vunpack.c.h.b16 %v233
  %v1139 = vunpack.c.l.b16 %v234
  %v1140 = vunpack.c.h.b16 %v234
  %v1141 = vunpack.c.l.b16 %v235
  %v1142 = vunpack.c.h.b16 %v235
  %v1143 = vunpack.c.l.b16 %v236
  %v1144 = vunpack.c.h.b16 %v236
  %v1145 = vunpack.c.l.b16 %v237
  %v1146 = vunpack.c.h.b16 %v237
  %v1147 = vunpack.c.l.b16 %v238
  %v1148 = vunpack.c.h.b16 %v238
  %v1149 = vunpack.c.l.b16 %v239
  %v1150 = vunpack.c.h.b16 %v239
  %v1151 = vunpack.c.l.b16 %v240
  %v1152 = vunpack.c.h.b16 %v240
  %v1153 = vunpack.c.l.b16 %v241
  %v1154 = vunpack.c.h.b16 %v241
  %v1155 = vunpack.c.l.b16 %v242
  %v1156 = vunpack.c.h.b16 %v242
  %v1157 = vunpack.c.l.b16 %v243
  %v1158 = vunpack.c.h.b16 %v243
  %v1159 = vunpack.c.l.b16 %v244
  %v1160 = vunpack.c.h.b16 %v244
  %v1161 = vunpack.c.l.b16 %v245
  %v1162 = vunpack.c.h.b16 %v245
  %v1163 = vunpack.c.l.b16 %v246
  %v1164 = vunpack.c.h.b16 %v246
  %v1165 = vunpack.c.l.b16 %v247
  %v1166 = vunpack.c.h.b16 %v247
  %v1167 = vunpack.c.l.b16 %v248
  %v1168 = vunpack.c.h.b16 %v248
  %v1169 = vunpack.c.l.b16 %v249
  %v1170 = vunpack.c.h.b16 %v249
  %v1171 = vunpack.c.l.b16 %v250
  %v1172 = vunpack.c.h.b16 %v250
  %v1173 = vunpack.c.l.b16 %v251
  %v1174 = vunpack.c.h.b16 %v251
  %v1175 = vunpack.c.l.b16 %v252
  %v1176 = vunpack.c.h.b16 %v252
  %v1177 = vunpack.c.l.b16 %v253
  %v1178 = vunpack.c.h.b16 %v253
  %v1179 = vunpack.c.l.b16 %v254
  %v1180 = vunpack.c.h.b16 %v254
  %v1181 = vunpack.c.l.b16 %v255
  %v1182 = vunpack.c.h.b16 %v255
  %v1183 = vunpack.c.l.b16 %v256
  %v1184 = vunpack.c.h.b16 %v256
  %v1185 = vunpack.c.l.b16 %v257
  %v1186 = vunpack.c.h.b16 %v257
  %v1187 = vunpack.c.l.b16 %v258
  %v1188 = vunpack.c.h.b16 %v258
  %v1189 = vunpack.c.l.b16 %v259
  %v1190 = vunpack.c.h.b16 %v259
  %v1191 = vunpack.c.l.b16 %v260
  %v1192 = vunpack.c.h.b16 %v260
  %v1193 = vunpack.c.l.b16 %v261
  %v1194 = vunpack.c.h.b16 %v261
  %v1195 = vunpack.c.l.b16 %v262
  %v1196 = vunpack.c.h.b16 %v262
  %v1197 = vunpack.c.l.b16 %v263
  %v1198 = vunpack.c.h.b16 %v263
  %v1199 = vunpack.c.l.b16 %v264
  %v1200 = vunpack.c.h.b16 %v264
  %v1201 = vunpack.c.l.b16 %v265
  %v1202 = vunpack.c.h.b16 %v265
  %v1203 = vunpack.c.l.b16 %v266
  %v1204 = vunpack.c.h.b16 %v266
  %v1205 = vunpack.c.l.b16 %v267
  %v1206 = vunpack.c.h.b16 %v267
  %v1207 = vunpack.c.l.b16 %v268
  %v1208 = vunpack.c.h.b16 %v268
  %v1209 = vunpack.c.l.b16 %v269
  %v1210 = vunpack.c.h.b16 %v269
  %v1211 = vunpack.c.l.b16 %v270
  %v1212 = vunpack.c.h.b16 %v270
  %v1213 = vunpack.c.l.b16 %v271
  %v1214 = vunpack.c.h.b16 %v271
  %v1215 = vunpack.c.l.b16 %v272
  %v1216 = vunpack.c.h.b16 %v272
  %v1217 = vunpack.c.l.b16 %v273
  %v1218 = vunpack.c.h.b16 %v273
  %v1219 = vunpack.c.l.b16 %v274
  %v1220 = vunpack.c.h.b16 %v274
  %v1221 = vunpack.c.l.b16 %v275
  %v1222 = vunpack.c.h.b16 %v275
  %v1223 = vunpack.c.l.b16 %v276
  %v1224 = vunpack.c.h.b16 %v276
  %v1225 = vunpack.c.l.b16 %v277
  %v1226 = vunpack.c.h.b16 %v277
  %v1227 = vunpack.c.l.b16 %v278
  %v1228 = vunpack.c.h.b16 %v278
  %v1229 = vunpack.c.l.b16 %v279
  %v1230 = vunpack.c.h.b16 %v279
  %v1231 = vunpack.c.l.b16 %v280
  %v1232 = vunpack.c.h.b16 %v280
  %v1233 = vunpack.c.l.b16 %v281
  %v1234 = vunpack.c.h.b16 %v281
  %v1235 = vunpack.c.l.b16 %v282
  %v1236 = vunpack.c.h.b16 %v282
  %v1237 = vunpack.c.l.b16 %v283
  %v1238 = vunpack.c.h.b16 %v283
  %v1239 = vunpack.c.l.b16 %v284
  %v1240 = vunpack.c.h.b16 %v284
  %v1241 = vunpack.c.l.b16 %v285
  %v1242 = vunpack.c.h.b16 %v285
  %v1243 = vunpack.c.l.b16 %v286
  %v1244 = vunpack.c.h.b16 %v286
  %v1245 = vunpack.c.l.b16 %v287
  %v1246 = vunpack.c.h.b16 %v287
  %v1247 = vunpack.c.l.b16 %v288
  %v1248 = vunpack.c.h.b16 %v288
  %v1249 = vunpack.c.l.b16 %v289
  %v1250 = vunpack.c.h.b16 %v289
  %v1251 = vunpack.c.l.b16 %v290
  %v1252 = vunpack.c.h.b16 %v290
  %v1253 = vunpack.c.l.b16 %v291
  %v1254 = vunpack.c.h.b16 %v291
  %v1255 = vunpack.c.l.b16 %v292
  %v1256 = vunpack.c.h.b16 %v292
  %v1257 = vunpack.c.l.b16 %v293
  %v1258 = vunpack.c.h.b16 %v293
  %v1259 = vunpack.c.l.b16 %v294
  %v1260 = vunpack.c.h.b16 %v294
  %v1261 = vunpack.c.l.b16 %v295
  %v1262 = vunpack.c.h.b16 %v295
  %v1263 = vunpack.c.l.b16 %v296
  %v1264 = vunpack.c.h.b16 %v296
  %v1265 = vunpack.c.l.b16 %v297
  %v1266 = vunpack.c.h.b16 %v297
  %v1267 = vunpack.c.l.b16 %v298
  %v1268 = vunpack.c.h.b16 %v298
  %v1269 = vunpack.c.l.b16 %v299
  %v1270 = vunpack.c.h.b16 %v299
  %v1271 = vunpack.c.l.b16 %v300
  %v1272 = vunpack.c.h.b16 %v300
  %v1273 = vunpack.c.l.b16 %v301
  %v1274 = vunpack.c.h.b16 %v301
  %v1275 = vunpack.c.l.b16 %v302
  %v1276 = vunpack.c.h.b16 %v302
  %v1277 = vunpack.c.l.b16 %v303
  %v1278 = vunpack.c.h.b16 %v303
  %v1279 = vunpack.c.l.b16 %v304
  %v1280 = vunpack.c.h.b16 %v304
  %v1281 = vunpack.c.l.b16 %v305
  %v1282 = vunpack.c.h.b16 %v305
  %v1283 = vunpack.c.l.b16 %v306
  %v1284 = vunpack.c.h.b16 %v306
  %v1285 = vunpack.c.l.b16 %v307
  %v1286 = vunpack.c.h.b16 %v307
  %v1287 = vunpack.c.l.b16 %v308
  %v1288 = vunpack.c.h.b16 %v308
  %v1289 = vunpack.c.l.b16 %v309
  %v1290 = vunpack.c.h.b16 %v309
  %v1291 = vunpack.c.l.b16 %v310
  %v1292 = vunpack.c.h.b16 %v310
  %v1293 = vunpack.c.l.b16 %v311
  %v1294 = vunpack.c.h.b16 %v311
  %v1295 = vunpack.c.l.b16 %v312
  %v1296 = vunpack.c.h.b16 %v312
  %v1297 = vunpack.c.l.b16 %v313
  %v1298 = vunpack.c.h.b16 %v313
  %v1299 = vunpack.c.l.b16 %v314
  %v1300 = vunpack.c.h.b16 %v314
  %v1301 = vunpack.c.l.b16 %v315
  %v1302 = vunpack.c.h.b16 %v315
  %v1303 = vunpack.c.l.b16 %v316
  %v1304 = vunpack.c.h.b16 %v316
  %v1305 = vunpack.c.l.b16 %v317
  %v1306 = vunpack.c.h.b16 %v317
  %v1307 = vunpack.c.l.b16 %v318
  %v1308 = vunpack.c.h.b16 %v318
  %v1309 = vunpack.c.l.b16 %v319
  %v1310 = vunpack.c.h.b16 %v319
  %v1311 = vunpack.c.l.b16 %v320
  %v1312 = vunpack.c.h.b16 %v320
  %v1313 = vunpack.c.l.b16 %v321
  %v1314 = vunpack.c.h.b16 %v321
  %v1315 = vunpack.c.l.b16 %v322
  %v1316 = vunpack.c.h.b16 %v322
  %v1317 = vunpack.c.l.b16 %v323
  %v1318 = vunpack.c.h.b16 %v323
  %v1319 = vunpack.c.l.b16 %v324
  %v1320 = vunpack.c.h.b16 %v324
  %v1321 = vunpack.c.l.b16 %v325
  %v1322 = vunpack.c.h.b16 %v325
  %v1323 = vunpack.c.l.b16 %v326
  %v1324 = vunpack.c.h.b16 %v326
  %v1325 = vunpack.c.l.b16 %v327
  %v1326 = vunpack.c.h.b16 %v327
  %v1327 = vunpack.c.l.b16 %v328
  %v1328 = vunpack.c.h.b16 %v328
  %v1329 = vunpack.c.l.b16 %v329
  %v1330 = vunpack.c.h.b16 %v329
  %v1331 = vunpack.c.l.b16 %v330
  %v1332 = vunpack.c.h.b16 %v330
  %v1333 = vunpack.c.l.b16 %v331
  %v1334 = vunpack.c.h.b16 %v331
  %v1335 = vunpack.c.l.b16 %v332
  %v1336 = vunpack.c.h.b16 %v332
  %v1337 = vunpack.c.l.b16 %v333
  %v1338 = vunpack.c.h.b16 %v333
  %v1339 = vunpack.c.l.b16 %v334
  %v1340 = vunpack.c.h.b16 %v334
  %v1341 = vunpack.c.l.b16 %v335
  %v1342 = vunpack.c.h.b16 %v335
  %v1343 = vunpack.c.l.b16 %v336
  %v1344 = vunpack.c.h.b16 %v336
  %v1345 = vunpack.c.l.b16 %v337
  %v1346 = vunpack.c.h.b16 %v337
  %v1347 = vunpack.c.l.b16 %v338
  %v1348 = vunpack.c.h.b16 %v338
  %v1349 = vunpack.c.l.b16 %v339
  %v1350 = vunpack.c.h.b16 %v339
  %v1351 = vunpack.c.l.b16 %v340
  %v1352 = vunpack.c.h.b16 %v340
  %v1353 = vunpack.c.l.b16 %v341
  %v1354 = vunpack.c.h.b16 %v341
  %v1355 = vunpack.c.l.b16 %v342
  %v1356 = vunpack.c.h.b16 %v342
  %v1357 = vunpack.c.l.b16 %v343
  %v1358 = vunpack.c.h.b16 %v343
  %v1359 = vunpack.c.l.b16 %v344
  %v1360 = vunpack.c.h.b16 %v344
  %v1361 = vunpack.c.l.b16 %v345
  %v1362 = vunpack.c.h.b16 %v345
  %v1363 = vpack.c.b16 %v727, %v723
  %v1364 = vpack.c.b16 %v728, %v724
  %v1365 = vpack.c.b16 %v729, %v725
  %v1366 = vpack.c.b16 %v730, %v726
  %v1367 = vpack.c.b16 %v735, %v731
  %v1368 = vpack.c.b16 %v736, %v732
  %v1369 = vpack.c.b16 %v737, %v733
  %v1370 = vpack.c.b16 %v738, %v734
  %v1371 = vpack.c.b16 %v743, %v739
  %v1372 = vpack.c.b16 %v744, %v740
  %v1373 = vpack.c.b16 %v745, %v741
  %v1374 = vpack.c.b16 %v746, %v742
  %v1375 = vpack.c.b16 %v751, %v747
  %v1376 = vpack.c.b16 %v752, %v748
  %v1377 = vpack.c.b16 %v753, %v749
  %v1378 = vpack.c.b16 %v754, %v750
  %v1379 = vpack.c.b16 %v759, %v755
  %v1380 = vpack.c.b16 %v760, %v756
  %v1381 = vpack.c.b16 %v761, %v757
  %v1382 = vpack.c.b16 %v762, %v758
  %v1383 = vpack.c.b16 %v767, %v763
  %v1384 = vpack.c.b16 %v768, %v764
  %v1385 = vpack.c.b16 %v769, %v765
  %v1386 = vpack.c.b16 %v770, %v766
  %v1387 = vpack.c.b16 %v775, %v771
  %v1388 = vpack.c.b16 %v776, %v772
  %v1389 = vpack.c.b16 %v777, %v773
  %v1390 = vpack.c.b16 %v778, %v774
  %v1391 = vpack.c.b16 %v783, %v779
  %v1392 = vpack.c.b16 %v784, %v780
  %v1393 = vpack.c.b16 %v785, %v781
  %v1394 = vpack.c.b16 %v786, %v782
  %v1395 = vpack.c.b16 %v791, %v787
  %v1396 = vpack.c.b16 %v792, %v788
  %v1397 = vpack.c.b16 %v793, %v789
  %v1398 = vpack.c.b16 %v794, %v790
  %v1399 = vpack.c.b16 %v799, %v795
  %v1400 = vpack.c.b16 %v800, %v796
  %v1401 = vpack.c.b16 %v801, %v797
  %v1402 = vpack.c.b16 %v802, %v798
  %v1403 = vpack.c.b16 %v807, %v803
  %v1404 = vpack.c.b16 %v808, %v804
  %v1405 = vpack.c.b16 %v809, %v805
  %v1406 = vpack.c.b16 %v810, %v806
  %v1407 = vpack.c.b16 %v815, %v811
  %v1408 = vpack.c.b16 %v816, %v812
  %v1409 = vpack.c.b16 %v817, %v813
  %v1410 = vpack.c.b16 %v818, %v814
  %v1411 = vpack.c.b16 %v823, %v819
  %v1412 = vpack.c.b16 %v824, %v820
  %v1413 = vpack.c.b16 %v825, %v821
  %v1414 = vpack.c.b16 %v826, %v822
  %v1415 = vpack.c.b16 %v831, %v827
  %v1416 = vpack.c.b16 %v832, %v828
  %v1417 = vpack.c.b16 %v833, %v829
  %v1418 = vpack.c.b16 %v834, %v830
  %v1419 = vpack.c.b16 %v839, %v835
  %v1420 = vpack.c.b16 %v840, %v836
  %v1421 = vpack.c.b16 %v841, %v837
  %v1422 = vpack.c.b16 %v842, %v838
  %v1423 = vpack.c.b16 %v847, %v843
  %v1424 = vpack.c.b16 %v848, %v844
  %v1425 = vpack.c.b16 %v849, %v845
  %v1426 = vpack.c.b16 %v850, %v846
  %v1427 = vpack.c.b16 %v855, %v851
  %v1428 = vpack.c.b16 %v856, %v852
  %v1429 = vpack.c.b16 %v857, %v853
  %v1430 = vpack.c.b16 %v858, %v854
  %v1431 = vpack.c.b16 %v863, %v859
  %v1432 = vpack.c.b16 %v864, %v860
  %v1433 = vpack.c.b16 %v865, %v861
  %v1434 = vpack.c.b16 %v866, %v862
  %v1435 = vpack.c.b16 %v871, %v867
  %v1436 = vpack.c.b16 %v872, %v868
  %v1437 = vpack.c.b16 %v873, %v869
  %v1438 = vpack.c.b16 %v874, %v870
  %v1439 = vpack.c.b16 %v879, %v875
  %v1440 = vpack.c.b16 %v880, %v876
  %v1441 = vpack.c.b16 %v881, %v877
  %v1442 = vpack.c.b16 %v882, %v878
  %v1443 = vpack.c.b16 %v887, %v883
  %v1444 = vpack.c.b16 %v888, %v884
  %v1445 = vpack.c.b16 %v889, %v885
  %v1446 = vpack.c.b16 %v890, %v886
  %v1447 = vpack.c.b16 %v895, %v891
  %v1448 = vpack.c.b16 %v896, %v892
  %v1449 = vpack.c.b16 %v897, %v893
  %v1450 = vpack.c.b16 %v898, %v894
  %v1451 = vpack.c.b16 %v903, %v899
  %v1452 = vpack.c.b16 %v904, %v900
  %v1453 = vpack.c.b16 %v905, %v901
  %v1454 = vpack.c.b16 %v906, %v902
  %v1455 = vpack.c.b16 %v911, %v907
  %v1456 = vpack.c.b16 %v912, %v908
  %v1457 = vpack.c.b16 %v913, %v909
  %v1458 = vpack.c.b16 %v914, %v910
  %v1459 = vpack.c.b16 %v919, %v915
  %v1460 = vpack.c.b16 %v920, %v916
  %v1461 = vpack.c.b16 %v921, %v917
  %v1462 = vpack.c.b16 %v922, %v918
  %v1463 = vpack.c.b16 %v927, %v923
  %v1464 = vpack.c.b16 %v928, %v924
  %v1465 = vpack.c.b16 %v929, %v925
  %v1466 = vpack.c.b16 %v930, %v926
  %v1467 = vpack.c.b16 %v935, %v931
  %v1468 = vpack.c.b16 %v936, %v932
  %v1469 = vpack.c.b16 %v937, %v933
  %v1470 = vpack.c.b16 %v938, %v934
  %v1471 = vpack.c.b16 %v943, %v939
  %v1472 = vpack.c.b16 %v944, %v940
  %v1473 = vpack.c.b16 %v945, %v941
  %v1474 = vpack.c.b16 %v946, %v942
  %v1475 = vpack.c.b16 %v951, %v947
  %v1476 = vpack.c.b16 %v952, %v948
  %v1477 = vpack.c.b16 %v953, %v949
  %v1478 = vpack.c.b16 %v954, %v950
  %v1479 = vpack.c.b16 %v959, %v955
  %v1480 = vpack.c.b16 %v960, %v956
  %v1481 = vpack.c.b16 %v961, %v957
  %v1482 = vpack.c.b16 %v962, %v958
  %v1483 = vpack.c.b16 %v967, %v963
  %v1484 = vpack.c.b16 %v968, %v964
  %v1485 = vpack.c.b16 %v969, %v965
  %v1486 = vpack.c.b16 %v970, %v966
  %v1487 = vpack.c.b16 %v975, %v971
  %v1488 = vpack.c.b16 %v976, %v972
  %v1489 = vpack.c.b16 %v977, %v973
  %v1490 = vpack.c.b16 %v978, %v974
  %v1491 = vpack.c.b16 %v983, %v979
  %v1492 = vpack.c.b16 %v984, %v980
  %v1493 = vpack.c.b16 %v985, %v981
  %v1494 = vpack.c.b16 %v986, %v982
  %v1495 = vpack.c.b16 %v991, %v987
  %v1496 = vpack.c.b16 %v992, %v988
  %v1497 = vpack.c.b16 %v993, %v989
  %v1498 = vpack.c.b16 %v994, %v990
  %v1499 = vpack.c.b16 %v999, %v995
  %v1500 = vpack.c.b16 %v1000, %v996
  %v1501 = vpack.c.b16 %v1001, %v997
  %v1502 = vpack.c.b16 %v1002, %v998
  %v1503 = vpack.c.b16 %v1007, %v1003
  %v1504 = vpack.c.b16 %v1008, %v1004
  %v1505 = vpack.c.b16 %v1009, %v1005
  %v1506 = vpack.c.b16 %v1010, %v1006
  %v1507 = vpack.c.b16 %v1015, %v1011
  %v1508 = vpack.c.b16 %v1016, %v1012
  %v1509 = vpack.c.b16 %v1017, %v1013
  %v1510 = vpack.c.b16 %v1018, %v1014
  %v1511 = vpack.c.b16 %v1023, %v1019
  %v1512 = vpack.c.b16 %v1024, %v1020
  %v1513 = vpack.c.b16 %v1025, %v1021
  %v1514 = vpack.c.b16 %v1026, %v1022
  %v1515 = vpack.c.b16 %v1031, %v1027
  %v1516 = vpack.c.b16 %v1032, %v1028
  %v1517 = vpack.c.b16 %v1033, %v1029
  %v1518 = vpack.c.b16 %v1034, %v1030
  %v1519 = vpack.c.b16 %v1039, %v1035
  %v1520 = vpack.c.b16 %v1040, %v1036
  %v1521 = vpack.c.b16 %v1041, %v1037
  %v1522 = vpack.c.b16 %v1042, %v1038
  %v1523 = vpack.c.b16 %v1047, %v1043
  %v1524 = vpack.c.b16 %v1048, %v1044
  %v1525 = vpack.c.b16 %v1049, %v1045
  %v1526 = vpack.c.b16 %v1050, %v1046
  %v1527 = vpack.c.b16 %v1055, %v1051
  %v1528 = vpack.c.b16 %v1056, %v1052
  %v1529 = vpack.c.b16 %v1057, %v1053
  %v1530 = vpack.c.b16 %v1058, %v1054
  %v1531 = vpack.c.b16 %v1063, %v1059
  %v1532 = vpack.c.b16 %v1064, %v1060
  %v1533 = vpack.c.b16 %v1065, %v1061
  %v1534 = vpack.c.b16 %v1066, %v1062
  %v1535 = vpack.c.b16 %v1071, %v1067
  %v1536 = vpack.c.b16 %v1072, %v1068
  %v1537 = vpack.c.b16 %v1073, %v1069
  %v1538 = vpack.c.b16 %v1074, %v1070
  %v1539 = vpack.c.b16 %v1079, %v1075
  %v1540 = vpack.c.b16 %v1080, %v1076
  %v1541 = vpack.c.b16 %v1081, %v1077
  %v1542 = vpack.c.b16 %v1082, %v1078
  %v1543 = vpack.c.b16 %v1087, %v1083
  %v1544 = vpack.c.b16 %v1088, %v1084
  %v1545 = vpack.c.b16 %v1089, %v1085
  %v1546 = vpack.c.b16 %v1090, %v1086
  %v1547 = vpack.c.b16 %v1095, %v1091
  %v1548 = vpack.c.b16 %v1096, %v1092
  %v1549 = vpack.c.b16 %v1097, %v1093
  %v1550 = vpack.c.b16 %v1098, %v1094
  %v1551 = vpack.c.b16 %v1103, %v1099
  %v1552 = vpack.c.b16 %v1104, %v1100
  %v1553 = vpack.c.b16 %v1105, %v1101
  %v1554 = vpack.c.b16 %v1106, %v1102
  %v1555 = vpack.c.b16 %v1111, %v1107
  %v1556 = vpack.c.b16 %v1112, %v1108
  %v1557 = vpack.c.b16 %v1113, %v1109
  %v1558 = vpack.c.b16 %v1114, %v1110
  %v1559 = vpack.c.b16 %v1119, %v1115
  %v1560 = vpack.c.b16 %v1120, %v1116
  %v1561 = vpack.c.b16 %v1121, %v1117
  %v1562 = vpack.c.b16 %v1122, %v1118
  %v1563 = vpack.c.b16 %v1127, %v1123
  %v1564 = vpack.c.b16 %v1128, %v1124
  %v1565 = vpack.c.b16 %v1129, %v1125
  %v1566 = vpack.c.b16 %v1130, %v1126
  %v1567 = vpack.c.b16 %v1135, %v1131
  %v1568 = vpack.c.b16 %v1136, %v1132
  %v1569 = vpack.c.b16 %v1137, %v1133
  %v1570 = vpack.c.b16 %v1138, %v1134
  %v1571 = vpack.c.b16 %v1143, %v1139
  %v1572 = vpack.c.b16 %v1144, %v1140
  %v1573 = vpack.c.b16 %v1145, %v1141
  %v1574 = vpack.c.b16 %v1146, %v1142
  %v1575 = vpack.c.b16 %v1151, %v1147
  %v1576 = vpack.c.b16 %v1152, %v1148
  %v1577 = vpack.c.b16 %v1153, %v1149
  %v1578 = vpack.c.b16 %v1154, %v1150
  %v1579 = vpack.c.b16 %v1159, %v1155
  %v1580 = vpack.c.b16 %v1160, %v1156
  %v1581 = vpack.c.b16 %v1161, %v1157
  %v1582 = vpack.c.b16 %v1162, %v1158
  %v1583 = vpack.c.b16 %v1167, %v1163
  %v1584 = vpack.c.b16 %v1168, %v1164
  %v1585 = vpack.c.b16 %v1169, %v1165
  %v1586 = vpack.c.b16 %v1170, %v1166
  %v1587 = vpack.c.b16 %v1175, %v1171
  %v1588 = vpack.c.b16 %v1176, %v1172
  %v1589 = vpack.c.b16 %v1177, %v1173
  %v1590 = vpack.c.b16 %v1178, %v1174
  %v1591 = vpack.c.b16 %v1183, %v1179
  %v1592 = vpack.c.b16 %v1184, %v1180
  %v1593 = vpack.c.b16 %v1185, %v1181
  %v1594 = vpack.c.b16 %v1186, %v1182
  %v1595 = vpack.c.b16 %v1191, %v1187
  %v1596 = vpack.c.b16 %v1192, %v1188
  %v1597 = vpack.c.b16 %v1193, %v1189
  %v1598 = vpack.c.b16 %v1194, %v1190
  %v1599 = vpack.c.b16 %v1199, %v1195
  %v1600 = vpack.c.b16 %v1200, %v1196
  %v1601 = vpack.c.b16 %v1201, %v1197
  %v1602 = vpack.c.b16 %v1202, %v1198
  %v1603 = vpack.c.b16 %v1207, %v1203
  %v1604 = vpack.c.b16 %v1208, %v1204
  %v1605 = vpack.c.b16 %v1209, %v1205
  %v1606 = vpack.c.b16 %v1210, %v1206
  %v1607 = vpack.c.b16 %v1215, %v1211
  %v1608 = vpack.c.b16 %v1216, %v1212
  %v1609 = vpack.c.b16 %v1217, %v1213
  %v1610 = vpack.c.b16 %v1218, %v1214
  %v1611 = vpack.c.b16 %v1223, %v1219
  %v1612 = vpack.c.b16 %v1224, %v1220
  %v1613 = vpack.c.b16 %v1225, %v1221
  %v1614 = vpack.c.b16 %v1226, %v1222
  %v1615 = vpack.c.b16 %v1231, %v1227
  %v1616 = vpack.c.b16 %v1232, %v1228
  %v1617 = vpack.c.b16 %v1233, %v1229
  %v1618 = vpack.c.b16 %v1234, %v1230
  %v1619 = vpack.c.b16 %v1239, %v1235
  %v1620 = vpack.c.b16 %v1240, %v1236
  %v1621 = vpack.c.b16 %v1241, %v1237
  %v1622 = vpack.c.b16 %v1242, %v1238
  %v1623 = vpack.c.b16 %v1247, %v1243
  %v1624 = vpack.c.b16 %v1248, %v1244
  %v1625 = vpack.c.b16 %v1249, %v1245
  %v1626 = vpack.c.b16 %v1250, %v1246
  %v1627 = vpack.c.b16 %v1255, %v1251
  %v1628 = vpack.c.b16 %v1256, %v1252
  %v1629 = vpack.c.b16 %v1257, %v1253
  %v1630 = vpack.c.b16 %v1258, %v1254
  %v1631 = vpack.c.b16 %v1263, %v1259
  %v1632 = vpack.c.b16 %v1264, %v1260
  %v1633 = vpack.c.b16 %v1265, %v1261
  %v1634 = vpack.c.b16 %v1266, %v1262
  %v1635 = vpack.c.b16 %v1271, %v1267
  %v1636 = vpack.c.b16 %v1272, %v1268
  %v1637 = vpack.c.b16 %v1273, %v1269
  %v1638 = vpack.c.b16 %v1274, %v1270
  %v1639 = vpack.c.b16 %v1279, %v1275
  %v1640 = vpack.c.b16 %v1280, %v1276
  %v1641 = vpack.c.b16 %v1281, %v1277
  %v1642 = vpack.c.b16 %v1282, %v1278
  %v1643 = vpack.c.b16 %v1287, %v1283
  %v1644 = vpack.c.b16 %v1288, %v1284
  %v1645 = vpack.c.b16 %v1289, %v1285
  %v1646 = vpack.c.b16 %v1290, %v1286
  %v1647 = vpack.c.b16 %v1295, %v1291
  %v1648 = vpack.c.b16 %v1296, %v1292
  %v1649 = vpack.c.b16 %v1297, %v1293
  %v1650 = vpack.c.b16 %v1298, %v1294
  %v1651 = vpack.c.b16 %v1303, %v1299
  %v1652 = vpack.c.b16 %v1304, %v1300
  %v1653 = vpack.c.b16 %v1305, %v1301
  %v1654 = vpack.c.b16 %v1306, %v1302
  %v1655 = vpack.c.b16 %v1311, %v1307
  %v1656 = vpack.c.b16 %v1312, %v1308
  %v1657 = vpack.c.b16 %v1313, %v1309
  %v1658 = vpack.c.b16 %v1314, %v1310
  %v1659 = vpack.c.b16 %v1319, %v1315
  %v1660 = vpack.c.b16 %v1320, %v1316
  %v1661 = vpack.c.b16 %v1321, %v1317
  %v1662 = vpack.c.b16 %v1322, %v1318
  %v1663 = vpack.c.b16 %v1327, %v1323
  %v1664 = vpack.c.b16 %v1328, %v1324
  %v1665 = vpack.c.b16 %v1329, %v1325
  %v1666 = vpack.c.b16 %v1330, %v1326
  %v1667 = vpack.c.b16 %v1335, %v1331
  %v1668 = vpack.c.b16 %v1336, %v1332
  %v1669 = vpack.c.b16 %v1337, %v1333
  %v1670 = vpack.c.b16 %v1338, %v1334
  %v1671 = vpack.c.b16 %v1343, %v1339
  %v1672 = vpack.c.b16 %v1344, %v1340
  %v1673 = vpack.c.b16 %v1345, %v1341
  %v1674 = vpack.c.b16 %v1346, %v1342
  %v1675 = vpack.c.b16 %v1351, %v1347
  %v1676 = vpack.c.b16 %v1352, %v1348
  %v1677 = vpack.c.b16 %v1353, %v1349
  %v1678 = vpack.c.b16 %v1354, %v1350
  %v1679 = vpack.c.b16 %v1359, %v1355
  %v1680 = vpack.c.b16 %v1360, %v1356
  %v1681 = vpack.c.b16 %v1361, %v1357
  %v1682 = vpack.c.b16 %v1362, %v1358
  %2003 = vmatprep.subr.bf16.mxu0 %v1392
  %2004 = vmatpush1.bf16.msra.mxu0 %v1391
  %2005 = vmatprep.subr.bf16.mxu0 %v1388
  %2006 = vmatpush1.bf16.msra.mxu0 %v1387
  %2007 = vmatprep.subr.bf16.mxu0 %v1384
  %2008 = vmatpush1.bf16.msra.mxu0 %v1383
  %2009 = vmatprep.subr.bf16.mxu0 %v1380
  %2010 = vmatpush1.bf16.msra.mxu0 %v1379
  %2011 = vmatprep.subr.bf16.mxu0 %v1376
  %2012 = vmatpush1.bf16.msra.mxu0 %v1375
  %2013 = vmatprep.subr.bf16.mxu0 %v1372
  %2014 = vmatpush1.bf16.msra.mxu0 %v1371
  %2015 = vmatprep.subr.bf16.mxu0 %v1368
  %2016 = vmatpush1.bf16.msra.mxu0 %v1367
  %2017 = vmatprep.subr.bf16.mxu0 %v1364
  %2018 = vmatpush1.bf16.msra.mxu0 %v1363
  %2019 = vmatprep.subr.bf16.mxu0 %v1424
  %2020 = vmatpush2.bf16.msra.mxu0 %v1423
  %2021 = vmatprep.subr.bf16.mxu0 %v1420
  %2022 = vmatpush2.bf16.msra.mxu0 %v1419
  %2023 = vmatprep.subr.bf16.mxu0 %v1416
  %2024 = vmatpush2.bf16.msra.mxu0 %v1415
  %2025 = vmatprep.subr.bf16.mxu0 %v1412
  %2026 = vmatpush2.bf16.msra.mxu0 %v1411
  %2027 = vmatprep.subr.bf16.mxu0 %v1408
  %2028 = vmatpush2.bf16.msra.mxu0 %v1407
  %2029 = vmatprep.subr.bf16.mxu0 %v1404
  %2030 = vmatpush2.bf16.msra.mxu0 %v1403
  %2031 = vmatprep.subr.bf16.mxu0 %v1400
  %2032 = vmatpush2.bf16.msra.mxu0 %v1399
  %2033 = vmatprep.subr.bf16.mxu0 %v1396
  %2034 = vmatpush2.bf16.msra.mxu0 %v1395
  %2035 = vmatprep.mubr.bf16.mxu0 %v384
  %2036 = vmatmul.mubr.bf16.gmra.mxu0 %v383
  %v2037 = vpop.f32.mrf.mxu0
  %v2038 = vadd.f32 %v351, %v2037
  %v2039 = vpop.f32.mrf.mxu0
  %v2040 = vadd.f32 %v355, %v2039
  %v2041 = vpop.f32.mrf.mxu0
  %v2042 = vpop.f32.mrf.mxu0
  %2043 = vdwg.mxu0
  %2044 = vmatprep.subr.bf16.mxu0 %v1456
  %2045 = vmatpush1.bf16.msra.mxu0 %v1455
  %2046 = vmatprep.subr.bf16.mxu0 %v1452
  %2047 = vmatpush1.bf16.msra.mxu0 %v1451
  %2048 = vmatprep.subr.bf16.mxu0 %v1448
  %2049 = vmatpush1.bf16.msra.mxu0 %v1447
  %2050 = vmatprep.subr.bf16.mxu0 %v1444
  %2051 = vmatpush1.bf16.msra.mxu0 %v1443
  %2052 = vmatprep.subr.bf16.mxu0 %v1440
  %2053 = vmatpush1.bf16.msra.mxu0 %v1439
  %2054 = vmatprep.subr.bf16.mxu0 %v1436
  %2055 = vmatpush1.bf16.msra.mxu0 %v1435
  %2056 = vmatprep.subr.bf16.mxu0 %v1432
  %2057 = vmatpush1.bf16.msra.mxu0 %v1431
  %2058 = vmatprep.subr.bf16.mxu0 %v1428
  %2059 = vmatpush1.bf16.msra.mxu0 %v1427
  %2060 = vmatprep.subr.bf16.mxu0 %v1488
  %2061 = vmatpush2.bf16.msra.mxu0 %v1487
  %2062 = vmatprep.subr.bf16.mxu0 %v1484
  %2063 = vmatpush2.bf16.msra.mxu0 %v1483
  %2064 = vmatprep.subr.bf16.mxu0 %v1480
  %2065 = vmatpush2.bf16.msra.mxu0 %v1479
  %2066 = vmatprep.subr.bf16.mxu0 %v1476
  %2067 = vmatpush2.bf16.msra.mxu0 %v1475
  %2068 = vmatprep.subr.bf16.mxu0 %v1472
  %2069 = vmatpush2.bf16.msra.mxu0 %v1471
  %2070 = vmatprep.subr.bf16.mxu0 %v1468
  %2071 = vmatpush2.bf16.msra.mxu0 %v1467
  %2072 = vmatprep.subr.bf16.mxu0 %v1464
  %2073 = vmatpush2.bf16.msra.mxu0 %v1463
  %2074 = vmatprep.subr.bf16.mxu0 %v1460
  %2075 = vmatpush2.bf16.msra.mxu0 %v1459
  %2076 = vmatprep.mubr.bf16.mxu0 %v386
  %2077 = vmatmul.mubr.bf16.gmra.mxu0 %v385
  %v2078 = vpop.f32.mrf.mxu0
  %v2079 = vadd.f32 %v2038, %v2078
  %v2080 = vpop.f32.mrf.mxu0
  %v2081 = vadd.f32 %v2040, %v2080
  %v2082 = vpop.f32.mrf.mxu0
  %v2083 = vpop.f32.mrf.mxu0
  %2084 = vdwg.mxu0
  %2085 = vmatprep.subr.bf16.mxu0 %v1520
  %2086 = vmatpush1.bf16.msra.mxu0 %v1519
  %2087 = vmatprep.subr.bf16.mxu0 %v1516
  %2088 = vmatpush1.bf16.msra.mxu0 %v1515
  %2089 = vmatprep.subr.bf16.mxu0 %v1512
  %2090 = vmatpush1.bf16.msra.mxu0 %v1511
  %2091 = vmatprep.subr.bf16.mxu0 %v1508
  %2092 = vmatpush1.bf16.msra.mxu0 %v1507
  %2093 = vmatprep.subr.bf16.mxu0 %v1504
  %2094 = vmatpush1.bf16.msra.mxu0 %v1503
  %2095 = vmatprep.subr.bf16.mxu0 %v1500
  %2096 = vmatpush1.bf16.msra.mxu0 %v1499
  %2097 = vmatprep.subr.bf16.mxu0 %v1496
  %2098 = vmatpush1.bf16.msra.mxu0 %v1495
  %2099 = vmatprep.subr.bf16.mxu0 %v1492
  %2100 = vmatpush1.bf16.msra.mxu0 %v1491
  %2101 = vmatprep.subr.bf16.mxu0 %v1552
  %2102 = vmatpush2.bf16.msra.mxu0 %v1551
  %2103 = vmatprep.subr.bf16.mxu0 %v1548
  %2104 = vmatpush2.bf16.msra.mxu0 %v1547
  %2105 = vmatprep.subr.bf16.mxu0 %v1544
  %2106 = vmatpush2.bf16.msra.mxu0 %v1543
  %2107 = vmatprep.subr.bf16.mxu0 %v1540
  %2108 = vmatpush2.bf16.msra.mxu0 %v1539
  %2109 = vmatprep.subr.bf16.mxu0 %v1536
  %2110 = vmatpush2.bf16.msra.mxu0 %v1535
  %2111 = vmatprep.subr.bf16.mxu0 %v1532
  %2112 = vmatpush2.bf16.msra.mxu0 %v1531
  %2113 = vmatprep.subr.bf16.mxu0 %v1528
  %2114 = vmatpush2.bf16.msra.mxu0 %v1527
  %2115 = vmatprep.subr.bf16.mxu0 %v1524
  %2116 = vmatpush2.bf16.msra.mxu0 %v1523
  %2117 = vmatprep.mubr.bf16.mxu0 %v388
  %2118 = vmatmul.mubr.bf16.gmra.mxu0 %v387
  %v2119 = vpop.f32.mrf.mxu0
  %v2120 = vadd.f32 %v2079, %v2119
  %v2121 = vpop.f32.mrf.mxu0
  %v2122 = vadd.f32 %v2081, %v2121
  %v2123 = vpop.f32.mrf.mxu0
  %v2124 = vpop.f32.mrf.mxu0
  %2125 = vdwg.mxu0
  %2126 = vmatprep.subr.bf16.mxu0 %v1584
  %2127 = vmatpush1.bf16.msra.mxu0 %v1583
  %2128 = vmatprep.subr.bf16.mxu0 %v1580
  %2129 = vmatpush1.bf16.msra.mxu0 %v1579
  %2130 = vmatprep.subr.bf16.mxu0 %v1576
  %2131 = vmatpush1.bf16.msra.mxu0 %v1575
  %2132 = vmatprep.subr.bf16.mxu0 %v1572
  %2133 = vmatpush1.bf16.msra.mxu0 %v1571
  %2134 = vmatprep.subr.bf16.mxu0 %v1568
  %2135 = vmatpush1.bf16.msra.mxu0 %v1567
  %2136 = vmatprep.subr.bf16.mxu0 %v1564
  %2137 = vmatpush1.bf16.msra.mxu0 %v1563
  %2138 = vmatprep.subr.bf16.mxu0 %v1560
  %2139 = vmatpush1.bf16.msra.mxu0 %v1559
  %2140 = vmatprep.subr.bf16.mxu0 %v1556
  %2141 = vmatpush1.bf16.msra.mxu0 %v1555
  %2142 = vmatprep.subr.bf16.mxu0 %v1616
  %2143 = vmatpush2.bf16.msra.mxu0 %v1615
  %2144 = vmatprep.subr.bf16.mxu0 %v1612
  %2145 = vmatpush2.bf16.msra.mxu0 %v1611
  %2146 = vmatprep.subr.bf16.mxu0 %v1608
  %2147 = vmatpush2.bf16.msra.mxu0 %v1607
  %2148 = vmatprep.subr.bf16.mxu0 %v1604
  %2149 = vmatpush2.bf16.msra.mxu0 %v1603
  %2150 = vmatprep.subr.bf16.mxu0 %v1600
  %2151 = vmatpush2.bf16.msra.mxu0 %v1599
  %2152 = vmatprep.subr.bf16.mxu0 %v1596
  %2153 = vmatpush2.bf16.msra.mxu0 %v1595
  %2154 = vmatprep.subr.bf16.mxu0 %v1592
  %2155 = vmatpush2.bf16.msra.mxu0 %v1591
  %2156 = vmatprep.subr.bf16.mxu0 %v1588
  %2157 = vmatpush2.bf16.msra.mxu0 %v1587
  %2158 = vmatprep.mubr.bf16.mxu0 %v390
  %2159 = vmatmul.mubr.bf16.gmra.mxu0 %v389
  %v2160 = vpop.f32.mrf.mxu0
  %v2161 = vadd.f32 %v2120, %v2160
  %v2162 = vpop.f32.mrf.mxu0
  %v2163 = vadd.f32 %v2122, %v2162
  %v2164 = vpop.f32.mrf.mxu0
  %v2165 = vpop.f32.mrf.mxu0
  %2166 = vdwg.mxu0
  %2167 = vmatprep.subr.bf16.mxu0 %v1648
  %2168 = vmatpush1.bf16.msra.mxu0 %v1647
  %2169 = vmatprep.subr.bf16.mxu0 %v1644
  %2170 = vmatpush1.bf16.msra.mxu0 %v1643
  %2171 = vmatprep.subr.bf16.mxu0 %v1640
  %2172 = vmatpush1.bf16.msra.mxu0 %v1639
  %2173 = vmatprep.subr.bf16.mxu0 %v1636
  %2174 = vmatpush1.bf16.msra.mxu0 %v1635
  %2175 = vmatprep.subr.bf16.mxu0 %v1632
  %2176 = vmatpush1.bf16.msra.mxu0 %v1631
  %2177 = vmatprep.subr.bf16.mxu0 %v1628
  %2178 = vmatpush1.bf16.msra.mxu0 %v1627
  %2179 = vmatprep.subr.bf16.mxu0 %v1624
  %2180 = vmatpush1.bf16.msra.mxu0 %v1623
  %2181 = vmatprep.subr.bf16.mxu0 %v1620
  %2182 = vmatpush1.bf16.msra.mxu0 %v1619
  %2183 = vmatprep.subr.bf16.mxu0 %v1680
  %2184 = vmatpush2.bf16.msra.mxu0 %v1679
  %2185 = vmatprep.subr.bf16.mxu0 %v1676
  %2186 = vmatpush2.bf16.msra.mxu0 %v1675
  %2187 = vmatprep.subr.bf16.mxu0 %v1672
  %2188 = vmatpush2.bf16.msra.mxu0 %v1671
  %2189 = vmatprep.subr.bf16.mxu0 %v1668
  %2190 = vmatpush2.bf16.msra.mxu0 %v1667
  %2191 = vmatprep.subr.bf16.mxu0 %v1664
  %2192 = vmatpush2.bf16.msra.mxu0 %v1663
  %2193 = vmatprep.subr.bf16.mxu0 %v1660
  %2194 = vmatpush2.bf16.msra.mxu0 %v1659
  %2195 = vmatprep.subr.bf16.mxu0 %v1656
  %2196 = vmatpush2.bf16.msra.mxu0 %v1655
  %2197 = vmatprep.subr.bf16.mxu0 %v1652
  %2198 = vmatpush2.bf16.msra.mxu0 %v1651
  %2199 = vmatprep.mubr.bf16.mxu0 %v392
  %2200 = vmatmul.mubr.bf16.gmra.mxu0 %v391
  %v2201 = vpop.f32.mrf.mxu0
  %v2202 = vadd.f32 %v2161, %v2201
  %v2203 = vpop.f32.mrf.mxu0
  %v2204 = vadd.f32 %v2163, %v2203
  %v2205 = vpop.f32.mrf.mxu0
  %v2206 = vpop.f32.mrf.mxu0
  %2207 = vdwg.mxu0
  %2208 = vmatprep.subr.bf16.mxu0 %v1394
  %2209 = vmatpush1.bf16.msra.mxu0 %v1393
  %2210 = vmatprep.subr.bf16.mxu0 %v1390
  %2211 = vmatpush1.bf16.msra.mxu0 %v1389
  %2212 = vmatprep.subr.bf16.mxu0 %v1386
  %2213 = vmatpush1.bf16.msra.mxu0 %v1385
  %2214 = vmatprep.subr.bf16.mxu0 %v1382
  %2215 = vmatpush1.bf16.msra.mxu0 %v1381
  %2216 = vmatprep.subr.bf16.mxu0 %v1378
  %2217 = vmatpush1.bf16.msra.mxu0 %v1377
  %2218 = vmatprep.subr.bf16.mxu0 %v1374
  %2219 = vmatpush1.bf16.msra.mxu0 %v1373
  %2220 = vmatprep.subr.bf16.mxu0 %v1370
  %2221 = vmatpush1.bf16.msra.mxu0 %v1369
  %2222 = vmatprep.subr.bf16.mxu0 %v1366
  %2223 = vmatpush1.bf16.msra.mxu0 %v1365
  %2224 = vmatprep.subr.bf16.mxu0 %v1426
  %2225 = vmatpush2.bf16.msra.mxu0 %v1425
  %2226 = vmatprep.subr.bf16.mxu0 %v1422
  %2227 = vmatpush2.bf16.msra.mxu0 %v1421
  %2228 = vmatprep.subr.bf16.mxu0 %v1418
  %2229 = vmatpush2.bf16.msra.mxu0 %v1417
  %2230 = vmatprep.subr.bf16.mxu0 %v1414
  %2231 = vmatpush2.bf16.msra.mxu0 %v1413
  %2232 = vmatprep.subr.bf16.mxu0 %v1410
  %2233 = vmatpush2.bf16.msra.mxu0 %v1409
  %2234 = vmatprep.subr.bf16.mxu0 %v1406
  %2235 = vmatpush2.bf16.msra.mxu0 %v1405
  %2236 = vmatprep.subr.bf16.mxu0 %v1402
  %2237 = vmatpush2.bf16.msra.mxu0 %v1401
  %2238 = vmatprep.subr.bf16.mxu0 %v1398
  %2239 = vmatpush2.bf16.msra.mxu0 %v1397
  %2240 = vmatprep.mubr.bf16.mxu0 %v384
  %2241 = vmatmul.mubr.bf16.gmra.mxu0 %v383
  %v2242 = vpop.f32.mrf.mxu0
  %v2243 = vadd.f32 %v359, %v2242
  %v2244 = vpop.f32.mrf.mxu0
  %v2245 = vadd.f32 %v363, %v2244
  %v2246 = vpop.f32.mrf.mxu0
  %v2247 = vpop.f32.mrf.mxu0
  %2248 = vdwg.mxu0
  %2249 = vmatprep.subr.bf16.mxu0 %v1458
  %2250 = vmatpush1.bf16.msra.mxu0 %v1457
  %2251 = vmatprep.subr.bf16.mxu0 %v1454
  %2252 = vmatpush1.bf16.msra.mxu0 %v1453
  %2253 = vmatprep.subr.bf16.mxu0 %v1450
  %2254 = vmatpush1.bf16.msra.mxu0 %v1449
  %2255 = vmatprep.subr.bf16.mxu0 %v1446
  %2256 = vmatpush1.bf16.msra.mxu0 %v1445
  %2257 = vmatprep.subr.bf16.mxu0 %v1442
  %2258 = vmatpush1.bf16.msra.mxu0 %v1441
  %2259 = vmatprep.subr.bf16.mxu0 %v1438
  %2260 = vmatpush1.bf16.msra.mxu0 %v1437
  %2261 = vmatprep.subr.bf16.mxu0 %v1434
  %2262 = vmatpush1.bf16.msra.mxu0 %v1433
  %2263 = vmatprep.subr.bf16.mxu0 %v1430
  %2264 = vmatpush1.bf16.msra.mxu0 %v1429
  %2265 = vmatprep.subr.bf16.mxu0 %v1490
  %2266 = vmatpush2.bf16.msra.mxu0 %v1489
  %2267 = vmatprep.subr.bf16.mxu0 %v1486
  %2268 = vmatpush2.bf16.msra.mxu0 %v1485
  %2269 = vmatprep.subr.bf16.mxu0 %v1482
  %2270 = vmatpush2.bf16.msra.mxu0 %v1481
  %2271 = vmatprep.subr.bf16.mxu0 %v1478
  %2272 = vmatpush2.bf16.msra.mxu0 %v1477
  %2273 = vmatprep.subr.bf16.mxu0 %v1474
  %2274 = vmatpush2.bf16.msra.mxu0 %v1473
  %2275 = vmatprep.subr.bf16.mxu0 %v1470
  %2276 = vmatpush2.bf16.msra.mxu0 %v1469
  %2277 = vmatprep.subr.bf16.mxu0 %v1466
  %2278 = vmatpush2.bf16.msra.mxu0 %v1465
  %2279 = vmatprep.subr.bf16.mxu0 %v1462
  %2280 = vmatpush2.bf16.msra.mxu0 %v1461
  %2281 = vmatprep.mubr.bf16.mxu0 %v386
  %2282 = vmatmul.mubr.bf16.gmra.mxu0 %v385
  %v2283 = vpop.f32.mrf.mxu0
  %v2284 = vadd.f32 %v2243, %v2283
  %v2285 = vpop.f32.mrf.mxu0
  %v2286 = vadd.f32 %v2245, %v2285
  %v2287 = vpop.f32.mrf.mxu0
  %v2288 = vpop.f32.mrf.mxu0
  %2289 = vdwg.mxu0
  %2290 = vmatprep.subr.bf16.mxu0 %v1522
  %2291 = vmatpush1.bf16.msra.mxu0 %v1521
  %2292 = vmatprep.subr.bf16.mxu0 %v1518
  %2293 = vmatpush1.bf16.msra.mxu0 %v1517
  %2294 = vmatprep.subr.bf16.mxu0 %v1514
  %2295 = vmatpush1.bf16.msra.mxu0 %v1513
  %2296 = vmatprep.subr.bf16.mxu0 %v1510
  %2297 = vmatpush1.bf16.msra.mxu0 %v1509
  %2298 = vmatprep.subr.bf16.mxu0 %v1506
  %2299 = vmatpush1.bf16.msra.mxu0 %v1505
  %2300 = vmatprep.subr.bf16.mxu0 %v1502
  %2301 = vmatpush1.bf16.msra.mxu0 %v1501
  %2302 = vmatprep.subr.bf16.mxu0 %v1498
  %2303 = vmatpush1.bf16.msra.mxu0 %v1497
  %2304 = vmatprep.subr.bf16.mxu0 %v1494
  %2305 = vmatpush1.bf16.msra.mxu0 %v1493
  %2306 = vmatprep.subr.bf16.mxu0 %v1554
  %2307 = vmatpush2.bf16.msra.mxu0 %v1553
  %2308 = vmatprep.subr.bf16.mxu0 %v1550
  %2309 = vmatpush2.bf16.msra.mxu0 %v1549
  %2310 = vmatprep.subr.bf16.mxu0 %v1546
  %2311 = vmatpush2.bf16.msra.mxu0 %v1545
  %2312 = vmatprep.subr.bf16.mxu0 %v1542
  %2313 = vmatpush2.bf16.msra.mxu0 %v1541
  %2314 = vmatprep.subr.bf16.mxu0 %v1538
  %2315 = vmatpush2.bf16.msra.mxu0 %v1537
  %2316 = vmatprep.subr.bf16.mxu0 %v1534
  %2317 = vmatpush2.bf16.msra.mxu0 %v1533
  %2318 = vmatprep.subr.bf16.mxu0 %v1530
  %2319 = vmatpush2.bf16.msra.mxu0 %v1529
  %2320 = vmatprep.subr.bf16.mxu0 %v1526
  %2321 = vmatpush2.bf16.msra.mxu0 %v1525
  %2322 = vmatprep.mubr.bf16.mxu0 %v388
  %2323 = vmatmul.mubr.bf16.gmra.mxu0 %v387
  %v2324 = vpop.f32.mrf.mxu0
  %v2325 = vadd.f32 %v2284, %v2324
  %v2326 = vpop.f32.mrf.mxu0
  %v2327 = vadd.f32 %v2286, %v2326
  %v2328 = vpop.f32.mrf.mxu0
  %v2329 = vpop.f32.mrf.mxu0
  %2330 = vdwg.mxu0
  %2331 = vmatprep.subr.bf16.mxu0 %v1586
  %2332 = vmatpush1.bf16.msra.mxu0 %v1585
  %2333 = vmatprep.subr.bf16.mxu0 %v1582
  %2334 = vmatpush1.bf16.msra.mxu0 %v1581
  %2335 = vmatprep.subr.bf16.mxu0 %v1578
  %2336 = vmatpush1.bf16.msra.mxu0 %v1577
  %2337 = vmatprep.subr.bf16.mxu0 %v1574
  %2338 = vmatpush1.bf16.msra.mxu0 %v1573
  %2339 = vmatprep.subr.bf16.mxu0 %v1570
  %2340 = vmatpush1.bf16.msra.mxu0 %v1569
  %2341 = vmatprep.subr.bf16.mxu0 %v1566
  %2342 = vmatpush1.bf16.msra.mxu0 %v1565
  %2343 = vmatprep.subr.bf16.mxu0 %v1562
  %2344 = vmatpush1.bf16.msra.mxu0 %v1561
  %2345 = vmatprep.subr.bf16.mxu0 %v1558
  %2346 = vmatpush1.bf16.msra.mxu0 %v1557
  %2347 = vmatprep.subr.bf16.mxu0 %v1618
  %2348 = vmatpush2.bf16.msra.mxu0 %v1617
  %2349 = vmatprep.subr.bf16.mxu0 %v1614
  %2350 = vmatpush2.bf16.msra.mxu0 %v1613
  %2351 = vmatprep.subr.bf16.mxu0 %v1610
  %2352 = vmatpush2.bf16.msra.mxu0 %v1609
  %2353 = vmatprep.subr.bf16.mxu0 %v1606
  %2354 = vmatpush2.bf16.msra.mxu0 %v1605
  %2355 = vmatprep.subr.bf16.mxu0 %v1602
  %2356 = vmatpush2.bf16.msra.mxu0 %v1601
  %2357 = vmatprep.subr.bf16.mxu0 %v1598
  %2358 = vmatpush2.bf16.msra.mxu0 %v1597
  %2359 = vmatprep.subr.bf16.mxu0 %v1594
  %2360 = vmatpush2.bf16.msra.mxu0 %v1593
  %2361 = vmatprep.subr.bf16.mxu0 %v1590
  %2362 = vmatpush2.bf16.msra.mxu0 %v1589
  %2363 = vmatprep.mubr.bf16.mxu0 %v390
  %2364 = vmatmul.mubr.bf16.gmra.mxu0 %v389
  %v2365 = vpop.f32.mrf.mxu0
  %v2366 = vadd.f32 %v2325, %v2365
  %v2367 = vpop.f32.mrf.mxu0
  %v2368 = vadd.f32 %v2327, %v2367
  %v2369 = vpop.f32.mrf.mxu0
  %v2370 = vpop.f32.mrf.mxu0
  %2371 = vdwg.mxu0
  %2372 = vmatprep.subr.bf16.mxu0 %v1650
  %2373 = vmatpush1.bf16.msra.mxu0 %v1649
  %2374 = vmatprep.subr.bf16.mxu0 %v1646
  %2375 = vmatpush1.bf16.msra.mxu0 %v1645
  %2376 = vmatprep.subr.bf16.mxu0 %v1642
  %2377 = vmatpush1.bf16.msra.mxu0 %v1641
  %2378 = vmatprep.subr.bf16.mxu0 %v1638
  %2379 = vmatpush1.bf16.msra.mxu0 %v1637
  %2380 = vmatprep.subr.bf16.mxu0 %v1634
  %2381 = vmatpush1.bf16.msra.mxu0 %v1633
  %2382 = vmatprep.subr.bf16.mxu0 %v1630
  %2383 = vmatpush1.bf16.msra.mxu0 %v1629
  %2384 = vmatprep.subr.bf16.mxu0 %v1626
  %2385 = vmatpush1.bf16.msra.mxu0 %v1625
  %2386 = vmatprep.subr.bf16.mxu0 %v1622
  %2387 = vmatpush1.bf16.msra.mxu0 %v1621
  %2388 = vmatprep.subr.bf16.mxu0 %v1682
  %2389 = vmatpush2.bf16.msra.mxu0 %v1681
  %2390 = vmatprep.subr.bf16.mxu0 %v1678
  %2391 = vmatpush2.bf16.msra.mxu0 %v1677
  %2392 = vmatprep.subr.bf16.mxu0 %v1674
  %2393 = vmatpush2.bf16.msra.mxu0 %v1673
  %2394 = vmatprep.subr.bf16.mxu0 %v1670
  %2395 = vmatpush2.bf16.msra.mxu0 %v1669
  %2396 = vmatprep.subr.bf16.mxu0 %v1666
  %2397 = vmatpush2.bf16.msra.mxu0 %v1665
  %2398 = vmatprep.subr.bf16.mxu0 %v1662
  %2399 = vmatpush2.bf16.msra.mxu0 %v1661
  %2400 = vmatprep.subr.bf16.mxu0 %v1658
  %2401 = vmatpush2.bf16.msra.mxu0 %v1657
  %2402 = vmatprep.subr.bf16.mxu0 %v1654
  %2403 = vmatpush2.bf16.msra.mxu0 %v1653
  %2404 = vmatprep.mubr.bf16.mxu0 %v392
  %2405 = vmatmul.mubr.bf16.gmra.mxu0 %v391
  %v2406 = vpop.f32.mrf.mxu0
  %v2407 = vadd.f32 %v2366, %v2406
  %v2408 = vpop.f32.mrf.mxu0
  %v2409 = vadd.f32 %v2368, %v2408
  %v2410 = vpop.f32.mrf.mxu0
  %v2411 = vpop.f32.mrf.mxu0
  %2412 = vdwg.mxu0
  %v2413 = vmax.f32 %v2202, 0.0
  %v2414 = vmax.f32 %v2204, 0.0
  %v2415 = vmax.f32 %v2407, 0.0
  %v2416 = vmax.f32 %v2409, 0.0
  %v2417 = vpack.c.bf16 %v2413, %v2413
  %v2418 = vpack.c.bf16 %v2414, %v2414
  %v2419 = vpack.c.bf16 %v2415, %v2415
  %v2420 = vpack.c.bf16 %v2416, %v2416
  %v2421 = vld [vmem:[%s3] sm:$0xf]
  %v2422 = vld [vmem:[%s3 + $0x4] sm:$0xf]
  %v2423 = vld [vmem:[%s3 + $0x8] sm:$0xf]
  %v2424 = vld [vmem:[%s3 + $0xc] sm:$0xf]
  %v2425 = vld [vmem:[%s3 + $0x10] sm:$0xf]
  %v2426 = vld [vmem:[%s3 + $0x14] sm:$0xf]
  %v2427 = vld [vmem:[%s3 + $0x18] sm:$0xf]
  %v2428 = vld [vmem:[%s3 + $0x1c] sm:$0xf]
  %v2429 = vld [vmem:[%s3 + $0x20] sm:$0xf]
  %v2430 = vld [vmem:[%s3 + $0x24] sm:$0xf]
  %v2431 = vld [vmem:[%s3 + $0x28] sm:$0xf]
  %v2432 = vld [vmem:[%s3 + $0x2c] sm:$0xf]
  %v2433 = vld [vmem:[%s3 + $0x30] sm:$0xf]
  %v2434 = vld [vmem:[%s3 + $0x34] sm:$0xf]
  %v2435 = vld [vmem:[%s3 + $0x38] sm:$0xf]
  %v2436 = vld [vmem:[%s3 + $0x3c] sm:$0xf]
  %v2437 = vld [vmem:[%s3 + $0x40] sm:$0xf]
  %v2438 = vld [vmem:[%s3 + $0x44] sm:$0xf]
  %v2439 = vld [vmem:[%s3 + $0x48] sm:$0xf]
  %v2440 = vld [vmem:[%s3 + $0x4c] sm:$0xf]
  %v2441 = vld [vmem:[%s3 + $0x50] sm:$0xf]
  %v2442 = vld [vmem:[%s3 + $0x54] sm:$0xf]
  %v2443 = vld [vmem:[%s3 + $0x58] sm:$0xf]
  %v2444 = vld [vmem:[%s3 + $0x5c] sm:$0xf]
  %v2445 = vld [vmem:[%s3 + $0x60] sm:$0xf]
  %v2446 = vld [vmem:[%s3 + $0x64] sm:$0xf]
  %v2447 = vld [vmem:[%s3 + $0x68] sm:$0xf]
  %v2448 = vld [vmem:[%s3 + $0x6c] sm:$0xf]
  %v2449 = vld [vmem:[%s3 + $0x70] sm:$0xf]
  %v2450 = vld [vmem:[%s3 + $0x74] sm:$0xf]
  %v2451 = vld [vmem:[%s3 + $0x78] sm:$0xf]
  %v2452 = vld [vmem:[%s3 + $0x7c] sm:$0xf]
  %v2453 = vld [vmem:[%s3 + $0x80] sm:$0xf]
  %v2454 = vld [vmem:[%s3 + $0x84] sm:$0xf]
  %v2455 = vld [vmem:[%s3 + $0x88] sm:$0xf]
  %v2456 = vld [vmem:[%s3 + $0x8c] sm:$0xf]
  %v2457 = vld [vmem:[%s3 + $0x90] sm:$0xf]
  %v2458 = vld [vmem:[%s3 + $0x94] sm:$0xf]
  %v2459 = vld [vmem:[%s3 + $0x98] sm:$0xf]
  %v2460 = vld [vmem:[%s3 + $0x9c] sm:$0xf]
  %v2461 = vld [vmem:[%s3 + $0xa0] sm:$0xf]
  %v2462 = vld [vmem:[%s3 + $0xa4] sm:$0xf]
  %v2463 = vld [vmem:[%s3 + $0xa8] sm:$0xf]
  %v2464 = vld [vmem:[%s3 + $0xac] sm:$0xf]
  %v2465 = vld [vmem:[%s3 + $0xb0] sm:$0xf]
  %v2466 = vld [vmem:[%s3 + $0xb4] sm:$0xf]
  %v2467 = vld [vmem:[%s3 + $0xb8] sm:$0xf]
  %v2468 = vld [vmem:[%s3 + $0xbc] sm:$0xf]
  %v2469 = vld [vmem:[%s3 + $0xc0] sm:$0xf]
  %v2470 = vld [vmem:[%s3 + $0xc4] sm:$0xf]
  %v2471 = vld [vmem:[%s3 + $0xc8] sm:$0xf]
  %v2472 = vld [vmem:[%s3 + $0xcc] sm:$0xf]
  %v2473 = vld [vmem:[%s3 + $0xd0] sm:$0xf]
  %v2474 = vld [vmem:[%s3 + $0xd4] sm:$0xf]
  %v2475 = vld [vmem:[%s3 + $0xd8] sm:$0xf]
  %v2476 = vld [vmem:[%s3 + $0xdc] sm:$0xf]
  %v2477 = vld [vmem:[%s3 + $0xe0] sm:$0xf]
  %v2478 = vld [vmem:[%s3 + $0xe4] sm:$0xf]
  %v2479 = vld [vmem:[%s3 + $0xe8] sm:$0xf]
  %v2480 = vld [vmem:[%s3 + $0xec] sm:$0xf]
  %v2481 = vld [vmem:[%s3 + $0xf0] sm:$0xf]
  %v2482 = vld [vmem:[%s3 + $0xf4] sm:$0xf]
  %v2483 = vld [vmem:[%s3 + $0xf8] sm:$0xf]
  %v2484 = vld [vmem:[%s3 + $0xfc] sm:$0xf]
  %v2485 = vld [vmem:[%s4] sm:$0x1]
  %v2487 = vlaneseq
  %v2488 = vshrl.u32 %v2487, 7
  %v2489 = vsub.s32 0, %v2488
  %v2490 = vrot.slane %v2485, %v2489
  %v2556 = vunpack.c.l.b16 %v2421
  %v2557 = vunpack.c.l.b16 %v2422
  %v2558 = vunpack.c.l.b16 %v2423
  %v2559 = vunpack.c.l.b16 %v2424
  %v2560 = vunpack.c.l.b16 %v2425
  %v2561 = vunpack.c.l.b16 %v2426
  %v2562 = vunpack.c.l.b16 %v2427
  %v2563 = vunpack.c.l.b16 %v2428
  %v2564 = vunpack.c.l.b16 %v2429
  %v2565 = vunpack.c.l.b16 %v2430
  %v2566 = vunpack.c.l.b16 %v2431
  %v2567 = vunpack.c.l.b16 %v2432
  %v2568 = vunpack.c.l.b16 %v2433
  %v2569 = vunpack.c.l.b16 %v2434
  %v2570 = vunpack.c.l.b16 %v2435
  %v2571 = vunpack.c.l.b16 %v2436
  %v2572 = vunpack.c.l.b16 %v2437
  %v2573 = vunpack.c.l.b16 %v2438
  %v2574 = vunpack.c.l.b16 %v2439
  %v2575 = vunpack.c.l.b16 %v2440
  %v2576 = vunpack.c.l.b16 %v2441
  %v2577 = vunpack.c.l.b16 %v2442
  %v2578 = vunpack.c.l.b16 %v2443
  %v2579 = vunpack.c.l.b16 %v2444
  %v2580 = vunpack.c.l.b16 %v2445
  %v2581 = vunpack.c.l.b16 %v2446
  %v2582 = vunpack.c.l.b16 %v2447
  %v2583 = vunpack.c.l.b16 %v2448
  %v2584 = vunpack.c.l.b16 %v2449
  %v2585 = vunpack.c.l.b16 %v2450
  %v2586 = vunpack.c.l.b16 %v2451
  %v2587 = vunpack.c.l.b16 %v2452
  %v2588 = vunpack.c.l.b16 %v2453
  %v2589 = vunpack.c.l.b16 %v2454
  %v2590 = vunpack.c.l.b16 %v2455
  %v2591 = vunpack.c.l.b16 %v2456
  %v2592 = vunpack.c.l.b16 %v2457
  %v2593 = vunpack.c.l.b16 %v2458
  %v2594 = vunpack.c.l.b16 %v2459
  %v2595 = vunpack.c.l.b16 %v2460
  %v2596 = vunpack.c.l.b16 %v2461
  %v2597 = vunpack.c.l.b16 %v2462
  %v2598 = vunpack.c.l.b16 %v2463
  %v2599 = vunpack.c.l.b16 %v2464
  %v2600 = vunpack.c.l.b16 %v2465
  %v2601 = vunpack.c.l.b16 %v2466
  %v2602 = vunpack.c.l.b16 %v2467
  %v2603 = vunpack.c.l.b16 %v2468
  %v2604 = vunpack.c.l.b16 %v2469
  %v2605 = vunpack.c.l.b16 %v2470
  %v2606 = vunpack.c.l.b16 %v2471
  %v2607 = vunpack.c.l.b16 %v2472
  %v2608 = vunpack.c.l.b16 %v2473
  %v2609 = vunpack.c.l.b16 %v2474
  %v2610 = vunpack.c.l.b16 %v2475
  %v2611 = vunpack.c.l.b16 %v2476
  %v2612 = vunpack.c.l.b16 %v2477
  %v2613 = vunpack.c.l.b16 %v2478
  %v2614 = vunpack.c.l.b16 %v2479
  %v2615 = vunpack.c.l.b16 %v2480
  %v2616 = vunpack.c.l.b16 %v2481
  %v2617 = vunpack.c.l.b16 %v2482
  %v2618 = vunpack.c.l.b16 %v2483
  %v2619 = vunpack.c.l.b16 %v2484
  %v2620 = vpack.c.b16 %v2557, %v2556
  %v2621 = vpack.c.b16 %v2559, %v2558
  %v2622 = vpack.c.b16 %v2561, %v2560
  %v2623 = vpack.c.b16 %v2563, %v2562
  %v2624 = vpack.c.b16 %v2565, %v2564
  %v2625 = vpack.c.b16 %v2567, %v2566
  %v2626 = vpack.c.b16 %v2569, %v2568
  %v2627 = vpack.c.b16 %v2571, %v2570
  %v2628 = vpack.c.b16 %v2573, %v2572
  %v2629 = vpack.c.b16 %v2575, %v2574
  %v2630 = vpack.c.b16 %v2577, %v2576
  %v2631 = vpack.c.b16 %v2579, %v2578
  %v2632 = vpack.c.b16 %v2581, %v2580
  %v2633 = vpack.c.b16 %v2583, %v2582
  %v2634 = vpack.c.b16 %v2585, %v2584
  %v2635 = vpack.c.b16 %v2587, %v2586
  %v2636 = vpack.c.b16 %v2589, %v2588
  %v2637 = vpack.c.b16 %v2591, %v2590
  %v2638 = vpack.c.b16 %v2593, %v2592
  %v2639 = vpack.c.b16 %v2595, %v2594
  %v2640 = vpack.c.b16 %v2597, %v2596
  %v2641 = vpack.c.b16 %v2599, %v2598
  %v2642 = vpack.c.b16 %v2601, %v2600
  %v2643 = vpack.c.b16 %v2603, %v2602
  %v2644 = vpack.c.b16 %v2605, %v2604
  %v2645 = vpack.c.b16 %v2607, %v2606
  %v2646 = vpack.c.b16 %v2609, %v2608
  %v2647 = vpack.c.b16 %v2611, %v2610
  %v2648 = vpack.c.b16 %v2613, %v2612
  %v2649 = vpack.c.b16 %v2615, %v2614
  %v2650 = vpack.c.b16 %v2617, %v2616
  %v2651 = vpack.c.b16 %v2619, %v2618
  %2684 = vmatprep.subr.bf16.mxu0 0
  %2685 = vmatpush1.bf16.msra.mxu0 %v2627
  %2686 = vmatprep.subr.bf16.mxu0 0
  %2687 = vmatpush1.bf16.msra.mxu0 %v2626
  %2688 = vmatprep.subr.bf16.mxu0 0
  %2689 = vmatpush1.bf16.msra.mxu0 %v2625
  %2690 = vmatprep.subr.bf16.mxu0 0
  %2691 = vmatpush1.bf16.msra.mxu0 %v2624
  %2692 = vmatprep.subr.bf16.mxu0 0
  %2693 = vmatpush1.bf16.msra.mxu0 %v2623
  %2694 = vmatprep.subr.bf16.mxu0 0
  %2695 = vmatpush1.bf16.msra.mxu0 %v2622
  %2696 = vmatprep.subr.bf16.mxu0 0
  %2697 = vmatpush1.bf16.msra.mxu0 %v2621
  %2698 = vmatprep.subr.bf16.mxu0 0
  %2699 = vmatpush1.bf16.msra.mxu0 %v2620
  %2700 = vmatprep.subr.bf16.mxu0 0
  %2701 = vmatpush2.bf16.msra.mxu0 %v2635
  %2702 = vmatprep.subr.bf16.mxu0 0
  %2703 = vmatpush2.bf16.msra.mxu0 %v2634
  %2704 = vmatprep.subr.bf16.mxu0 0
  %2705 = vmatpush2.bf16.msra.mxu0 %v2633
  %2706 = vmatprep.subr.bf16.mxu0 0
  %2707 = vmatpush2.bf16.msra.mxu0 %v2632
  %2708 = vmatprep.subr.bf16.mxu0 0
  %2709 = vmatpush2.bf16.msra.mxu0 %v2631
  %2710 = vmatprep.subr.bf16.mxu0 0
  %2711 = vmatpush2.bf16.msra.mxu0 %v2630
  %2712 = vmatprep.subr.bf16.mxu0 0
  %2713 = vmatpush2.bf16.msra.mxu0 %v2629
  %2714 = vmatprep.subr.bf16.mxu0 0
  %2715 = vmatpush2.bf16.msra.mxu0 %v2628
  %2716 = vmatprep.mubr.bf16.mxu0 %v2418
  %2717 = vmatmul.mubr.bf16.gmra.mxu0 %v2417
  %v2718 = vpop.f32.mrf.mxu0
  %v2719 = vadd.f32 %v2490, %v2718
  %v2720 = vpop.f32.mrf.mxu0
  %v2721 = vpop.f32.mrf.mxu0
  %v2722 = vpop.f32.mrf.mxu0
  %2723 = vdwg.mxu0
  %2724 = vmatprep.subr.bf16.mxu0 0
  %2725 = vmatpush1.bf16.msra.mxu0 %v2643
  %2726 = vmatprep.subr.bf16.mxu0 0
  %2727 = vmatpush1.bf16.msra.mxu0 %v2642
  %2728 = vmatprep.subr.bf16.mxu0 0
  %2729 = vmatpush1.bf16.msra.mxu0 %v2641
  %2730 = vmatprep.subr.bf16.mxu0 0
  %2731 = vmatpush1.bf16.msra.mxu0 %v2640
  %2732 = vmatprep.subr.bf16.mxu0 0
  %2733 = vmatpush1.bf16.msra.mxu0 %v2639
  %2734 = vmatprep.subr.bf16.mxu0 0
  %2735 = vmatpush1.bf16.msra.mxu0 %v2638
  %2736 = vmatprep.subr.bf16.mxu0 0
  %2737 = vmatpush1.bf16.msra.mxu0 %v2637
  %2738 = vmatprep.subr.bf16.mxu0 0
  %2739 = vmatpush1.bf16.msra.mxu0 %v2636
  %2740 = vmatprep.subr.bf16.mxu0 0
  %2741 = vmatpush2.bf16.msra.mxu0 %v2651
  %2742 = vmatprep.subr.bf16.mxu0 0
  %2743 = vmatpush2.bf16.msra.mxu0 %v2650
  %2744 = vmatprep.subr.bf16.mxu0 0
  %2745 = vmatpush2.bf16.msra.mxu0 %v2649
  %2746 = vmatprep.subr.bf16.mxu0 0
  %2747 = vmatpush2.bf16.msra.mxu0 %v2648
  %2748 = vmatprep.subr.bf16.mxu0 0
  %2749 = vmatpush2.bf16.msra.mxu0 %v2647
  %2750 = vmatprep.subr.bf16.mxu0 0
  %2751 = vmatpush2.bf16.msra.mxu0 %v2646
  %2752 = vmatprep.subr.bf16.mxu0 0
  %2753 = vmatpush2.bf16.msra.mxu0 %v2645
  %2754 = vmatprep.subr.bf16.mxu0 0
  %2755 = vmatpush2.bf16.msra.mxu0 %v2644
  %2756 = vmatprep.mubr.bf16.mxu0 %v2420
  %2757 = vmatmul.mubr.bf16.gmra.mxu0 %v2419
  %v2758 = vpop.f32.mrf.mxu0
  %v2759 = vadd.f32 %v2719, %v2758
  %v2760 = vpop.f32.mrf.mxu0
  %v2761 = vpop.f32.mrf.mxu0
  %v2762 = vpop.f32.mrf.mxu0
  %2763 = vdwg.mxu0
  %2764 = vst [vmem:[%s5] sm:$0xff] %v2759
  // Predicated region
  $region22: #{card_classifier_forward.3} parent=0 // pred_check
    _
  $region23: #{card_classifier_forward.3} parent=0 // pred_check_branch
    %2766 = sbr.rel (0) target = $region25
  $region24: #{card_classifier_forward.3} parent=0 // pred_region
    _
  $region25: #{card_classifier_forward.3} parent=0 // pred_fallthru
    _
  // Predicated region
  $region26: #{card_classifier_forward.3} parent=0 // pred_check
    _
  $region27: #{card_classifier_forward.3} parent=0 // pred_check_branch
    %2768 = sbr.rel (0) target = $region29
  $region28: #{card_classifier_forward.3} parent=0 // pred_region
    _
  $region29: #{card_classifier_forward.3} parent=0 // pred_fallthru
    _

</llo_original>
